<compile_context>
chip_gen: v7x
topology: tpu7x:2x2x1
jax: 0.10.0
libtpu: 0.0.40
codegen_flags: <defaults>
</compile_context>

<pallas_src>
from functools import partial

import jax
import jax.numpy as jnp
from jax.experimental import pallas as pl
from jax.experimental.pallas import tpu as pltpu


def _round_up(n, m):
    return ((n + m - 1) // m) * m


def _lstm_latent2_kernel(x_ref,                       # (T, Bp, Dp) f32, VMEM
                         w1_ref, b1_ref,              # (Dp+H1p, 4H1p) bf16, (1, 4H1p) f32
                         b2_ref, b3_ref,              # (1, 4H2p), (1, 4H3p) f32
                         blc_ref,                     # (1, Dp) f32
                         w2_hbm, w3_hbm, wlc_hbm,     # bf16, memory_space=ANY
                         out_ref,                     # (T+future, Bp, Dp) f32
                         gx1_ref,                     # VMEM scratch (T, Bp, 4H1p) f32
                         w2_ref, w3_ref, wlc_ref,     # VMEM scratch, bf16
                         sem):                        # DMA sems (3,)
    T, Bp, Dp = x_ref.shape
    T_total = out_ref.shape[0]
    future = T_total - T

    H1p = w1_ref.shape[1] // 4
    H2p = w2_ref.shape[1] // 4
    H3p = w3_ref.shape[1] // 4
    bf16 = jnp.bfloat16

    # Kick off the layer-2/3/output-linear weight DMAs so they stream into
    # VMEM while the gx1 precompute and step-0 layer-1 work run.
    cp_w2 = pltpu.make_async_copy(w2_hbm, w2_ref, sem.at[0]); cp_w2.start()
    cp_w3 = pltpu.make_async_copy(w3_hbm, w3_ref, sem.at[1]); cp_w3.start()
    cp_wl = pltpu.make_async_copy(wlc_hbm, wlc_ref, sem.at[2]); cp_wl.start()

    # Hoist the small bias broadcasts out of the recurrence (JAX does not CSE
    # broadcast_in_dim).
    b1 = jnp.broadcast_to(b1_ref[...], (Bp, 4 * H1p))
    b2 = jnp.broadcast_to(b2_ref[...], (Bp, 4 * H2p))
    b3 = jnp.broadcast_to(b3_ref[...], (Bp, 4 * H3p))
    blc = jnp.broadcast_to(blc_ref[...], (Bp, Dp))

    # Precompute the layer-1 input projection for ALL real timesteps with one
    # big matmul (b1 folded in) and park it in VMEM scratch so it does not
    # occupy half the register file across the unrolled loop.
    x_all = x_ref[...].reshape(T * Bp, Dp).astype(bf16)
    gx1_ref[...] = (jnp.dot(x_all, w1_ref[pl.ds(0, Dp), :],
                            preferred_element_type=jnp.float32)
                    + b1_ref[...]).reshape(T, Bp, 4 * H1p)

    def sigmoid(v):
        # One EUP push (tanh) instead of exp + reciprocal.
        return 0.5 * jnp.tanh(0.5 * v) + 0.5

    def gates_to_hc(gates, c, Hp):
        # nn.LSTMCell gate order (i, f, g, o); each slice is 128-lane aligned.
        i = sigmoid(gates[:, 0 * Hp:1 * Hp])
        f = sigmoid(gates[:, 1 * Hp:2 * Hp])
        g = jnp.tanh(gates[:, 2 * Hp:3 * Hp])
        o = sigmoid(gates[:, 3 * Hp:4 * Hp])
        c_new = f * c + i * g
        h_new = o * jnp.tanh(c_new)
        return h_new, c_new

    def upper_layers(h1, st):
        # Layers 2 and 3 use a single fused [x, h] @ [Wih; Whh] matmul each;
        # the two output linears are pre-composed into one.
        h2, c2, h3, c3 = st
        g2 = jnp.dot(jnp.concatenate([h1, h2], axis=-1).astype(bf16),
                     w2_ref[...], preferred_element_type=jnp.float32) + b2
        h2, c2 = gates_to_hc(g2, c2, H2p)
        g3 = jnp.dot(jnp.concatenate([h2, h3], axis=-1).astype(bf16),
                     w3_ref[...], preferred_element_type=jnp.float32) + b3
        h3, c3 = gates_to_hc(g3, c3, H3p)
        out = jnp.dot(h3.astype(bf16), wlc_ref[...],
                      preferred_element_type=jnp.float32) + blc
        return out, (h2, c2, h3, c3)

    h1 = jnp.zeros((Bp, H1p), jnp.float32)
    c1 = jnp.zeros((Bp, H1p), jnp.float32)
    st = (jnp.zeros((Bp, H2p), jnp.float32), jnp.zeros((Bp, H2p), jnp.float32),
          jnp.zeros((Bp, H3p), jnp.float32), jnp.zeros((Bp, H3p), jnp.float32))
    out = jnp.zeros((Bp, Dp), jnp.float32)

    # Phase 1: real timesteps (fully unrolled; T is small and static).
    for t in range(T):
        g1 = gx1_ref[t] + jnp.dot(h1.astype(bf16), w1_ref[pl.ds(Dp, H1p), :],
                                  preferred_element_type=jnp.float32)
        h1, c1 = gates_to_hc(g1, c1, H1p)
        if t == 0:
            # First use of the manually-DMA'd weights is in upper_layers.
            cp_w2.wait(); cp_w3.wait(); cp_wl.wait()
        out, st = upper_layers(h1, st)
        out_ref[t] = out

    # Phase 2: autoregressive future steps — feed the previous output back in.
    for i in range(future):
        g1 = jnp.dot(jnp.concatenate([out, h1], axis=-1).astype(bf16),
                     w1_ref[...], preferred_element_type=jnp.float32) + b1
        h1, c1 = gates_to_hc(g1, c1, H1p)
        out, st = upper_layers(h1, st)
        out_ref[T + i] = out


def pack_params(params, *, n_hidden, dim_latent):
    """One-time weight packing: per-gate 128-lane padding, [Wih; Whh] stacking,
    output-linear pre-composition, bf16 weight storage (biases stay f32)."""
    H1, H2, H3 = n_hidden // 2, n_hidden, n_hidden * 2
    D = dim_latent
    f32, bf16 = jnp.float32, jnp.bfloat16
    Dp, H1p, H2p, H3p = (_round_up(v, 128) for v in (D, H1, H2, H3))

    def pad_gate_cols(w, rows, rows_p, H, Hp):
        # Pad per-gate so each of (i, f, g, o) starts on a 128-lane boundary.
        w4 = w.astype(f32).reshape(rows, 4, H)
        out = jnp.zeros((rows_p, 4, Hp), f32).at[:rows, :, :H].set(w4)
        return out.reshape(rows_p, 4 * Hp)

    def pack_lstm(wih, whh, b, in_dim, in_p, H, Hp):
        # Stack [Wih; Whh] so the kernel can do one fused [x, h] matmul.
        w = jnp.concatenate([pad_gate_cols(wih, in_dim, in_p, H, Hp),
                             pad_gate_cols(whh, H, Hp, H, Hp)], axis=0)
        return w.astype(bf16), pad_gate_cols(b, 1, 1, H, Hp)

    def pad2(w, r, rp, c, cp):
        return jnp.zeros((rp, cp), f32).at[:r, :c].set(w.astype(f32))

    # Pre-compose the two output linears (no nonlinearity between them).
    hp = jax.lax.Precision.HIGHEST
    wlc = jnp.dot(params["wl1"], params["wl2"], precision=hp)
    blc = jnp.dot(params["bl1"], params["wl2"], precision=hp) + params["bl2"]

    w1, b1 = pack_lstm(params["wih1"], params["whh1"], params["b1"], D, Dp, H1, H1p)
    w2, b2 = pack_lstm(params["wih2"], params["whh2"], params["b2"], H1, H1p, H2, H2p)
    w3, b3 = pack_lstm(params["wih3"], params["whh3"], params["b3"], H2, H2p, H3, H3p)
    wlc_p = pad2(wlc, H3, H3p, D, Dp).astype(bf16)
    blc_p = pad2(blc, 1, 1, D, Dp)
    return dict(w1=w1, b1=b1, w2=w2, b2=b2, w3=w3, b3=b3, wlc=wlc_p, blc=blc_p)


@partial(jax.jit, static_argnames=("future",))
def lstm_latent_2_forward(X, packed, *, future=0):
    """X: (B, T, dim_latent). Returns (T+future, B, dim_latent) like torch.stack."""
    B, T, D = X.shape
    f32 = jnp.float32
    Bp = _round_up(B, 8)
    Dp = packed["wlc"].shape[1]
    H1p = packed["w1"].shape[1] // 4
    T_total = T + future

    # Time-major, padded input (padded rows/lanes are zero and stay zero
    # through the recurrence).
    x_tm = jnp.zeros((T, Bp, Dp), f32).at[:, :B, :D].set(
        jnp.transpose(X, (1, 0, 2)).astype(f32))

    vmem = pl.BlockSpec(memory_space=pltpu.MemorySpace.VMEM)
    hbm = pl.BlockSpec(memory_space=pl.ANY)

    out_padded = pl.pallas_call(
        _lstm_latent2_kernel,
        out_shape=jax.ShapeDtypeStruct((T_total, Bp, Dp), f32),
        in_specs=[vmem, vmem, vmem, vmem, vmem, vmem, hbm, hbm, hbm],
        out_specs=vmem,
        scratch_shapes=[
            pltpu.VMEM((T, Bp, 4 * H1p), f32),               # gx1
            pltpu.VMEM(packed["w2"].shape, jnp.bfloat16),    # w2
            pltpu.VMEM(packed["w3"].shape, jnp.bfloat16),    # w3
            pltpu.VMEM(packed["wlc"].shape, jnp.bfloat16),   # composed linear
            pltpu.SemaphoreType.DMA((3,)),
        ],
    )(x_tm, packed["w1"], packed["b1"], packed["b2"], packed["b3"],
      packed["blc"], packed["w2"], packed["w3"], packed["wlc"])

    return out_padded[:, :B, :D]


def init_params(key, *, n_hidden, dim_latent):
    """Deterministic synthetic init (uniform, PyTorch-like scales).
    Weight layout is pre-transposed: (in_features, out_features)."""
    H1, H2, H3 = n_hidden // 2, n_hidden, n_hidden * 2
    ks = iter(jax.random.split(key, 32))

    def u(shape, scale):
        return jax.random.uniform(next(ks), shape, jnp.float32, -scale, scale)

    def lstm(in_dim, H):
        s = float(H) ** -0.5
        wih = u((in_dim, 4 * H), s)
        whh = u((H, 4 * H), s)
        b = u((1, 4 * H), s) + u((1, 4 * H), s)   # b_ih + b_hh folded together
        return wih, whh, b

    def linear(in_dim, out_dim):
        s = float(in_dim) ** -0.5
        return u((in_dim, out_dim), s), u((1, out_dim), s)

    wih1, whh1, b1 = lstm(dim_latent, H1)
    wih2, whh2, b2 = lstm(H1, H2)
    wih3, whh3, b3 = lstm(H2, H3)
    wl1, bl1 = linear(H3, n_hidden)
    wl2, bl2 = linear(n_hidden, dim_latent)
    return dict(wih1=wih1, whh1=whh1, b1=b1,
                wih2=wih2, whh2=whh2, b2=b2,
                wih3=wih3, whh3=whh3, b3=b3,
                wl1=wl1, bl1=bl1, wl2=wl2, bl2=bl2)


def reference_forward(X, params, *, n_hidden, dim_latent, future=0):
    """Pure-JAX reference mirroring the PyTorch forward (Precision.HIGHEST)."""
    B, T, D = X.shape
    H1, H2, H3 = n_hidden // 2, n_hidden, n_hidden * 2
    hp = jax.lax.Precision.HIGHEST

    def cell(x, h, c, wih, whh, b):
        H = h.shape[-1]
        gates = (jnp.dot(x, wih, precision=hp)
                 + jnp.dot(h, whh, precision=hp) + b)
        i = jax.nn.sigmoid(gates[:, 0 * H:1 * H])
        f = jax.nn.sigmoid(gates[:, 1 * H:2 * H])
        g = jnp.tanh(gates[:, 2 * H:3 * H])
        o = jax.nn.sigmoid(gates[:, 3 * H:4 * H])
        c_new = f * c + i * g
        return o * jnp.tanh(c_new), c_new

    h1 = jnp.zeros((B, H1), jnp.float32); c1 = jnp.zeros((B, H1), jnp.float32)
    h2 = jnp.zeros((B, H2), jnp.float32); c2 = jnp.zeros((B, H2), jnp.float32)
    h3 = jnp.zeros((B, H3), jnp.float32); c3 = jnp.zeros((B, H3), jnp.float32)
    out = None
    outs = []
    for t in range(T + future):
        x_t = X[:, t, :] if t < T else out
        h1, c1 = cell(x_t, h1, c1, params["wih1"], params["whh1"], params["b1"])
        h2, c2 = cell(h1, h2, c2, params["wih2"], params["whh2"], params["b2"])
        h3, c3 = cell(h2, h3, c3, params["wih3"], params["whh3"], params["b3"])
        z = jnp.dot(h3, params["wl1"], precision=hp) + params["bl1"]
        out = jnp.dot(z, params["wl2"], precision=hp) + params["bl2"]
        outs.append(out)
    return jnp.stack(outs)


if __name__ == "__main__":
    n_hidden, dim_latent = 64, 64      # scaled-down vs. defaults (256, 64)
    B, T, future = 4, 8, 2

    key = jax.random.PRNGKey(0)
    k_param, k_x = jax.random.split(key)
    params = init_params(k_param, n_hidden=n_hidden, dim_latent=dim_latent)
    packed = pack_params(params, n_hidden=n_hidden, dim_latent=dim_latent)
    X = jax.random.normal(k_x, (B, T, dim_latent), jnp.float32)

    out = lstm_latent_2_forward(X, packed, future=future)
    out = jax.block_until_ready(out)
    assert out.shape == (T + future, B, dim_latent), out.shape

    ref = reference_forward(X, params, n_hidden=n_hidden,
                            dim_latent=dim_latent, future=future)
    max_err = float(jnp.max(jnp.abs(out - ref)))
    # bf16 weight storage / single-pass MXU vs the Precision.HIGHEST reference
    # gives ~1e-3-level error; 4e-3 is the validated bound.
    assert max_err < 4e-3, f"max abs err {max_err}"

    print("KERNEL_OK")
</pallas_src>

<mosaic_0001>
module attributes {stable_mosaic.version = 11 : i64} {
  func.func @_lstm_latent2_kernel(%arg0: memref<8x8x128xf32, #tpu.memory_space<vmem>>, %arg1: memref<256x512xbf16, #tpu.memory_space<vmem>>, %arg2: memref<1x512xf32, #tpu.memory_space<vmem>>, %arg3: memref<1x512xf32, #tpu.memory_space<vmem>>, %arg4: memref<1x512xf32, #tpu.memory_space<vmem>>, %arg5: memref<1x128xf32, #tpu.memory_space<vmem>>, %arg6: memref<256x512xbf16, #tpu.memory_space<any>>, %arg7: memref<256x512xbf16, #tpu.memory_space<any>>, %arg8: memref<128x128xbf16, #tpu.memory_space<any>>, %arg9: memref<10x8x128xf32, #tpu.memory_space<vmem>>, %arg10: memref<8x8x512xf32, #tpu.memory_space<vmem>>, %arg11: memref<256x512xbf16, #tpu.memory_space<vmem>>, %arg12: memref<256x512xbf16, #tpu.memory_space<vmem>>, %arg13: memref<128x128xbf16, #tpu.memory_space<vmem>>, %arg14: memref<3x!tpu.dma_semaphore, #tpu.memory_space<semaphore_mem>>) attributes {dimension_semantics = [], scalar_prefetch = 0 : i64, scratch_operands = 5 : i64, tpu.core_type = #tpu.core_type<tc>} {
    %c0_i32 = arith.constant 0 : i32
    %0 = tpu.memref_slice %arg14[%c0_i32] : memref<3x!tpu.dma_semaphore, #tpu.memory_space<semaphore_mem>> -> memref<1x!tpu.dma_semaphore, #tpu.memory_space<semaphore_mem>>
    %1 = tpu.memref_squeeze %0 : memref<1x!tpu.dma_semaphore, #tpu.memory_space<semaphore_mem>> -> memref<!tpu.dma_semaphore, #tpu.memory_space<semaphore_mem>>
    tpu.enqueue_dma source(%arg6 : memref<256x512xbf16, #tpu.memory_space<any>>) target(%arg11 : memref<256x512xbf16, #tpu.memory_space<vmem>>) target_semaphore(%1 : memref<!tpu.dma_semaphore, #tpu.memory_space<semaphore_mem>>)
    %c1_i32 = arith.constant 1 : i32
    %2 = tpu.memref_slice %arg14[%c1_i32] : memref<3x!tpu.dma_semaphore, #tpu.memory_space<semaphore_mem>> -> memref<1x!tpu.dma_semaphore, #tpu.memory_space<semaphore_mem>>
    %3 = tpu.memref_squeeze %2 : memref<1x!tpu.dma_semaphore, #tpu.memory_space<semaphore_mem>> -> memref<!tpu.dma_semaphore, #tpu.memory_space<semaphore_mem>>
    tpu.enqueue_dma source(%arg7 : memref<256x512xbf16, #tpu.memory_space<any>>) target(%arg12 : memref<256x512xbf16, #tpu.memory_space<vmem>>) target_semaphore(%3 : memref<!tpu.dma_semaphore, #tpu.memory_space<semaphore_mem>>)
    %c2_i32 = arith.constant 2 : i32
    %4 = tpu.memref_slice %arg14[%c2_i32] : memref<3x!tpu.dma_semaphore, #tpu.memory_space<semaphore_mem>> -> memref<1x!tpu.dma_semaphore, #tpu.memory_space<semaphore_mem>>
    %5 = tpu.memref_squeeze %4 : memref<1x!tpu.dma_semaphore, #tpu.memory_space<semaphore_mem>> -> memref<!tpu.dma_semaphore, #tpu.memory_space<semaphore_mem>>
    tpu.enqueue_dma source(%arg8 : memref<128x128xbf16, #tpu.memory_space<any>>) target(%arg13 : memref<128x128xbf16, #tpu.memory_space<vmem>>) target_semaphore(%5 : memref<!tpu.dma_semaphore, #tpu.memory_space<semaphore_mem>>)
    %c0 = arith.constant 0 : index
    %c0_0 = arith.constant 0 : index
    %6 = vector.load %arg2[%c0, %c0_0] : memref<1x512xf32, #tpu.memory_space<vmem>>, vector<1x512xf32>
    %7 = vector.shape_cast %6 : vector<1x512xf32> to vector<1x512xf32>
    %8 = vector.broadcast %7 : vector<1x512xf32> to vector<8x512xf32>
    %c0_1 = arith.constant 0 : index
    %c0_2 = arith.constant 0 : index
    %9 = vector.load %arg3[%c0_1, %c0_2] : memref<1x512xf32, #tpu.memory_space<vmem>>, vector<1x512xf32>
    %10 = vector.shape_cast %9 : vector<1x512xf32> to vector<1x512xf32>
    %11 = vector.broadcast %10 : vector<1x512xf32> to vector<8x512xf32>
    %c0_3 = arith.constant 0 : index
    %c0_4 = arith.constant 0 : index
    %12 = vector.load %arg4[%c0_3, %c0_4] : memref<1x512xf32, #tpu.memory_space<vmem>>, vector<1x512xf32>
    %13 = vector.shape_cast %12 : vector<1x512xf32> to vector<1x512xf32>
    %14 = vector.broadcast %13 : vector<1x512xf32> to vector<8x512xf32>
    %c0_5 = arith.constant 0 : index
    %c0_6 = arith.constant 0 : index
    %15 = vector.load %arg5[%c0_5, %c0_6] : memref<1x128xf32, #tpu.memory_space<vmem>>, vector<1x128xf32>
    %16 = vector.shape_cast %15 : vector<1x128xf32> to vector<1x128xf32>
    %17 = vector.broadcast %16 : vector<1x128xf32> to vector<8x128xf32>
    %c0_7 = arith.constant 0 : index
    %c0_8 = arith.constant 0 : index
    %c0_9 = arith.constant 0 : index
    %18 = vector.load %arg0[%c0_7, %c0_8, %c0_9] : memref<8x8x128xf32, #tpu.memory_space<vmem>>, vector<8x8x128xf32>
    %19 = vector.shape_cast %18 : vector<8x8x128xf32> to vector<64x128xf32>
    %20 = arith.truncf %19 : vector<64x128xf32> to vector<64x128xbf16>
    %c0_10 = arith.constant 0 : index
    %c0_11 = arith.constant 0 : index
    %21 = vector.load %arg1[%c0_10, %c0_11] : memref<256x512xbf16, #tpu.memory_space<vmem>>, vector<128x512xbf16>
    %cst = arith.constant dense<0.000000e+00> : vector<64x512xf32>
    %22 = tpu.matmul %20, %21, %cst {dimension_numbers = #tpu.dot_dimension_numbers<[1], [0], [0], [1], [0, 0, 1, 1], [], []>} : vector<64x128xbf16>, vector<128x512xbf16>, vector<64x512xf32> -> vector<64x512xf32>
    %c0_12 = arith.constant 0 : index
    %c0_13 = arith.constant 0 : index
    %23 = vector.load %arg2[%c0_12, %c0_13] : memref<1x512xf32, #tpu.memory_space<vmem>>, vector<1x512xf32>
    %24 = vector.broadcast %23 : vector<1x512xf32> to vector<64x512xf32>
    %25 = arith.addf %22, %24 : vector<64x512xf32>
    %26 = vector.shape_cast %25 : vector<64x512xf32> to vector<8x8x512xf32>
    %c0_14 = arith.constant 0 : index
    %c0_15 = arith.constant 0 : index
    %c0_16 = arith.constant 0 : index
    %27 = vector.load %arg10[%c0_14, %c0_15, %c0_16] : memref<8x8x512xf32, #tpu.memory_space<vmem>>, vector<8x8x512xf32>
    tpu.vector_store %arg10[%c0_14, %c0_15, %c0_16], %26 {strides = array<i32>} : memref<8x8x512xf32, #tpu.memory_space<vmem>>, vector<8x8x512xf32>,
    %cst_17 = arith.constant 0.000000e+00 : f32
    %28 = vector.broadcast %cst_17 : f32 to vector<8x128xf32>
    %cst_18 = arith.constant 0.000000e+00 : f32
    %29 = vector.broadcast %cst_18 : f32 to vector<8x128xf32>
    %cst_19 = arith.constant 0.000000e+00 : f32
    %30 = vector.broadcast %cst_19 : f32 to vector<8x128xf32>
    %cst_20 = arith.constant 0.000000e+00 : f32
    %31 = vector.broadcast %cst_20 : f32 to vector<8x128xf32>
    %cst_21 = arith.constant 0.000000e+00 : f32
    %32 = vector.broadcast %cst_21 : f32 to vector<8x128xf32>
    %cst_22 = arith.constant 0.000000e+00 : f32
    %33 = vector.broadcast %cst_22 : f32 to vector<8x128xf32>
    %c0_23 = arith.constant 0 : index
    %c0_24 = arith.constant 0 : index
    %c0_25 = arith.constant 0 : index
    %34 = vector.load %arg10[%c0_23, %c0_24, %c0_25] : memref<8x8x512xf32, #tpu.memory_space<vmem>>, vector<1x8x512xf32>
    %35 = vector.shape_cast %34 : vector<1x8x512xf32> to vector<8x512xf32>
    %36 = arith.truncf %28 : vector<8x128xf32> to vector<8x128xbf16>
    %c128 = arith.constant 128 : index
    %c0_26 = arith.constant 0 : index
    %37 = vector.load %arg1[%c128, %c0_26] : memref<256x512xbf16, #tpu.memory_space<vmem>>, vector<128x512xbf16>
    %cst_27 = arith.constant dense<0.000000e+00> : vector<8x512xf32>
    %38 = tpu.matmul %36, %37, %cst_27 {dimension_numbers = #tpu.dot_dimension_numbers<[1], [0], [0], [1], [0, 0, 1, 1], [], []>} : vector<8x128xbf16>, vector<128x512xbf16>, vector<8x512xf32> -> vector<8x512xf32>
    %39 = arith.addf %35, %38 : vector<8x512xf32>
    %40 = vector.extract_strided_slice %39 {offsets = [0, 0], sizes = [8, 128], strides = [1, 1]} : vector<8x512xf32> to vector<8x128xf32>
    %cst_28 = arith.constant 5.000000e-01 : f32
    %41 = vector.broadcast %cst_28 : f32 to vector<8x128xf32>
    %42 = arith.mulf %41, %40 : vector<8x128xf32>
    %43 = math.tanh %42 : vector<8x128xf32>
    %cst_29 = arith.constant 5.000000e-01 : f32
    %44 = vector.broadcast %cst_29 : f32 to vector<8x128xf32>
    %45 = arith.mulf %44, %43 : vector<8x128xf32>
    %cst_30 = arith.constant 5.000000e-01 : f32
    %46 = vector.broadcast %cst_30 : f32 to vector<8x128xf32>
    %47 = arith.addf %45, %46 : vector<8x128xf32>
    %48 = vector.extract_strided_slice %39 {offsets = [0, 128], sizes = [8, 128], strides = [1, 1]} : vector<8x512xf32> to vector<8x128xf32>
    %cst_31 = arith.constant 5.000000e-01 : f32
    %49 = vector.broadcast %cst_31 : f32 to vector<8x128xf32>
    %50 = arith.mulf %49, %48 : vector<8x128xf32>
    %51 = math.tanh %50 : vector<8x128xf32>
    %cst_32 = arith.constant 5.000000e-01 : f32
    %52 = vector.broadcast %cst_32 : f32 to vector<8x128xf32>
    %53 = arith.mulf %52, %51 : vector<8x128xf32>
    %cst_33 = arith.constant 5.000000e-01 : f32
    %54 = vector.broadcast %cst_33 : f32 to vector<8x128xf32>
    %55 = arith.addf %53, %54 : vector<8x128xf32>
    %56 = vector.extract_strided_slice %39 {offsets = [0, 256], sizes = [8, 128], strides = [1, 1]} : vector<8x512xf32> to vector<8x128xf32>
    %57 = math.tanh %56 : vector<8x128xf32>
    %58 = vector.extract_strided_slice %39 {offsets = [0, 384], sizes = [8, 128], strides = [1, 1]} : vector<8x512xf32> to vector<8x128xf32>
    %cst_34 = arith.constant 5.000000e-01 : f32
    %59 = vector.broadcast %cst_34 : f32 to vector<8x128xf32>
    %60 = arith.mulf %59, %58 : vector<8x128xf32>
    %61 = math.tanh %60 : vector<8x128xf32>
    %cst_35 = arith.constant 5.000000e-01 : f32
    %62 = vector.broadcast %cst_35 : f32 to vector<8x128xf32>
    %63 = arith.mulf %62, %61 : vector<8x128xf32>
    %cst_36 = arith.constant 5.000000e-01 : f32
    %64 = vector.broadcast %cst_36 : f32 to vector<8x128xf32>
    %65 = arith.addf %63, %64 : vector<8x128xf32>
    %66 = arith.mulf %55, %29 : vector<8x128xf32>
    %67 = arith.mulf %47, %57 : vector<8x128xf32>
    %68 = arith.addf %66, %67 : vector<8x128xf32>
    %69 = math.tanh %68 : vector<8x128xf32>
    %70 = arith.mulf %65, %69 : vector<8x128xf32>
    %c0_i32_37 = arith.constant 0 : i32
    %71 = tpu.memref_slice %arg14[%c0_i32_37] : memref<3x!tpu.dma_semaphore, #tpu.memory_space<semaphore_mem>> -> memref<1x!tpu.dma_semaphore, #tpu.memory_space<semaphore_mem>>
    %72 = tpu.memref_squeeze %71 : memref<1x!tpu.dma_semaphore, #tpu.memory_space<semaphore_mem>> -> memref<!tpu.dma_semaphore, #tpu.memory_space<semaphore_mem>>
    tpu.wait_dma2 semaphore(%72 : memref<!tpu.dma_semaphore, #tpu.memory_space<semaphore_mem>>) src(%arg6 : memref<256x512xbf16, #tpu.memory_space<any>>) dst(%arg11 : memref<256x512xbf16, #tpu.memory_space<vmem>>)
    %c1_i32_38 = arith.constant 1 : i32
    %73 = tpu.memref_slice %arg14[%c1_i32_38] : memref<3x!tpu.dma_semaphore, #tpu.memory_space<semaphore_mem>> -> memref<1x!tpu.dma_semaphore, #tpu.memory_space<semaphore_mem>>
    %74 = tpu.memref_squeeze %73 : memref<1x!tpu.dma_semaphore, #tpu.memory_space<semaphore_mem>> -> memref<!tpu.dma_semaphore, #tpu.memory_space<semaphore_mem>>
    tpu.wait_dma2 semaphore(%74 : memref<!tpu.dma_semaphore, #tpu.memory_space<semaphore_mem>>) src(%arg7 : memref<256x512xbf16, #tpu.memory_space<any>>) dst(%arg12 : memref<256x512xbf16, #tpu.memory_space<vmem>>)
    %c2_i32_39 = arith.constant 2 : i32
    %75 = tpu.memref_slice %arg14[%c2_i32_39] : memref<3x!tpu.dma_semaphore, #tpu.memory_space<semaphore_mem>> -> memref<1x!tpu.dma_semaphore, #tpu.memory_space<semaphore_mem>>
    %76 = tpu.memref_squeeze %75 : memref<1x!tpu.dma_semaphore, #tpu.memory_space<semaphore_mem>> -> memref<!tpu.dma_semaphore, #tpu.memory_space<semaphore_mem>>
    tpu.wait_dma2 semaphore(%76 : memref<!tpu.dma_semaphore, #tpu.memory_space<semaphore_mem>>) src(%arg8 : memref<128x128xbf16, #tpu.memory_space<any>>) dst(%arg13 : memref<128x128xbf16, #tpu.memory_space<vmem>>)
    %77 = tpu.concatenate %70, %30 in 1 : vector<8x128xf32>, vector<8x128xf32> -> vector<8x256xf32>
    %78 = arith.truncf %77 : vector<8x256xf32> to vector<8x256xbf16>
    %c0_40 = arith.constant 0 : index
    %c0_41 = arith.constant 0 : index
    %79 = vector.load %arg11[%c0_40, %c0_41] : memref<256x512xbf16, #tpu.memory_space<vmem>>, vector<256x512xbf16>
    %cst_42 = arith.constant dense<0.000000e+00> : vector<8x512xf32>
    %80 = tpu.matmul %78, %79, %cst_42 {dimension_numbers = #tpu.dot_dimension_numbers<[1], [0], [0], [1], [0, 0, 1, 1], [], []>} : vector<8x256xbf16>, vector<256x512xbf16>, vector<8x512xf32> -> vector<8x512xf32>
    %81 = arith.addf %80, %11 : vector<8x512xf32>
    %82 = vector.extract_strided_slice %81 {offsets = [0, 0], sizes = [8, 128], strides = [1, 1]} : vector<8x512xf32> to vector<8x128xf32>
    %cst_43 = arith.constant 5.000000e-01 : f32
    %83 = vector.broadcast %cst_43 : f32 to vector<8x128xf32>
    %84 = arith.mulf %83, %82 : vector<8x128xf32>
    %85 = math.tanh %84 : vector<8x128xf32>
    %cst_44 = arith.constant 5.000000e-01 : f32
    %86 = vector.broadcast %cst_44 : f32 to vector<8x128xf32>
    %87 = arith.mulf %86, %85 : vector<8x128xf32>
    %cst_45 = arith.constant 5.000000e-01 : f32
    %88 = vector.broadcast %cst_45 : f32 to vector<8x128xf32>
    %89 = arith.addf %87, %88 : vector<8x128xf32>
    %90 = vector.extract_strided_slice %81 {offsets = [0, 128], sizes = [8, 128], strides = [1, 1]} : vector<8x512xf32> to vector<8x128xf32>
    %cst_46 = arith.constant 5.000000e-01 : f32
    %91 = vector.broadcast %cst_46 : f32 to vector<8x128xf32>
    %92 = arith.mulf %91, %90 : vector<8x128xf32>
    %93 = math.tanh %92 : vector<8x128xf32>
    %cst_47 = arith.constant 5.000000e-01 : f32
    %94 = vector.broadcast %cst_47 : f32 to vector<8x128xf32>
    %95 = arith.mulf %94, %93 : vector<8x128xf32>
    %cst_48 = arith.constant 5.000000e-01 : f32
    %96 = vector.broadcast %cst_48 : f32 to vector<8x128xf32>
    %97 = arith.addf %95, %96 : vector<8x128xf32>
    %98 = vector.extract_strided_slice %81 {offsets = [0, 256], sizes = [8, 128], strides = [1, 1]} : vector<8x512xf32> to vector<8x128xf32>
    %99 = math.tanh %98 : vector<8x128xf32>
    %100 = vector.extract_strided_slice %81 {offsets = [0, 384], sizes = [8, 128], strides = [1, 1]} : vector<8x512xf32> to vector<8x128xf32>
    %cst_49 = arith.constant 5.000000e-01 : f32
    %101 = vector.broadcast %cst_49 : f32 to vector<8x128xf32>
    %102 = arith.mulf %101, %100 : vector<8x128xf32>
    %103 = math.tanh %102 : vector<8x128xf32>
    %cst_50 = arith.constant 5.000000e-01 : f32
    %104 = vector.broadcast %cst_50 : f32 to vector<8x128xf32>
    %105 = arith.mulf %104, %103 : vector<8x128xf32>
    %cst_51 = arith.constant 5.000000e-01 : f32
    %106 = vector.broadcast %cst_51 : f32 to vector<8x128xf32>
    %107 = arith.addf %105, %106 : vector<8x128xf32>
    %108 = arith.mulf %97, %31 : vector<8x128xf32>
    %109 = arith.mulf %89, %99 : vector<8x128xf32>
    %110 = arith.addf %108, %109 : vector<8x128xf32>
    %111 = math.tanh %110 : vector<8x128xf32>
    %112 = arith.mulf %107, %111 : vector<8x128xf32>
    %113 = tpu.concatenate %112, %32 in 1 : vector<8x128xf32>, vector<8x128xf32> -> vector<8x256xf32>
    %114 = arith.truncf %113 : vector<8x256xf32> to vector<8x256xbf16>
    %c0_52 = arith.constant 0 : index
    %c0_53 = arith.constant 0 : index
    %115 = vector.load %arg12[%c0_52, %c0_53] : memref<256x512xbf16, #tpu.memory_space<vmem>>, vector<256x512xbf16>
    %cst_54 = arith.constant dense<0.000000e+00> : vector<8x512xf32>
    %116 = tpu.matmul %114, %115, %cst_54 {dimension_numbers = #tpu.dot_dimension_numbers<[1], [0], [0], [1], [0, 0, 1, 1], [], []>} : vector<8x256xbf16>, vector<256x512xbf16>, vector<8x512xf32> -> vector<8x512xf32>
    %117 = arith.addf %116, %14 : vector<8x512xf32>
    %118 = vector.extract_strided_slice %117 {offsets = [0, 0], sizes = [8, 128], strides = [1, 1]} : vector<8x512xf32> to vector<8x128xf32>
    %cst_55 = arith.constant 5.000000e-01 : f32
    %119 = vector.broadcast %cst_55 : f32 to vector<8x128xf32>
    %120 = arith.mulf %119, %118 : vector<8x128xf32>
    %121 = math.tanh %120 : vector<8x128xf32>
    %cst_56 = arith.constant 5.000000e-01 : f32
    %122 = vector.broadcast %cst_56 : f32 to vector<8x128xf32>
    %123 = arith.mulf %122, %121 : vector<8x128xf32>
    %cst_57 = arith.constant 5.000000e-01 : f32
    %124 = vector.broadcast %cst_57 : f32 to vector<8x128xf32>
    %125 = arith.addf %123, %124 : vector<8x128xf32>
    %126 = vector.extract_strided_slice %117 {offsets = [0, 128], sizes = [8, 128], strides = [1, 1]} : vector<8x512xf32> to vector<8x128xf32>
    %cst_58 = arith.constant 5.000000e-01 : f32
    %127 = vector.broadcast %cst_58 : f32 to vector<8x128xf32>
    %128 = arith.mulf %127, %126 : vector<8x128xf32>
    %129 = math.tanh %128 : vector<8x128xf32>
    %cst_59 = arith.constant 5.000000e-01 : f32
    %130 = vector.broadcast %cst_59 : f32 to vector<8x128xf32>
    %131 = arith.mulf %130, %129 : vector<8x128xf32>
    %cst_60 = arith.constant 5.000000e-01 : f32
    %132 = vector.broadcast %cst_60 : f32 to vector<8x128xf32>
    %133 = arith.addf %131, %132 : vector<8x128xf32>
    %134 = vector.extract_strided_slice %117 {offsets = [0, 256], sizes = [8, 128], strides = [1, 1]} : vector<8x512xf32> to vector<8x128xf32>
    %135 = math.tanh %134 : vector<8x128xf32>
    %136 = vector.extract_strided_slice %117 {offsets = [0, 384], sizes = [8, 128], strides = [1, 1]} : vector<8x512xf32> to vector<8x128xf32>
    %cst_61 = arith.constant 5.000000e-01 : f32
    %137 = vector.broadcast %cst_61 : f32 to vector<8x128xf32>
    %138 = arith.mulf %137, %136 : vector<8x128xf32>
    %139 = math.tanh %138 : vector<8x128xf32>
    %cst_62 = arith.constant 5.000000e-01 : f32
    %140 = vector.broadcast %cst_62 : f32 to vector<8x128xf32>
    %141 = arith.mulf %140, %139 : vector<8x128xf32>
    %cst_63 = arith.constant 5.000000e-01 : f32
    %142 = vector.broadcast %cst_63 : f32 to vector<8x128xf32>
    %143 = arith.addf %141, %142 : vector<8x128xf32>
    %144 = arith.mulf %133, %33 : vector<8x128xf32>
    %145 = arith.mulf %125, %135 : vector<8x128xf32>
    %146 = arith.addf %144, %145 : vector<8x128xf32>
    %147 = math.tanh %146 : vector<8x128xf32>
    %148 = arith.mulf %143, %147 : vector<8x128xf32>
    %149 = arith.truncf %148 : vector<8x128xf32> to vector<8x128xbf16>
    %c0_64 = arith.constant 0 : index
    %c0_65 = arith.constant 0 : index
    %150 = vector.load %arg13[%c0_64, %c0_65] : memref<128x128xbf16, #tpu.memory_space<vmem>>, vector<128x128xbf16>
    %cst_66 = arith.constant dense<0.000000e+00> : vector<8x128xf32>
    %151 = tpu.matmul %149, %150, %cst_66 {dimension_numbers = #tpu.dot_dimension_numbers<[1], [0], [0], [1], [0, 0, 1, 1], [], []>} : vector<8x128xbf16>, vector<128x128xbf16>, vector<8x128xf32> -> vector<8x128xf32>
    %152 = arith.addf %151, %17 : vector<8x128xf32>
    %c0_67 = arith.constant 0 : index
    %c0_68 = arith.constant 0 : index
    %c0_69 = arith.constant 0 : index
    %153 = vector.load %arg9[%c0_67, %c0_68, %c0_69] : memref<10x8x128xf32, #tpu.memory_space<vmem>>, vector<1x8x128xf32>
    %154 = vector.shape_cast %153 : vector<1x8x128xf32> to vector<8x128xf32>
    %155 = vector.shape_cast %152 : vector<8x128xf32> to vector<1x8x128xf32>
    tpu.vector_store %arg9[%c0_67, %c0_68, %c0_69], %155 {strides = array<i32>} : memref<10x8x128xf32, #tpu.memory_space<vmem>>, vector<1x8x128xf32>,
    %c1 = arith.constant 1 : index
    %c0_70 = arith.constant 0 : index
    %c0_71 = arith.constant 0 : index
    %156 = vector.load %arg10[%c1, %c0_70, %c0_71] : memref<8x8x512xf32, #tpu.memory_space<vmem>>, vector<1x8x512xf32>
    %157 = vector.shape_cast %156 : vector<1x8x512xf32> to vector<8x512xf32>
    %158 = arith.truncf %70 : vector<8x128xf32> to vector<8x128xbf16>
    %c128_72 = arith.constant 128 : index
    %c0_73 = arith.constant 0 : index
    %159 = vector.load %arg1[%c128_72, %c0_73] : memref<256x512xbf16, #tpu.memory_space<vmem>>, vector<128x512xbf16>
    %cst_74 = arith.constant dense<0.000000e+00> : vector<8x512xf32>
    %160 = tpu.matmul %158, %159, %cst_74 {dimension_numbers = #tpu.dot_dimension_numbers<[1], [0], [0], [1], [0, 0, 1, 1], [], []>} : vector<8x128xbf16>, vector<128x512xbf16>, vector<8x512xf32> -> vector<8x512xf32>
    %161 = arith.addf %157, %160 : vector<8x512xf32>
    %162 = vector.extract_strided_slice %161 {offsets = [0, 0], sizes = [8, 128], strides = [1, 1]} : vector<8x512xf32> to vector<8x128xf32>
    %cst_75 = arith.constant 5.000000e-01 : f32
    %163 = vector.broadcast %cst_75 : f32 to vector<8x128xf32>
    %164 = arith.mulf %163, %162 : vector<8x128xf32>
    %165 = math.tanh %164 : vector<8x128xf32>
    %cst_76 = arith.constant 5.000000e-01 : f32
    %166 = vector.broadcast %cst_76 : f32 to vector<8x128xf32>
    %167 = arith.mulf %166, %165 : vector<8x128xf32>
    %cst_77 = arith.constant 5.000000e-01 : f32
    %168 = vector.broadcast %cst_77 : f32 to vector<8x128xf32>
    %169 = arith.addf %167, %168 : vector<8x128xf32>
    %170 = vector.extract_strided_slice %161 {offsets = [0, 128], sizes = [8, 128], strides = [1, 1]} : vector<8x512xf32> to vector<8x128xf32>
    %cst_78 = arith.constant 5.000000e-01 : f32
    %171 = vector.broadcast %cst_78 : f32 to vector<8x128xf32>
    %172 = arith.mulf %171, %170 : vector<8x128xf32>
    %173 = math.tanh %172 : vector<8x128xf32>
    %cst_79 = arith.constant 5.000000e-01 : f32
    %174 = vector.broadcast %cst_79 : f32 to vector<8x128xf32>
    %175 = arith.mulf %174, %173 : vector<8x128xf32>
    %cst_80 = arith.constant 5.000000e-01 : f32
    %176 = vector.broadcast %cst_80 : f32 to vector<8x128xf32>
    %177 = arith.addf %175, %176 : vector<8x128xf32>
    %178 = vector.extract_strided_slice %161 {offsets = [0, 256], sizes = [8, 128], strides = [1, 1]} : vector<8x512xf32> to vector<8x128xf32>
    %179 = math.tanh %178 : vector<8x128xf32>
    %180 = vector.extract_strided_slice %161 {offsets = [0, 384], sizes = [8, 128], strides = [1, 1]} : vector<8x512xf32> to vector<8x128xf32>
    %cst_81 = arith.constant 5.000000e-01 : f32
    %181 = vector.broadcast %cst_81 : f32 to vector<8x128xf32>
    %182 = arith.mulf %181, %180 : vector<8x128xf32>
    %183 = math.tanh %182 : vector<8x128xf32>
    %cst_82 = arith.constant 5.000000e-01 : f32
    %184 = vector.broadcast %cst_82 : f32 to vector<8x128xf32>
    %185 = arith.mulf %184, %183 : vector<8x128xf32>
    %cst_83 = arith.constant 5.000000e-01 : f32
    %186 = vector.broadcast %cst_83 : f32 to vector<8x128xf32>
    %187 = arith.addf %185, %186 : vector<8x128xf32>
    %188 = arith.mulf %177, %68 : vector<8x128xf32>
    %189 = arith.mulf %169, %179 : vector<8x128xf32>
    %190 = arith.addf %188, %189 : vector<8x128xf32>
    %191 = math.tanh %190 : vector<8x128xf32>
    %192 = arith.mulf %187, %191 : vector<8x128xf32>
    %193 = tpu.concatenate %192, %112 in 1 : vector<8x128xf32>, vector<8x128xf32> -> vector<8x256xf32>
    %194 = arith.truncf %193 : vector<8x256xf32> to vector<8x256xbf16>
    %c0_84 = arith.constant 0 : index
    %c0_85 = arith.constant 0 : index
    %195 = vector.load %arg11[%c0_84, %c0_85] : memref<256x512xbf16, #tpu.memory_space<vmem>>, vector<256x512xbf16>
    %cst_86 = arith.constant dense<0.000000e+00> : vector<8x512xf32>
    %196 = tpu.matmul %194, %195, %cst_86 {dimension_numbers = #tpu.dot_dimension_numbers<[1], [0], [0], [1], [0, 0, 1, 1], [], []>} : vector<8x256xbf16>, vector<256x512xbf16>, vector<8x512xf32> -> vector<8x512xf32>
    %197 = arith.addf %196, %11 : vector<8x512xf32>
    %198 = vector.extract_strided_slice %197 {offsets = [0, 0], sizes = [8, 128], strides = [1, 1]} : vector<8x512xf32> to vector<8x128xf32>
    %cst_87 = arith.constant 5.000000e-01 : f32
    %199 = vector.broadcast %cst_87 : f32 to vector<8x128xf32>
    %200 = arith.mulf %199, %198 : vector<8x128xf32>
    %201 = math.tanh %200 : vector<8x128xf32>
    %cst_88 = arith.constant 5.000000e-01 : f32
    %202 = vector.broadcast %cst_88 : f32 to vector<8x128xf32>
    %203 = arith.mulf %202, %201 : vector<8x128xf32>
    %cst_89 = arith.constant 5.000000e-01 : f32
    %204 = vector.broadcast %cst_89 : f32 to vector<8x128xf32>
    %205 = arith.addf %203, %204 : vector<8x128xf32>
    %206 = vector.extract_strided_slice %197 {offsets = [0, 128], sizes = [8, 128], strides = [1, 1]} : vector<8x512xf32> to vector<8x128xf32>
    %cst_90 = arith.constant 5.000000e-01 : f32
    %207 = vector.broadcast %cst_90 : f32 to vector<8x128xf32>
    %208 = arith.mulf %207, %206 : vector<8x128xf32>
    %209 = math.tanh %208 : vector<8x128xf32>
    %cst_91 = arith.constant 5.000000e-01 : f32
    %210 = vector.broadcast %cst_91 : f32 to vector<8x128xf32>
    %211 = arith.mulf %210, %209 : vector<8x128xf32>
    %cst_92 = arith.constant 5.000000e-01 : f32
    %212 = vector.broadcast %cst_92 : f32 to vector<8x128xf32>
    %213 = arith.addf %211, %212 : vector<8x128xf32>
    %214 = vector.extract_strided_slice %197 {offsets = [0, 256], sizes = [8, 128], strides = [1, 1]} : vector<8x512xf32> to vector<8x128xf32>
    %215 = math.tanh %214 : vector<8x128xf32>
    %216 = vector.extract_strided_slice %197 {offsets = [0, 384], sizes = [8, 128], strides = [1, 1]} : vector<8x512xf32> to vector<8x128xf32>
    %cst_93 = arith.constant 5.000000e-01 : f32
    %217 = vector.broadcast %cst_93 : f32 to vector<8x128xf32>
    %218 = arith.mulf %217, %216 : vector<8x128xf32>
    %219 = math.tanh %218 : vector<8x128xf32>
    %cst_94 = arith.constant 5.000000e-01 : f32
    %220 = vector.broadcast %cst_94 : f32 to vector<8x128xf32>
    %221 = arith.mulf %220, %219 : vector<8x128xf32>
    %cst_95 = arith.constant 5.000000e-01 : f32
    %222 = vector.broadcast %cst_95 : f32 to vector<8x128xf32>
    %223 = arith.addf %221, %222 : vector<8x128xf32>
    %224 = arith.mulf %213, %110 : vector<8x128xf32>
    %225 = arith.mulf %205, %215 : vector<8x128xf32>
    %226 = arith.addf %224, %225 : vector<8x128xf32>
    %227 = math.tanh %226 : vector<8x128xf32>
    %228 = arith.mulf %223, %227 : vector<8x128xf32>
    %229 = tpu.concatenate %228, %148 in 1 : vector<8x128xf32>, vector<8x128xf32> -> vector<8x256xf32>
    %230 = arith.truncf %229 : vector<8x256xf32> to vector<8x256xbf16>
    %c0_96 = arith.constant 0 : index
    %c0_97 = arith.constant 0 : index
    %231 = vector.load %arg12[%c0_96, %c0_97] : memref<256x512xbf16, #tpu.memory_space<vmem>>, vector<256x512xbf16>
    %cst_98 = arith.constant dense<0.000000e+00> : vector<8x512xf32>
    %232 = tpu.matmul %230, %231, %cst_98 {dimension_numbers = #tpu.dot_dimension_numbers<[1], [0], [0], [1], [0, 0, 1, 1], [], []>} : vector<8x256xbf16>, vector<256x512xbf16>, vector<8x512xf32> -> vector<8x512xf32>
    %233 = arith.addf %232, %14 : vector<8x512xf32>
    %234 = vector.extract_strided_slice %233 {offsets = [0, 0], sizes = [8, 128], strides = [1, 1]} : vector<8x512xf32> to vector<8x128xf32>
    %cst_99 = arith.constant 5.000000e-01 : f32
    %235 = vector.broadcast %cst_99 : f32 to vector<8x128xf32>
    %236 = arith.mulf %235, %234 : vector<8x128xf32>
    %237 = math.tanh %236 : vector<8x128xf32>
    %cst_100 = arith.constant 5.000000e-01 : f32
    %238 = vector.broadcast %cst_100 : f32 to vector<8x128xf32>
    %239 = arith.mulf %238, %237 : vector<8x128xf32>
    %cst_101 = arith.constant 5.000000e-01 : f32
    %240 = vector.broadcast %cst_101 : f32 to vector<8x128xf32>
    %241 = arith.addf %239, %240 : vector<8x128xf32>
    %242 = vector.extract_strided_slice %233 {offsets = [0, 128], sizes = [8, 128], strides = [1, 1]} : vector<8x512xf32> to vector<8x128xf32>
    %cst_102 = arith.constant 5.000000e-01 : f32
    %243 = vector.broadcast %cst_102 : f32 to vector<8x128xf32>
    %244 = arith.mulf %243, %242 : vector<8x128xf32>
    %245 = math.tanh %244 : vector<8x128xf32>
    %cst_103 = arith.constant 5.000000e-01 : f32
    %246 = vector.broadcast %cst_103 : f32 to vector<8x128xf32>
    %247 = arith.mulf %246, %245 : vector<8x128xf32>
    %cst_104 = arith.constant 5.000000e-01 : f32
    %248 = vector.broadcast %cst_104 : f32 to vector<8x128xf32>
    %249 = arith.addf %247, %248 : vector<8x128xf32>
    %250 = vector.extract_strided_slice %233 {offsets = [0, 256], sizes = [8, 128], strides = [1, 1]} : vector<8x512xf32> to vector<8x128xf32>
    %251 = math.tanh %250 : vector<8x128xf32>
    %252 = vector.extract_strided_slice %233 {offsets = [0, 384], sizes = [8, 128], strides = [1, 1]} : vector<8x512xf32> to vector<8x128xf32>
    %cst_105 = arith.constant 5.000000e-01 : f32
    %253 = vector.broadcast %cst_105 : f32 to vector<8x128xf32>
    %254 = arith.mulf %253, %252 : vector<8x128xf32>
    %255 = math.tanh %254 : vector<8x128xf32>
    %cst_106 = arith.constant 5.000000e-01 : f32
    %256 = vector.broadcast %cst_106 : f32 to vector<8x128xf32>
    %257 = arith.mulf %256, %255 : vector<8x128xf32>
    %cst_107 = arith.constant 5.000000e-01 : f32
    %258 = vector.broadcast %cst_107 : f32 to vector<8x128xf32>
    %259 = arith.addf %257, %258 : vector<8x128xf32>
    %260 = arith.mulf %249, %146 : vector<8x128xf32>
    %261 = arith.mulf %241, %251 : vector<8x128xf32>
    %262 = arith.addf %260, %261 : vector<8x128xf32>
    %263 = math.tanh %262 : vector<8x128xf32>
    %264 = arith.mulf %259, %263 : vector<8x128xf32>
    %265 = arith.truncf %264 : vector<8x128xf32> to vector<8x128xbf16>
    %c0_108 = arith.constant 0 : index
    %c0_109 = arith.constant 0 : index
    %266 = vector.load %arg13[%c0_108, %c0_109] : memref<128x128xbf16, #tpu.memory_space<vmem>>, vector<128x128xbf16>
    %cst_110 = arith.constant dense<0.000000e+00> : vector<8x128xf32>
    %267 = tpu.matmul %265, %266, %cst_110 {dimension_numbers = #tpu.dot_dimension_numbers<[1], [0], [0], [1], [0, 0, 1, 1], [], []>} : vector<8x128xbf16>, vector<128x128xbf16>, vector<8x128xf32> -> vector<8x128xf32>
    %268 = arith.addf %267, %17 : vector<8x128xf32>
    %c1_111 = arith.constant 1 : index
    %c0_112 = arith.constant 0 : index
    %c0_113 = arith.constant 0 : index
    %269 = vector.load %arg9[%c1_111, %c0_112, %c0_113] : memref<10x8x128xf32, #tpu.memory_space<vmem>>, vector<1x8x128xf32>
    %270 = vector.shape_cast %269 : vector<1x8x128xf32> to vector<8x128xf32>
    %271 = vector.shape_cast %268 : vector<8x128xf32> to vector<1x8x128xf32>
    tpu.vector_store %arg9[%c1_111, %c0_112, %c0_113], %271 {strides = array<i32>} : memref<10x8x128xf32, #tpu.memory_space<vmem>>, vector<1x8x128xf32>,
    %c2 = arith.constant 2 : index
    %c0_114 = arith.constant 0 : index
    %c0_115 = arith.constant 0 : index
    %272 = vector.load %arg10[%c2, %c0_114, %c0_115] : memref<8x8x512xf32, #tpu.memory_space<vmem>>, vector<1x8x512xf32>
    %273 = vector.shape_cast %272 : vector<1x8x512xf32> to vector<8x512xf32>
    %274 = arith.truncf %192 : vector<8x128xf32> to vector<8x128xbf16>
    %c128_116 = arith.constant 128 : index
    %c0_117 = arith.constant 0 : index
    %275 = vector.load %arg1[%c128_116, %c0_117] : memref<256x512xbf16, #tpu.memory_space<vmem>>, vector<128x512xbf16>
    %cst_118 = arith.constant dense<0.000000e+00> : vector<8x512xf32>
    %276 = tpu.matmul %274, %275, %cst_118 {dimension_numbers = #tpu.dot_dimension_numbers<[1], [0], [0], [1], [0, 0, 1, 1], [], []>} : vector<8x128xbf16>, vector<128x512xbf16>, vector<8x512xf32> -> vector<8x512xf32>
    %277 = arith.addf %273, %276 : vector<8x512xf32>
    %278 = vector.extract_strided_slice %277 {offsets = [0, 0], sizes = [8, 128], strides = [1, 1]} : vector<8x512xf32> to vector<8x128xf32>
    %cst_119 = arith.constant 5.000000e-01 : f32
    %279 = vector.broadcast %cst_119 : f32 to vector<8x128xf32>
    %280 = arith.mulf %279, %278 : vector<8x128xf32>
    %281 = math.tanh %280 : vector<8x128xf32>
    %cst_120 = arith.constant 5.000000e-01 : f32
    %282 = vector.broadcast %cst_120 : f32 to vector<8x128xf32>
    %283 = arith.mulf %282, %281 : vector<8x128xf32>
    %cst_121 = arith.constant 5.000000e-01 : f32
    %284 = vector.broadcast %cst_121 : f32 to vector<8x128xf32>
    %285 = arith.addf %283, %284 : vector<8x128xf32>
    %286 = vector.extract_strided_slice %277 {offsets = [0, 128], sizes = [8, 128], strides = [1, 1]} : vector<8x512xf32> to vector<8x128xf32>
    %cst_122 = arith.constant 5.000000e-01 : f32
    %287 = vector.broadcast %cst_122 : f32 to vector<8x128xf32>
    %288 = arith.mulf %287, %286 : vector<8x128xf32>
    %289 = math.tanh %288 : vector<8x128xf32>
    %cst_123 = arith.constant 5.000000e-01 : f32
    %290 = vector.broadcast %cst_123 : f32 to vector<8x128xf32>
    %291 = arith.mulf %290, %289 : vector<8x128xf32>
    %cst_124 = arith.constant 5.000000e-01 : f32
    %292 = vector.broadcast %cst_124 : f32 to vector<8x128xf32>
    %293 = arith.addf %291, %292 : vector<8x128xf32>
    %294 = vector.extract_strided_slice %277 {offsets = [0, 256], sizes = [8, 128], strides = [1, 1]} : vector<8x512xf32> to vector<8x128xf32>
    %295 = math.tanh %294 : vector<8x128xf32>
    %296 = vector.extract_strided_slice %277 {offsets = [0, 384], sizes = [8, 128], strides = [1, 1]} : vector<8x512xf32> to vector<8x128xf32>
    %cst_125 = arith.constant 5.000000e-01 : f32
    %297 = vector.broadcast %cst_125 : f32 to vector<8x128xf32>
    %298 = arith.mulf %297, %296 : vector<8x128xf32>
    %299 = math.tanh %298 : vector<8x128xf32>
    %cst_126 = arith.constant 5.000000e-01 : f32
    %300 = vector.broadcast %cst_126 : f32 to vector<8x128xf32>
    %301 = arith.mulf %300, %299 : vector<8x128xf32>
    %cst_127 = arith.constant 5.000000e-01 : f32
    %302 = vector.broadcast %cst_127 : f32 to vector<8x128xf32>
    %303 = arith.addf %301, %302 : vector<8x128xf32>
    %304 = arith.mulf %293, %190 : vector<8x128xf32>
    %305 = arith.mulf %285, %295 : vector<8x128xf32>
    %306 = arith.addf %304, %305 : vector<8x128xf32>
    %307 = math.tanh %306 : vector<8x128xf32>
    %308 = arith.mulf %303, %307 : vector<8x128xf32>
    %309 = tpu.concatenate %308, %228 in 1 : vector<8x128xf32>, vector<8x128xf32> -> vector<8x256xf32>
    %310 = arith.truncf %309 : vector<8x256xf32> to vector<8x256xbf16>
    %c0_128 = arith.constant 0 : index
    %c0_129 = arith.constant 0 : index
    %311 = vector.load %arg11[%c0_128, %c0_129] : memref<256x512xbf16, #tpu.memory_space<vmem>>, vector<256x512xbf16>
    %cst_130 = arith.constant dense<0.000000e+00> : vector<8x512xf32>
    %312 = tpu.matmul %310, %311, %cst_130 {dimension_numbers = #tpu.dot_dimension_numbers<[1], [0], [0], [1], [0, 0, 1, 1], [], []>} : vector<8x256xbf16>, vector<256x512xbf16>, vector<8x512xf32> -> vector<8x512xf32>
    %313 = arith.addf %312, %11 : vector<8x512xf32>
    %314 = vector.extract_strided_slice %313 {offsets = [0, 0], sizes = [8, 128], strides = [1, 1]} : vector<8x512xf32> to vector<8x128xf32>
    %cst_131 = arith.constant 5.000000e-01 : f32
    %315 = vector.broadcast %cst_131 : f32 to vector<8x128xf32>
    %316 = arith.mulf %315, %314 : vector<8x128xf32>
    %317 = math.tanh %316 : vector<8x128xf32>
    %cst_132 = arith.constant 5.000000e-01 : f32
    %318 = vector.broadcast %cst_132 : f32 to vector<8x128xf32>
    %319 = arith.mulf %318, %317 : vector<8x128xf32>
    %cst_133 = arith.constant 5.000000e-01 : f32
    %320 = vector.broadcast %cst_133 : f32 to vector<8x128xf32>
    %321 = arith.addf %319, %320 : vector<8x128xf32>
    %322 = vector.extract_strided_slice %313 {offsets = [0, 128], sizes = [8, 128], strides = [1, 1]} : vector<8x512xf32> to vector<8x128xf32>
    %cst_134 = arith.constant 5.000000e-01 : f32
    %323 = vector.broadcast %cst_134 : f32 to vector<8x128xf32>
    %324 = arith.mulf %323, %322 : vector<8x128xf32>
    %325 = math.tanh %324 : vector<8x128xf32>
    %cst_135 = arith.constant 5.000000e-01 : f32
    %326 = vector.broadcast %cst_135 : f32 to vector<8x128xf32>
    %327 = arith.mulf %326, %325 : vector<8x128xf32>
    %cst_136 = arith.constant 5.000000e-01 : f32
    %328 = vector.broadcast %cst_136 : f32 to vector<8x128xf32>
    %329 = arith.addf %327, %328 : vector<8x128xf32>
    %330 = vector.extract_strided_slice %313 {offsets = [0, 256], sizes = [8, 128], strides = [1, 1]} : vector<8x512xf32> to vector<8x128xf32>
    %331 = math.tanh %330 : vector<8x128xf32>
    %332 = vector.extract_strided_slice %313 {offsets = [0, 384], sizes = [8, 128], strides = [1, 1]} : vector<8x512xf32> to vector<8x128xf32>
    %cst_137 = arith.constant 5.000000e-01 : f32
    %333 = vector.broadcast %cst_137 : f32 to vector<8x128xf32>
    %334 = arith.mulf %333, %332 : vector<8x128xf32>
    %335 = math.tanh %334 : vector<8x128xf32>
    %cst_138 = arith.constant 5.000000e-01 : f32
    %336 = vector.broadcast %cst_138 : f32 to vector<8x128xf32>
    %337 = arith.mulf %336, %335 : vector<8x128xf32>
    %cst_139 = arith.constant 5.000000e-01 : f32
    %338 = vector.broadcast %cst_139 : f32 to vector<8x128xf32>
    %339 = arith.addf %337, %338 : vector<8x128xf32>
    %340 = arith.mulf %329, %226 : vector<8x128xf32>
    %341 = arith.mulf %321, %331 : vector<8x128xf32>
    %342 = arith.addf %340, %341 : vector<8x128xf32>
    %343 = math.tanh %342 : vector<8x128xf32>
    %344 = arith.mulf %339, %343 : vector<8x128xf32>
    %345 = tpu.concatenate %344, %264 in 1 : vector<8x128xf32>, vector<8x128xf32> -> vector<8x256xf32>
    %346 = arith.truncf %345 : vector<8x256xf32> to vector<8x256xbf16>
    %c0_140 = arith.constant 0 : index
    %c0_141 = arith.constant 0 : index
    %347 = vector.load %arg12[%c0_140, %c0_141] : memref<256x512xbf16, #tpu.memory_space<vmem>>, vector<256x512xbf16>
    %cst_142 = arith.constant dense<0.000000e+00> : vector<8x512xf32>
    %348 = tpu.matmul %346, %347, %cst_142 {dimension_numbers = #tpu.dot_dimension_numbers<[1], [0], [0], [1], [0, 0, 1, 1], [], []>} : vector<8x256xbf16>, vector<256x512xbf16>, vector<8x512xf32> -> vector<8x512xf32>
    %349 = arith.addf %348, %14 : vector<8x512xf32>
    %350 = vector.extract_strided_slice %349 {offsets = [0, 0], sizes = [8, 128], strides = [1, 1]} : vector<8x512xf32> to vector<8x128xf32>
    %cst_143 = arith.constant 5.000000e-01 : f32
    %351 = vector.broadcast %cst_143 : f32 to vector<8x128xf32>
    %352 = arith.mulf %351, %350 : vector<8x128xf32>
    %353 = math.tanh %352 : vector<8x128xf32>
    %cst_144 = arith.constant 5.000000e-01 : f32
    %354 = vector.broadcast %cst_144 : f32 to vector<8x128xf32>
    %355 = arith.mulf %354, %353 : vector<8x128xf32>
    %cst_145 = arith.constant 5.000000e-01 : f32
    %356 = vector.broadcast %cst_145 : f32 to vector<8x128xf32>
    %357 = arith.addf %355, %356 : vector<8x128xf32>
    %358 = vector.extract_strided_slice %349 {offsets = [0, 128], sizes = [8, 128], strides = [1, 1]} : vector<8x512xf32> to vector<8x128xf32>
    %cst_146 = arith.constant 5.000000e-01 : f32
    %359 = vector.broadcast %cst_146 : f32 to vector<8x128xf32>
    %360 = arith.mulf %359, %358 : vector<8x128xf32>
    %361 = math.tanh %360 : vector<8x128xf32>
    %cst_147 = arith.constant 5.000000e-01 : f32
    %362 = vector.broadcast %cst_147 : f32 to vector<8x128xf32>
    %363 = arith.mulf %362, %361 : vector<8x128xf32>
    %cst_148 = arith.constant 5.000000e-01 : f32
    %364 = vector.broadcast %cst_148 : f32 to vector<8x128xf32>
    %365 = arith.addf %363, %364 : vector<8x128xf32>
    %366 = vector.extract_strided_slice %349 {offsets = [0, 256], sizes = [8, 128], strides = [1, 1]} : vector<8x512xf32> to vector<8x128xf32>
    %367 = math.tanh %366 : vector<8x128xf32>
    %368 = vector.extract_strided_slice %349 {offsets = [0, 384], sizes = [8, 128], strides = [1, 1]} : vector<8x512xf32> to vector<8x128xf32>
    %cst_149 = arith.constant 5.000000e-01 : f32
    %369 = vector.broadcast %cst_149 : f32 to vector<8x128xf32>
    %370 = arith.mulf %369, %368 : vector<8x128xf32>
    %371 = math.tanh %370 : vector<8x128xf32>
    %cst_150 = arith.constant 5.000000e-01 : f32
    %372 = vector.broadcast %cst_150 : f32 to vector<8x128xf32>
    %373 = arith.mulf %372, %371 : vector<8x128xf32>
    %cst_151 = arith.constant 5.000000e-01 : f32
    %374 = vector.broadcast %cst_151 : f32 to vector<8x128xf32>
    %375 = arith.addf %373, %374 : vector<8x128xf32>
    %376 = arith.mulf %365, %262 : vector<8x128xf32>
    %377 = arith.mulf %357, %367 : vector<8x128xf32>
    %378 = arith.addf %376, %377 : vector<8x128xf32>
    %379 = math.tanh %378 : vector<8x128xf32>
    %380 = arith.mulf %375, %379 : vector<8x128xf32>
    %381 = arith.truncf %380 : vector<8x128xf32> to vector<8x128xbf16>
    %c0_152 = arith.constant 0 : index
    %c0_153 = arith.constant 0 : index
    %382 = vector.load %arg13[%c0_152, %c0_153] : memref<128x128xbf16, #tpu.memory_space<vmem>>, vector<128x128xbf16>
    %cst_154 = arith.constant dense<0.000000e+00> : vector<8x128xf32>
    %383 = tpu.matmul %381, %382, %cst_154 {dimension_numbers = #tpu.dot_dimension_numbers<[1], [0], [0], [1], [0, 0, 1, 1], [], []>} : vector<8x128xbf16>, vector<128x128xbf16>, vector<8x128xf32> -> vector<8x128xf32>
    %384 = arith.addf %383, %17 : vector<8x128xf32>
    %c2_155 = arith.constant 2 : index
    %c0_156 = arith.constant 0 : index
    %c0_157 = arith.constant 0 : index
    %385 = vector.load %arg9[%c2_155, %c0_156, %c0_157] : memref<10x8x128xf32, #tpu.memory_space<vmem>>, vector<1x8x128xf32>
    %386 = vector.shape_cast %385 : vector<1x8x128xf32> to vector<8x128xf32>
    %387 = vector.shape_cast %384 : vector<8x128xf32> to vector<1x8x128xf32>
    tpu.vector_store %arg9[%c2_155, %c0_156, %c0_157], %387 {strides = array<i32>} : memref<10x8x128xf32, #tpu.memory_space<vmem>>, vector<1x8x128xf32>,
    %c3 = arith.constant 3 : index
    %c0_158 = arith.constant 0 : index
    %c0_159 = arith.constant 0 : index
    %388 = vector.load %arg10[%c3, %c0_158, %c0_159] : memref<8x8x512xf32, #tpu.memory_space<vmem>>, vector<1x8x512xf32>
    %389 = vector.shape_cast %388 : vector<1x8x512xf32> to vector<8x512xf32>
    %390 = arith.truncf %308 : vector<8x128xf32> to vector<8x128xbf16>
    %c128_160 = arith.constant 128 : index
    %c0_161 = arith.constant 0 : index
    %391 = vector.load %arg1[%c128_160, %c0_161] : memref<256x512xbf16, #tpu.memory_space<vmem>>, vector<128x512xbf16>
    %cst_162 = arith.constant dense<0.000000e+00> : vector<8x512xf32>
    %392 = tpu.matmul %390, %391, %cst_162 {dimension_numbers = #tpu.dot_dimension_numbers<[1], [0], [0], [1], [0, 0, 1, 1], [], []>} : vector<8x128xbf16>, vector<128x512xbf16>, vector<8x512xf32> -> vector<8x512xf32>
    %393 = arith.addf %389, %392 : vector<8x512xf32>
    %394 = vector.extract_strided_slice %393 {offsets = [0, 0], sizes = [8, 128], strides = [1, 1]} : vector<8x512xf32> to vector<8x128xf32>
    %cst_163 = arith.constant 5.000000e-01 : f32
    %395 = vector.broadcast %cst_163 : f32 to vector<8x128xf32>
    %396 = arith.mulf %395, %394 : vector<8x128xf32>
    %397 = math.tanh %396 : vector<8x128xf32>
    %cst_164 = arith.constant 5.000000e-01 : f32
    %398 = vector.broadcast %cst_164 : f32 to vector<8x128xf32>
    %399 = arith.mulf %398, %397 : vector<8x128xf32>
    %cst_165 = arith.constant 5.000000e-01 : f32
    %400 = vector.broadcast %cst_165 : f32 to vector<8x128xf32>
    %401 = arith.addf %399, %400 : vector<8x128xf32>
    %402 = vector.extract_strided_slice %393 {offsets = [0, 128], sizes = [8, 128], strides = [1, 1]} : vector<8x512xf32> to vector<8x128xf32>
    %cst_166 = arith.constant 5.000000e-01 : f32
    %403 = vector.broadcast %cst_166 : f32 to vector<8x128xf32>
    %404 = arith.mulf %403, %402 : vector<8x128xf32>
    %405 = math.tanh %404 : vector<8x128xf32>
    %cst_167 = arith.constant 5.000000e-01 : f32
    %406 = vector.broadcast %cst_167 : f32 to vector<8x128xf32>
    %407 = arith.mulf %406, %405 : vector<8x128xf32>
    %cst_168 = arith.constant 5.000000e-01 : f32
    %408 = vector.broadcast %cst_168 : f32 to vector<8x128xf32>
    %409 = arith.addf %407, %408 : vector<8x128xf32>
    %410 = vector.extract_strided_slice %393 {offsets = [0, 256], sizes = [8, 128], strides = [1, 1]} : vector<8x512xf32> to vector<8x128xf32>
    %411 = math.tanh %410 : vector<8x128xf32>
    %412 = vector.extract_strided_slice %393 {offsets = [0, 384], sizes = [8, 128], strides = [1, 1]} : vector<8x512xf32> to vector<8x128xf32>
    %cst_169 = arith.constant 5.000000e-01 : f32
    %413 = vector.broadcast %cst_169 : f32 to vector<8x128xf32>
    %414 = arith.mulf %413, %412 : vector<8x128xf32>
    %415 = math.tanh %414 : vector<8x128xf32>
    %cst_170 = arith.constant 5.000000e-01 : f32
    %416 = vector.broadcast %cst_170 : f32 to vector<8x128xf32>
    %417 = arith.mulf %416, %415 : vector<8x128xf32>
    %cst_171 = arith.constant 5.000000e-01 : f32
    %418 = vector.broadcast %cst_171 : f32 to vector<8x128xf32>
    %419 = arith.addf %417, %418 : vector<8x128xf32>
    %420 = arith.mulf %409, %306 : vector<8x128xf32>
    %421 = arith.mulf %401, %411 : vector<8x128xf32>
    %422 = arith.addf %420, %421 : vector<8x128xf32>
    %423 = math.tanh %422 : vector<8x128xf32>
    %424 = arith.mulf %419, %423 : vector<8x128xf32>
    %425 = tpu.concatenate %424, %344 in 1 : vector<8x128xf32>, vector<8x128xf32> -> vector<8x256xf32>
    %426 = arith.truncf %425 : vector<8x256xf32> to vector<8x256xbf16>
    %c0_172 = arith.constant 0 : index
    %c0_173 = arith.constant 0 : index
    %427 = vector.load %arg11[%c0_172, %c0_173] : memref<256x512xbf16, #tpu.memory_space<vmem>>, vector<256x512xbf16>
    %cst_174 = arith.constant dense<0.000000e+00> : vector<8x512xf32>
    %428 = tpu.matmul %426, %427, %cst_174 {dimension_numbers = #tpu.dot_dimension_numbers<[1], [0], [0], [1], [0, 0, 1, 1], [], []>} : vector<8x256xbf16>, vector<256x512xbf16>, vector<8x512xf32> -> vector<8x512xf32>
    %429 = arith.addf %428, %11 : vector<8x512xf32>
    %430 = vector.extract_strided_slice %429 {offsets = [0, 0], sizes = [8, 128], strides = [1, 1]} : vector<8x512xf32> to vector<8x128xf32>
    %cst_175 = arith.constant 5.000000e-01 : f32
    %431 = vector.broadcast %cst_175 : f32 to vector<8x128xf32>
    %432 = arith.mulf %431, %430 : vector<8x128xf32>
    %433 = math.tanh %432 : vector<8x128xf32>
    %cst_176 = arith.constant 5.000000e-01 : f32
    %434 = vector.broadcast %cst_176 : f32 to vector<8x128xf32>
    %435 = arith.mulf %434, %433 : vector<8x128xf32>
    %cst_177 = arith.constant 5.000000e-01 : f32
    %436 = vector.broadcast %cst_177 : f32 to vector<8x128xf32>
    %437 = arith.addf %435, %436 : vector<8x128xf32>
    %438 = vector.extract_strided_slice %429 {offsets = [0, 128], sizes = [8, 128], strides = [1, 1]} : vector<8x512xf32> to vector<8x128xf32>
    %cst_178 = arith.constant 5.000000e-01 : f32
    %439 = vector.broadcast %cst_178 : f32 to vector<8x128xf32>
    %440 = arith.mulf %439, %438 : vector<8x128xf32>
    %441 = math.tanh %440 : vector<8x128xf32>
    %cst_179 = arith.constant 5.000000e-01 : f32
    %442 = vector.broadcast %cst_179 : f32 to vector<8x128xf32>
    %443 = arith.mulf %442, %441 : vector<8x128xf32>
    %cst_180 = arith.constant 5.000000e-01 : f32
    %444 = vector.broadcast %cst_180 : f32 to vector<8x128xf32>
    %445 = arith.addf %443, %444 : vector<8x128xf32>
    %446 = vector.extract_strided_slice %429 {offsets = [0, 256], sizes = [8, 128], strides = [1, 1]} : vector<8x512xf32> to vector<8x128xf32>
    %447 = math.tanh %446 : vector<8x128xf32>
    %448 = vector.extract_strided_slice %429 {offsets = [0, 384], sizes = [8, 128], strides = [1, 1]} : vector<8x512xf32> to vector<8x128xf32>
    %cst_181 = arith.constant 5.000000e-01 : f32
    %449 = vector.broadcast %cst_181 : f32 to vector<8x128xf32>
    %450 = arith.mulf %449, %448 : vector<8x128xf32>
    %451 = math.tanh %450 : vector<8x128xf32>
    %cst_182 = arith.constant 5.000000e-01 : f32
    %452 = vector.broadcast %cst_182 : f32 to vector<8x128xf32>
    %453 = arith.mulf %452, %451 : vector<8x128xf32>
    %cst_183 = arith.constant 5.000000e-01 : f32
    %454 = vector.broadcast %cst_183 : f32 to vector<8x128xf32>
    %455 = arith.addf %453, %454 : vector<8x128xf32>
    %456 = arith.mulf %445, %342 : vector<8x128xf32>
    %457 = arith.mulf %437, %447 : vector<8x128xf32>
    %458 = arith.addf %456, %457 : vector<8x128xf32>
    %459 = math.tanh %458 : vector<8x128xf32>
    %460 = arith.mulf %455, %459 : vector<8x128xf32>
    %461 = tpu.concatenate %460, %380 in 1 : vector<8x128xf32>, vector<8x128xf32> -> vector<8x256xf32>
    %462 = arith.truncf %461 : vector<8x256xf32> to vector<8x256xbf16>
    %c0_184 = arith.constant 0 : index
    %c0_185 = arith.constant 0 : index
    %463 = vector.load %arg12[%c0_184, %c0_185] : memref<256x512xbf16, #tpu.memory_space<vmem>>, vector<256x512xbf16>
    %cst_186 = arith.constant dense<0.000000e+00> : vector<8x512xf32>
    %464 = tpu.matmul %462, %463, %cst_186 {dimension_numbers = #tpu.dot_dimension_numbers<[1], [0], [0], [1], [0, 0, 1, 1], [], []>} : vector<8x256xbf16>, vector<256x512xbf16>, vector<8x512xf32> -> vector<8x512xf32>
    %465 = arith.addf %464, %14 : vector<8x512xf32>
    %466 = vector.extract_strided_slice %465 {offsets = [0, 0], sizes = [8, 128], strides = [1, 1]} : vector<8x512xf32> to vector<8x128xf32>
    %cst_187 = arith.constant 5.000000e-01 : f32
    %467 = vector.broadcast %cst_187 : f32 to vector<8x128xf32>
    %468 = arith.mulf %467, %466 : vector<8x128xf32>
    %469 = math.tanh %468 : vector<8x128xf32>
    %cst_188 = arith.constant 5.000000e-01 : f32
    %470 = vector.broadcast %cst_188 : f32 to vector<8x128xf32>
    %471 = arith.mulf %470, %469 : vector<8x128xf32>
    %cst_189 = arith.constant 5.000000e-01 : f32
    %472 = vector.broadcast %cst_189 : f32 to vector<8x128xf32>
    %473 = arith.addf %471, %472 : vector<8x128xf32>
    %474 = vector.extract_strided_slice %465 {offsets = [0, 128], sizes = [8, 128], strides = [1, 1]} : vector<8x512xf32> to vector<8x128xf32>
    %cst_190 = arith.constant 5.000000e-01 : f32
    %475 = vector.broadcast %cst_190 : f32 to vector<8x128xf32>
    %476 = arith.mulf %475, %474 : vector<8x128xf32>
    %477 = math.tanh %476 : vector<8x128xf32>
    %cst_191 = arith.constant 5.000000e-01 : f32
    %478 = vector.broadcast %cst_191 : f32 to vector<8x128xf32>
    %479 = arith.mulf %478, %477 : vector<8x128xf32>
    %cst_192 = arith.constant 5.000000e-01 : f32
    %480 = vector.broadcast %cst_192 : f32 to vector<8x128xf32>
    %481 = arith.addf %479, %480 : vector<8x128xf32>
    %482 = vector.extract_strided_slice %465 {offsets = [0, 256], sizes = [8, 128], strides = [1, 1]} : vector<8x512xf32> to vector<8x128xf32>
    %483 = math.tanh %482 : vector<8x128xf32>
    %484 = vector.extract_strided_slice %465 {offsets = [0, 384], sizes = [8, 128], strides = [1, 1]} : vector<8x512xf32> to vector<8x128xf32>
    %cst_193 = arith.constant 5.000000e-01 : f32
    %485 = vector.broadcast %cst_193 : f32 to vector<8x128xf32>
    %486 = arith.mulf %485, %484 : vector<8x128xf32>
    %487 = math.tanh %486 : vector<8x128xf32>
    %cst_194 = arith.constant 5.000000e-01 : f32
    %488 = vector.broadcast %cst_194 : f32 to vector<8x128xf32>
    %489 = arith.mulf %488, %487 : vector<8x128xf32>
    %cst_195 = arith.constant 5.000000e-01 : f32
    %490 = vector.broadcast %cst_195 : f32 to vector<8x128xf32>
    %491 = arith.addf %489, %490 : vector<8x128xf32>
    %492 = arith.mulf %481, %378 : vector<8x128xf32>
    %493 = arith.mulf %473, %483 : vector<8x128xf32>
    %494 = arith.addf %492, %493 : vector<8x128xf32>
    %495 = math.tanh %494 : vector<8x128xf32>
    %496 = arith.mulf %491, %495 : vector<8x128xf32>
    %497 = arith.truncf %496 : vector<8x128xf32> to vector<8x128xbf16>
    %c0_196 = arith.constant 0 : index
    %c0_197 = arith.constant 0 : index
    %498 = vector.load %arg13[%c0_196, %c0_197] : memref<128x128xbf16, #tpu.memory_space<vmem>>, vector<128x128xbf16>
    %cst_198 = arith.constant dense<0.000000e+00> : vector<8x128xf32>
    %499 = tpu.matmul %497, %498, %cst_198 {dimension_numbers = #tpu.dot_dimension_numbers<[1], [0], [0], [1], [0, 0, 1, 1], [], []>} : vector<8x128xbf16>, vector<128x128xbf16>, vector<8x128xf32> -> vector<8x128xf32>
    %500 = arith.addf %499, %17 : vector<8x128xf32>
    %c3_199 = arith.constant 3 : index
    %c0_200 = arith.constant 0 : index
    %c0_201 = arith.constant 0 : index
    %501 = vector.load %arg9[%c3_199, %c0_200, %c0_201] : memref<10x8x128xf32, #tpu.memory_space<vmem>>, vector<1x8x128xf32>
    %502 = vector.shape_cast %501 : vector<1x8x128xf32> to vector<8x128xf32>
    %503 = vector.shape_cast %500 : vector<8x128xf32> to vector<1x8x128xf32>
    tpu.vector_store %arg9[%c3_199, %c0_200, %c0_201], %503 {strides = array<i32>} : memref<10x8x128xf32, #tpu.memory_space<vmem>>, vector<1x8x128xf32>,
    %c4 = arith.constant 4 : index
    %c0_202 = arith.constant 0 : index
    %c0_203 = arith.constant 0 : index
    %504 = vector.load %arg10[%c4, %c0_202, %c0_203] : memref<8x8x512xf32, #tpu.memory_space<vmem>>, vector<1x8x512xf32>
    %505 = vector.shape_cast %504 : vector<1x8x512xf32> to vector<8x512xf32>
    %506 = arith.truncf %424 : vector<8x128xf32> to vector<8x128xbf16>
    %c128_204 = arith.constant 128 : index
    %c0_205 = arith.constant 0 : index
    %507 = vector.load %arg1[%c128_204, %c0_205] : memref<256x512xbf16, #tpu.memory_space<vmem>>, vector<128x512xbf16>
    %cst_206 = arith.constant dense<0.000000e+00> : vector<8x512xf32>
    %508 = tpu.matmul %506, %507, %cst_206 {dimension_numbers = #tpu.dot_dimension_numbers<[1], [0], [0], [1], [0, 0, 1, 1], [], []>} : vector<8x128xbf16>, vector<128x512xbf16>, vector<8x512xf32> -> vector<8x512xf32>
    %509 = arith.addf %505, %508 : vector<8x512xf32>
    %510 = vector.extract_strided_slice %509 {offsets = [0, 0], sizes = [8, 128], strides = [1, 1]} : vector<8x512xf32> to vector<8x128xf32>
    %cst_207 = arith.constant 5.000000e-01 : f32
    %511 = vector.broadcast %cst_207 : f32 to vector<8x128xf32>
    %512 = arith.mulf %511, %510 : vector<8x128xf32>
    %513 = math.tanh %512 : vector<8x128xf32>
    %cst_208 = arith.constant 5.000000e-01 : f32
    %514 = vector.broadcast %cst_208 : f32 to vector<8x128xf32>
    %515 = arith.mulf %514, %513 : vector<8x128xf32>
    %cst_209 = arith.constant 5.000000e-01 : f32
    %516 = vector.broadcast %cst_209 : f32 to vector<8x128xf32>
    %517 = arith.addf %515, %516 : vector<8x128xf32>
    %518 = vector.extract_strided_slice %509 {offsets = [0, 128], sizes = [8, 128], strides = [1, 1]} : vector<8x512xf32> to vector<8x128xf32>
    %cst_210 = arith.constant 5.000000e-01 : f32
    %519 = vector.broadcast %cst_210 : f32 to vector<8x128xf32>
    %520 = arith.mulf %519, %518 : vector<8x128xf32>
    %521 = math.tanh %520 : vector<8x128xf32>
    %cst_211 = arith.constant 5.000000e-01 : f32
    %522 = vector.broadcast %cst_211 : f32 to vector<8x128xf32>
    %523 = arith.mulf %522, %521 : vector<8x128xf32>
    %cst_212 = arith.constant 5.000000e-01 : f32
    %524 = vector.broadcast %cst_212 : f32 to vector<8x128xf32>
    %525 = arith.addf %523, %524 : vector<8x128xf32>
    %526 = vector.extract_strided_slice %509 {offsets = [0, 256], sizes = [8, 128], strides = [1, 1]} : vector<8x512xf32> to vector<8x128xf32>
    %527 = math.tanh %526 : vector<8x128xf32>
    %528 = vector.extract_strided_slice %509 {offsets = [0, 384], sizes = [8, 128], strides = [1, 1]} : vector<8x512xf32> to vector<8x128xf32>
    %cst_213 = arith.constant 5.000000e-01 : f32
    %529 = vector.broadcast %cst_213 : f32 to vector<8x128xf32>
    %530 = arith.mulf %529, %528 : vector<8x128xf32>
    %531 = math.tanh %530 : vector<8x128xf32>
    %cst_214 = arith.constant 5.000000e-01 : f32
    %532 = vector.broadcast %cst_214 : f32 to vector<8x128xf32>
    %533 = arith.mulf %532, %531 : vector<8x128xf32>
    %cst_215 = arith.constant 5.000000e-01 : f32
    %534 = vector.broadcast %cst_215 : f32 to vector<8x128xf32>
    %535 = arith.addf %533, %534 : vector<8x128xf32>
    %536 = arith.mulf %525, %422 : vector<8x128xf32>
    %537 = arith.mulf %517, %527 : vector<8x128xf32>
    %538 = arith.addf %536, %537 : vector<8x128xf32>
    %539 = math.tanh %538 : vector<8x128xf32>
    %540 = arith.mulf %535, %539 : vector<8x128xf32>
    %541 = tpu.concatenate %540, %460 in 1 : vector<8x128xf32>, vector<8x128xf32> -> vector<8x256xf32>
    %542 = arith.truncf %541 : vector<8x256xf32> to vector<8x256xbf16>
    %c0_216 = arith.constant 0 : index
    %c0_217 = arith.constant 0 : index
    %543 = vector.load %arg11[%c0_216, %c0_217] : memref<256x512xbf16, #tpu.memory_space<vmem>>, vector<256x512xbf16>
    %cst_218 = arith.constant dense<0.000000e+00> : vector<8x512xf32>
    %544 = tpu.matmul %542, %543, %cst_218 {dimension_numbers = #tpu.dot_dimension_numbers<[1], [0], [0], [1], [0, 0, 1, 1], [], []>} : vector<8x256xbf16>, vector<256x512xbf16>, vector<8x512xf32> -> vector<8x512xf32>
    %545 = arith.addf %544, %11 : vector<8x512xf32>
    %546 = vector.extract_strided_slice %545 {offsets = [0, 0], sizes = [8, 128], strides = [1, 1]} : vector<8x512xf32> to vector<8x128xf32>
    %cst_219 = arith.constant 5.000000e-01 : f32
    %547 = vector.broadcast %cst_219 : f32 to vector<8x128xf32>
    %548 = arith.mulf %547, %546 : vector<8x128xf32>
    %549 = math.tanh %548 : vector<8x128xf32>
    %cst_220 = arith.constant 5.000000e-01 : f32
    %550 = vector.broadcast %cst_220 : f32 to vector<8x128xf32>
    %551 = arith.mulf %550, %549 : vector<8x128xf32>
    %cst_221 = arith.constant 5.000000e-01 : f32
    %552 = vector.broadcast %cst_221 : f32 to vector<8x128xf32>
    %553 = arith.addf %551, %552 : vector<8x128xf32>
    %554 = vector.extract_strided_slice %545 {offsets = [0, 128], sizes = [8, 128], strides = [1, 1]} : vector<8x512xf32> to vector<8x128xf32>
    %cst_222 = arith.constant 5.000000e-01 : f32
    %555 = vector.broadcast %cst_222 : f32 to vector<8x128xf32>
    %556 = arith.mulf %555, %554 : vector<8x128xf32>
    %557 = math.tanh %556 : vector<8x128xf32>
    %cst_223 = arith.constant 5.000000e-01 : f32
    %558 = vector.broadcast %cst_223 : f32 to vector<8x128xf32>
    %559 = arith.mulf %558, %557 : vector<8x128xf32>
    %cst_224 = arith.constant 5.000000e-01 : f32
    %560 = vector.broadcast %cst_224 : f32 to vector<8x128xf32>
    %561 = arith.addf %559, %560 : vector<8x128xf32>
    %562 = vector.extract_strided_slice %545 {offsets = [0, 256], sizes = [8, 128], strides = [1, 1]} : vector<8x512xf32> to vector<8x128xf32>
    %563 = math.tanh %562 : vector<8x128xf32>
    %564 = vector.extract_strided_slice %545 {offsets = [0, 384], sizes = [8, 128], strides = [1, 1]} : vector<8x512xf32> to vector<8x128xf32>
    %cst_225 = arith.constant 5.000000e-01 : f32
    %565 = vector.broadcast %cst_225 : f32 to vector<8x128xf32>
    %566 = arith.mulf %565, %564 : vector<8x128xf32>
    %567 = math.tanh %566 : vector<8x128xf32>
    %cst_226 = arith.constant 5.000000e-01 : f32
    %568 = vector.broadcast %cst_226 : f32 to vector<8x128xf32>
    %569 = arith.mulf %568, %567 : vector<8x128xf32>
    %cst_227 = arith.constant 5.000000e-01 : f32
    %570 = vector.broadcast %cst_227 : f32 to vector<8x128xf32>
    %571 = arith.addf %569, %570 : vector<8x128xf32>
    %572 = arith.mulf %561, %458 : vector<8x128xf32>
    %573 = arith.mulf %553, %563 : vector<8x128xf32>
    %574 = arith.addf %572, %573 : vector<8x128xf32>
    %575 = math.tanh %574 : vector<8x128xf32>
    %576 = arith.mulf %571, %575 : vector<8x128xf32>
    %577 = tpu.concatenate %576, %496 in 1 : vector<8x128xf32>, vector<8x128xf32> -> vector<8x256xf32>
    %578 = arith.truncf %577 : vector<8x256xf32> to vector<8x256xbf16>
    %c0_228 = arith.constant 0 : index
    %c0_229 = arith.constant 0 : index
    %579 = vector.load %arg12[%c0_228, %c0_229] : memref<256x512xbf16, #tpu.memory_space<vmem>>, vector<256x512xbf16>
    %cst_230 = arith.constant dense<0.000000e+00> : vector<8x512xf32>
    %580 = tpu.matmul %578, %579, %cst_230 {dimension_numbers = #tpu.dot_dimension_numbers<[1], [0], [0], [1], [0, 0, 1, 1], [], []>} : vector<8x256xbf16>, vector<256x512xbf16>, vector<8x512xf32> -> vector<8x512xf32>
    %581 = arith.addf %580, %14 : vector<8x512xf32>
    %582 = vector.extract_strided_slice %581 {offsets = [0, 0], sizes = [8, 128], strides = [1, 1]} : vector<8x512xf32> to vector<8x128xf32>
    %cst_231 = arith.constant 5.000000e-01 : f32
    %583 = vector.broadcast %cst_231 : f32 to vector<8x128xf32>
    %584 = arith.mulf %583, %582 : vector<8x128xf32>
    %585 = math.tanh %584 : vector<8x128xf32>
    %cst_232 = arith.constant 5.000000e-01 : f32
    %586 = vector.broadcast %cst_232 : f32 to vector<8x128xf32>
    %587 = arith.mulf %586, %585 : vector<8x128xf32>
    %cst_233 = arith.constant 5.000000e-01 : f32
    %588 = vector.broadcast %cst_233 : f32 to vector<8x128xf32>
    %589 = arith.addf %587, %588 : vector<8x128xf32>
    %590 = vector.extract_strided_slice %581 {offsets = [0, 128], sizes = [8, 128], strides = [1, 1]} : vector<8x512xf32> to vector<8x128xf32>
    %cst_234 = arith.constant 5.000000e-01 : f32
    %591 = vector.broadcast %cst_234 : f32 to vector<8x128xf32>
    %592 = arith.mulf %591, %590 : vector<8x128xf32>
    %593 = math.tanh %592 : vector<8x128xf32>
    %cst_235 = arith.constant 5.000000e-01 : f32
    %594 = vector.broadcast %cst_235 : f32 to vector<8x128xf32>
    %595 = arith.mulf %594, %593 : vector<8x128xf32>
    %cst_236 = arith.constant 5.000000e-01 : f32
    %596 = vector.broadcast %cst_236 : f32 to vector<8x128xf32>
    %597 = arith.addf %595, %596 : vector<8x128xf32>
    %598 = vector.extract_strided_slice %581 {offsets = [0, 256], sizes = [8, 128], strides = [1, 1]} : vector<8x512xf32> to vector<8x128xf32>
    %599 = math.tanh %598 : vector<8x128xf32>
    %600 = vector.extract_strided_slice %581 {offsets = [0, 384], sizes = [8, 128], strides = [1, 1]} : vector<8x512xf32> to vector<8x128xf32>
    %cst_237 = arith.constant 5.000000e-01 : f32
    %601 = vector.broadcast %cst_237 : f32 to vector<8x128xf32>
    %602 = arith.mulf %601, %600 : vector<8x128xf32>
    %603 = math.tanh %602 : vector<8x128xf32>
    %cst_238 = arith.constant 5.000000e-01 : f32
    %604 = vector.broadcast %cst_238 : f32 to vector<8x128xf32>
    %605 = arith.mulf %604, %603 : vector<8x128xf32>
    %cst_239 = arith.constant 5.000000e-01 : f32
    %606 = vector.broadcast %cst_239 : f32 to vector<8x128xf32>
    %607 = arith.addf %605, %606 : vector<8x128xf32>
    %608 = arith.mulf %597, %494 : vector<8x128xf32>
    %609 = arith.mulf %589, %599 : vector<8x128xf32>
    %610 = arith.addf %608, %609 : vector<8x128xf32>
    %611 = math.tanh %610 : vector<8x128xf32>
    %612 = arith.mulf %607, %611 : vector<8x128xf32>
    %613 = arith.truncf %612 : vector<8x128xf32> to vector<8x128xbf16>
    %c0_240 = arith.constant 0 : index
    %c0_241 = arith.constant 0 : index
    %614 = vector.load %arg13[%c0_240, %c0_241] : memref<128x128xbf16, #tpu.memory_space<vmem>>, vector<128x128xbf16>
    %cst_242 = arith.constant dense<0.000000e+00> : vector<8x128xf32>
    %615 = tpu.matmul %613, %614, %cst_242 {dimension_numbers = #tpu.dot_dimension_numbers<[1], [0], [0], [1], [0, 0, 1, 1], [], []>} : vector<8x128xbf16>, vector<128x128xbf16>, vector<8x128xf32> -> vector<8x128xf32>
    %616 = arith.addf %615, %17 : vector<8x128xf32>
    %c4_243 = arith.constant 4 : index
    %c0_244 = arith.constant 0 : index
    %c0_245 = arith.constant 0 : index
    %617 = vector.load %arg9[%c4_243, %c0_244, %c0_245] : memref<10x8x128xf32, #tpu.memory_space<vmem>>, vector<1x8x128xf32>
    %618 = vector.shape_cast %617 : vector<1x8x128xf32> to vector<8x128xf32>
    %619 = vector.shape_cast %616 : vector<8x128xf32> to vector<1x8x128xf32>
    tpu.vector_store %arg9[%c4_243, %c0_244, %c0_245], %619 {strides = array<i32>} : memref<10x8x128xf32, #tpu.memory_space<vmem>>, vector<1x8x128xf32>,
    %c5 = arith.constant 5 : index
    %c0_246 = arith.constant 0 : index
    %c0_247 = arith.constant 0 : index
    %620 = vector.load %arg10[%c5, %c0_246, %c0_247] : memref<8x8x512xf32, #tpu.memory_space<vmem>>, vector<1x8x512xf32>
    %621 = vector.shape_cast %620 : vector<1x8x512xf32> to vector<8x512xf32>
    %622 = arith.truncf %540 : vector<8x128xf32> to vector<8x128xbf16>
    %c128_248 = arith.constant 128 : index
    %c0_249 = arith.constant 0 : index
    %623 = vector.load %arg1[%c128_248, %c0_249] : memref<256x512xbf16, #tpu.memory_space<vmem>>, vector<128x512xbf16>
    %cst_250 = arith.constant dense<0.000000e+00> : vector<8x512xf32>
    %624 = tpu.matmul %622, %623, %cst_250 {dimension_numbers = #tpu.dot_dimension_numbers<[1], [0], [0], [1], [0, 0, 1, 1], [], []>} : vector<8x128xbf16>, vector<128x512xbf16>, vector<8x512xf32> -> vector<8x512xf32>
    %625 = arith.addf %621, %624 : vector<8x512xf32>
    %626 = vector.extract_strided_slice %625 {offsets = [0, 0], sizes = [8, 128], strides = [1, 1]} : vector<8x512xf32> to vector<8x128xf32>
    %cst_251 = arith.constant 5.000000e-01 : f32
    %627 = vector.broadcast %cst_251 : f32 to vector<8x128xf32>
    %628 = arith.mulf %627, %626 : vector<8x128xf32>
    %629 = math.tanh %628 : vector<8x128xf32>
    %cst_252 = arith.constant 5.000000e-01 : f32
    %630 = vector.broadcast %cst_252 : f32 to vector<8x128xf32>
    %631 = arith.mulf %630, %629 : vector<8x128xf32>
    %cst_253 = arith.constant 5.000000e-01 : f32
    %632 = vector.broadcast %cst_253 : f32 to vector<8x128xf32>
    %633 = arith.addf %631, %632 : vector<8x128xf32>
    %634 = vector.extract_strided_slice %625 {offsets = [0, 128], sizes = [8, 128], strides = [1, 1]} : vector<8x512xf32> to vector<8x128xf32>
    %cst_254 = arith.constant 5.000000e-01 : f32
    %635 = vector.broadcast %cst_254 : f32 to vector<8x128xf32>
    %636 = arith.mulf %635, %634 : vector<8x128xf32>
    %637 = math.tanh %636 : vector<8x128xf32>
    %cst_255 = arith.constant 5.000000e-01 : f32
    %638 = vector.broadcast %cst_255 : f32 to vector<8x128xf32>
    %639 = arith.mulf %638, %637 : vector<8x128xf32>
    %cst_256 = arith.constant 5.000000e-01 : f32
    %640 = vector.broadcast %cst_256 : f32 to vector<8x128xf32>
    %641 = arith.addf %639, %640 : vector<8x128xf32>
    %642 = vector.extract_strided_slice %625 {offsets = [0, 256], sizes = [8, 128], strides = [1, 1]} : vector<8x512xf32> to vector<8x128xf32>
    %643 = math.tanh %642 : vector<8x128xf32>
    %644 = vector.extract_strided_slice %625 {offsets = [0, 384], sizes = [8, 128], strides = [1, 1]} : vector<8x512xf32> to vector<8x128xf32>
    %cst_257 = arith.constant 5.000000e-01 : f32
    %645 = vector.broadcast %cst_257 : f32 to vector<8x128xf32>
    %646 = arith.mulf %645, %644 : vector<8x128xf32>
    %647 = math.tanh %646 : vector<8x128xf32>
    %cst_258 = arith.constant 5.000000e-01 : f32
    %648 = vector.broadcast %cst_258 : f32 to vector<8x128xf32>
    %649 = arith.mulf %648, %647 : vector<8x128xf32>
    %cst_259 = arith.constant 5.000000e-01 : f32
    %650 = vector.broadcast %cst_259 : f32 to vector<8x128xf32>
    %651 = arith.addf %649, %650 : vector<8x128xf32>
    %652 = arith.mulf %641, %538 : vector<8x128xf32>
    %653 = arith.mulf %633, %643 : vector<8x128xf32>
    %654 = arith.addf %652, %653 : vector<8x128xf32>
    %655 = math.tanh %654 : vector<8x128xf32>
    %656 = arith.mulf %651, %655 : vector<8x128xf32>
    %657 = tpu.concatenate %656, %576 in 1 : vector<8x128xf32>, vector<8x128xf32> -> vector<8x256xf32>
    %658 = arith.truncf %657 : vector<8x256xf32> to vector<8x256xbf16>
    %c0_260 = arith.constant 0 : index
    %c0_261 = arith.constant 0 : index
    %659 = vector.load %arg11[%c0_260, %c0_261] : memref<256x512xbf16, #tpu.memory_space<vmem>>, vector<256x512xbf16>
    %cst_262 = arith.constant dense<0.000000e+00> : vector<8x512xf32>
    %660 = tpu.matmul %658, %659, %cst_262 {dimension_numbers = #tpu.dot_dimension_numbers<[1], [0], [0], [1], [0, 0, 1, 1], [], []>} : vector<8x256xbf16>, vector<256x512xbf16>, vector<8x512xf32> -> vector<8x512xf32>
    %661 = arith.addf %660, %11 : vector<8x512xf32>
    %662 = vector.extract_strided_slice %661 {offsets = [0, 0], sizes = [8, 128], strides = [1, 1]} : vector<8x512xf32> to vector<8x128xf32>
    %cst_263 = arith.constant 5.000000e-01 : f32
    %663 = vector.broadcast %cst_263 : f32 to vector<8x128xf32>
    %664 = arith.mulf %663, %662 : vector<8x128xf32>
    %665 = math.tanh %664 : vector<8x128xf32>
    %cst_264 = arith.constant 5.000000e-01 : f32
    %666 = vector.broadcast %cst_264 : f32 to vector<8x128xf32>
    %667 = arith.mulf %666, %665 : vector<8x128xf32>
    %cst_265 = arith.constant 5.000000e-01 : f32
    %668 = vector.broadcast %cst_265 : f32 to vector<8x128xf32>
    %669 = arith.addf %667, %668 : vector<8x128xf32>
    %670 = vector.extract_strided_slice %661 {offsets = [0, 128], sizes = [8, 128], strides = [1, 1]} : vector<8x512xf32> to vector<8x128xf32>
    %cst_266 = arith.constant 5.000000e-01 : f32
    %671 = vector.broadcast %cst_266 : f32 to vector<8x128xf32>
    %672 = arith.mulf %671, %670 : vector<8x128xf32>
    %673 = math.tanh %672 : vector<8x128xf32>
    %cst_267 = arith.constant 5.000000e-01 : f32
    %674 = vector.broadcast %cst_267 : f32 to vector<8x128xf32>
    %675 = arith.mulf %674, %673 : vector<8x128xf32>
    %cst_268 = arith.constant 5.000000e-01 : f32
    %676 = vector.broadcast %cst_268 : f32 to vector<8x128xf32>
    %677 = arith.addf %675, %676 : vector<8x128xf32>
    %678 = vector.extract_strided_slice %661 {offsets = [0, 256], sizes = [8, 128], strides = [1, 1]} : vector<8x512xf32> to vector<8x128xf32>
    %679 = math.tanh %678 : vector<8x128xf32>
    %680 = vector.extract_strided_slice %661 {offsets = [0, 384], sizes = [8, 128], strides = [1, 1]} : vector<8x512xf32> to vector<8x128xf32>
    %cst_269 = arith.constant 5.000000e-01 : f32
    %681 = vector.broadcast %cst_269 : f32 to vector<8x128xf32>
    %682 = arith.mulf %681, %680 : vector<8x128xf32>
    %683 = math.tanh %682 : vector<8x128xf32>
    %cst_270 = arith.constant 5.000000e-01 : f32
    %684 = vector.broadcast %cst_270 : f32 to vector<8x128xf32>
    %685 = arith.mulf %684, %683 : vector<8x128xf32>
    %cst_271 = arith.constant 5.000000e-01 : f32
    %686 = vector.broadcast %cst_271 : f32 to vector<8x128xf32>
    %687 = arith.addf %685, %686 : vector<8x128xf32>
    %688 = arith.mulf %677, %574 : vector<8x128xf32>
    %689 = arith.mulf %669, %679 : vector<8x128xf32>
    %690 = arith.addf %688, %689 : vector<8x128xf32>
    %691 = math.tanh %690 : vector<8x128xf32>
    %692 = arith.mulf %687, %691 : vector<8x128xf32>
    %693 = tpu.concatenate %692, %612 in 1 : vector<8x128xf32>, vector<8x128xf32> -> vector<8x256xf32>
    %694 = arith.truncf %693 : vector<8x256xf32> to vector<8x256xbf16>
    %c0_272 = arith.constant 0 : index
    %c0_273 = arith.constant 0 : index
    %695 = vector.load %arg12[%c0_272, %c0_273] : memref<256x512xbf16, #tpu.memory_space<vmem>>, vector<256x512xbf16>
    %cst_274 = arith.constant dense<0.000000e+00> : vector<8x512xf32>
    %696 = tpu.matmul %694, %695, %cst_274 {dimension_numbers = #tpu.dot_dimension_numbers<[1], [0], [0], [1], [0, 0, 1, 1], [], []>} : vector<8x256xbf16>, vector<256x512xbf16>, vector<8x512xf32> -> vector<8x512xf32>
    %697 = arith.addf %696, %14 : vector<8x512xf32>
    %698 = vector.extract_strided_slice %697 {offsets = [0, 0], sizes = [8, 128], strides = [1, 1]} : vector<8x512xf32> to vector<8x128xf32>
    %cst_275 = arith.constant 5.000000e-01 : f32
    %699 = vector.broadcast %cst_275 : f32 to vector<8x128xf32>
    %700 = arith.mulf %699, %698 : vector<8x128xf32>
    %701 = math.tanh %700 : vector<8x128xf32>
    %cst_276 = arith.constant 5.000000e-01 : f32
    %702 = vector.broadcast %cst_276 : f32 to vector<8x128xf32>
    %703 = arith.mulf %702, %701 : vector<8x128xf32>
    %cst_277 = arith.constant 5.000000e-01 : f32
    %704 = vector.broadcast %cst_277 : f32 to vector<8x128xf32>
    %705 = arith.addf %703, %704 : vector<8x128xf32>
    %706 = vector.extract_strided_slice %697 {offsets = [0, 128], sizes = [8, 128], strides = [1, 1]} : vector<8x512xf32> to vector<8x128xf32>
    %cst_278 = arith.constant 5.000000e-01 : f32
    %707 = vector.broadcast %cst_278 : f32 to vector<8x128xf32>
    %708 = arith.mulf %707, %706 : vector<8x128xf32>
    %709 = math.tanh %708 : vector<8x128xf32>
    %cst_279 = arith.constant 5.000000e-01 : f32
    %710 = vector.broadcast %cst_279 : f32 to vector<8x128xf32>
    %711 = arith.mulf %710, %709 : vector<8x128xf32>
    %cst_280 = arith.constant 5.000000e-01 : f32
    %712 = vector.broadcast %cst_280 : f32 to vector<8x128xf32>
    %713 = arith.addf %711, %712 : vector<8x128xf32>
    %714 = vector.extract_strided_slice %697 {offsets = [0, 256], sizes = [8, 128], strides = [1, 1]} : vector<8x512xf32> to vector<8x128xf32>
    %715 = math.tanh %714 : vector<8x128xf32>
    %716 = vector.extract_strided_slice %697 {offsets = [0, 384], sizes = [8, 128], strides = [1, 1]} : vector<8x512xf32> to vector<8x128xf32>
    %cst_281 = arith.constant 5.000000e-01 : f32
    %717 = vector.broadcast %cst_281 : f32 to vector<8x128xf32>
    %718 = arith.mulf %717, %716 : vector<8x128xf32>
    %719 = math.tanh %718 : vector<8x128xf32>
    %cst_282 = arith.constant 5.000000e-01 : f32
    %720 = vector.broadcast %cst_282 : f32 to vector<8x128xf32>
    %721 = arith.mulf %720, %719 : vector<8x128xf32>
    %cst_283 = arith.constant 5.000000e-01 : f32
    %722 = vector.broadcast %cst_283 : f32 to vector<8x128xf32>
    %723 = arith.addf %721, %722 : vector<8x128xf32>
    %724 = arith.mulf %713, %610 : vector<8x128xf32>
    %725 = arith.mulf %705, %715 : vector<8x128xf32>
    %726 = arith.addf %724, %725 : vector<8x128xf32>
    %727 = math.tanh %726 : vector<8x128xf32>
    %728 = arith.mulf %723, %727 : vector<8x128xf32>
    %729 = arith.truncf %728 : vector<8x128xf32> to vector<8x128xbf16>
    %c0_284 = arith.constant 0 : index
    %c0_285 = arith.constant 0 : index
    %730 = vector.load %arg13[%c0_284, %c0_285] : memref<128x128xbf16, #tpu.memory_space<vmem>>, vector<128x128xbf16>
    %cst_286 = arith.constant dense<0.000000e+00> : vector<8x128xf32>
    %731 = tpu.matmul %729, %730, %cst_286 {dimension_numbers = #tpu.dot_dimension_numbers<[1], [0], [0], [1], [0, 0, 1, 1], [], []>} : vector<8x128xbf16>, vector<128x128xbf16>, vector<8x128xf32> -> vector<8x128xf32>
    %732 = arith.addf %731, %17 : vector<8x128xf32>
    %c5_287 = arith.constant 5 : index
    %c0_288 = arith.constant 0 : index
    %c0_289 = arith.constant 0 : index
    %733 = vector.load %arg9[%c5_287, %c0_288, %c0_289] : memref<10x8x128xf32, #tpu.memory_space<vmem>>, vector<1x8x128xf32>
    %734 = vector.shape_cast %733 : vector<1x8x128xf32> to vector<8x128xf32>
    %735 = vector.shape_cast %732 : vector<8x128xf32> to vector<1x8x128xf32>
    tpu.vector_store %arg9[%c5_287, %c0_288, %c0_289], %735 {strides = array<i32>} : memref<10x8x128xf32, #tpu.memory_space<vmem>>, vector<1x8x128xf32>,
    %c6 = arith.constant 6 : index
    %c0_290 = arith.constant 0 : index
    %c0_291 = arith.constant 0 : index
    %736 = vector.load %arg10[%c6, %c0_290, %c0_291] : memref<8x8x512xf32, #tpu.memory_space<vmem>>, vector<1x8x512xf32>
    %737 = vector.shape_cast %736 : vector<1x8x512xf32> to vector<8x512xf32>
    %738 = arith.truncf %656 : vector<8x128xf32> to vector<8x128xbf16>
    %c128_292 = arith.constant 128 : index
    %c0_293 = arith.constant 0 : index
    %739 = vector.load %arg1[%c128_292, %c0_293] : memref<256x512xbf16, #tpu.memory_space<vmem>>, vector<128x512xbf16>
    %cst_294 = arith.constant dense<0.000000e+00> : vector<8x512xf32>
    %740 = tpu.matmul %738, %739, %cst_294 {dimension_numbers = #tpu.dot_dimension_numbers<[1], [0], [0], [1], [0, 0, 1, 1], [], []>} : vector<8x128xbf16>, vector<128x512xbf16>, vector<8x512xf32> -> vector<8x512xf32>
    %741 = arith.addf %737, %740 : vector<8x512xf32>
    %742 = vector.extract_strided_slice %741 {offsets = [0, 0], sizes = [8, 128], strides = [1, 1]} : vector<8x512xf32> to vector<8x128xf32>
    %cst_295 = arith.constant 5.000000e-01 : f32
    %743 = vector.broadcast %cst_295 : f32 to vector<8x128xf32>
    %744 = arith.mulf %743, %742 : vector<8x128xf32>
    %745 = math.tanh %744 : vector<8x128xf32>
    %cst_296 = arith.constant 5.000000e-01 : f32
    %746 = vector.broadcast %cst_296 : f32 to vector<8x128xf32>
    %747 = arith.mulf %746, %745 : vector<8x128xf32>
    %cst_297 = arith.constant 5.000000e-01 : f32
    %748 = vector.broadcast %cst_297 : f32 to vector<8x128xf32>
    %749 = arith.addf %747, %748 : vector<8x128xf32>
    %750 = vector.extract_strided_slice %741 {offsets = [0, 128], sizes = [8, 128], strides = [1, 1]} : vector<8x512xf32> to vector<8x128xf32>
    %cst_298 = arith.constant 5.000000e-01 : f32
    %751 = vector.broadcast %cst_298 : f32 to vector<8x128xf32>
    %752 = arith.mulf %751, %750 : vector<8x128xf32>
    %753 = math.tanh %752 : vector<8x128xf32>
    %cst_299 = arith.constant 5.000000e-01 : f32
    %754 = vector.broadcast %cst_299 : f32 to vector<8x128xf32>
    %755 = arith.mulf %754, %753 : vector<8x128xf32>
    %cst_300 = arith.constant 5.000000e-01 : f32
    %756 = vector.broadcast %cst_300 : f32 to vector<8x128xf32>
    %757 = arith.addf %755, %756 : vector<8x128xf32>
    %758 = vector.extract_strided_slice %741 {offsets = [0, 256], sizes = [8, 128], strides = [1, 1]} : vector<8x512xf32> to vector<8x128xf32>
    %759 = math.tanh %758 : vector<8x128xf32>
    %760 = vector.extract_strided_slice %741 {offsets = [0, 384], sizes = [8, 128], strides = [1, 1]} : vector<8x512xf32> to vector<8x128xf32>
    %cst_301 = arith.constant 5.000000e-01 : f32
    %761 = vector.broadcast %cst_301 : f32 to vector<8x128xf32>
    %762 = arith.mulf %761, %760 : vector<8x128xf32>
    %763 = math.tanh %762 : vector<8x128xf32>
    %cst_302 = arith.constant 5.000000e-01 : f32
    %764 = vector.broadcast %cst_302 : f32 to vector<8x128xf32>
    %765 = arith.mulf %764, %763 : vector<8x128xf32>
    %cst_303 = arith.constant 5.000000e-01 : f32
    %766 = vector.broadcast %cst_303 : f32 to vector<8x128xf32>
    %767 = arith.addf %765, %766 : vector<8x128xf32>
    %768 = arith.mulf %757, %654 : vector<8x128xf32>
    %769 = arith.mulf %749, %759 : vector<8x128xf32>
    %770 = arith.addf %768, %769 : vector<8x128xf32>
    %771 = math.tanh %770 : vector<8x128xf32>
    %772 = arith.mulf %767, %771 : vector<8x128xf32>
    %773 = tpu.concatenate %772, %692 in 1 : vector<8x128xf32>, vector<8x128xf32> -> vector<8x256xf32>
    %774 = arith.truncf %773 : vector<8x256xf32> to vector<8x256xbf16>
    %c0_304 = arith.constant 0 : index
    %c0_305 = arith.constant 0 : index
    %775 = vector.load %arg11[%c0_304, %c0_305] : memref<256x512xbf16, #tpu.memory_space<vmem>>, vector<256x512xbf16>
    %cst_306 = arith.constant dense<0.000000e+00> : vector<8x512xf32>
    %776 = tpu.matmul %774, %775, %cst_306 {dimension_numbers = #tpu.dot_dimension_numbers<[1], [0], [0], [1], [0, 0, 1, 1], [], []>} : vector<8x256xbf16>, vector<256x512xbf16>, vector<8x512xf32> -> vector<8x512xf32>
    %777 = arith.addf %776, %11 : vector<8x512xf32>
    %778 = vector.extract_strided_slice %777 {offsets = [0, 0], sizes = [8, 128], strides = [1, 1]} : vector<8x512xf32> to vector<8x128xf32>
    %cst_307 = arith.constant 5.000000e-01 : f32
    %779 = vector.broadcast %cst_307 : f32 to vector<8x128xf32>
    %780 = arith.mulf %779, %778 : vector<8x128xf32>
    %781 = math.tanh %780 : vector<8x128xf32>
    %cst_308 = arith.constant 5.000000e-01 : f32
    %782 = vector.broadcast %cst_308 : f32 to vector<8x128xf32>
    %783 = arith.mulf %782, %781 : vector<8x128xf32>
    %cst_309 = arith.constant 5.000000e-01 : f32
    %784 = vector.broadcast %cst_309 : f32 to vector<8x128xf32>
    %785 = arith.addf %783, %784 : vector<8x128xf32>
    %786 = vector.extract_strided_slice %777 {offsets = [0, 128], sizes = [8, 128], strides = [1, 1]} : vector<8x512xf32> to vector<8x128xf32>
    %cst_310 = arith.constant 5.000000e-01 : f32
    %787 = vector.broadcast %cst_310 : f32 to vector<8x128xf32>
    %788 = arith.mulf %787, %786 : vector<8x128xf32>
    %789 = math.tanh %788 : vector<8x128xf32>
    %cst_311 = arith.constant 5.000000e-01 : f32
    %790 = vector.broadcast %cst_311 : f32 to vector<8x128xf32>
    %791 = arith.mulf %790, %789 : vector<8x128xf32>
    %cst_312 = arith.constant 5.000000e-01 : f32
    %792 = vector.broadcast %cst_312 : f32 to vector<8x128xf32>
    %793 = arith.addf %791, %792 : vector<8x128xf32>
    %794 = vector.extract_strided_slice %777 {offsets = [0, 256], sizes = [8, 128], strides = [1, 1]} : vector<8x512xf32> to vector<8x128xf32>
    %795 = math.tanh %794 : vector<8x128xf32>
    %796 = vector.extract_strided_slice %777 {offsets = [0, 384], sizes = [8, 128], strides = [1, 1]} : vector<8x512xf32> to vector<8x128xf32>
    %cst_313 = arith.constant 5.000000e-01 : f32
    %797 = vector.broadcast %cst_313 : f32 to vector<8x128xf32>
    %798 = arith.mulf %797, %796 : vector<8x128xf32>
    %799 = math.tanh %798 : vector<8x128xf32>
    %cst_314 = arith.constant 5.000000e-01 : f32
    %800 = vector.broadcast %cst_314 : f32 to vector<8x128xf32>
    %801 = arith.mulf %800, %799 : vector<8x128xf32>
    %cst_315 = arith.constant 5.000000e-01 : f32
    %802 = vector.broadcast %cst_315 : f32 to vector<8x128xf32>
    %803 = arith.addf %801, %802 : vector<8x128xf32>
    %804 = arith.mulf %793, %690 : vector<8x128xf32>
    %805 = arith.mulf %785, %795 : vector<8x128xf32>
    %806 = arith.addf %804, %805 : vector<8x128xf32>
    %807 = math.tanh %806 : vector<8x128xf32>
    %808 = arith.mulf %803, %807 : vector<8x128xf32>
    %809 = tpu.concatenate %808, %728 in 1 : vector<8x128xf32>, vector<8x128xf32> -> vector<8x256xf32>
    %810 = arith.truncf %809 : vector<8x256xf32> to vector<8x256xbf16>
    %c0_316 = arith.constant 0 : index
    %c0_317 = arith.constant 0 : index
    %811 = vector.load %arg12[%c0_316, %c0_317] : memref<256x512xbf16, #tpu.memory_space<vmem>>, vector<256x512xbf16>
    %cst_318 = arith.constant dense<0.000000e+00> : vector<8x512xf32>
    %812 = tpu.matmul %810, %811, %cst_318 {dimension_numbers = #tpu.dot_dimension_numbers<[1], [0], [0], [1], [0, 0, 1, 1], [], []>} : vector<8x256xbf16>, vector<256x512xbf16>, vector<8x512xf32> -> vector<8x512xf32>
    %813 = arith.addf %812, %14 : vector<8x512xf32>
    %814 = vector.extract_strided_slice %813 {offsets = [0, 0], sizes = [8, 128], strides = [1, 1]} : vector<8x512xf32> to vector<8x128xf32>
    %cst_319 = arith.constant 5.000000e-01 : f32
    %815 = vector.broadcast %cst_319 : f32 to vector<8x128xf32>
    %816 = arith.mulf %815, %814 : vector<8x128xf32>
    %817 = math.tanh %816 : vector<8x128xf32>
    %cst_320 = arith.constant 5.000000e-01 : f32
    %818 = vector.broadcast %cst_320 : f32 to vector<8x128xf32>
    %819 = arith.mulf %818, %817 : vector<8x128xf32>
    %cst_321 = arith.constant 5.000000e-01 : f32
    %820 = vector.broadcast %cst_321 : f32 to vector<8x128xf32>
    %821 = arith.addf %819, %820 : vector<8x128xf32>
    %822 = vector.extract_strided_slice %813 {offsets = [0, 128], sizes = [8, 128], strides = [1, 1]} : vector<8x512xf32> to vector<8x128xf32>
    %cst_322 = arith.constant 5.000000e-01 : f32
    %823 = vector.broadcast %cst_322 : f32 to vector<8x128xf32>
    %824 = arith.mulf %823, %822 : vector<8x128xf32>
    %825 = math.tanh %824 : vector<8x128xf32>
    %cst_323 = arith.constant 5.000000e-01 : f32
    %826 = vector.broadcast %cst_323 : f32 to vector<8x128xf32>
    %827 = arith.mulf %826, %825 : vector<8x128xf32>
    %cst_324 = arith.constant 5.000000e-01 : f32
    %828 = vector.broadcast %cst_324 : f32 to vector<8x128xf32>
    %829 = arith.addf %827, %828 : vector<8x128xf32>
    %830 = vector.extract_strided_slice %813 {offsets = [0, 256], sizes = [8, 128], strides = [1, 1]} : vector<8x512xf32> to vector<8x128xf32>
    %831 = math.tanh %830 : vector<8x128xf32>
    %832 = vector.extract_strided_slice %813 {offsets = [0, 384], sizes = [8, 128], strides = [1, 1]} : vector<8x512xf32> to vector<8x128xf32>
    %cst_325 = arith.constant 5.000000e-01 : f32
    %833 = vector.broadcast %cst_325 : f32 to vector<8x128xf32>
    %834 = arith.mulf %833, %832 : vector<8x128xf32>
    %835 = math.tanh %834 : vector<8x128xf32>
    %cst_326 = arith.constant 5.000000e-01 : f32
    %836 = vector.broadcast %cst_326 : f32 to vector<8x128xf32>
    %837 = arith.mulf %836, %835 : vector<8x128xf32>
    %cst_327 = arith.constant 5.000000e-01 : f32
    %838 = vector.broadcast %cst_327 : f32 to vector<8x128xf32>
    %839 = arith.addf %837, %838 : vector<8x128xf32>
    %840 = arith.mulf %829, %726 : vector<8x128xf32>
    %841 = arith.mulf %821, %831 : vector<8x128xf32>
    %842 = arith.addf %840, %841 : vector<8x128xf32>
    %843 = math.tanh %842 : vector<8x128xf32>
    %844 = arith.mulf %839, %843 : vector<8x128xf32>
    %845 = arith.truncf %844 : vector<8x128xf32> to vector<8x128xbf16>
    %c0_328 = arith.constant 0 : index
    %c0_329 = arith.constant 0 : index
    %846 = vector.load %arg13[%c0_328, %c0_329] : memref<128x128xbf16, #tpu.memory_space<vmem>>, vector<128x128xbf16>
    %cst_330 = arith.constant dense<0.000000e+00> : vector<8x128xf32>
    %847 = tpu.matmul %845, %846, %cst_330 {dimension_numbers = #tpu.dot_dimension_numbers<[1], [0], [0], [1], [0, 0, 1, 1], [], []>} : vector<8x128xbf16>, vector<128x128xbf16>, vector<8x128xf32> -> vector<8x128xf32>
    %848 = arith.addf %847, %17 : vector<8x128xf32>
    %c6_331 = arith.constant 6 : index
    %c0_332 = arith.constant 0 : index
    %c0_333 = arith.constant 0 : index
    %849 = vector.load %arg9[%c6_331, %c0_332, %c0_333] : memref<10x8x128xf32, #tpu.memory_space<vmem>>, vector<1x8x128xf32>
    %850 = vector.shape_cast %849 : vector<1x8x128xf32> to vector<8x128xf32>
    %851 = vector.shape_cast %848 : vector<8x128xf32> to vector<1x8x128xf32>
    tpu.vector_store %arg9[%c6_331, %c0_332, %c0_333], %851 {strides = array<i32>} : memref<10x8x128xf32, #tpu.memory_space<vmem>>, vector<1x8x128xf32>,
    %c7 = arith.constant 7 : index
    %c0_334 = arith.constant 0 : index
    %c0_335 = arith.constant 0 : index
    %852 = vector.load %arg10[%c7, %c0_334, %c0_335] : memref<8x8x512xf32, #tpu.memory_space<vmem>>, vector<1x8x512xf32>
    %853 = vector.shape_cast %852 : vector<1x8x512xf32> to vector<8x512xf32>
    %854 = arith.truncf %772 : vector<8x128xf32> to vector<8x128xbf16>
    %c128_336 = arith.constant 128 : index
    %c0_337 = arith.constant 0 : index
    %855 = vector.load %arg1[%c128_336, %c0_337] : memref<256x512xbf16, #tpu.memory_space<vmem>>, vector<128x512xbf16>
    %cst_338 = arith.constant dense<0.000000e+00> : vector<8x512xf32>
    %856 = tpu.matmul %854, %855, %cst_338 {dimension_numbers = #tpu.dot_dimension_numbers<[1], [0], [0], [1], [0, 0, 1, 1], [], []>} : vector<8x128xbf16>, vector<128x512xbf16>, vector<8x512xf32> -> vector<8x512xf32>
    %857 = arith.addf %853, %856 : vector<8x512xf32>
    %858 = vector.extract_strided_slice %857 {offsets = [0, 0], sizes = [8, 128], strides = [1, 1]} : vector<8x512xf32> to vector<8x128xf32>
    %cst_339 = arith.constant 5.000000e-01 : f32
    %859 = vector.broadcast %cst_339 : f32 to vector<8x128xf32>
    %860 = arith.mulf %859, %858 : vector<8x128xf32>
    %861 = math.tanh %860 : vector<8x128xf32>
    %cst_340 = arith.constant 5.000000e-01 : f32
    %862 = vector.broadcast %cst_340 : f32 to vector<8x128xf32>
    %863 = arith.mulf %862, %861 : vector<8x128xf32>
    %cst_341 = arith.constant 5.000000e-01 : f32
    %864 = vector.broadcast %cst_341 : f32 to vector<8x128xf32>
    %865 = arith.addf %863, %864 : vector<8x128xf32>
    %866 = vector.extract_strided_slice %857 {offsets = [0, 128], sizes = [8, 128], strides = [1, 1]} : vector<8x512xf32> to vector<8x128xf32>
    %cst_342 = arith.constant 5.000000e-01 : f32
    %867 = vector.broadcast %cst_342 : f32 to vector<8x128xf32>
    %868 = arith.mulf %867, %866 : vector<8x128xf32>
    %869 = math.tanh %868 : vector<8x128xf32>
    %cst_343 = arith.constant 5.000000e-01 : f32
    %870 = vector.broadcast %cst_343 : f32 to vector<8x128xf32>
    %871 = arith.mulf %870, %869 : vector<8x128xf32>
    %cst_344 = arith.constant 5.000000e-01 : f32
    %872 = vector.broadcast %cst_344 : f32 to vector<8x128xf32>
    %873 = arith.addf %871, %872 : vector<8x128xf32>
    %874 = vector.extract_strided_slice %857 {offsets = [0, 256], sizes = [8, 128], strides = [1, 1]} : vector<8x512xf32> to vector<8x128xf32>
    %875 = math.tanh %874 : vector<8x128xf32>
    %876 = vector.extract_strided_slice %857 {offsets = [0, 384], sizes = [8, 128], strides = [1, 1]} : vector<8x512xf32> to vector<8x128xf32>
    %cst_345 = arith.constant 5.000000e-01 : f32
    %877 = vector.broadcast %cst_345 : f32 to vector<8x128xf32>
    %878 = arith.mulf %877, %876 : vector<8x128xf32>
    %879 = math.tanh %878 : vector<8x128xf32>
    %cst_346 = arith.constant 5.000000e-01 : f32
    %880 = vector.broadcast %cst_346 : f32 to vector<8x128xf32>
    %881 = arith.mulf %880, %879 : vector<8x128xf32>
    %cst_347 = arith.constant 5.000000e-01 : f32
    %882 = vector.broadcast %cst_347 : f32 to vector<8x128xf32>
    %883 = arith.addf %881, %882 : vector<8x128xf32>
    %884 = arith.mulf %873, %770 : vector<8x128xf32>
    %885 = arith.mulf %865, %875 : vector<8x128xf32>
    %886 = arith.addf %884, %885 : vector<8x128xf32>
    %887 = math.tanh %886 : vector<8x128xf32>
    %888 = arith.mulf %883, %887 : vector<8x128xf32>
    %889 = tpu.concatenate %888, %808 in 1 : vector<8x128xf32>, vector<8x128xf32> -> vector<8x256xf32>
    %890 = arith.truncf %889 : vector<8x256xf32> to vector<8x256xbf16>
    %c0_348 = arith.constant 0 : index
    %c0_349 = arith.constant 0 : index
    %891 = vector.load %arg11[%c0_348, %c0_349] : memref<256x512xbf16, #tpu.memory_space<vmem>>, vector<256x512xbf16>
    %cst_350 = arith.constant dense<0.000000e+00> : vector<8x512xf32>
    %892 = tpu.matmul %890, %891, %cst_350 {dimension_numbers = #tpu.dot_dimension_numbers<[1], [0], [0], [1], [0, 0, 1, 1], [], []>} : vector<8x256xbf16>, vector<256x512xbf16>, vector<8x512xf32> -> vector<8x512xf32>
    %893 = arith.addf %892, %11 : vector<8x512xf32>
    %894 = vector.extract_strided_slice %893 {offsets = [0, 0], sizes = [8, 128], strides = [1, 1]} : vector<8x512xf32> to vector<8x128xf32>
    %cst_351 = arith.constant 5.000000e-01 : f32
    %895 = vector.broadcast %cst_351 : f32 to vector<8x128xf32>
    %896 = arith.mulf %895, %894 : vector<8x128xf32>
    %897 = math.tanh %896 : vector<8x128xf32>
    %cst_352 = arith.constant 5.000000e-01 : f32
    %898 = vector.broadcast %cst_352 : f32 to vector<8x128xf32>
    %899 = arith.mulf %898, %897 : vector<8x128xf32>
    %cst_353 = arith.constant 5.000000e-01 : f32
    %900 = vector.broadcast %cst_353 : f32 to vector<8x128xf32>
    %901 = arith.addf %899, %900 : vector<8x128xf32>
    %902 = vector.extract_strided_slice %893 {offsets = [0, 128], sizes = [8, 128], strides = [1, 1]} : vector<8x512xf32> to vector<8x128xf32>
    %cst_354 = arith.constant 5.000000e-01 : f32
    %903 = vector.broadcast %cst_354 : f32 to vector<8x128xf32>
    %904 = arith.mulf %903, %902 : vector<8x128xf32>
    %905 = math.tanh %904 : vector<8x128xf32>
    %cst_355 = arith.constant 5.000000e-01 : f32
    %906 = vector.broadcast %cst_355 : f32 to vector<8x128xf32>
    %907 = arith.mulf %906, %905 : vector<8x128xf32>
    %cst_356 = arith.constant 5.000000e-01 : f32
    %908 = vector.broadcast %cst_356 : f32 to vector<8x128xf32>
    %909 = arith.addf %907, %908 : vector<8x128xf32>
    %910 = vector.extract_strided_slice %893 {offsets = [0, 256], sizes = [8, 128], strides = [1, 1]} : vector<8x512xf32> to vector<8x128xf32>
    %911 = math.tanh %910 : vector<8x128xf32>
    %912 = vector.extract_strided_slice %893 {offsets = [0, 384], sizes = [8, 128], strides = [1, 1]} : vector<8x512xf32> to vector<8x128xf32>
    %cst_357 = arith.constant 5.000000e-01 : f32
    %913 = vector.broadcast %cst_357 : f32 to vector<8x128xf32>
    %914 = arith.mulf %913, %912 : vector<8x128xf32>
    %915 = math.tanh %914 : vector<8x128xf32>
    %cst_358 = arith.constant 5.000000e-01 : f32
    %916 = vector.broadcast %cst_358 : f32 to vector<8x128xf32>
    %917 = arith.mulf %916, %915 : vector<8x128xf32>
    %cst_359 = arith.constant 5.000000e-01 : f32
    %918 = vector.broadcast %cst_359 : f32 to vector<8x128xf32>
    %919 = arith.addf %917, %918 : vector<8x128xf32>
    %920 = arith.mulf %909, %806 : vector<8x128xf32>
    %921 = arith.mulf %901, %911 : vector<8x128xf32>
    %922 = arith.addf %920, %921 : vector<8x128xf32>
    %923 = math.tanh %922 : vector<8x128xf32>
    %924 = arith.mulf %919, %923 : vector<8x128xf32>
    %925 = tpu.concatenate %924, %844 in 1 : vector<8x128xf32>, vector<8x128xf32> -> vector<8x256xf32>
    %926 = arith.truncf %925 : vector<8x256xf32> to vector<8x256xbf16>
    %c0_360 = arith.constant 0 : index
    %c0_361 = arith.constant 0 : index
    %927 = vector.load %arg12[%c0_360, %c0_361] : memref<256x512xbf16, #tpu.memory_space<vmem>>, vector<256x512xbf16>
    %cst_362 = arith.constant dense<0.000000e+00> : vector<8x512xf32>
    %928 = tpu.matmul %926, %927, %cst_362 {dimension_numbers = #tpu.dot_dimension_numbers<[1], [0], [0], [1], [0, 0, 1, 1], [], []>} : vector<8x256xbf16>, vector<256x512xbf16>, vector<8x512xf32> -> vector<8x512xf32>
    %929 = arith.addf %928, %14 : vector<8x512xf32>
    %930 = vector.extract_strided_slice %929 {offsets = [0, 0], sizes = [8, 128], strides = [1, 1]} : vector<8x512xf32> to vector<8x128xf32>
    %cst_363 = arith.constant 5.000000e-01 : f32
    %931 = vector.broadcast %cst_363 : f32 to vector<8x128xf32>
    %932 = arith.mulf %931, %930 : vector<8x128xf32>
    %933 = math.tanh %932 : vector<8x128xf32>
    %cst_364 = arith.constant 5.000000e-01 : f32
    %934 = vector.broadcast %cst_364 : f32 to vector<8x128xf32>
    %935 = arith.mulf %934, %933 : vector<8x128xf32>
    %cst_365 = arith.constant 5.000000e-01 : f32
    %936 = vector.broadcast %cst_365 : f32 to vector<8x128xf32>
    %937 = arith.addf %935, %936 : vector<8x128xf32>
    %938 = vector.extract_strided_slice %929 {offsets = [0, 128], sizes = [8, 128], strides = [1, 1]} : vector<8x512xf32> to vector<8x128xf32>
    %cst_366 = arith.constant 5.000000e-01 : f32
    %939 = vector.broadcast %cst_366 : f32 to vector<8x128xf32>
    %940 = arith.mulf %939, %938 : vector<8x128xf32>
    %941 = math.tanh %940 : vector<8x128xf32>
    %cst_367 = arith.constant 5.000000e-01 : f32
    %942 = vector.broadcast %cst_367 : f32 to vector<8x128xf32>
    %943 = arith.mulf %942, %941 : vector<8x128xf32>
    %cst_368 = arith.constant 5.000000e-01 : f32
    %944 = vector.broadcast %cst_368 : f32 to vector<8x128xf32>
    %945 = arith.addf %943, %944 : vector<8x128xf32>
    %946 = vector.extract_strided_slice %929 {offsets = [0, 256], sizes = [8, 128], strides = [1, 1]} : vector<8x512xf32> to vector<8x128xf32>
    %947 = math.tanh %946 : vector<8x128xf32>
    %948 = vector.extract_strided_slice %929 {offsets = [0, 384], sizes = [8, 128], strides = [1, 1]} : vector<8x512xf32> to vector<8x128xf32>
    %cst_369 = arith.constant 5.000000e-01 : f32
    %949 = vector.broadcast %cst_369 : f32 to vector<8x128xf32>
    %950 = arith.mulf %949, %948 : vector<8x128xf32>
    %951 = math.tanh %950 : vector<8x128xf32>
    %cst_370 = arith.constant 5.000000e-01 : f32
    %952 = vector.broadcast %cst_370 : f32 to vector<8x128xf32>
    %953 = arith.mulf %952, %951 : vector<8x128xf32>
    %cst_371 = arith.constant 5.000000e-01 : f32
    %954 = vector.broadcast %cst_371 : f32 to vector<8x128xf32>
    %955 = arith.addf %953, %954 : vector<8x128xf32>
    %956 = arith.mulf %945, %842 : vector<8x128xf32>
    %957 = arith.mulf %937, %947 : vector<8x128xf32>
    %958 = arith.addf %956, %957 : vector<8x128xf32>
    %959 = math.tanh %958 : vector<8x128xf32>
    %960 = arith.mulf %955, %959 : vector<8x128xf32>
    %961 = arith.truncf %960 : vector<8x128xf32> to vector<8x128xbf16>
    %c0_372 = arith.constant 0 : index
    %c0_373 = arith.constant 0 : index
    %962 = vector.load %arg13[%c0_372, %c0_373] : memref<128x128xbf16, #tpu.memory_space<vmem>>, vector<128x128xbf16>
    %cst_374 = arith.constant dense<0.000000e+00> : vector<8x128xf32>
    %963 = tpu.matmul %961, %962, %cst_374 {dimension_numbers = #tpu.dot_dimension_numbers<[1], [0], [0], [1], [0, 0, 1, 1], [], []>} : vector<8x128xbf16>, vector<128x128xbf16>, vector<8x128xf32> -> vector<8x128xf32>
    %964 = arith.addf %963, %17 : vector<8x128xf32>
    %c7_375 = arith.constant 7 : index
    %c0_376 = arith.constant 0 : index
    %c0_377 = arith.constant 0 : index
    %965 = vector.load %arg9[%c7_375, %c0_376, %c0_377] : memref<10x8x128xf32, #tpu.memory_space<vmem>>, vector<1x8x128xf32>
    %966 = vector.shape_cast %965 : vector<1x8x128xf32> to vector<8x128xf32>
    %967 = vector.shape_cast %964 : vector<8x128xf32> to vector<1x8x128xf32>
    tpu.vector_store %arg9[%c7_375, %c0_376, %c0_377], %967 {strides = array<i32>} : memref<10x8x128xf32, #tpu.memory_space<vmem>>, vector<1x8x128xf32>,
    %968 = tpu.concatenate %964, %888 in 1 : vector<8x128xf32>, vector<8x128xf32> -> vector<8x256xf32>
    %969 = arith.truncf %968 : vector<8x256xf32> to vector<8x256xbf16>
    %c0_378 = arith.constant 0 : index
    %c0_379 = arith.constant 0 : index
    %970 = vector.load %arg1[%c0_378, %c0_379] : memref<256x512xbf16, #tpu.memory_space<vmem>>, vector<256x512xbf16>
    %cst_380 = arith.constant dense<0.000000e+00> : vector<8x512xf32>
    %971 = tpu.matmul %969, %970, %cst_380 {dimension_numbers = #tpu.dot_dimension_numbers<[1], [0], [0], [1], [0, 0, 1, 1], [], []>} : vector<8x256xbf16>, vector<256x512xbf16>, vector<8x512xf32> -> vector<8x512xf32>
    %972 = arith.addf %971, %8 : vector<8x512xf32>
    %973 = vector.extract_strided_slice %972 {offsets = [0, 0], sizes = [8, 128], strides = [1, 1]} : vector<8x512xf32> to vector<8x128xf32>
    %cst_381 = arith.constant 5.000000e-01 : f32
    %974 = vector.broadcast %cst_381 : f32 to vector<8x128xf32>
    %975 = arith.mulf %974, %973 : vector<8x128xf32>
    %976 = math.tanh %975 : vector<8x128xf32>
    %cst_382 = arith.constant 5.000000e-01 : f32
    %977 = vector.broadcast %cst_382 : f32 to vector<8x128xf32>
    %978 = arith.mulf %977, %976 : vector<8x128xf32>
    %cst_383 = arith.constant 5.000000e-01 : f32
    %979 = vector.broadcast %cst_383 : f32 to vector<8x128xf32>
    %980 = arith.addf %978, %979 : vector<8x128xf32>
    %981 = vector.extract_strided_slice %972 {offsets = [0, 128], sizes = [8, 128], strides = [1, 1]} : vector<8x512xf32> to vector<8x128xf32>
    %cst_384 = arith.constant 5.000000e-01 : f32
    %982 = vector.broadcast %cst_384 : f32 to vector<8x128xf32>
    %983 = arith.mulf %982, %981 : vector<8x128xf32>
    %984 = math.tanh %983 : vector<8x128xf32>
    %cst_385 = arith.constant 5.000000e-01 : f32
    %985 = vector.broadcast %cst_385 : f32 to vector<8x128xf32>
    %986 = arith.mulf %985, %984 : vector<8x128xf32>
    %cst_386 = arith.constant 5.000000e-01 : f32
    %987 = vector.broadcast %cst_386 : f32 to vector<8x128xf32>
    %988 = arith.addf %986, %987 : vector<8x128xf32>
    %989 = vector.extract_strided_slice %972 {offsets = [0, 256], sizes = [8, 128], strides = [1, 1]} : vector<8x512xf32> to vector<8x128xf32>
    %990 = math.tanh %989 : vector<8x128xf32>
    %991 = vector.extract_strided_slice %972 {offsets = [0, 384], sizes = [8, 128], strides = [1, 1]} : vector<8x512xf32> to vector<8x128xf32>
    %cst_387 = arith.constant 5.000000e-01 : f32
    %992 = vector.broadcast %cst_387 : f32 to vector<8x128xf32>
    %993 = arith.mulf %992, %991 : vector<8x128xf32>
    %994 = math.tanh %993 : vector<8x128xf32>
    %cst_388 = arith.constant 5.000000e-01 : f32
    %995 = vector.broadcast %cst_388 : f32 to vector<8x128xf32>
    %996 = arith.mulf %995, %994 : vector<8x128xf32>
    %cst_389 = arith.constant 5.000000e-01 : f32
    %997 = vector.broadcast %cst_389 : f32 to vector<8x128xf32>
    %998 = arith.addf %996, %997 : vector<8x128xf32>
    %999 = arith.mulf %988, %886 : vector<8x128xf32>
    %1000 = arith.mulf %980, %990 : vector<8x128xf32>
    %1001 = arith.addf %999, %1000 : vector<8x128xf32>
    %1002 = math.tanh %1001 : vector<8x128xf32>
    %1003 = arith.mulf %998, %1002 : vector<8x128xf32>
    %1004 = tpu.concatenate %1003, %924 in 1 : vector<8x128xf32>, vector<8x128xf32> -> vector<8x256xf32>
    %1005 = arith.truncf %1004 : vector<8x256xf32> to vector<8x256xbf16>
    %c0_390 = arith.constant 0 : index
    %c0_391 = arith.constant 0 : index
    %1006 = vector.load %arg11[%c0_390, %c0_391] : memref<256x512xbf16, #tpu.memory_space<vmem>>, vector<256x512xbf16>
    %cst_392 = arith.constant dense<0.000000e+00> : vector<8x512xf32>
    %1007 = tpu.matmul %1005, %1006, %cst_392 {dimension_numbers = #tpu.dot_dimension_numbers<[1], [0], [0], [1], [0, 0, 1, 1], [], []>} : vector<8x256xbf16>, vector<256x512xbf16>, vector<8x512xf32> -> vector<8x512xf32>
    %1008 = arith.addf %1007, %11 : vector<8x512xf32>
    %1009 = vector.extract_strided_slice %1008 {offsets = [0, 0], sizes = [8, 128], strides = [1, 1]} : vector<8x512xf32> to vector<8x128xf32>
    %cst_393 = arith.constant 5.000000e-01 : f32
    %1010 = vector.broadcast %cst_393 : f32 to vector<8x128xf32>
    %1011 = arith.mulf %1010, %1009 : vector<8x128xf32>
    %1012 = math.tanh %1011 : vector<8x128xf32>
    %cst_394 = arith.constant 5.000000e-01 : f32
    %1013 = vector.broadcast %cst_394 : f32 to vector<8x128xf32>
    %1014 = arith.mulf %1013, %1012 : vector<8x128xf32>
    %cst_395 = arith.constant 5.000000e-01 : f32
    %1015 = vector.broadcast %cst_395 : f32 to vector<8x128xf32>
    %1016 = arith.addf %1014, %1015 : vector<8x128xf32>
    %1017 = vector.extract_strided_slice %1008 {offsets = [0, 128], sizes = [8, 128], strides = [1, 1]} : vector<8x512xf32> to vector<8x128xf32>
    %cst_396 = arith.constant 5.000000e-01 : f32
    %1018 = vector.broadcast %cst_396 : f32 to vector<8x128xf32>
    %1019 = arith.mulf %1018, %1017 : vector<8x128xf32>
    %1020 = math.tanh %1019 : vector<8x128xf32>
    %cst_397 = arith.constant 5.000000e-01 : f32
    %1021 = vector.broadcast %cst_397 : f32 to vector<8x128xf32>
    %1022 = arith.mulf %1021, %1020 : vector<8x128xf32>
    %cst_398 = arith.constant 5.000000e-01 : f32
    %1023 = vector.broadcast %cst_398 : f32 to vector<8x128xf32>
    %1024 = arith.addf %1022, %1023 : vector<8x128xf32>
    %1025 = vector.extract_strided_slice %1008 {offsets = [0, 256], sizes = [8, 128], strides = [1, 1]} : vector<8x512xf32> to vector<8x128xf32>
    %1026 = math.tanh %1025 : vector<8x128xf32>
    %1027 = vector.extract_strided_slice %1008 {offsets = [0, 384], sizes = [8, 128], strides = [1, 1]} : vector<8x512xf32> to vector<8x128xf32>
    %cst_399 = arith.constant 5.000000e-01 : f32
    %1028 = vector.broadcast %cst_399 : f32 to vector<8x128xf32>
    %1029 = arith.mulf %1028, %1027 : vector<8x128xf32>
    %1030 = math.tanh %1029 : vector<8x128xf32>
    %cst_400 = arith.constant 5.000000e-01 : f32
    %1031 = vector.broadcast %cst_400 : f32 to vector<8x128xf32>
    %1032 = arith.mulf %1031, %1030 : vector<8x128xf32>
    %cst_401 = arith.constant 5.000000e-01 : f32
    %1033 = vector.broadcast %cst_401 : f32 to vector<8x128xf32>
    %1034 = arith.addf %1032, %1033 : vector<8x128xf32>
    %1035 = arith.mulf %1024, %922 : vector<8x128xf32>
    %1036 = arith.mulf %1016, %1026 : vector<8x128xf32>
    %1037 = arith.addf %1035, %1036 : vector<8x128xf32>
    %1038 = math.tanh %1037 : vector<8x128xf32>
    %1039 = arith.mulf %1034, %1038 : vector<8x128xf32>
    %1040 = tpu.concatenate %1039, %960 in 1 : vector<8x128xf32>, vector<8x128xf32> -> vector<8x256xf32>
    %1041 = arith.truncf %1040 : vector<8x256xf32> to vector<8x256xbf16>
    %c0_402 = arith.constant 0 : index
    %c0_403 = arith.constant 0 : index
    %1042 = vector.load %arg12[%c0_402, %c0_403] : memref<256x512xbf16, #tpu.memory_space<vmem>>, vector<256x512xbf16>
    %cst_404 = arith.constant dense<0.000000e+00> : vector<8x512xf32>
    %1043 = tpu.matmul %1041, %1042, %cst_404 {dimension_numbers = #tpu.dot_dimension_numbers<[1], [0], [0], [1], [0, 0, 1, 1], [], []>} : vector<8x256xbf16>, vector<256x512xbf16>, vector<8x512xf32> -> vector<8x512xf32>
    %1044 = arith.addf %1043, %14 : vector<8x512xf32>
    %1045 = vector.extract_strided_slice %1044 {offsets = [0, 0], sizes = [8, 128], strides = [1, 1]} : vector<8x512xf32> to vector<8x128xf32>
    %cst_405 = arith.constant 5.000000e-01 : f32
    %1046 = vector.broadcast %cst_405 : f32 to vector<8x128xf32>
    %1047 = arith.mulf %1046, %1045 : vector<8x128xf32>
    %1048 = math.tanh %1047 : vector<8x128xf32>
    %cst_406 = arith.constant 5.000000e-01 : f32
    %1049 = vector.broadcast %cst_406 : f32 to vector<8x128xf32>
    %1050 = arith.mulf %1049, %1048 : vector<8x128xf32>
    %cst_407 = arith.constant 5.000000e-01 : f32
    %1051 = vector.broadcast %cst_407 : f32 to vector<8x128xf32>
    %1052 = arith.addf %1050, %1051 : vector<8x128xf32>
    %1053 = vector.extract_strided_slice %1044 {offsets = [0, 128], sizes = [8, 128], strides = [1, 1]} : vector<8x512xf32> to vector<8x128xf32>
    %cst_408 = arith.constant 5.000000e-01 : f32
    %1054 = vector.broadcast %cst_408 : f32 to vector<8x128xf32>
    %1055 = arith.mulf %1054, %1053 : vector<8x128xf32>
    %1056 = math.tanh %1055 : vector<8x128xf32>
    %cst_409 = arith.constant 5.000000e-01 : f32
    %1057 = vector.broadcast %cst_409 : f32 to vector<8x128xf32>
    %1058 = arith.mulf %1057, %1056 : vector<8x128xf32>
    %cst_410 = arith.constant 5.000000e-01 : f32
    %1059 = vector.broadcast %cst_410 : f32 to vector<8x128xf32>
    %1060 = arith.addf %1058, %1059 : vector<8x128xf32>
    %1061 = vector.extract_strided_slice %1044 {offsets = [0, 256], sizes = [8, 128], strides = [1, 1]} : vector<8x512xf32> to vector<8x128xf32>
    %1062 = math.tanh %1061 : vector<8x128xf32>
    %1063 = vector.extract_strided_slice %1044 {offsets = [0, 384], sizes = [8, 128], strides = [1, 1]} : vector<8x512xf32> to vector<8x128xf32>
    %cst_411 = arith.constant 5.000000e-01 : f32
    %1064 = vector.broadcast %cst_411 : f32 to vector<8x128xf32>
    %1065 = arith.mulf %1064, %1063 : vector<8x128xf32>
    %1066 = math.tanh %1065 : vector<8x128xf32>
    %cst_412 = arith.constant 5.000000e-01 : f32
    %1067 = vector.broadcast %cst_412 : f32 to vector<8x128xf32>
    %1068 = arith.mulf %1067, %1066 : vector<8x128xf32>
    %cst_413 = arith.constant 5.000000e-01 : f32
    %1069 = vector.broadcast %cst_413 : f32 to vector<8x128xf32>
    %1070 = arith.addf %1068, %1069 : vector<8x128xf32>
    %1071 = arith.mulf %1060, %958 : vector<8x128xf32>
    %1072 = arith.mulf %1052, %1062 : vector<8x128xf32>
    %1073 = arith.addf %1071, %1072 : vector<8x128xf32>
    %1074 = math.tanh %1073 : vector<8x128xf32>
    %1075 = arith.mulf %1070, %1074 : vector<8x128xf32>
    %1076 = arith.truncf %1075 : vector<8x128xf32> to vector<8x128xbf16>
    %c0_414 = arith.constant 0 : index
    %c0_415 = arith.constant 0 : index
    %1077 = vector.load %arg13[%c0_414, %c0_415] : memref<128x128xbf16, #tpu.memory_space<vmem>>, vector<128x128xbf16>
    %cst_416 = arith.constant dense<0.000000e+00> : vector<8x128xf32>
    %1078 = tpu.matmul %1076, %1077, %cst_416 {dimension_numbers = #tpu.dot_dimension_numbers<[1], [0], [0], [1], [0, 0, 1, 1], [], []>} : vector<8x128xbf16>, vector<128x128xbf16>, vector<8x128xf32> -> vector<8x128xf32>
    %1079 = arith.addf %1078, %17 : vector<8x128xf32>
    %c8 = arith.constant 8 : index
    %c0_417 = arith.constant 0 : index
    %c0_418 = arith.constant 0 : index
    %1080 = vector.load %arg9[%c8, %c0_417, %c0_418] : memref<10x8x128xf32, #tpu.memory_space<vmem>>, vector<1x8x128xf32>
    %1081 = vector.shape_cast %1080 : vector<1x8x128xf32> to vector<8x128xf32>
    %1082 = vector.shape_cast %1079 : vector<8x128xf32> to vector<1x8x128xf32>
    tpu.vector_store %arg9[%c8, %c0_417, %c0_418], %1082 {strides = array<i32>} : memref<10x8x128xf32, #tpu.memory_space<vmem>>, vector<1x8x128xf32>,
    %1083 = tpu.concatenate %1079, %1003 in 1 : vector<8x128xf32>, vector<8x128xf32> -> vector<8x256xf32>
    %1084 = arith.truncf %1083 : vector<8x256xf32> to vector<8x256xbf16>
    %c0_419 = arith.constant 0 : index
    %c0_420 = arith.constant 0 : index
    %1085 = vector.load %arg1[%c0_419, %c0_420] : memref<256x512xbf16, #tpu.memory_space<vmem>>, vector<256x512xbf16>
    %cst_421 = arith.constant dense<0.000000e+00> : vector<8x512xf32>
    %1086 = tpu.matmul %1084, %1085, %cst_421 {dimension_numbers = #tpu.dot_dimension_numbers<[1], [0], [0], [1], [0, 0, 1, 1], [], []>} : vector<8x256xbf16>, vector<256x512xbf16>, vector<8x512xf32> -> vector<8x512xf32>
    %1087 = arith.addf %1086, %8 : vector<8x512xf32>
    %1088 = vector.extract_strided_slice %1087 {offsets = [0, 0], sizes = [8, 128], strides = [1, 1]} : vector<8x512xf32> to vector<8x128xf32>
    %cst_422 = arith.constant 5.000000e-01 : f32
    %1089 = vector.broadcast %cst_422 : f32 to vector<8x128xf32>
    %1090 = arith.mulf %1089, %1088 : vector<8x128xf32>
    %1091 = math.tanh %1090 : vector<8x128xf32>
    %cst_423 = arith.constant 5.000000e-01 : f32
    %1092 = vector.broadcast %cst_423 : f32 to vector<8x128xf32>
    %1093 = arith.mulf %1092, %1091 : vector<8x128xf32>
    %cst_424 = arith.constant 5.000000e-01 : f32
    %1094 = vector.broadcast %cst_424 : f32 to vector<8x128xf32>
    %1095 = arith.addf %1093, %1094 : vector<8x128xf32>
    %1096 = vector.extract_strided_slice %1087 {offsets = [0, 128], sizes = [8, 128], strides = [1, 1]} : vector<8x512xf32> to vector<8x128xf32>
    %cst_425 = arith.constant 5.000000e-01 : f32
    %1097 = vector.broadcast %cst_425 : f32 to vector<8x128xf32>
    %1098 = arith.mulf %1097, %1096 : vector<8x128xf32>
    %1099 = math.tanh %1098 : vector<8x128xf32>
    %cst_426 = arith.constant 5.000000e-01 : f32
    %1100 = vector.broadcast %cst_426 : f32 to vector<8x128xf32>
    %1101 = arith.mulf %1100, %1099 : vector<8x128xf32>
    %cst_427 = arith.constant 5.000000e-01 : f32
    %1102 = vector.broadcast %cst_427 : f32 to vector<8x128xf32>
    %1103 = arith.addf %1101, %1102 : vector<8x128xf32>
    %1104 = vector.extract_strided_slice %1087 {offsets = [0, 256], sizes = [8, 128], strides = [1, 1]} : vector<8x512xf32> to vector<8x128xf32>
    %1105 = math.tanh %1104 : vector<8x128xf32>
    %1106 = vector.extract_strided_slice %1087 {offsets = [0, 384], sizes = [8, 128], strides = [1, 1]} : vector<8x512xf32> to vector<8x128xf32>
    %cst_428 = arith.constant 5.000000e-01 : f32
    %1107 = vector.broadcast %cst_428 : f32 to vector<8x128xf32>
    %1108 = arith.mulf %1107, %1106 : vector<8x128xf32>
    %1109 = math.tanh %1108 : vector<8x128xf32>
    %cst_429 = arith.constant 5.000000e-01 : f32
    %1110 = vector.broadcast %cst_429 : f32 to vector<8x128xf32>
    %1111 = arith.mulf %1110, %1109 : vector<8x128xf32>
    %cst_430 = arith.constant 5.000000e-01 : f32
    %1112 = vector.broadcast %cst_430 : f32 to vector<8x128xf32>
    %1113 = arith.addf %1111, %1112 : vector<8x128xf32>
    %1114 = arith.mulf %1103, %1001 : vector<8x128xf32>
    %1115 = arith.mulf %1095, %1105 : vector<8x128xf32>
    %1116 = arith.addf %1114, %1115 : vector<8x128xf32>
    %1117 = math.tanh %1116 : vector<8x128xf32>
    %1118 = arith.mulf %1113, %1117 : vector<8x128xf32>
    %1119 = tpu.concatenate %1118, %1039 in 1 : vector<8x128xf32>, vector<8x128xf32> -> vector<8x256xf32>
    %1120 = arith.truncf %1119 : vector<8x256xf32> to vector<8x256xbf16>
    %c0_431 = arith.constant 0 : index
    %c0_432 = arith.constant 0 : index
    %1121 = vector.load %arg11[%c0_431, %c0_432] : memref<256x512xbf16, #tpu.memory_space<vmem>>, vector<256x512xbf16>
    %cst_433 = arith.constant dense<0.000000e+00> : vector<8x512xf32>
    %1122 = tpu.matmul %1120, %1121, %cst_433 {dimension_numbers = #tpu.dot_dimension_numbers<[1], [0], [0], [1], [0, 0, 1, 1], [], []>} : vector<8x256xbf16>, vector<256x512xbf16>, vector<8x512xf32> -> vector<8x512xf32>
    %1123 = arith.addf %1122, %11 : vector<8x512xf32>
    %1124 = vector.extract_strided_slice %1123 {offsets = [0, 0], sizes = [8, 128], strides = [1, 1]} : vector<8x512xf32> to vector<8x128xf32>
    %cst_434 = arith.constant 5.000000e-01 : f32
    %1125 = vector.broadcast %cst_434 : f32 to vector<8x128xf32>
    %1126 = arith.mulf %1125, %1124 : vector<8x128xf32>
    %1127 = math.tanh %1126 : vector<8x128xf32>
    %cst_435 = arith.constant 5.000000e-01 : f32
    %1128 = vector.broadcast %cst_435 : f32 to vector<8x128xf32>
    %1129 = arith.mulf %1128, %1127 : vector<8x128xf32>
    %cst_436 = arith.constant 5.000000e-01 : f32
    %1130 = vector.broadcast %cst_436 : f32 to vector<8x128xf32>
    %1131 = arith.addf %1129, %1130 : vector<8x128xf32>
    %1132 = vector.extract_strided_slice %1123 {offsets = [0, 128], sizes = [8, 128], strides = [1, 1]} : vector<8x512xf32> to vector<8x128xf32>
    %cst_437 = arith.constant 5.000000e-01 : f32
    %1133 = vector.broadcast %cst_437 : f32 to vector<8x128xf32>
    %1134 = arith.mulf %1133, %1132 : vector<8x128xf32>
    %1135 = math.tanh %1134 : vector<8x128xf32>
    %cst_438 = arith.constant 5.000000e-01 : f32
    %1136 = vector.broadcast %cst_438 : f32 to vector<8x128xf32>
    %1137 = arith.mulf %1136, %1135 : vector<8x128xf32>
    %cst_439 = arith.constant 5.000000e-01 : f32
    %1138 = vector.broadcast %cst_439 : f32 to vector<8x128xf32>
    %1139 = arith.addf %1137, %1138 : vector<8x128xf32>
    %1140 = vector.extract_strided_slice %1123 {offsets = [0, 256], sizes = [8, 128], strides = [1, 1]} : vector<8x512xf32> to vector<8x128xf32>
    %1141 = math.tanh %1140 : vector<8x128xf32>
    %1142 = vector.extract_strided_slice %1123 {offsets = [0, 384], sizes = [8, 128], strides = [1, 1]} : vector<8x512xf32> to vector<8x128xf32>
    %cst_440 = arith.constant 5.000000e-01 : f32
    %1143 = vector.broadcast %cst_440 : f32 to vector<8x128xf32>
    %1144 = arith.mulf %1143, %1142 : vector<8x128xf32>
    %1145 = math.tanh %1144 : vector<8x128xf32>
    %cst_441 = arith.constant 5.000000e-01 : f32
    %1146 = vector.broadcast %cst_441 : f32 to vector<8x128xf32>
    %1147 = arith.mulf %1146, %1145 : vector<8x128xf32>
    %cst_442 = arith.constant 5.000000e-01 : f32
    %1148 = vector.broadcast %cst_442 : f32 to vector<8x128xf32>
    %1149 = arith.addf %1147, %1148 : vector<8x128xf32>
    %1150 = arith.mulf %1139, %1037 : vector<8x128xf32>
    %1151 = arith.mulf %1131, %1141 : vector<8x128xf32>
    %1152 = arith.addf %1150, %1151 : vector<8x128xf32>
    %1153 = math.tanh %1152 : vector<8x128xf32>
    %1154 = arith.mulf %1149, %1153 : vector<8x128xf32>
    %1155 = tpu.concatenate %1154, %1075 in 1 : vector<8x128xf32>, vector<8x128xf32> -> vector<8x256xf32>
    %1156 = arith.truncf %1155 : vector<8x256xf32> to vector<8x256xbf16>
    %c0_443 = arith.constant 0 : index
    %c0_444 = arith.constant 0 : index
    %1157 = vector.load %arg12[%c0_443, %c0_444] : memref<256x512xbf16, #tpu.memory_space<vmem>>, vector<256x512xbf16>
    %cst_445 = arith.constant dense<0.000000e+00> : vector<8x512xf32>
    %1158 = tpu.matmul %1156, %1157, %cst_445 {dimension_numbers = #tpu.dot_dimension_numbers<[1], [0], [0], [1], [0, 0, 1, 1], [], []>} : vector<8x256xbf16>, vector<256x512xbf16>, vector<8x512xf32> -> vector<8x512xf32>
    %1159 = arith.addf %1158, %14 : vector<8x512xf32>
    %1160 = vector.extract_strided_slice %1159 {offsets = [0, 0], sizes = [8, 128], strides = [1, 1]} : vector<8x512xf32> to vector<8x128xf32>
    %cst_446 = arith.constant 5.000000e-01 : f32
    %1161 = vector.broadcast %cst_446 : f32 to vector<8x128xf32>
    %1162 = arith.mulf %1161, %1160 : vector<8x128xf32>
    %1163 = math.tanh %1162 : vector<8x128xf32>
    %cst_447 = arith.constant 5.000000e-01 : f32
    %1164 = vector.broadcast %cst_447 : f32 to vector<8x128xf32>
    %1165 = arith.mulf %1164, %1163 : vector<8x128xf32>
    %cst_448 = arith.constant 5.000000e-01 : f32
    %1166 = vector.broadcast %cst_448 : f32 to vector<8x128xf32>
    %1167 = arith.addf %1165, %1166 : vector<8x128xf32>
    %1168 = vector.extract_strided_slice %1159 {offsets = [0, 128], sizes = [8, 128], strides = [1, 1]} : vector<8x512xf32> to vector<8x128xf32>
    %cst_449 = arith.constant 5.000000e-01 : f32
    %1169 = vector.broadcast %cst_449 : f32 to vector<8x128xf32>
    %1170 = arith.mulf %1169, %1168 : vector<8x128xf32>
    %1171 = math.tanh %1170 : vector<8x128xf32>
    %cst_450 = arith.constant 5.000000e-01 : f32
    %1172 = vector.broadcast %cst_450 : f32 to vector<8x128xf32>
    %1173 = arith.mulf %1172, %1171 : vector<8x128xf32>
    %cst_451 = arith.constant 5.000000e-01 : f32
    %1174 = vector.broadcast %cst_451 : f32 to vector<8x128xf32>
    %1175 = arith.addf %1173, %1174 : vector<8x128xf32>
    %1176 = vector.extract_strided_slice %1159 {offsets = [0, 256], sizes = [8, 128], strides = [1, 1]} : vector<8x512xf32> to vector<8x128xf32>
    %1177 = math.tanh %1176 : vector<8x128xf32>
    %1178 = vector.extract_strided_slice %1159 {offsets = [0, 384], sizes = [8, 128], strides = [1, 1]} : vector<8x512xf32> to vector<8x128xf32>
    %cst_452 = arith.constant 5.000000e-01 : f32
    %1179 = vector.broadcast %cst_452 : f32 to vector<8x128xf32>
    %1180 = arith.mulf %1179, %1178 : vector<8x128xf32>
    %1181 = math.tanh %1180 : vector<8x128xf32>
    %cst_453 = arith.constant 5.000000e-01 : f32
    %1182 = vector.broadcast %cst_453 : f32 to vector<8x128xf32>
    %1183 = arith.mulf %1182, %1181 : vector<8x128xf32>
    %cst_454 = arith.constant 5.000000e-01 : f32
    %1184 = vector.broadcast %cst_454 : f32 to vector<8x128xf32>
    %1185 = arith.addf %1183, %1184 : vector<8x128xf32>
    %1186 = arith.mulf %1175, %1073 : vector<8x128xf32>
    %1187 = arith.mulf %1167, %1177 : vector<8x128xf32>
    %1188 = arith.addf %1186, %1187 : vector<8x128xf32>
    %1189 = math.tanh %1188 : vector<8x128xf32>
    %1190 = arith.mulf %1185, %1189 : vector<8x128xf32>
    %1191 = arith.truncf %1190 : vector<8x128xf32> to vector<8x128xbf16>
    %c0_455 = arith.constant 0 : index
    %c0_456 = arith.constant 0 : index
    %1192 = vector.load %arg13[%c0_455, %c0_456] : memref<128x128xbf16, #tpu.memory_space<vmem>>, vector<128x128xbf16>
    %cst_457 = arith.constant dense<0.000000e+00> : vector<8x128xf32>
    %1193 = tpu.matmul %1191, %1192, %cst_457 {dimension_numbers = #tpu.dot_dimension_numbers<[1], [0], [0], [1], [0, 0, 1, 1], [], []>} : vector<8x128xbf16>, vector<128x128xbf16>, vector<8x128xf32> -> vector<8x128xf32>
    %1194 = arith.addf %1193, %17 : vector<8x128xf32>
    %c9 = arith.constant 9 : index
    %c0_458 = arith.constant 0 : index
    %c0_459 = arith.constant 0 : index
    %1195 = vector.load %arg9[%c9, %c0_458, %c0_459] : memref<10x8x128xf32, #tpu.memory_space<vmem>>, vector<1x8x128xf32>
    %1196 = vector.shape_cast %1195 : vector<1x8x128xf32> to vector<8x128xf32>
    %1197 = vector.shape_cast %1194 : vector<8x128xf32> to vector<1x8x128xf32>
    tpu.vector_store %arg9[%c9, %c0_458, %c0_459], %1197 {strides = array<i32>} : memref<10x8x128xf32, #tpu.memory_space<vmem>>, vector<1x8x128xf32>,
    return
  }
}

</mosaic_0001>

<llo_original>
// kernel: lstm_latent_2_forward.1
$region0: #{lstm_latent_2_forward.1}
  #allocation0 [shape = 'u32[]', space=smem, size = 0x4, offset = 0x4, fixed_abs, tag = 'smem constant byte address 0x4 - core index']
  #allocation1 [shape = 'u32[144,128]{1,0:T(1,128)}', space=vmem, size = 0x12000, scoped, tag = 'internal scratch']
  #allocation2 [shape = 'f32[8,8,512]{2,1,0:T(8,128)}', space=vmem, size = 0x20000, scoped, tag = 'scratch operand']
  #allocation3 [shape = 'bf16[256,512]{1,0:T(16,128)(2,1)}', space=vmem, size = 0x40000, scoped, tag = 'scratch operand']
  #allocation4 [shape = 'bf16[256,512]{1,0:T(16,128)(2,1)}', space=vmem, size = 0x40000, scoped, tag = 'scratch operand']
  #allocation5 [shape = 'bf16[128,128]{1,0:T(16,128)(2,1)}', space=vmem, size = 0x8000, scoped, tag = 'scratch operand']
  #allocation6 [shape = 's32[3]{0}', space=sflag, size = 0xc, scoped, tag = 'scratch operand']
  #allocation9 [shape = 's32[]', space=sflag, size = 0x4, offset = 0, fixed_abs, tag = 'sflag constant byte address 0x0 - dummy sync flag']
  #allocation11 [shape = 's32[]', space=sflag, size = 0x4, offset = 0, fixed_abs, tag = 'sflag constant byte address 0x0 - dummy sync flag']
  #allocation13 [shape = 's32[]', space=sflag, size = 0x4, offset = 0, fixed_abs, tag = 'sflag constant byte address 0x0 - dummy sync flag']
  %s0 = inlined_call_operand.vmem [shape: f32[8,8,128], index: 0, kind: input, shape index: {}]
  %s1 = inlined_call_operand.hbm [shape: bf16[256,512], index: 1, kind: input, shape index: {}]
  %s2 = inlined_call_operand.vmem [shape: f32[1,512], index: 2, kind: input, shape index: {}]
  %s3 = inlined_call_operand.vmem [shape: f32[1,512], index: 3, kind: input, shape index: {}]
  %s4 = inlined_call_operand.vmem [shape: f32[1,512], index: 4, kind: input, shape index: {}]
  %s5 = inlined_call_operand.vmem [shape: f32[1,128], index: 5, kind: input, shape index: {}]
  %s6 = inlined_call_operand.hbm [shape: bf16[256,512], index: 6, kind: input, shape index: {}]
  %s7 = inlined_call_operand.hbm [shape: bf16[256,512], index: 7, kind: input, shape index: {}]
  %s8 = inlined_call_operand.vmem [shape: bf16[128,128], index: 8, kind: input, shape index: {}]
  %s9 = inlined_call_operand.vmem [shape: f32[10,8,128], index: 9, kind: output, shape index: {}]
  %s10 = sld [smem:[#allocation0]]
  $region72: #{lstm_latent_2_forward.1} parent=0
    _
  %s12 = ssub.s32 1, %s10
  %s13 = scalar_select 0, %s12, %s10
  $region1: #{lstm_latent_2_forward.1} parent=0
    #allocation7 [shape = 'u8[262144]{0}', space=vmem, size = 0x40000, scoped, tag = 'input window, operand 1, single buffered']
    #allocation8 [shape = 's32[1]{0}', space=sflag, size = 0x4, scoped, tag = 'scoped memory for lstm_latent_2_forward.1']
    #allocation10 [shape = 'u32[9]{0}', space=smem, size = 0x24, scoped, tag = 'DMA stride descriptor']
    #allocation12 [shape = 'u32[9]{0}', space=smem, size = 0x24, scoped, tag = 'DMA stride descriptor']
    %14 = vsyncpa [#allocation8], 0
    // Predicated region
    $region2: #{lstm_latent_2_forward.1} parent=1 // pred_check
      _
    $region3: #{lstm_latent_2_forward.1} parent=1 // pred_check_branch
      %16 = sbr.rel (0) target = $region5
    $region4: #{lstm_latent_2_forward.1} parent=1 // pred_region
      _
    $region5: #{lstm_latent_2_forward.1} parent=1 // pred_fallthru
      _
    // Predicated region
    $region6: #{lstm_latent_2_forward.1} parent=1 // pred_check
      _
    $region7: #{lstm_latent_2_forward.1} parent=1 // pred_check_branch
      %18 = sbr.rel (0) target = $region9
    $region8: #{lstm_latent_2_forward.1} parent=1 // pred_region
      %s20 = ssub.s32 8192, 8192
      %21 = vsyncadd [#allocation8], %s20
      %s22 = sshll.u32 [#allocation7], 4
      %s23 = int_to_ptr.vmem [resolvable:$true] %s22
      %28 = dma.hbm_to_vmem [thread:$0]  %s1, 8192, %s23, [#allocation8], 256, 256, 16
    $region9: #{lstm_latent_2_forward.1} parent=1 // pred_fallthru
      _
    // Predicated region
    $region10: #{lstm_latent_2_forward.1} parent=1 // pred_check
      _
    $region11: #{lstm_latent_2_forward.1} parent=1 // pred_check_branch
      %30 = sbr.rel (0) target = $region13
    $region12: #{lstm_latent_2_forward.1} parent=1 // pred_region
      _
    $region13: #{lstm_latent_2_forward.1} parent=1 // pred_fallthru
      _
    // Predicated region
    $region14: #{lstm_latent_2_forward.1} parent=1 // pred_check
      _
    $region15: #{lstm_latent_2_forward.1} parent=1 // pred_check_branch
      %32 = sbr.rel (0) target = $region17
    $region16: #{lstm_latent_2_forward.1} parent=1 // pred_region
      _
    $region17: #{lstm_latent_2_forward.1} parent=1 // pred_fallthru
      _
    // Predicated region
    $region18: #{lstm_latent_2_forward.1} parent=1 // pred_check
      _
    $region19: #{lstm_latent_2_forward.1} parent=1 // pred_check_branch
      %34 = sbr.rel (0) target = $region21
    $region20: #{lstm_latent_2_forward.1} parent=1 // pred_region
      _
    $region21: #{lstm_latent_2_forward.1} parent=1 // pred_fallthru
      _
    // Predicated region
    $region22: #{lstm_latent_2_forward.1} parent=1 // pred_check
      _
    $region23: #{lstm_latent_2_forward.1} parent=1 // pred_check_branch
      %36 = sbr.rel (0) target = $region25
    $region24: #{lstm_latent_2_forward.1} parent=1 // pred_region
      _
    $region25: #{lstm_latent_2_forward.1} parent=1 // pred_fallthru
      _
    // Predicated region
    $region26: #{lstm_latent_2_forward.1} parent=1 // pred_check
      _
    $region27: #{lstm_latent_2_forward.1} parent=1 // pred_check_branch
      %38 = sbr.rel (0) target = $region29
    $region28: #{lstm_latent_2_forward.1} parent=1 // pred_region
      %39 = dma.done [#allocation8], 8192
    $region29: #{lstm_latent_2_forward.1} parent=1 // pred_fallthru
      _
    %s42 = sshll.u32 1, 14
    %s43 = sxor.u32 4294967295, %s42
    %s45 = sld [smem:[#allocation0]]
    %s46 = sadd.s32 2, %s45
    %s48 = sshll.u32 7, 26
    %s49 = sxor.u32 4294967295, %s48
    %s50 = sand.u32 0, %s49
    %s51 = sshll.u32 %s46, 26
    %s52 = sor.u32 %s50, %s51
    %s53 = sshll.u32 [#allocation3], 4
    %s54 = int_to_ptr.vmem [resolvable:$true] %s53
    %57 = sst [smem:[#allocation10]] 512
    %s58 = scalar_lea.smem [#allocation10], 1
    %59 = sst [smem:[%s58]] 512
    %s60 = scalar_lea.smem [#allocation10], 2
    %61 = sst [smem:[%s60]] 4
    %s62 = scalar_lea.smem [#allocation10], 3
    %63 = sst [smem:[%s62]] 64
    %s64 = scalar_lea.smem [#allocation10], 4
    %65 = sst [smem:[%s64]] 128
    %s66 = scalar_lea.smem [#allocation10], 5
    %67 = sst [smem:[%s66]] 2
    %s68 = scalar_lea.smem [#allocation10], 6
    %69 = sst [smem:[%s68]] 256
    %s70 = scalar_lea.smem [#allocation10], 7
    %71 = sst [smem:[%s70]] 64
    %s72 = scalar_lea.smem [#allocation10], 8
    %73 = sst [smem:[%s72]] 4
    %75 = dma.general %s6, 8192, %s54, [#allocation6], [#allocation9], [#allocation10], %s52, 0
    %s76 = scalar_lea.sflag [#allocation6], 1
    %s78 = sshll.u32 1, 14
    %s79 = sxor.u32 4294967295, %s78
    %s81 = sadd.s32 2, %s45
    %s83 = sshll.u32 7, 26
    %s84 = sxor.u32 4294967295, %s83
    %s85 = sand.u32 0, %s84
    %s86 = sshll.u32 %s81, 26
    %s87 = sor.u32 %s85, %s86
    %s88 = sshll.u32 [#allocation4], 4
    %s89 = int_to_ptr.vmem [resolvable:$true] %s88
    %92 = sst [smem:[#allocation12]] 512
    %s93 = scalar_lea.smem [#allocation12], 1
    %94 = sst [smem:[%s93]] 512
    %s95 = scalar_lea.smem [#allocation12], 2
    %96 = sst [smem:[%s95]] 4
    %s97 = scalar_lea.smem [#allocation12], 3
    %98 = sst [smem:[%s97]] 64
    %s99 = scalar_lea.smem [#allocation12], 4
    %100 = sst [smem:[%s99]] 128
    %s101 = scalar_lea.smem [#allocation12], 5
    %102 = sst [smem:[%s101]] 2
    %s103 = scalar_lea.smem [#allocation12], 6
    %104 = sst [smem:[%s103]] 256
    %s105 = scalar_lea.smem [#allocation12], 7
    %106 = sst [smem:[%s105]] 64
    %s107 = scalar_lea.smem [#allocation12], 8
    %108 = sst [smem:[%s107]] 4
    %110 = dma.general %s7, 8192, %s89, %s76, [#allocation11], [#allocation12], %s87, 0
    %s111 = scalar_lea.sflag [#allocation6], 2
    %p113 = scmp.lt.u32.totalorder 64, 8
    %p114 = pneg %p113
    // Predicated region
    $region30: #{lstm_latent_2_forward.1} parent=1 // pred_check
      _
    $region31: #{lstm_latent_2_forward.1} parent=1 // pred_check_branch
      %116 = sbr.rel (%p113) target = $region33
    $region32: #{lstm_latent_2_forward.1} parent=1 // pred_region
      %s131 = sand.u32 64, 7
      %p132 = scmp.eq.s32.totalorder %s131, 0
      // Predicated region
      $region45: #{lstm_latent_2_forward.1} parent=32 // pred_check
        %p133 = pneg %p132
      $region46: #{lstm_latent_2_forward.1} parent=32 // pred_check_branch
        %135 = sbr.rel (%p133) target = $region48
      $region47: #{lstm_latent_2_forward.1} parent=32 // pred_region
        loop: start=0, step=1, limit=1
        $region49: #{lstm_latent_2_forward.1} parent=47 // loop_pre_header
          _
        $region50: #{lstm_latent_2_forward.1} parent=47 // loop_header
          %s137 = sphi 0, %s141
          %p138 = scmp.ge.s32.totalorder %s137, 1
          %s142 = sphi %s8, %s8
          %s143 = sphi [#allocation5], [#allocation5]
        $region51: #{lstm_latent_2_forward.1} parent=47 // loop_header_branch
          %140 = sbr.rel (%p138) target = $region55
        $region52: #{lstm_latent_2_forward.1} parent=47 // loop_body
          %v144 = vld [vmem:[%s142] sm:$0xff]
          %145 = vst [vmem:[%s143] sm:$0xff] %v144
          %v146 = vld [vmem:[%s142 + $0x8] sm:$0xff]
          %147 = vst [vmem:[%s143 + $0x8] sm:$0xff] %v146
          %v148 = vld [vmem:[%s142 + $0x10] sm:$0xff]
          %149 = vst [vmem:[%s143 + $0x10] sm:$0xff] %v148
          %v150 = vld [vmem:[%s142 + $0x18] sm:$0xff]
          %151 = vst [vmem:[%s143 + $0x18] sm:$0xff] %v150
          %v152 = vld [vmem:[%s142 + $0x20] sm:$0xff]
          %153 = vst [vmem:[%s143 + $0x20] sm:$0xff] %v152
          %v154 = vld [vmem:[%s142 + $0x28] sm:$0xff]
          %155 = vst [vmem:[%s143 + $0x28] sm:$0xff] %v154
          %v156 = vld [vmem:[%s142 + $0x30] sm:$0xff]
          %157 = vst [vmem:[%s143 + $0x30] sm:$0xff] %v156
          %v158 = vld [vmem:[%s142 + $0x38] sm:$0xff]
          %159 = vst [vmem:[%s143 + $0x38] sm:$0xff] %v158
        $region53: #{lstm_latent_2_forward.1} parent=47 // loop_footer
          %s141 = sadd.s32 1, %s137
        $region54: #{lstm_latent_2_forward.1} parent=47 // loop_footer_branch
          %136 = sbr.rel target = $region50
        $region55: #{lstm_latent_2_forward.1} parent=47 // loop_exit
          _
      $region48: #{lstm_latent_2_forward.1} parent=32 // pred_fallthru
        _
      %p160 = pneg %p132
      // Predicated region
      $region56: #{lstm_latent_2_forward.1} parent=32 // pred_check
        _
      $region57: #{lstm_latent_2_forward.1} parent=32 // pred_check_branch
        %162 = sbr.rel (%p132) target = $region59
      $region58: #{lstm_latent_2_forward.1} parent=32 // pred_region
        %s163 = sand.u32 64, 7
      $region59: #{lstm_latent_2_forward.1} parent=32 // pred_fallthru
        _
    $region33: #{lstm_latent_2_forward.1} parent=1 // pred_fallthru
      _
    // Predicated region
    $region34: #{lstm_latent_2_forward.1} parent=1 // pred_check
      %p117 = pneg %p113
    $region35: #{lstm_latent_2_forward.1} parent=1 // pred_check_branch
      %119 = sbr.rel (%p117) target = $region37
    $region36: #{lstm_latent_2_forward.1} parent=1 // pred_region
      %s120 = sshllo.u32 0, 64
      loop: start=0, step=1, limit=1
      $region38: #{lstm_latent_2_forward.1} parent=36 // loop_pre_header
        _
      $region39: #{lstm_latent_2_forward.1} parent=36 // loop_header
        %s122 = sphi 0, %s126
        %p123 = scmp.ge.s32.totalorder %s122, 1
        %s127 = sphi %s8, %s8
        %s128 = sphi [#allocation5], [#allocation5]
      $region40: #{lstm_latent_2_forward.1} parent=36 // loop_header_branch
        %125 = sbr.rel (%p123) target = $region44
      $region41: #{lstm_latent_2_forward.1} parent=36 // loop_body
        %v129 = vld [vmem:[%s127] sm:%s120]
        %130 = vst [vmem:[%s128] sm:%s120] %v129
      $region42: #{lstm_latent_2_forward.1} parent=36 // loop_footer
        %s126 = sadd.s32 1, %s122
      $region43: #{lstm_latent_2_forward.1} parent=36 // loop_footer_branch
        %121 = sbr.rel target = $region39
      $region44: #{lstm_latent_2_forward.1} parent=36 // loop_exit
        _
    $region37: #{lstm_latent_2_forward.1} parent=1 // pred_fallthru
      _
    // Predicated region
    $region60: #{lstm_latent_2_forward.1} parent=1 // pred_check
      _
    $region61: #{lstm_latent_2_forward.1} parent=1 // pred_check_branch
      %166 = sbr.rel (0) target = $region63
    $region62: #{lstm_latent_2_forward.1} parent=1 // pred_region
      %167 = vsyncadd %s111, 1024
    $region63: #{lstm_latent_2_forward.1} parent=1 // pred_fallthru
      _
    %v168 = vld [vmem:[%s2] sm:$0xf]
    %v170 = vlaneseq
    %v171 = vshrl.u32 %v170, 7
    %v172 = vsub.s32 0, %v171
    %v173 = vrot.slane %v168, %v172
    %v174 = vlaneseq
    %v175 = vshrl.u32 %v174, 7
    %v176 = vsub.s32 1, %v175
    %v177 = vrot.slane %v168, %v176
    %v178 = vlaneseq
    %v179 = vshrl.u32 %v178, 7
    %v180 = vsub.s32 2, %v179
    %v181 = vrot.slane %v168, %v180
    %v182 = vlaneseq
    %v183 = vshrl.u32 %v182, 7
    %v184 = vsub.s32 3, %v183
    %v185 = vrot.slane %v168, %v184
    %v190 = vld [vmem:[%s3] sm:$0xf]
    %v192 = vlaneseq
    %v193 = vshrl.u32 %v192, 7
    %v194 = vsub.s32 0, %v193
    %v195 = vrot.slane %v190, %v194
    %v196 = vlaneseq
    %v197 = vshrl.u32 %v196, 7
    %v198 = vsub.s32 1, %v197
    %v199 = vrot.slane %v190, %v198
    %v200 = vlaneseq
    %v201 = vshrl.u32 %v200, 7
    %v202 = vsub.s32 2, %v201
    %v203 = vrot.slane %v190, %v202
    %v204 = vlaneseq
    %v205 = vshrl.u32 %v204, 7
    %v206 = vsub.s32 3, %v205
    %v207 = vrot.slane %v190, %v206
    %v212 = vld [vmem:[%s4] sm:$0xf]
    %v214 = vlaneseq
    %v215 = vshrl.u32 %v214, 7
    %v216 = vsub.s32 0, %v215
    %v217 = vrot.slane %v212, %v216
    %v218 = vlaneseq
    %v219 = vshrl.u32 %v218, 7
    %v220 = vsub.s32 1, %v219
    %v221 = vrot.slane %v212, %v220
    %v222 = vlaneseq
    %v223 = vshrl.u32 %v222, 7
    %v224 = vsub.s32 2, %v223
    %v225 = vrot.slane %v212, %v224
    %v226 = vlaneseq
    %v227 = vshrl.u32 %v226, 7
    %v228 = vsub.s32 3, %v227
    %v229 = vrot.slane %v212, %v228
    %v234 = vld [vmem:[%s5] sm:$0x1]
    %v236 = vlaneseq
    %v237 = vshrl.u32 %v236, 7
    %v238 = vsub.s32 0, %v237
    %v239 = vrot.slane %v234, %v238
    %v241 = vld [vmem:[%s0] sm:$0xff]
    %v242 = vld [vmem:[%s0 + $0x8] sm:$0xff]
    %v243 = vld [vmem:[%s0 + $0x10] sm:$0xff]
    %v244 = vld [vmem:[%s0 + $0x18] sm:$0xff]
    %v245 = vld [vmem:[%s0 + $0x20] sm:$0xff]
    %v246 = vld [vmem:[%s0 + $0x28] sm:$0xff]
    %v247 = vld [vmem:[%s0 + $0x30] sm:$0xff]
    %v248 = vld [vmem:[%s0 + $0x38] sm:$0xff]
    %v249 = vpack.c.bf16 %v242, %v241
    %v250 = vpack.c.bf16 %v244, %v243
    %v251 = vpack.c.bf16 %v246, %v245
    %v252 = vpack.c.bf16 %v248, %v247
    %v253 = vld [vmem:[#allocation7] sm:$0xff]
    %v254 = vld [vmem:[#allocation7 + $0x8] sm:$0xff]
    %v255 = vld [vmem:[#allocation7 + $0x10] sm:$0xff]
    %v256 = vld [vmem:[#allocation7 + $0x18] sm:$0xff]
    %v257 = vld [vmem:[#allocation7 + $0x20] sm:$0xff]
    %v258 = vld [vmem:[#allocation7 + $0x28] sm:$0xff]
    %v259 = vld [vmem:[#allocation7 + $0x30] sm:$0xff]
    %v260 = vld [vmem:[#allocation7 + $0x38] sm:$0xff]
    %v261 = vld [vmem:[#allocation7 + $0x40] sm:$0xff]
    %v262 = vld [vmem:[#allocation7 + $0x48] sm:$0xff]
    %v263 = vld [vmem:[#allocation7 + $0x50] sm:$0xff]
    %v264 = vld [vmem:[#allocation7 + $0x58] sm:$0xff]
    %v265 = vld [vmem:[#allocation7 + $0x60] sm:$0xff]
    %v266 = vld [vmem:[#allocation7 + $0x68] sm:$0xff]
    %v267 = vld [vmem:[#allocation7 + $0x70] sm:$0xff]
    %v268 = vld [vmem:[#allocation7 + $0x78] sm:$0xff]
    %v269 = vld [vmem:[#allocation7 + $0x80] sm:$0xff]
    %v270 = vld [vmem:[#allocation7 + $0x88] sm:$0xff]
    %v271 = vld [vmem:[#allocation7 + $0x90] sm:$0xff]
    %v272 = vld [vmem:[#allocation7 + $0x98] sm:$0xff]
    %v273 = vld [vmem:[#allocation7 + $0xa0] sm:$0xff]
    %v274 = vld [vmem:[#allocation7 + $0xa8] sm:$0xff]
    %v275 = vld [vmem:[#allocation7 + $0xb0] sm:$0xff]
    %v276 = vld [vmem:[#allocation7 + $0xb8] sm:$0xff]
    %v277 = vld [vmem:[#allocation7 + $0xc0] sm:$0xff]
    %v278 = vld [vmem:[#allocation7 + $0xc8] sm:$0xff]
    %v279 = vld [vmem:[#allocation7 + $0xd0] sm:$0xff]
    %v280 = vld [vmem:[#allocation7 + $0xd8] sm:$0xff]
    %v281 = vld [vmem:[#allocation7 + $0xe0] sm:$0xff]
    %v282 = vld [vmem:[#allocation7 + $0xe8] sm:$0xff]
    %v283 = vld [vmem:[#allocation7 + $0xf0] sm:$0xff]
    %v284 = vld [vmem:[#allocation7 + $0xf8] sm:$0xff]
    %v317 = vunpack.c.l.b16 %v253
    %v318 = vunpack.c.h.b16 %v253
    %v319 = vunpack.c.l.b16 %v254
    %v320 = vunpack.c.h.b16 %v254
    %v321 = vunpack.c.l.b16 %v255
    %v322 = vunpack.c.h.b16 %v255
    %v323 = vunpack.c.l.b16 %v256
    %v324 = vunpack.c.h.b16 %v256
    %v325 = vunpack.c.l.b16 %v257
    %v326 = vunpack.c.h.b16 %v257
    %v327 = vunpack.c.l.b16 %v258
    %v328 = vunpack.c.h.b16 %v258
    %v329 = vunpack.c.l.b16 %v259
    %v330 = vunpack.c.h.b16 %v259
    %v331 = vunpack.c.l.b16 %v260
    %v332 = vunpack.c.h.b16 %v260
    %v333 = vunpack.c.l.b16 %v261
    %v334 = vunpack.c.h.b16 %v261
    %v335 = vunpack.c.l.b16 %v262
    %v336 = vunpack.c.h.b16 %v262
    %v337 = vunpack.c.l.b16 %v263
    %v338 = vunpack.c.h.b16 %v263
    %v339 = vunpack.c.l.b16 %v264
    %v340 = vunpack.c.h.b16 %v264
    %v341 = vunpack.c.l.b16 %v265
    %v342 = vunpack.c.h.b16 %v265
    %v343 = vunpack.c.l.b16 %v266
    %v344 = vunpack.c.h.b16 %v266
    %v345 = vunpack.c.l.b16 %v267
    %v346 = vunpack.c.h.b16 %v267
    %v347 = vunpack.c.l.b16 %v268
    %v348 = vunpack.c.h.b16 %v268
    %v349 = vunpack.c.l.b16 %v269
    %v350 = vunpack.c.h.b16 %v269
    %v351 = vunpack.c.l.b16 %v270
    %v352 = vunpack.c.h.b16 %v270
    %v353 = vunpack.c.l.b16 %v271
    %v354 = vunpack.c.h.b16 %v271
    %v355 = vunpack.c.l.b16 %v272
    %v356 = vunpack.c.h.b16 %v272
    %v357 = vunpack.c.l.b16 %v273
    %v358 = vunpack.c.h.b16 %v273
    %v359 = vunpack.c.l.b16 %v274
    %v360 = vunpack.c.h.b16 %v274
    %v361 = vunpack.c.l.b16 %v275
    %v362 = vunpack.c.h.b16 %v275
    %v363 = vunpack.c.l.b16 %v276
    %v364 = vunpack.c.h.b16 %v276
    %v365 = vunpack.c.l.b16 %v277
    %v366 = vunpack.c.h.b16 %v277
    %v367 = vunpack.c.l.b16 %v278
    %v368 = vunpack.c.h.b16 %v278
    %v369 = vunpack.c.l.b16 %v279
    %v370 = vunpack.c.h.b16 %v279
    %v371 = vunpack.c.l.b16 %v280
    %v372 = vunpack.c.h.b16 %v280
    %v373 = vunpack.c.l.b16 %v281
    %v374 = vunpack.c.h.b16 %v281
    %v375 = vunpack.c.l.b16 %v282
    %v376 = vunpack.c.h.b16 %v282
    %v377 = vunpack.c.l.b16 %v283
    %v378 = vunpack.c.h.b16 %v283
    %v379 = vunpack.c.l.b16 %v284
    %v380 = vunpack.c.h.b16 %v284
    %v381 = vpack.c.b16 %v321, %v317
    %v382 = vpack.c.b16 %v322, %v318
    %v383 = vpack.c.b16 %v323, %v319
    %v384 = vpack.c.b16 %v324, %v320
    %v385 = vpack.c.b16 %v329, %v325
    %v386 = vpack.c.b16 %v330, %v326
    %v387 = vpack.c.b16 %v331, %v327
    %v388 = vpack.c.b16 %v332, %v328
    %v389 = vpack.c.b16 %v337, %v333
    %v390 = vpack.c.b16 %v338, %v334
    %v391 = vpack.c.b16 %v339, %v335
    %v392 = vpack.c.b16 %v340, %v336
    %v393 = vpack.c.b16 %v345, %v341
    %v394 = vpack.c.b16 %v346, %v342
    %v395 = vpack.c.b16 %v347, %v343
    %v396 = vpack.c.b16 %v348, %v344
    %v397 = vpack.c.b16 %v353, %v349
    %v398 = vpack.c.b16 %v354, %v350
    %v399 = vpack.c.b16 %v355, %v351
    %v400 = vpack.c.b16 %v356, %v352
    %v401 = vpack.c.b16 %v361, %v357
    %v402 = vpack.c.b16 %v362, %v358
    %v403 = vpack.c.b16 %v363, %v359
    %v404 = vpack.c.b16 %v364, %v360
    %v405 = vpack.c.b16 %v369, %v365
    %v406 = vpack.c.b16 %v370, %v366
    %v407 = vpack.c.b16 %v371, %v367
    %v408 = vpack.c.b16 %v372, %v368
    %v409 = vpack.c.b16 %v377, %v373
    %v410 = vpack.c.b16 %v378, %v374
    %v411 = vpack.c.b16 %v379, %v375
    %v412 = vpack.c.b16 %v380, %v376
    %445 = vmatprep.subr.bf16.mxu0 %v382
    %446 = vmatpush1.bf16.msra.mxu0 %v381
    %447 = vmatprep.subr.bf16.mxu0 %v386
    %448 = vmatpush1.bf16.msra.mxu0 %v385
    %449 = vmatprep.subr.bf16.mxu0 %v390
    %450 = vmatpush1.bf16.msra.mxu0 %v389
    %451 = vmatprep.subr.bf16.mxu0 %v394
    %452 = vmatpush1.bf16.msra.mxu0 %v393
    %453 = vmatprep.subr.bf16.mxu0 %v398
    %454 = vmatpush1.bf16.msra.mxu0 %v397
    %455 = vmatprep.subr.bf16.mxu0 %v402
    %456 = vmatpush1.bf16.msra.mxu0 %v401
    %457 = vmatprep.subr.bf16.mxu0 %v406
    %458 = vmatpush1.bf16.msra.mxu0 %v405
    %459 = vmatprep.subr.bf16.mxu0 %v410
    %460 = vmatpush1.bf16.msra.mxu0 %v409
    %461 = vmatprep.subr.bf16.mxu0 0
    %462 = vmatpush1.bf16.msra.mxu0 0
    %463 = vmatprep.subr.bf16.mxu0 0
    %464 = vmatpush1.bf16.msra.mxu0 0
    %465 = vmatprep.subr.bf16.mxu0 0
    %466 = vmatpush1.bf16.msra.mxu0 0
    %467 = vmatprep.subr.bf16.mxu0 0
    %468 = vmatpush1.bf16.msra.mxu0 0
    %469 = vmatprep.subr.bf16.mxu0 0
    %470 = vmatpush1.bf16.msra.mxu0 0
    %471 = vmatprep.subr.bf16.mxu0 0
    %472 = vmatpush1.bf16.msra.mxu0 0
    %473 = vmatprep.subr.bf16.mxu0 0
    %474 = vmatpush1.bf16.msra.mxu0 0
    %475 = vmatprep.subr.bf16.mxu0 0
    %476 = vmatpush1.bf16.msra.mxu0 0
    %477 = vmatprep.mubr.bf16.mxu0 0
    %478 = vmatmul.mubr.bf16.gmra.mrb[0].mxu0 %v249
    %v479 = vpop.f32.mrb[0].mxu0
    %v480 = vadd.f32 %v173, %v479
    %v481 = vpop.f32.mrb[0].mxu0
    %v482 = vadd.f32 %v177, %v481
    %v483 = vpop.f32.mrb[0].mxu0
    %v484 = vadd.f32 %v173, %v483
    %v485 = vpop.f32.mrb[0].mxu0
    %v486 = vadd.f32 %v177, %v485
    %487 = vmatprep.mubr.bf16.mxu0 0
    %488 = vmatmul.mubr.bf16.gmra.mrb[0].mxu0 %v250
    %v489 = vpop.f32.mrb[0].mxu0
    %v490 = vadd.f32 %v173, %v489
    %v491 = vpop.f32.mrb[0].mxu0
    %v492 = vadd.f32 %v177, %v491
    %v493 = vpop.f32.mrb[0].mxu0
    %v494 = vadd.f32 %v173, %v493
    %v495 = vpop.f32.mrb[0].mxu0
    %v496 = vadd.f32 %v177, %v495
    %497 = vmatprep.mubr.bf16.mxu0 0
    %498 = vmatmul.mubr.bf16.gmra.mrb[0].mxu0 %v251
    %v499 = vpop.f32.mrb[0].mxu0
    %v500 = vadd.f32 %v173, %v499
    %v501 = vpop.f32.mrb[0].mxu0
    %v502 = vadd.f32 %v177, %v501
    %v503 = vpop.f32.mrb[0].mxu0
    %v504 = vadd.f32 %v173, %v503
    %v505 = vpop.f32.mrb[0].mxu0
    %v506 = vadd.f32 %v177, %v505
    %507 = vmatprep.mubr.bf16.mxu0 0
    %508 = vmatmul.mubr.bf16.gmra.mrb[0].mxu0 %v252
    %v509 = vpop.f32.mrb[0].mxu0
    %v510 = vadd.f32 %v173, %v509
    %v511 = vpop.f32.mrb[0].mxu0
    %v512 = vadd.f32 %v177, %v511
    %v513 = vpop.f32.mrb[0].mxu0
    %v514 = vadd.f32 %v173, %v513
    %v515 = vpop.f32.mrb[0].mxu0
    %v516 = vadd.f32 %v177, %v515
    %517 = vdwg.mxu0
    %518 = vmatprep.subr.bf16.mxu0 %v384
    %519 = vmatpush1.bf16.msra.mxu0 %v383
    %520 = vmatprep.subr.bf16.mxu0 %v388
    %521 = vmatpush1.bf16.msra.mxu0 %v387
    %522 = vmatprep.subr.bf16.mxu0 %v392
    %523 = vmatpush1.bf16.msra.mxu0 %v391
    %524 = vmatprep.subr.bf16.mxu0 %v396
    %525 = vmatpush1.bf16.msra.mxu0 %v395
    %526 = vmatprep.subr.bf16.mxu0 %v400
    %527 = vmatpush1.bf16.msra.mxu0 %v399
    %528 = vmatprep.subr.bf16.mxu0 %v404
    %529 = vmatpush1.bf16.msra.mxu0 %v403
    %530 = vmatprep.subr.bf16.mxu0 %v408
    %531 = vmatpush1.bf16.msra.mxu0 %v407
    %532 = vmatprep.subr.bf16.mxu0 %v412
    %533 = vmatpush1.bf16.msra.mxu0 %v411
    %534 = vmatprep.subr.bf16.mxu0 0
    %535 = vmatpush1.bf16.msra.mxu0 0
    %536 = vmatprep.subr.bf16.mxu0 0
    %537 = vmatpush1.bf16.msra.mxu0 0
    %538 = vmatprep.subr.bf16.mxu0 0
    %539 = vmatpush1.bf16.msra.mxu0 0
    %540 = vmatprep.subr.bf16.mxu0 0
    %541 = vmatpush1.bf16.msra.mxu0 0
    %542 = vmatprep.subr.bf16.mxu0 0
    %543 = vmatpush1.bf16.msra.mxu0 0
    %544 = vmatprep.subr.bf16.mxu0 0
    %545 = vmatpush1.bf16.msra.mxu0 0
    %546 = vmatprep.subr.bf16.mxu0 0
    %547 = vmatpush1.bf16.msra.mxu0 0
    %548 = vmatprep.subr.bf16.mxu0 0
    %549 = vmatpush1.bf16.msra.mxu0 0
    %550 = vmatprep.mubr.bf16.mxu0 0
    %551 = vmatmul.mubr.bf16.gmra.mrb[0].mxu0 %v249
    %v552 = vpop.f32.mrb[0].mxu0
    %v553 = vadd.f32 %v181, %v552
    %v554 = vpop.f32.mrb[0].mxu0
    %v555 = vadd.f32 %v185, %v554
    %v556 = vpop.f32.mrb[0].mxu0
    %v557 = vadd.f32 %v181, %v556
    %v558 = vpop.f32.mrb[0].mxu0
    %v559 = vadd.f32 %v185, %v558
    %560 = vmatprep.mubr.bf16.mxu0 0
    %561 = vmatmul.mubr.bf16.gmra.mrb[0].mxu0 %v250
    %v562 = vpop.f32.mrb[0].mxu0
    %v563 = vadd.f32 %v181, %v562
    %v564 = vpop.f32.mrb[0].mxu0
    %v565 = vadd.f32 %v185, %v564
    %v566 = vpop.f32.mrb[0].mxu0
    %v567 = vadd.f32 %v181, %v566
    %v568 = vpop.f32.mrb[0].mxu0
    %v569 = vadd.f32 %v185, %v568
    %570 = vmatprep.mubr.bf16.mxu0 0
    %571 = vmatmul.mubr.bf16.gmra.mrb[0].mxu0 %v251
    %v572 = vpop.f32.mrb[0].mxu0
    %v573 = vadd.f32 %v181, %v572
    %v574 = vpop.f32.mrb[0].mxu0
    %v575 = vadd.f32 %v185, %v574
    %v576 = vpop.f32.mrb[0].mxu0
    %v577 = vadd.f32 %v181, %v576
    %v578 = vpop.f32.mrb[0].mxu0
    %v579 = vadd.f32 %v185, %v578
    %580 = vmatprep.mubr.bf16.mxu0 0
    %581 = vmatmul.mubr.bf16.gmra.mrb[0].mxu0 %v252
    %v582 = vpop.f32.mrb[0].mxu0
    %v583 = vadd.f32 %v181, %v582
    %v584 = vpop.f32.mrb[0].mxu0
    %v585 = vadd.f32 %v185, %v584
    %v586 = vpop.f32.mrb[0].mxu0
    %v587 = vadd.f32 %v181, %v586
    %v588 = vpop.f32.mrb[0].mxu0
    %v589 = vadd.f32 %v185, %v588
    %590 = vdwg.mxu0
    %591 = vst [vmem:[#allocation2] sm:$0xff] %v480
    %592 = vst [vmem:[#allocation2 + $0x8] sm:$0xff] %v482
    %593 = vst [vmem:[#allocation2 + $0x10] sm:$0xff] %v553
    %594 = vst [vmem:[#allocation2 + $0x18] sm:$0xff] %v555
    %595 = vst [vmem:[#allocation2 + $0x20] sm:$0xff] %v484
    %596 = vst [vmem:[#allocation2 + $0x28] sm:$0xff] %v486
    %597 = vst [vmem:[#allocation2 + $0x30] sm:$0xff] %v557
    %598 = vst [vmem:[#allocation2 + $0x38] sm:$0xff] %v559
    %599 = vst [vmem:[#allocation2 + $0x40] sm:$0xff] %v490
    %600 = vst [vmem:[#allocation2 + $0x48] sm:$0xff] %v492
    %601 = vst [vmem:[#allocation2 + $0x50] sm:$0xff] %v563
    %602 = vst [vmem:[#allocation2 + $0x58] sm:$0xff] %v565
    %603 = vst [vmem:[#allocation2 + $0x60] sm:$0xff] %v494
    %604 = vst [vmem:[#allocation2 + $0x68] sm:$0xff] %v496
    %605 = vst [vmem:[#allocation2 + $0x70] sm:$0xff] %v567
    %606 = vst [vmem:[#allocation2 + $0x78] sm:$0xff] %v569
    %607 = vst [vmem:[#allocation2 + $0x80] sm:$0xff] %v500
    %608 = vst [vmem:[#allocation2 + $0x88] sm:$0xff] %v502
    %609 = vst [vmem:[#allocation2 + $0x90] sm:$0xff] %v573
    %610 = vst [vmem:[#allocation2 + $0x98] sm:$0xff] %v575
    %611 = vst [vmem:[#allocation2 + $0xa0] sm:$0xff] %v504
    %612 = vst [vmem:[#allocation2 + $0xa8] sm:$0xff] %v506
    %613 = vst [vmem:[#allocation2 + $0xb0] sm:$0xff] %v577
    %614 = vst [vmem:[#allocation2 + $0xb8] sm:$0xff] %v579
    %615 = vst [vmem:[#allocation2 + $0xc0] sm:$0xff] %v510
    %616 = vst [vmem:[#allocation2 + $0xc8] sm:$0xff] %v512
    %617 = vst [vmem:[#allocation2 + $0xd0] sm:$0xff] %v583
    %618 = vst [vmem:[#allocation2 + $0xd8] sm:$0xff] %v585
    %619 = vst [vmem:[#allocation2 + $0xe0] sm:$0xff] %v514
    %620 = vst [vmem:[#allocation2 + $0xe8] sm:$0xff] %v516
    %621 = vst [vmem:[#allocation2 + $0xf0] sm:$0xff] %v587
    %622 = vst [vmem:[#allocation2 + $0xf8] sm:$0xff] %v589
    %v623 = vld [vmem:[#allocation2] sm:$0xff]
    %v624 = vld [vmem:[#allocation2 + $0x8] sm:$0xff]
    %v625 = vld [vmem:[#allocation2 + $0x10] sm:$0xff]
    %v626 = vld [vmem:[#allocation2 + $0x18] sm:$0xff]
    %v627 = vld [vmem:[#allocation7 + $0x100] sm:$0xff]
    %v628 = vld [vmem:[#allocation7 + $0x108] sm:$0xff]
    %v629 = vld [vmem:[#allocation7 + $0x110] sm:$0xff]
    %v630 = vld [vmem:[#allocation7 + $0x118] sm:$0xff]
    %v631 = vld [vmem:[#allocation7 + $0x120] sm:$0xff]
    %v632 = vld [vmem:[#allocation7 + $0x128] sm:$0xff]
    %v633 = vld [vmem:[#allocation7 + $0x130] sm:$0xff]
    %v634 = vld [vmem:[#allocation7 + $0x138] sm:$0xff]
    %v635 = vld [vmem:[#allocation7 + $0x140] sm:$0xff]
    %v636 = vld [vmem:[#allocation7 + $0x148] sm:$0xff]
    %v637 = vld [vmem:[#allocation7 + $0x150] sm:$0xff]
    %v638 = vld [vmem:[#allocation7 + $0x158] sm:$0xff]
    %v639 = vld [vmem:[#allocation7 + $0x160] sm:$0xff]
    %v640 = vld [vmem:[#allocation7 + $0x168] sm:$0xff]
    %v641 = vld [vmem:[#allocation7 + $0x170] sm:$0xff]
    %v642 = vld [vmem:[#allocation7 + $0x178] sm:$0xff]
    %v643 = vld [vmem:[#allocation7 + $0x180] sm:$0xff]
    %v644 = vld [vmem:[#allocation7 + $0x188] sm:$0xff]
    %v645 = vld [vmem:[#allocation7 + $0x190] sm:$0xff]
    %v646 = vld [vmem:[#allocation7 + $0x198] sm:$0xff]
    %v647 = vld [vmem:[#allocation7 + $0x1a0] sm:$0xff]
    %v648 = vld [vmem:[#allocation7 + $0x1a8] sm:$0xff]
    %v649 = vld [vmem:[#allocation7 + $0x1b0] sm:$0xff]
    %v650 = vld [vmem:[#allocation7 + $0x1b8] sm:$0xff]
    %v651 = vld [vmem:[#allocation7 + $0x1c0] sm:$0xff]
    %v652 = vld [vmem:[#allocation7 + $0x1c8] sm:$0xff]
    %v653 = vld [vmem:[#allocation7 + $0x1d0] sm:$0xff]
    %v654 = vld [vmem:[#allocation7 + $0x1d8] sm:$0xff]
    %v655 = vld [vmem:[#allocation7 + $0x1e0] sm:$0xff]
    %v656 = vld [vmem:[#allocation7 + $0x1e8] sm:$0xff]
    %v657 = vld [vmem:[#allocation7 + $0x1f0] sm:$0xff]
    %v658 = vld [vmem:[#allocation7 + $0x1f8] sm:$0xff]
    %v691 = vunpack.c.l.b16 %v627
    %v692 = vunpack.c.h.b16 %v627
    %v693 = vunpack.c.l.b16 %v628
    %v694 = vunpack.c.h.b16 %v628
    %v695 = vunpack.c.l.b16 %v629
    %v696 = vunpack.c.h.b16 %v629
    %v697 = vunpack.c.l.b16 %v630
    %v698 = vunpack.c.h.b16 %v630
    %v699 = vunpack.c.l.b16 %v631
    %v700 = vunpack.c.h.b16 %v631
    %v701 = vunpack.c.l.b16 %v632
    %v702 = vunpack.c.h.b16 %v632
    %v703 = vunpack.c.l.b16 %v633
    %v704 = vunpack.c.h.b16 %v633
    %v705 = vunpack.c.l.b16 %v634
    %v706 = vunpack.c.h.b16 %v634
    %v707 = vunpack.c.l.b16 %v635
    %v708 = vunpack.c.h.b16 %v635
    %v709 = vunpack.c.l.b16 %v636
    %v710 = vunpack.c.h.b16 %v636
    %v711 = vunpack.c.l.b16 %v637
    %v712 = vunpack.c.h.b16 %v637
    %v713 = vunpack.c.l.b16 %v638
    %v714 = vunpack.c.h.b16 %v638
    %v715 = vunpack.c.l.b16 %v639
    %v716 = vunpack.c.h.b16 %v639
    %v717 = vunpack.c.l.b16 %v640
    %v718 = vunpack.c.h.b16 %v640
    %v719 = vunpack.c.l.b16 %v641
    %v720 = vunpack.c.h.b16 %v641
    %v721 = vunpack.c.l.b16 %v642
    %v722 = vunpack.c.h.b16 %v642
    %v723 = vunpack.c.l.b16 %v643
    %v724 = vunpack.c.h.b16 %v643
    %v725 = vunpack.c.l.b16 %v644
    %v726 = vunpack.c.h.b16 %v644
    %v727 = vunpack.c.l.b16 %v645
    %v728 = vunpack.c.h.b16 %v645
    %v729 = vunpack.c.l.b16 %v646
    %v730 = vunpack.c.h.b16 %v646
    %v731 = vunpack.c.l.b16 %v647
    %v732 = vunpack.c.h.b16 %v647
    %v733 = vunpack.c.l.b16 %v648
    %v734 = vunpack.c.h.b16 %v648
    %v735 = vunpack.c.l.b16 %v649
    %v736 = vunpack.c.h.b16 %v649
    %v737 = vunpack.c.l.b16 %v650
    %v738 = vunpack.c.h.b16 %v650
    %v739 = vunpack.c.l.b16 %v651
    %v740 = vunpack.c.h.b16 %v651
    %v741 = vunpack.c.l.b16 %v652
    %v742 = vunpack.c.h.b16 %v652
    %v743 = vunpack.c.l.b16 %v653
    %v744 = vunpack.c.h.b16 %v653
    %v745 = vunpack.c.l.b16 %v654
    %v746 = vunpack.c.h.b16 %v654
    %v747 = vunpack.c.l.b16 %v655
    %v748 = vunpack.c.h.b16 %v655
    %v749 = vunpack.c.l.b16 %v656
    %v750 = vunpack.c.h.b16 %v656
    %v751 = vunpack.c.l.b16 %v657
    %v752 = vunpack.c.h.b16 %v657
    %v753 = vunpack.c.l.b16 %v658
    %v754 = vunpack.c.h.b16 %v658
    %v755 = vpack.c.b16 %v695, %v691
    %v756 = vpack.c.b16 %v696, %v692
    %v757 = vpack.c.b16 %v697, %v693
    %v758 = vpack.c.b16 %v698, %v694
    %v759 = vpack.c.b16 %v703, %v699
    %v760 = vpack.c.b16 %v704, %v700
    %v761 = vpack.c.b16 %v705, %v701
    %v762 = vpack.c.b16 %v706, %v702
    %v763 = vpack.c.b16 %v711, %v707
    %v764 = vpack.c.b16 %v712, %v708
    %v765 = vpack.c.b16 %v713, %v709
    %v766 = vpack.c.b16 %v714, %v710
    %v767 = vpack.c.b16 %v719, %v715
    %v768 = vpack.c.b16 %v720, %v716
    %v769 = vpack.c.b16 %v721, %v717
    %v770 = vpack.c.b16 %v722, %v718
    %v771 = vpack.c.b16 %v727, %v723
    %v772 = vpack.c.b16 %v728, %v724
    %v773 = vpack.c.b16 %v729, %v725
    %v774 = vpack.c.b16 %v730, %v726
    %v775 = vpack.c.b16 %v735, %v731
    %v776 = vpack.c.b16 %v736, %v732
    %v777 = vpack.c.b16 %v737, %v733
    %v778 = vpack.c.b16 %v738, %v734
    %v779 = vpack.c.b16 %v743, %v739
    %v780 = vpack.c.b16 %v744, %v740
    %v781 = vpack.c.b16 %v745, %v741
    %v782 = vpack.c.b16 %v746, %v742
    %v783 = vpack.c.b16 %v751, %v747
    %v784 = vpack.c.b16 %v752, %v748
    %v785 = vpack.c.b16 %v753, %v749
    %v786 = vpack.c.b16 %v754, %v750
    %819 = vmatprep.subr.bf16.mxu0 %v756
    %820 = vmatpush1.bf16.msra.mxu0 %v755
    %821 = vmatprep.subr.bf16.mxu0 %v760
    %822 = vmatpush1.bf16.msra.mxu0 %v759
    %823 = vmatprep.subr.bf16.mxu0 %v764
    %824 = vmatpush1.bf16.msra.mxu0 %v763
    %825 = vmatprep.subr.bf16.mxu0 %v768
    %826 = vmatpush1.bf16.msra.mxu0 %v767
    %827 = vmatprep.subr.bf16.mxu0 %v772
    %828 = vmatpush1.bf16.msra.mxu0 %v771
    %829 = vmatprep.subr.bf16.mxu0 %v776
    %830 = vmatpush1.bf16.msra.mxu0 %v775
    %831 = vmatprep.subr.bf16.mxu0 %v780
    %832 = vmatpush1.bf16.msra.mxu0 %v779
    %833 = vmatprep.subr.bf16.mxu0 %v784
    %834 = vmatpush1.bf16.msra.mxu0 %v783
    %835 = vmatprep.subr.bf16.mxu0 0
    %836 = vmatpush1.bf16.msra.mxu0 0
    %837 = vmatprep.subr.bf16.mxu0 0
    %838 = vmatpush1.bf16.msra.mxu0 0
    %839 = vmatprep.subr.bf16.mxu0 0
    %840 = vmatpush1.bf16.msra.mxu0 0
    %841 = vmatprep.subr.bf16.mxu0 0
    %842 = vmatpush1.bf16.msra.mxu0 0
    %843 = vmatprep.subr.bf16.mxu0 0
    %844 = vmatpush1.bf16.msra.mxu0 0
    %845 = vmatprep.subr.bf16.mxu0 0
    %846 = vmatpush1.bf16.msra.mxu0 0
    %847 = vmatprep.subr.bf16.mxu0 0
    %848 = vmatpush1.bf16.msra.mxu0 0
    %849 = vmatprep.subr.bf16.mxu0 0
    %850 = vmatpush1.bf16.msra.mxu0 0
    %851 = vmatprep.mubr.bf16.mxu0 0
    %852 = vmatmul.mubr.bf16.gmra.mrb[0].mxu0 0
    %v853 = vpop.f32.mrb[0].mxu0
    %v854 = vadd.f32 0.0, %v853
    %v855 = vpop.f32.mrb[0].mxu0
    %v856 = vadd.f32 0.0, %v855
    %v857 = vpop.f32.mrb[0].mxu0
    %v858 = vpop.f32.mrb[0].mxu0
    %859 = vdwg.mxu0
    %860 = vmatprep.subr.bf16.mxu0 %v758
    %861 = vmatpush1.bf16.msra.mxu0 %v757
    %862 = vmatprep.subr.bf16.mxu0 %v762
    %863 = vmatpush1.bf16.msra.mxu0 %v761
    %864 = vmatprep.subr.bf16.mxu0 %v766
    %865 = vmatpush1.bf16.msra.mxu0 %v765
    %866 = vmatprep.subr.bf16.mxu0 %v770
    %867 = vmatpush1.bf16.msra.mxu0 %v769
    %868 = vmatprep.subr.bf16.mxu0 %v774
    %869 = vmatpush1.bf16.msra.mxu0 %v773
    %870 = vmatprep.subr.bf16.mxu0 %v778
    %871 = vmatpush1.bf16.msra.mxu0 %v777
    %872 = vmatprep.subr.bf16.mxu0 %v782
    %873 = vmatpush1.bf16.msra.mxu0 %v781
    %874 = vmatprep.subr.bf16.mxu0 %v786
    %875 = vmatpush1.bf16.msra.mxu0 %v785
    %876 = vmatprep.subr.bf16.mxu0 0
    %877 = vmatpush1.bf16.msra.mxu0 0
    %878 = vmatprep.subr.bf16.mxu0 0
    %879 = vmatpush1.bf16.msra.mxu0 0
    %880 = vmatprep.subr.bf16.mxu0 0
    %881 = vmatpush1.bf16.msra.mxu0 0
    %882 = vmatprep.subr.bf16.mxu0 0
    %883 = vmatpush1.bf16.msra.mxu0 0
    %884 = vmatprep.subr.bf16.mxu0 0
    %885 = vmatpush1.bf16.msra.mxu0 0
    %886 = vmatprep.subr.bf16.mxu0 0
    %887 = vmatpush1.bf16.msra.mxu0 0
    %888 = vmatprep.subr.bf16.mxu0 0
    %889 = vmatpush1.bf16.msra.mxu0 0
    %890 = vmatprep.subr.bf16.mxu0 0
    %891 = vmatpush1.bf16.msra.mxu0 0
    %892 = vmatprep.mubr.bf16.mxu0 0
    %893 = vmatmul.mubr.bf16.gmra.mrb[0].mxu0 0
    %v894 = vpop.f32.mrb[0].mxu0
    %v895 = vadd.f32 0.0, %v894
    %v896 = vpop.f32.mrb[0].mxu0
    %v897 = vadd.f32 0.0, %v896
    %v898 = vpop.f32.mrb[0].mxu0
    %v899 = vpop.f32.mrb[0].mxu0
    %900 = vdwg.mxu0
    %v901 = vadd.f32 %v623, %v854
    %v902 = vadd.f32 %v624, %v856
    %v903 = vadd.f32 %v625, %v895
    %v904 = vadd.f32 %v626, %v897
    %v905 = vmul.f32 %v901, 0.5
    %v906 = vtanh.pop %v905
    %v907 = vmul.f32 %v906, 0.5
    %v908 = vadd.f32 %v907, 0.5
    %v909 = vmul.f32 %v902, 0.5
    %v910 = vtanh.pop %v909
    %v911 = vmul.f32 %v910, 0.5
    %v912 = vadd.f32 %v911, 0.5
    %v913 = vtanh.pop %v903
    %v914 = vmul.f32 %v904, 0.5
    %v915 = vtanh.pop %v914
    %v916 = vmul.f32 %v915, 0.5
    %v917 = vadd.f32 %v916, 0.5
    %v918 = vmul.f32 %v912, 0.0
    %v919 = vmul.f32 %v908, %v913
    %v920 = vadd.f32 %v918, %v919
    %v921 = vtanh.pop %v920
    %v922 = vmul.f32 %v917, %v921
    %s923 = smul.u32 4, 32
    %s924 = smul.u32 %s923, 4
    %s925 = sshll.u32 %s924, 4
    %926 = dma.done [#allocation6], %s925
    %s927 = sshll.u32 %s924, 4
    %928 = dma.done %s76, %s927
    %s929 = smul.u32 4, 16
    %s930 = smul.u32 %s929, 1
    %s931 = sshll.u32 %s930, 4
    %932 = dma.done %s111, %s931
    %v933 = vpack.c.bf16 %v922, %v922
    %v934 = vpack.c.bf16 0.0, 0.0
    %v935 = vld [vmem:[#allocation3] sm:$0xff]
    %v936 = vld [vmem:[#allocation3 + $0x8] sm:$0xff]
    %v937 = vld [vmem:[#allocation3 + $0x10] sm:$0xff]
    %v938 = vld [vmem:[#allocation3 + $0x18] sm:$0xff]
    %v939 = vld [vmem:[#allocation3 + $0x20] sm:$0xff]
    %v940 = vld [vmem:[#allocation3 + $0x28] sm:$0xff]
    %v941 = vld [vmem:[#allocation3 + $0x30] sm:$0xff]
    %v942 = vld [vmem:[#allocation3 + $0x38] sm:$0xff]
    %v943 = vld [vmem:[#allocation3 + $0x40] sm:$0xff]
    %v944 = vld [vmem:[#allocation3 + $0x48] sm:$0xff]
    %v945 = vld [vmem:[#allocation3 + $0x50] sm:$0xff]
    %v946 = vld [vmem:[#allocation3 + $0x58] sm:$0xff]
    %v947 = vld [vmem:[#allocation3 + $0x60] sm:$0xff]
    %v948 = vld [vmem:[#allocation3 + $0x68] sm:$0xff]
    %v949 = vld [vmem:[#allocation3 + $0x70] sm:$0xff]
    %v950 = vld [vmem:[#allocation3 + $0x78] sm:$0xff]
    %v951 = vld [vmem:[#allocation3 + $0x80] sm:$0xff]
    %v952 = vld [vmem:[#allocation3 + $0x88] sm:$0xff]
    %v953 = vld [vmem:[#allocation3 + $0x90] sm:$0xff]
    %v954 = vld [vmem:[#allocation3 + $0x98] sm:$0xff]
    %v955 = vld [vmem:[#allocation3 + $0xa0] sm:$0xff]
    %v956 = vld [vmem:[#allocation3 + $0xa8] sm:$0xff]
    %v957 = vld [vmem:[#allocation3 + $0xb0] sm:$0xff]
    %v958 = vld [vmem:[#allocation3 + $0xb8] sm:$0xff]
    %v959 = vld [vmem:[#allocation3 + $0xc0] sm:$0xff]
    %v960 = vld [vmem:[#allocation3 + $0xc8] sm:$0xff]
    %v961 = vld [vmem:[#allocation3 + $0xd0] sm:$0xff]
    %v962 = vld [vmem:[#allocation3 + $0xd8] sm:$0xff]
    %v963 = vld [vmem:[#allocation3 + $0xe0] sm:$0xff]
    %v964 = vld [vmem:[#allocation3 + $0xe8] sm:$0xff]
    %v965 = vld [vmem:[#allocation3 + $0xf0] sm:$0xff]
    %v966 = vld [vmem:[#allocation3 + $0xf8] sm:$0xff]
    %v967 = vld [vmem:[#allocation3 + $0x100] sm:$0xff]
    %v968 = vld [vmem:[#allocation3 + $0x108] sm:$0xff]
    %v969 = vld [vmem:[#allocation3 + $0x110] sm:$0xff]
    %v970 = vld [vmem:[#allocation3 + $0x118] sm:$0xff]
    %v971 = vld [vmem:[#allocation3 + $0x120] sm:$0xff]
    %v972 = vld [vmem:[#allocation3 + $0x128] sm:$0xff]
    %v973 = vld [vmem:[#allocation3 + $0x130] sm:$0xff]
    %v974 = vld [vmem:[#allocation3 + $0x138] sm:$0xff]
    %v975 = vld [vmem:[#allocation3 + $0x140] sm:$0xff]
    %v976 = vld [vmem:[#allocation3 + $0x148] sm:$0xff]
    %v977 = vld [vmem:[#allocation3 + $0x150] sm:$0xff]
    %v978 = vld [vmem:[#allocation3 + $0x158] sm:$0xff]
    %v979 = vld [vmem:[#allocation3 + $0x160] sm:$0xff]
    %v980 = vld [vmem:[#allocation3 + $0x168] sm:$0xff]
    %v981 = vld [vmem:[#allocation3 + $0x170] sm:$0xff]
    %v982 = vld [vmem:[#allocation3 + $0x178] sm:$0xff]
    %v983 = vld [vmem:[#allocation3 + $0x180] sm:$0xff]
    %v984 = vld [vmem:[#allocation3 + $0x188] sm:$0xff]
    %v985 = vld [vmem:[#allocation3 + $0x190] sm:$0xff]
    %v986 = vld [vmem:[#allocation3 + $0x198] sm:$0xff]
    %v987 = vld [vmem:[#allocation3 + $0x1a0] sm:$0xff]
    %v988 = vld [vmem:[#allocation3 + $0x1a8] sm:$0xff]
    %v989 = vld [vmem:[#allocation3 + $0x1b0] sm:$0xff]
    %v990 = vld [vmem:[#allocation3 + $0x1b8] sm:$0xff]
    %v991 = vld [vmem:[#allocation3 + $0x1c0] sm:$0xff]
    %v992 = vld [vmem:[#allocation3 + $0x1c8] sm:$0xff]
    %v993 = vld [vmem:[#allocation3 + $0x1d0] sm:$0xff]
    %v994 = vld [vmem:[#allocation3 + $0x1d8] sm:$0xff]
    %v995 = vld [vmem:[#allocation3 + $0x1e0] sm:$0xff]
    %v996 = vld [vmem:[#allocation3 + $0x1e8] sm:$0xff]
    %v997 = vld [vmem:[#allocation3 + $0x1f0] sm:$0xff]
    %v998 = vld [vmem:[#allocation3 + $0x1f8] sm:$0xff]
    %999 = vmatprep.subr.bf16.mxu0 %v936
    %1000 = vmatpush1.bf16.msra.mxu0 %v935
    %1001 = vmatprep.subr.bf16.mxu0 %v940
    %1002 = vmatpush1.bf16.msra.mxu0 %v939
    %1003 = vmatprep.subr.bf16.mxu0 %v944
    %1004 = vmatpush1.bf16.msra.mxu0 %v943
    %1005 = vmatprep.subr.bf16.mxu0 %v948
    %1006 = vmatpush1.bf16.msra.mxu0 %v947
    %1007 = vmatprep.subr.bf16.mxu0 %v952
    %1008 = vmatpush1.bf16.msra.mxu0 %v951
    %1009 = vmatprep.subr.bf16.mxu0 %v956
    %1010 = vmatpush1.bf16.msra.mxu0 %v955
    %1011 = vmatprep.subr.bf16.mxu0 %v960
    %1012 = vmatpush1.bf16.msra.mxu0 %v959
    %1013 = vmatprep.subr.bf16.mxu0 %v964
    %1014 = vmatpush1.bf16.msra.mxu0 %v963
    %1015 = vmatprep.subr.bf16.mxu0 %v968
    %1016 = vmatpush1.bf16.msra.mxu0 %v967
    %1017 = vmatprep.subr.bf16.mxu0 %v972
    %1018 = vmatpush1.bf16.msra.mxu0 %v971
    %1019 = vmatprep.subr.bf16.mxu0 %v976
    %1020 = vmatpush1.bf16.msra.mxu0 %v975
    %1021 = vmatprep.subr.bf16.mxu0 %v980
    %1022 = vmatpush1.bf16.msra.mxu0 %v979
    %1023 = vmatprep.subr.bf16.mxu0 %v984
    %1024 = vmatpush1.bf16.msra.mxu0 %v983
    %1025 = vmatprep.subr.bf16.mxu0 %v988
    %1026 = vmatpush1.bf16.msra.mxu0 %v987
    %1027 = vmatprep.subr.bf16.mxu0 %v992
    %1028 = vmatpush1.bf16.msra.mxu0 %v991
    %1029 = vmatprep.subr.bf16.mxu0 %v996
    %1030 = vmatpush1.bf16.msra.mxu0 %v995
    %1031 = vmatprep.mubr.bf16.mxu0 %v934
    %1032 = vmatmul.mubr.bf16.gmra.mrb[0].mxu0 %v933
    %v1033 = vpop.f32.mrb[0].mxu0
    %v1034 = vadd.f32 %v195, %v1033
    %v1035 = vpop.f32.mrb[0].mxu0
    %v1036 = vadd.f32 %v199, %v1035
    %v1037 = vpop.f32.mrb[0].mxu0
    %v1038 = vpop.f32.mrb[0].mxu0
    %1039 = vdwg.mxu0
    %1040 = vmatprep.subr.bf16.mxu0 %v938
    %1041 = vmatpush1.bf16.msra.mxu0 %v937
    %1042 = vmatprep.subr.bf16.mxu0 %v942
    %1043 = vmatpush1.bf16.msra.mxu0 %v941
    %1044 = vmatprep.subr.bf16.mxu0 %v946
    %1045 = vmatpush1.bf16.msra.mxu0 %v945
    %1046 = vmatprep.subr.bf16.mxu0 %v950
    %1047 = vmatpush1.bf16.msra.mxu0 %v949
    %1048 = vmatprep.subr.bf16.mxu0 %v954
    %1049 = vmatpush1.bf16.msra.mxu0 %v953
    %1050 = vmatprep.subr.bf16.mxu0 %v958
    %1051 = vmatpush1.bf16.msra.mxu0 %v957
    %1052 = vmatprep.subr.bf16.mxu0 %v962
    %1053 = vmatpush1.bf16.msra.mxu0 %v961
    %1054 = vmatprep.subr.bf16.mxu0 %v966
    %1055 = vmatpush1.bf16.msra.mxu0 %v965
    %1056 = vmatprep.subr.bf16.mxu0 %v970
    %1057 = vmatpush1.bf16.msra.mxu0 %v969
    %1058 = vmatprep.subr.bf16.mxu0 %v974
    %1059 = vmatpush1.bf16.msra.mxu0 %v973
    %1060 = vmatprep.subr.bf16.mxu0 %v978
    %1061 = vmatpush1.bf16.msra.mxu0 %v977
    %1062 = vmatprep.subr.bf16.mxu0 %v982
    %1063 = vmatpush1.bf16.msra.mxu0 %v981
    %1064 = vmatprep.subr.bf16.mxu0 %v986
    %1065 = vmatpush1.bf16.msra.mxu0 %v985
    %1066 = vmatprep.subr.bf16.mxu0 %v990
    %1067 = vmatpush1.bf16.msra.mxu0 %v989
    %1068 = vmatprep.subr.bf16.mxu0 %v994
    %1069 = vmatpush1.bf16.msra.mxu0 %v993
    %1070 = vmatprep.subr.bf16.mxu0 %v998
    %1071 = vmatpush1.bf16.msra.mxu0 %v997
    %1072 = vmatprep.mubr.bf16.mxu0 %v934
    %1073 = vmatmul.mubr.bf16.gmra.mrb[0].mxu0 %v933
    %v1074 = vpop.f32.mrb[0].mxu0
    %v1075 = vadd.f32 %v203, %v1074
    %v1076 = vpop.f32.mrb[0].mxu0
    %v1077 = vadd.f32 %v207, %v1076
    %v1078 = vpop.f32.mrb[0].mxu0
    %v1079 = vpop.f32.mrb[0].mxu0
    %1080 = vdwg.mxu0
    %v1081 = vmul.f32 %v1034, 0.5
    %v1082 = vtanh.pop %v1081
    %v1083 = vmul.f32 %v1082, 0.5
    %v1084 = vadd.f32 %v1083, 0.5
    %v1085 = vmul.f32 %v1036, 0.5
    %v1086 = vtanh.pop %v1085
    %v1087 = vmul.f32 %v1086, 0.5
    %v1088 = vadd.f32 %v1087, 0.5
    %v1089 = vtanh.pop %v1075
    %v1090 = vmul.f32 %v1077, 0.5
    %v1091 = vtanh.pop %v1090
    %v1092 = vmul.f32 %v1091, 0.5
    %v1093 = vadd.f32 %v1092, 0.5
    %v1094 = vmul.f32 %v1088, 0.0
    %v1095 = vmul.f32 %v1084, %v1089
    %v1096 = vadd.f32 %v1094, %v1095
    %v1097 = vtanh.pop %v1096
    %v1098 = vmul.f32 %v1093, %v1097
    %v1099 = vpack.c.bf16 %v1098, %v1098
    %v1100 = vld [vmem:[#allocation4] sm:$0xff]
    %v1101 = vld [vmem:[#allocation4 + $0x8] sm:$0xff]
    %v1102 = vld [vmem:[#allocation4 + $0x10] sm:$0xff]
    %v1103 = vld [vmem:[#allocation4 + $0x18] sm:$0xff]
    %v1104 = vld [vmem:[#allocation4 + $0x20] sm:$0xff]
    %v1105 = vld [vmem:[#allocation4 + $0x28] sm:$0xff]
    %v1106 = vld [vmem:[#allocation4 + $0x30] sm:$0xff]
    %v1107 = vld [vmem:[#allocation4 + $0x38] sm:$0xff]
    %v1108 = vld [vmem:[#allocation4 + $0x40] sm:$0xff]
    %v1109 = vld [vmem:[#allocation4 + $0x48] sm:$0xff]
    %v1110 = vld [vmem:[#allocation4 + $0x50] sm:$0xff]
    %v1111 = vld [vmem:[#allocation4 + $0x58] sm:$0xff]
    %v1112 = vld [vmem:[#allocation4 + $0x60] sm:$0xff]
    %v1113 = vld [vmem:[#allocation4 + $0x68] sm:$0xff]
    %v1114 = vld [vmem:[#allocation4 + $0x70] sm:$0xff]
    %v1115 = vld [vmem:[#allocation4 + $0x78] sm:$0xff]
    %v1116 = vld [vmem:[#allocation4 + $0x80] sm:$0xff]
    %v1117 = vld [vmem:[#allocation4 + $0x88] sm:$0xff]
    %v1118 = vld [vmem:[#allocation4 + $0x90] sm:$0xff]
    %v1119 = vld [vmem:[#allocation4 + $0x98] sm:$0xff]
    %v1120 = vld [vmem:[#allocation4 + $0xa0] sm:$0xff]
    %v1121 = vld [vmem:[#allocation4 + $0xa8] sm:$0xff]
    %v1122 = vld [vmem:[#allocation4 + $0xb0] sm:$0xff]
    %v1123 = vld [vmem:[#allocation4 + $0xb8] sm:$0xff]
    %v1124 = vld [vmem:[#allocation4 + $0xc0] sm:$0xff]
    %v1125 = vld [vmem:[#allocation4 + $0xc8] sm:$0xff]
    %v1126 = vld [vmem:[#allocation4 + $0xd0] sm:$0xff]
    %v1127 = vld [vmem:[#allocation4 + $0xd8] sm:$0xff]
    %v1128 = vld [vmem:[#allocation4 + $0xe0] sm:$0xff]
    %v1129 = vld [vmem:[#allocation4 + $0xe8] sm:$0xff]
    %v1130 = vld [vmem:[#allocation4 + $0xf0] sm:$0xff]
    %v1131 = vld [vmem:[#allocation4 + $0xf8] sm:$0xff]
    %v1132 = vld [vmem:[#allocation4 + $0x100] sm:$0xff]
    %v1133 = vld [vmem:[#allocation4 + $0x108] sm:$0xff]
    %v1134 = vld [vmem:[#allocation4 + $0x110] sm:$0xff]
    %v1135 = vld [vmem:[#allocation4 + $0x118] sm:$0xff]
    %v1136 = vld [vmem:[#allocation4 + $0x120] sm:$0xff]
    %v1137 = vld [vmem:[#allocation4 + $0x128] sm:$0xff]
    %v1138 = vld [vmem:[#allocation4 + $0x130] sm:$0xff]
    %v1139 = vld [vmem:[#allocation4 + $0x138] sm:$0xff]
    %v1140 = vld [vmem:[#allocation4 + $0x140] sm:$0xff]
    %v1141 = vld [vmem:[#allocation4 + $0x148] sm:$0xff]
    %v1142 = vld [vmem:[#allocation4 + $0x150] sm:$0xff]
    %v1143 = vld [vmem:[#allocation4 + $0x158] sm:$0xff]
    %v1144 = vld [vmem:[#allocation4 + $0x160] sm:$0xff]
    %v1145 = vld [vmem:[#allocation4 + $0x168] sm:$0xff]
    %v1146 = vld [vmem:[#allocation4 + $0x170] sm:$0xff]
    %v1147 = vld [vmem:[#allocation4 + $0x178] sm:$0xff]
    %v1148 = vld [vmem:[#allocation4 + $0x180] sm:$0xff]
    %v1149 = vld [vmem:[#allocation4 + $0x188] sm:$0xff]
    %v1150 = vld [vmem:[#allocation4 + $0x190] sm:$0xff]
    %v1151 = vld [vmem:[#allocation4 + $0x198] sm:$0xff]
    %v1152 = vld [vmem:[#allocation4 + $0x1a0] sm:$0xff]
    %v1153 = vld [vmem:[#allocation4 + $0x1a8] sm:$0xff]
    %v1154 = vld [vmem:[#allocation4 + $0x1b0] sm:$0xff]
    %v1155 = vld [vmem:[#allocation4 + $0x1b8] sm:$0xff]
    %v1156 = vld [vmem:[#allocation4 + $0x1c0] sm:$0xff]
    %v1157 = vld [vmem:[#allocation4 + $0x1c8] sm:$0xff]
    %v1158 = vld [vmem:[#allocation4 + $0x1d0] sm:$0xff]
    %v1159 = vld [vmem:[#allocation4 + $0x1d8] sm:$0xff]
    %v1160 = vld [vmem:[#allocation4 + $0x1e0] sm:$0xff]
    %v1161 = vld [vmem:[#allocation4 + $0x1e8] sm:$0xff]
    %v1162 = vld [vmem:[#allocation4 + $0x1f0] sm:$0xff]
    %v1163 = vld [vmem:[#allocation4 + $0x1f8] sm:$0xff]
    %1164 = vmatprep.subr.bf16.mxu0 %v1101
    %1165 = vmatpush1.bf16.msra.mxu0 %v1100
    %1166 = vmatprep.subr.bf16.mxu0 %v1105
    %1167 = vmatpush1.bf16.msra.mxu0 %v1104
    %1168 = vmatprep.subr.bf16.mxu0 %v1109
    %1169 = vmatpush1.bf16.msra.mxu0 %v1108
    %1170 = vmatprep.subr.bf16.mxu0 %v1113
    %1171 = vmatpush1.bf16.msra.mxu0 %v1112
    %1172 = vmatprep.subr.bf16.mxu0 %v1117
    %1173 = vmatpush1.bf16.msra.mxu0 %v1116
    %1174 = vmatprep.subr.bf16.mxu0 %v1121
    %1175 = vmatpush1.bf16.msra.mxu0 %v1120
    %1176 = vmatprep.subr.bf16.mxu0 %v1125
    %1177 = vmatpush1.bf16.msra.mxu0 %v1124
    %1178 = vmatprep.subr.bf16.mxu0 %v1129
    %1179 = vmatpush1.bf16.msra.mxu0 %v1128
    %1180 = vmatprep.subr.bf16.mxu0 %v1133
    %1181 = vmatpush1.bf16.msra.mxu0 %v1132
    %1182 = vmatprep.subr.bf16.mxu0 %v1137
    %1183 = vmatpush1.bf16.msra.mxu0 %v1136
    %1184 = vmatprep.subr.bf16.mxu0 %v1141
    %1185 = vmatpush1.bf16.msra.mxu0 %v1140
    %1186 = vmatprep.subr.bf16.mxu0 %v1145
    %1187 = vmatpush1.bf16.msra.mxu0 %v1144
    %1188 = vmatprep.subr.bf16.mxu0 %v1149
    %1189 = vmatpush1.bf16.msra.mxu0 %v1148
    %1190 = vmatprep.subr.bf16.mxu0 %v1153
    %1191 = vmatpush1.bf16.msra.mxu0 %v1152
    %1192 = vmatprep.subr.bf16.mxu0 %v1157
    %1193 = vmatpush1.bf16.msra.mxu0 %v1156
    %1194 = vmatprep.subr.bf16.mxu0 %v1161
    %1195 = vmatpush1.bf16.msra.mxu0 %v1160
    %1196 = vmatprep.mubr.bf16.mxu0 %v934
    %1197 = vmatmul.mubr.bf16.gmra.mrb[0].mxu0 %v1099
    %v1198 = vpop.f32.mrb[0].mxu0
    %v1199 = vadd.f32 %v217, %v1198
    %v1200 = vpop.f32.mrb[0].mxu0
    %v1201 = vadd.f32 %v221, %v1200
    %v1202 = vpop.f32.mrb[0].mxu0
    %v1203 = vpop.f32.mrb[0].mxu0
    %1204 = vdwg.mxu0
    %1205 = vmatprep.subr.bf16.mxu0 %v1103
    %1206 = vmatpush1.bf16.msra.mxu0 %v1102
    %1207 = vmatprep.subr.bf16.mxu0 %v1107
    %1208 = vmatpush1.bf16.msra.mxu0 %v1106
    %1209 = vmatprep.subr.bf16.mxu0 %v1111
    %1210 = vmatpush1.bf16.msra.mxu0 %v1110
    %1211 = vmatprep.subr.bf16.mxu0 %v1115
    %1212 = vmatpush1.bf16.msra.mxu0 %v1114
    %1213 = vmatprep.subr.bf16.mxu0 %v1119
    %1214 = vmatpush1.bf16.msra.mxu0 %v1118
    %1215 = vmatprep.subr.bf16.mxu0 %v1123
    %1216 = vmatpush1.bf16.msra.mxu0 %v1122
    %1217 = vmatprep.subr.bf16.mxu0 %v1127
    %1218 = vmatpush1.bf16.msra.mxu0 %v1126
    %1219 = vmatprep.subr.bf16.mxu0 %v1131
    %1220 = vmatpush1.bf16.msra.mxu0 %v1130
    %1221 = vmatprep.subr.bf16.mxu0 %v1135
    %1222 = vmatpush1.bf16.msra.mxu0 %v1134
    %1223 = vmatprep.subr.bf16.mxu0 %v1139
    %1224 = vmatpush1.bf16.msra.mxu0 %v1138
    %1225 = vmatprep.subr.bf16.mxu0 %v1143
    %1226 = vmatpush1.bf16.msra.mxu0 %v1142
    %1227 = vmatprep.subr.bf16.mxu0 %v1147
    %1228 = vmatpush1.bf16.msra.mxu0 %v1146
    %1229 = vmatprep.subr.bf16.mxu0 %v1151
    %1230 = vmatpush1.bf16.msra.mxu0 %v1150
    %1231 = vmatprep.subr.bf16.mxu0 %v1155
    %1232 = vmatpush1.bf16.msra.mxu0 %v1154
    %1233 = vmatprep.subr.bf16.mxu0 %v1159
    %1234 = vmatpush1.bf16.msra.mxu0 %v1158
    %1235 = vmatprep.subr.bf16.mxu0 %v1163
    %1236 = vmatpush1.bf16.msra.mxu0 %v1162
    %1237 = vmatprep.mubr.bf16.mxu0 %v934
    %1238 = vmatmul.mubr.bf16.gmra.mrb[0].mxu0 %v1099
    %v1239 = vpop.f32.mrb[0].mxu0
    %v1240 = vadd.f32 %v225, %v1239
    %v1241 = vpop.f32.mrb[0].mxu0
    %v1242 = vadd.f32 %v229, %v1241
    %v1243 = vpop.f32.mrb[0].mxu0
    %v1244 = vpop.f32.mrb[0].mxu0
    %1245 = vdwg.mxu0
    %v1246 = vmul.f32 %v1199, 0.5
    %v1247 = vtanh.pop %v1246
    %v1248 = vmul.f32 %v1247, 0.5
    %v1249 = vadd.f32 %v1248, 0.5
    %v1250 = vmul.f32 %v1201, 0.5
    %v1251 = vtanh.pop %v1250
    %v1252 = vmul.f32 %v1251, 0.5
    %v1253 = vadd.f32 %v1252, 0.5
    %v1254 = vtanh.pop %v1240
    %v1255 = vmul.f32 %v1242, 0.5
    %v1256 = vtanh.pop %v1255
    %v1257 = vmul.f32 %v1256, 0.5
    %v1258 = vadd.f32 %v1257, 0.5
    %v1259 = vmul.f32 %v1253, 0.0
    %v1260 = vmul.f32 %v1249, %v1254
    %v1261 = vadd.f32 %v1259, %v1260
    %v1262 = vtanh.pop %v1261
    %v1263 = vmul.f32 %v1258, %v1262
    %v1264 = vpack.c.bf16 %v1263, %v1263
    %v1265 = vld [vmem:[#allocation5] sm:$0xff]
    %v1266 = vld [vmem:[#allocation5 + $0x8] sm:$0xff]
    %v1267 = vld [vmem:[#allocation5 + $0x10] sm:$0xff]
    %v1268 = vld [vmem:[#allocation5 + $0x18] sm:$0xff]
    %v1269 = vld [vmem:[#allocation5 + $0x20] sm:$0xff]
    %v1270 = vld [vmem:[#allocation5 + $0x28] sm:$0xff]
    %v1271 = vld [vmem:[#allocation5 + $0x30] sm:$0xff]
    %v1272 = vld [vmem:[#allocation5 + $0x38] sm:$0xff]
    %1273 = vmatprep.subr.bf16.mxu0 0
    %1274 = vmatpush1.bf16.msra.mxu0 %v1265
    %1275 = vmatprep.subr.bf16.mxu0 0
    %1276 = vmatpush1.bf16.msra.mxu0 %v1266
    %1277 = vmatprep.subr.bf16.mxu0 0
    %1278 = vmatpush1.bf16.msra.mxu0 %v1267
    %1279 = vmatprep.subr.bf16.mxu0 0
    %1280 = vmatpush1.bf16.msra.mxu0 %v1268
    %1281 = vmatprep.subr.bf16.mxu0 0
    %1282 = vmatpush1.bf16.msra.mxu0 %v1269
    %1283 = vmatprep.subr.bf16.mxu0 0
    %1284 = vmatpush1.bf16.msra.mxu0 %v1270
    %1285 = vmatprep.subr.bf16.mxu0 0
    %1286 = vmatpush1.bf16.msra.mxu0 %v1271
    %1287 = vmatprep.subr.bf16.mxu0 0
    %1288 = vmatpush1.bf16.msra.mxu0 %v1272
    %1289 = vmatprep.subr.bf16.mxu0 0
    %1290 = vmatpush1.bf16.msra.mxu0 0
    %1291 = vmatprep.subr.bf16.mxu0 0
    %1292 = vmatpush1.bf16.msra.mxu0 0
    %1293 = vmatprep.subr.bf16.mxu0 0
    %1294 = vmatpush1.bf16.msra.mxu0 0
    %1295 = vmatprep.subr.bf16.mxu0 0
    %1296 = vmatpush1.bf16.msra.mxu0 0
    %1297 = vmatprep.subr.bf16.mxu0 0
    %1298 = vmatpush1.bf16.msra.mxu0 0
    %1299 = vmatprep.subr.bf16.mxu0 0
    %1300 = vmatpush1.bf16.msra.mxu0 0
    %1301 = vmatprep.subr.bf16.mxu0 0
    %1302 = vmatpush1.bf16.msra.mxu0 0
    %1303 = vmatprep.subr.bf16.mxu0 0
    %1304 = vmatpush1.bf16.msra.mxu0 0
    %1305 = vmatprep.mubr.bf16.mxu0 0
    %1306 = vmatmul.mubr.bf16.gmra.mrb[0].mxu0 %v1264
    %v1307 = vpop.f32.mrb[0].mxu0
    %v1308 = vadd.f32 %v239, %v1307
    %v1309 = vpop.f32.mrb[0].mxu0
    %v1310 = vpop.f32.mrb[0].mxu0
    %v1311 = vpop.f32.mrb[0].mxu0
    %1312 = vdwg.mxu0
    %1313 = vst [vmem:[%s9] sm:$0xff] %v1308
    %s1314 = scalar_lea.vmem [#allocation2], 32
    %v1315 = vld [vmem:[%s1314] sm:$0xff]
    %v1316 = vld [vmem:[%s1314 + $0x8] sm:$0xff]
    %v1317 = vld [vmem:[%s1314 + $0x10] sm:$0xff]
    %v1318 = vld [vmem:[%s1314 + $0x18] sm:$0xff]
    %v1319 = vld [vmem:[#allocation7 + $0x100] sm:$0xff]
    %v1320 = vld [vmem:[#allocation7 + $0x108] sm:$0xff]
    %v1321 = vld [vmem:[#allocation7 + $0x110] sm:$0xff]
    %v1322 = vld [vmem:[#allocation7 + $0x118] sm:$0xff]
    %v1323 = vld [vmem:[#allocation7 + $0x120] sm:$0xff]
    %v1324 = vld [vmem:[#allocation7 + $0x128] sm:$0xff]
    %v1325 = vld [vmem:[#allocation7 + $0x130] sm:$0xff]
    %v1326 = vld [vmem:[#allocation7 + $0x138] sm:$0xff]
    %v1327 = vld [vmem:[#allocation7 + $0x140] sm:$0xff]
    %v1328 = vld [vmem:[#allocation7 + $0x148] sm:$0xff]
    %v1329 = vld [vmem:[#allocation7 + $0x150] sm:$0xff]
    %v1330 = vld [vmem:[#allocation7 + $0x158] sm:$0xff]
    %v1331 = vld [vmem:[#allocation7 + $0x160] sm:$0xff]
    %v1332 = vld [vmem:[#allocation7 + $0x168] sm:$0xff]
    %v1333 = vld [vmem:[#allocation7 + $0x170] sm:$0xff]
    %v1334 = vld [vmem:[#allocation7 + $0x178] sm:$0xff]
    %v1335 = vld [vmem:[#allocation7 + $0x180] sm:$0xff]
    %v1336 = vld [vmem:[#allocation7 + $0x188] sm:$0xff]
    %v1337 = vld [vmem:[#allocation7 + $0x190] sm:$0xff]
    %v1338 = vld [vmem:[#allocation7 + $0x198] sm:$0xff]
    %v1339 = vld [vmem:[#allocation7 + $0x1a0] sm:$0xff]
    %v1340 = vld [vmem:[#allocation7 + $0x1a8] sm:$0xff]
    %v1341 = vld [vmem:[#allocation7 + $0x1b0] sm:$0xff]
    %v1342 = vld [vmem:[#allocation7 + $0x1b8] sm:$0xff]
    %v1343 = vld [vmem:[#allocation7 + $0x1c0] sm:$0xff]
    %v1344 = vld [vmem:[#allocation7 + $0x1c8] sm:$0xff]
    %v1345 = vld [vmem:[#allocation7 + $0x1d0] sm:$0xff]
    %v1346 = vld [vmem:[#allocation7 + $0x1d8] sm:$0xff]
    %v1347 = vld [vmem:[#allocation7 + $0x1e0] sm:$0xff]
    %v1348 = vld [vmem:[#allocation7 + $0x1e8] sm:$0xff]
    %v1349 = vld [vmem:[#allocation7 + $0x1f0] sm:$0xff]
    %v1350 = vld [vmem:[#allocation7 + $0x1f8] sm:$0xff]
    %v1383 = vunpack.c.l.b16 %v1319
    %v1384 = vunpack.c.h.b16 %v1319
    %v1385 = vunpack.c.l.b16 %v1320
    %v1386 = vunpack.c.h.b16 %v1320
    %v1387 = vunpack.c.l.b16 %v1321
    %v1388 = vunpack.c.h.b16 %v1321
    %v1389 = vunpack.c.l.b16 %v1322
    %v1390 = vunpack.c.h.b16 %v1322
    %v1391 = vunpack.c.l.b16 %v1323
    %v1392 = vunpack.c.h.b16 %v1323
    %v1393 = vunpack.c.l.b16 %v1324
    %v1394 = vunpack.c.h.b16 %v1324
    %v1395 = vunpack.c.l.b16 %v1325
    %v1396 = vunpack.c.h.b16 %v1325
    %v1397 = vunpack.c.l.b16 %v1326
    %v1398 = vunpack.c.h.b16 %v1326
    %v1399 = vunpack.c.l.b16 %v1327
    %v1400 = vunpack.c.h.b16 %v1327
    %v1401 = vunpack.c.l.b16 %v1328
    %v1402 = vunpack.c.h.b16 %v1328
    %v1403 = vunpack.c.l.b16 %v1329
    %v1404 = vunpack.c.h.b16 %v1329
    %v1405 = vunpack.c.l.b16 %v1330
    %v1406 = vunpack.c.h.b16 %v1330
    %v1407 = vunpack.c.l.b16 %v1331
    %v1408 = vunpack.c.h.b16 %v1331
    %v1409 = vunpack.c.l.b16 %v1332
    %v1410 = vunpack.c.h.b16 %v1332
    %v1411 = vunpack.c.l.b16 %v1333
    %v1412 = vunpack.c.h.b16 %v1333
    %v1413 = vunpack.c.l.b16 %v1334
    %v1414 = vunpack.c.h.b16 %v1334
    %v1415 = vunpack.c.l.b16 %v1335
    %v1416 = vunpack.c.h.b16 %v1335
    %v1417 = vunpack.c.l.b16 %v1336
    %v1418 = vunpack.c.h.b16 %v1336
    %v1419 = vunpack.c.l.b16 %v1337
    %v1420 = vunpack.c.h.b16 %v1337
    %v1421 = vunpack.c.l.b16 %v1338
    %v1422 = vunpack.c.h.b16 %v1338
    %v1423 = vunpack.c.l.b16 %v1339
    %v1424 = vunpack.c.h.b16 %v1339
    %v1425 = vunpack.c.l.b16 %v1340
    %v1426 = vunpack.c.h.b16 %v1340
    %v1427 = vunpack.c.l.b16 %v1341
    %v1428 = vunpack.c.h.b16 %v1341
    %v1429 = vunpack.c.l.b16 %v1342
    %v1430 = vunpack.c.h.b16 %v1342
    %v1431 = vunpack.c.l.b16 %v1343
    %v1432 = vunpack.c.h.b16 %v1343
    %v1433 = vunpack.c.l.b16 %v1344
    %v1434 = vunpack.c.h.b16 %v1344
    %v1435 = vunpack.c.l.b16 %v1345
    %v1436 = vunpack.c.h.b16 %v1345
    %v1437 = vunpack.c.l.b16 %v1346
    %v1438 = vunpack.c.h.b16 %v1346
    %v1439 = vunpack.c.l.b16 %v1347
    %v1440 = vunpack.c.h.b16 %v1347
    %v1441 = vunpack.c.l.b16 %v1348
    %v1442 = vunpack.c.h.b16 %v1348
    %v1443 = vunpack.c.l.b16 %v1349
    %v1444 = vunpack.c.h.b16 %v1349
    %v1445 = vunpack.c.l.b16 %v1350
    %v1446 = vunpack.c.h.b16 %v1350
    %v1447 = vpack.c.b16 %v1387, %v1383
    %v1448 = vpack.c.b16 %v1388, %v1384
    %v1449 = vpack.c.b16 %v1389, %v1385
    %v1450 = vpack.c.b16 %v1390, %v1386
    %v1451 = vpack.c.b16 %v1395, %v1391
    %v1452 = vpack.c.b16 %v1396, %v1392
    %v1453 = vpack.c.b16 %v1397, %v1393
    %v1454 = vpack.c.b16 %v1398, %v1394
    %v1455 = vpack.c.b16 %v1403, %v1399
    %v1456 = vpack.c.b16 %v1404, %v1400
    %v1457 = vpack.c.b16 %v1405, %v1401
    %v1458 = vpack.c.b16 %v1406, %v1402
    %v1459 = vpack.c.b16 %v1411, %v1407
    %v1460 = vpack.c.b16 %v1412, %v1408
    %v1461 = vpack.c.b16 %v1413, %v1409
    %v1462 = vpack.c.b16 %v1414, %v1410
    %v1463 = vpack.c.b16 %v1419, %v1415
    %v1464 = vpack.c.b16 %v1420, %v1416
    %v1465 = vpack.c.b16 %v1421, %v1417
    %v1466 = vpack.c.b16 %v1422, %v1418
    %v1467 = vpack.c.b16 %v1427, %v1423
    %v1468 = vpack.c.b16 %v1428, %v1424
    %v1469 = vpack.c.b16 %v1429, %v1425
    %v1470 = vpack.c.b16 %v1430, %v1426
    %v1471 = vpack.c.b16 %v1435, %v1431
    %v1472 = vpack.c.b16 %v1436, %v1432
    %v1473 = vpack.c.b16 %v1437, %v1433
    %v1474 = vpack.c.b16 %v1438, %v1434
    %v1475 = vpack.c.b16 %v1443, %v1439
    %v1476 = vpack.c.b16 %v1444, %v1440
    %v1477 = vpack.c.b16 %v1445, %v1441
    %v1478 = vpack.c.b16 %v1446, %v1442
    %1511 = vmatprep.subr.bf16.mxu0 %v1448
    %1512 = vmatpush1.bf16.msra.mxu0 %v1447
    %1513 = vmatprep.subr.bf16.mxu0 %v1452
    %1514 = vmatpush1.bf16.msra.mxu0 %v1451
    %1515 = vmatprep.subr.bf16.mxu0 %v1456
    %1516 = vmatpush1.bf16.msra.mxu0 %v1455
    %1517 = vmatprep.subr.bf16.mxu0 %v1460
    %1518 = vmatpush1.bf16.msra.mxu0 %v1459
    %1519 = vmatprep.subr.bf16.mxu0 %v1464
    %1520 = vmatpush1.bf16.msra.mxu0 %v1463
    %1521 = vmatprep.subr.bf16.mxu0 %v1468
    %1522 = vmatpush1.bf16.msra.mxu0 %v1467
    %1523 = vmatprep.subr.bf16.mxu0 %v1472
    %1524 = vmatpush1.bf16.msra.mxu0 %v1471
    %1525 = vmatprep.subr.bf16.mxu0 %v1476
    %1526 = vmatpush1.bf16.msra.mxu0 %v1475
    %1527 = vmatprep.subr.bf16.mxu0 0
    %1528 = vmatpush1.bf16.msra.mxu0 0
    %1529 = vmatprep.subr.bf16.mxu0 0
    %1530 = vmatpush1.bf16.msra.mxu0 0
    %1531 = vmatprep.subr.bf16.mxu0 0
    %1532 = vmatpush1.bf16.msra.mxu0 0
    %1533 = vmatprep.subr.bf16.mxu0 0
    %1534 = vmatpush1.bf16.msra.mxu0 0
    %1535 = vmatprep.subr.bf16.mxu0 0
    %1536 = vmatpush1.bf16.msra.mxu0 0
    %1537 = vmatprep.subr.bf16.mxu0 0
    %1538 = vmatpush1.bf16.msra.mxu0 0
    %1539 = vmatprep.subr.bf16.mxu0 0
    %1540 = vmatpush1.bf16.msra.mxu0 0
    %1541 = vmatprep.subr.bf16.mxu0 0
    %1542 = vmatpush1.bf16.msra.mxu0 0
    %1543 = vmatprep.mubr.bf16.mxu0 0
    %1544 = vmatmul.mubr.bf16.gmra.mrb[0].mxu0 %v933
    %v1545 = vpop.f32.mrb[0].mxu0
    %v1546 = vadd.f32 0.0, %v1545
    %v1547 = vpop.f32.mrb[0].mxu0
    %v1548 = vadd.f32 0.0, %v1547
    %v1549 = vpop.f32.mrb[0].mxu0
    %v1550 = vpop.f32.mrb[0].mxu0
    %1551 = vdwg.mxu0
    %1552 = vmatprep.subr.bf16.mxu0 %v1450
    %1553 = vmatpush1.bf16.msra.mxu0 %v1449
    %1554 = vmatprep.subr.bf16.mxu0 %v1454
    %1555 = vmatpush1.bf16.msra.mxu0 %v1453
    %1556 = vmatprep.subr.bf16.mxu0 %v1458
    %1557 = vmatpush1.bf16.msra.mxu0 %v1457
    %1558 = vmatprep.subr.bf16.mxu0 %v1462
    %1559 = vmatpush1.bf16.msra.mxu0 %v1461
    %1560 = vmatprep.subr.bf16.mxu0 %v1466
    %1561 = vmatpush1.bf16.msra.mxu0 %v1465
    %1562 = vmatprep.subr.bf16.mxu0 %v1470
    %1563 = vmatpush1.bf16.msra.mxu0 %v1469
    %1564 = vmatprep.subr.bf16.mxu0 %v1474
    %1565 = vmatpush1.bf16.msra.mxu0 %v1473
    %1566 = vmatprep.subr.bf16.mxu0 %v1478
    %1567 = vmatpush1.bf16.msra.mxu0 %v1477
    %1568 = vmatprep.subr.bf16.mxu0 0
    %1569 = vmatpush1.bf16.msra.mxu0 0
    %1570 = vmatprep.subr.bf16.mxu0 0
    %1571 = vmatpush1.bf16.msra.mxu0 0
    %1572 = vmatprep.subr.bf16.mxu0 0
    %1573 = vmatpush1.bf16.msra.mxu0 0
    %1574 = vmatprep.subr.bf16.mxu0 0
    %1575 = vmatpush1.bf16.msra.mxu0 0
    %1576 = vmatprep.subr.bf16.mxu0 0
    %1577 = vmatpush1.bf16.msra.mxu0 0
    %1578 = vmatprep.subr.bf16.mxu0 0
    %1579 = vmatpush1.bf16.msra.mxu0 0
    %1580 = vmatprep.subr.bf16.mxu0 0
    %1581 = vmatpush1.bf16.msra.mxu0 0
    %1582 = vmatprep.subr.bf16.mxu0 0
    %1583 = vmatpush1.bf16.msra.mxu0 0
    %1584 = vmatprep.mubr.bf16.mxu0 0
    %1585 = vmatmul.mubr.bf16.gmra.mrb[0].mxu0 %v933
    %v1586 = vpop.f32.mrb[0].mxu0
    %v1587 = vadd.f32 0.0, %v1586
    %v1588 = vpop.f32.mrb[0].mxu0
    %v1589 = vadd.f32 0.0, %v1588
    %v1590 = vpop.f32.mrb[0].mxu0
    %v1591 = vpop.f32.mrb[0].mxu0
    %1592 = vdwg.mxu0
    %v1593 = vadd.f32 %v1315, %v1546
    %v1594 = vadd.f32 %v1316, %v1548
    %v1595 = vadd.f32 %v1317, %v1587
    %v1596 = vadd.f32 %v1318, %v1589
    %v1597 = vmul.f32 %v1593, 0.5
    %v1598 = vtanh.pop %v1597
    %v1599 = vmul.f32 %v1598, 0.5
    %v1600 = vadd.f32 %v1599, 0.5
    %v1601 = vmul.f32 %v1594, 0.5
    %v1602 = vtanh.pop %v1601
    %v1603 = vmul.f32 %v1602, 0.5
    %v1604 = vadd.f32 %v1603, 0.5
    %v1605 = vtanh.pop %v1595
    %v1606 = vmul.f32 %v1596, 0.5
    %v1607 = vtanh.pop %v1606
    %v1608 = vmul.f32 %v1607, 0.5
    %v1609 = vadd.f32 %v1608, 0.5
    %v1610 = vmul.f32 %v1604, %v920
    %v1611 = vmul.f32 %v1600, %v1605
    %v1612 = vadd.f32 %v1610, %v1611
    %v1613 = vtanh.pop %v1612
    %v1614 = vmul.f32 %v1609, %v1613
    %v1615 = vpack.c.bf16 %v1614, %v1614
    %v1616 = vld [vmem:[#allocation3] sm:$0xff]
    %v1617 = vld [vmem:[#allocation3 + $0x8] sm:$0xff]
    %v1618 = vld [vmem:[#allocation3 + $0x10] sm:$0xff]
    %v1619 = vld [vmem:[#allocation3 + $0x18] sm:$0xff]
    %v1620 = vld [vmem:[#allocation3 + $0x20] sm:$0xff]
    %v1621 = vld [vmem:[#allocation3 + $0x28] sm:$0xff]
    %v1622 = vld [vmem:[#allocation3 + $0x30] sm:$0xff]
    %v1623 = vld [vmem:[#allocation3 + $0x38] sm:$0xff]
    %v1624 = vld [vmem:[#allocation3 + $0x40] sm:$0xff]
    %v1625 = vld [vmem:[#allocation3 + $0x48] sm:$0xff]
    %v1626 = vld [vmem:[#allocation3 + $0x50] sm:$0xff]
    %v1627 = vld [vmem:[#allocation3 + $0x58] sm:$0xff]
    %v1628 = vld [vmem:[#allocation3 + $0x60] sm:$0xff]
    %v1629 = vld [vmem:[#allocation3 + $0x68] sm:$0xff]
    %v1630 = vld [vmem:[#allocation3 + $0x70] sm:$0xff]
    %v1631 = vld [vmem:[#allocation3 + $0x78] sm:$0xff]
    %v1632 = vld [vmem:[#allocation3 + $0x80] sm:$0xff]
    %v1633 = vld [vmem:[#allocation3 + $0x88] sm:$0xff]
    %v1634 = vld [vmem:[#allocation3 + $0x90] sm:$0xff]
    %v1635 = vld [vmem:[#allocation3 + $0x98] sm:$0xff]
    %v1636 = vld [vmem:[#allocation3 + $0xa0] sm:$0xff]
    %v1637 = vld [vmem:[#allocation3 + $0xa8] sm:$0xff]
    %v1638 = vld [vmem:[#allocation3 + $0xb0] sm:$0xff]
    %v1639 = vld [vmem:[#allocation3 + $0xb8] sm:$0xff]
    %v1640 = vld [vmem:[#allocation3 + $0xc0] sm:$0xff]
    %v1641 = vld [vmem:[#allocation3 + $0xc8] sm:$0xff]
    %v1642 = vld [vmem:[#allocation3 + $0xd0] sm:$0xff]
    %v1643 = vld [vmem:[#allocation3 + $0xd8] sm:$0xff]
    %v1644 = vld [vmem:[#allocation3 + $0xe0] sm:$0xff]
    %v1645 = vld [vmem:[#allocation3 + $0xe8] sm:$0xff]
    %v1646 = vld [vmem:[#allocation3 + $0xf0] sm:$0xff]
    %v1647 = vld [vmem:[#allocation3 + $0xf8] sm:$0xff]
    %v1648 = vld [vmem:[#allocation3 + $0x100] sm:$0xff]
    %v1649 = vld [vmem:[#allocation3 + $0x108] sm:$0xff]
    %v1650 = vld [vmem:[#allocation3 + $0x110] sm:$0xff]
    %v1651 = vld [vmem:[#allocation3 + $0x118] sm:$0xff]
    %v1652 = vld [vmem:[#allocation3 + $0x120] sm:$0xff]
    %v1653 = vld [vmem:[#allocation3 + $0x128] sm:$0xff]
    %v1654 = vld [vmem:[#allocation3 + $0x130] sm:$0xff]
    %v1655 = vld [vmem:[#allocation3 + $0x138] sm:$0xff]
    %v1656 = vld [vmem:[#allocation3 + $0x140] sm:$0xff]
    %v1657 = vld [vmem:[#allocation3 + $0x148] sm:$0xff]
    %v1658 = vld [vmem:[#allocation3 + $0x150] sm:$0xff]
    %v1659 = vld [vmem:[#allocation3 + $0x158] sm:$0xff]
    %v1660 = vld [vmem:[#allocation3 + $0x160] sm:$0xff]
    %v1661 = vld [vmem:[#allocation3 + $0x168] sm:$0xff]
    %v1662 = vld [vmem:[#allocation3 + $0x170] sm:$0xff]
    %v1663 = vld [vmem:[#allocation3 + $0x178] sm:$0xff]
    %v1664 = vld [vmem:[#allocation3 + $0x180] sm:$0xff]
    %v1665 = vld [vmem:[#allocation3 + $0x188] sm:$0xff]
    %v1666 = vld [vmem:[#allocation3 + $0x190] sm:$0xff]
    %v1667 = vld [vmem:[#allocation3 + $0x198] sm:$0xff]
    %v1668 = vld [vmem:[#allocation3 + $0x1a0] sm:$0xff]
    %v1669 = vld [vmem:[#allocation3 + $0x1a8] sm:$0xff]
    %v1670 = vld [vmem:[#allocation3 + $0x1b0] sm:$0xff]
    %v1671 = vld [vmem:[#allocation3 + $0x1b8] sm:$0xff]
    %v1672 = vld [vmem:[#allocation3 + $0x1c0] sm:$0xff]
    %v1673 = vld [vmem:[#allocation3 + $0x1c8] sm:$0xff]
    %v1674 = vld [vmem:[#allocation3 + $0x1d0] sm:$0xff]
    %v1675 = vld [vmem:[#allocation3 + $0x1d8] sm:$0xff]
    %v1676 = vld [vmem:[#allocation3 + $0x1e0] sm:$0xff]
    %v1677 = vld [vmem:[#allocation3 + $0x1e8] sm:$0xff]
    %v1678 = vld [vmem:[#allocation3 + $0x1f0] sm:$0xff]
    %v1679 = vld [vmem:[#allocation3 + $0x1f8] sm:$0xff]
    %1680 = vmatprep.subr.bf16.mxu0 %v1617
    %1681 = vmatpush1.bf16.msra.mxu0 %v1616
    %1682 = vmatprep.subr.bf16.mxu0 %v1621
    %1683 = vmatpush1.bf16.msra.mxu0 %v1620
    %1684 = vmatprep.subr.bf16.mxu0 %v1625
    %1685 = vmatpush1.bf16.msra.mxu0 %v1624
    %1686 = vmatprep.subr.bf16.mxu0 %v1629
    %1687 = vmatpush1.bf16.msra.mxu0 %v1628
    %1688 = vmatprep.subr.bf16.mxu0 %v1633
    %1689 = vmatpush1.bf16.msra.mxu0 %v1632
    %1690 = vmatprep.subr.bf16.mxu0 %v1637
    %1691 = vmatpush1.bf16.msra.mxu0 %v1636
    %1692 = vmatprep.subr.bf16.mxu0 %v1641
    %1693 = vmatpush1.bf16.msra.mxu0 %v1640
    %1694 = vmatprep.subr.bf16.mxu0 %v1645
    %1695 = vmatpush1.bf16.msra.mxu0 %v1644
    %1696 = vmatprep.subr.bf16.mxu0 %v1649
    %1697 = vmatpush1.bf16.msra.mxu0 %v1648
    %1698 = vmatprep.subr.bf16.mxu0 %v1653
    %1699 = vmatpush1.bf16.msra.mxu0 %v1652
    %1700 = vmatprep.subr.bf16.mxu0 %v1657
    %1701 = vmatpush1.bf16.msra.mxu0 %v1656
    %1702 = vmatprep.subr.bf16.mxu0 %v1661
    %1703 = vmatpush1.bf16.msra.mxu0 %v1660
    %1704 = vmatprep.subr.bf16.mxu0 %v1665
    %1705 = vmatpush1.bf16.msra.mxu0 %v1664
    %1706 = vmatprep.subr.bf16.mxu0 %v1669
    %1707 = vmatpush1.bf16.msra.mxu0 %v1668
    %1708 = vmatprep.subr.bf16.mxu0 %v1673
    %1709 = vmatpush1.bf16.msra.mxu0 %v1672
    %1710 = vmatprep.subr.bf16.mxu0 %v1677
    %1711 = vmatpush1.bf16.msra.mxu0 %v1676
    %1712 = vmatprep.mubr.bf16.mxu0 %v1099
    %1713 = vmatmul.mubr.bf16.gmra.mrb[0].mxu0 %v1615
    %v1714 = vpop.f32.mrb[0].mxu0
    %v1715 = vadd.f32 %v195, %v1714
    %v1716 = vpop.f32.mrb[0].mxu0
    %v1717 = vadd.f32 %v199, %v1716
    %v1718 = vpop.f32.mrb[0].mxu0
    %v1719 = vpop.f32.mrb[0].mxu0
    %1720 = vdwg.mxu0
    %1721 = vmatprep.subr.bf16.mxu0 %v1619
    %1722 = vmatpush1.bf16.msra.mxu0 %v1618
    %1723 = vmatprep.subr.bf16.mxu0 %v1623
    %1724 = vmatpush1.bf16.msra.mxu0 %v1622
    %1725 = vmatprep.subr.bf16.mxu0 %v1627
    %1726 = vmatpush1.bf16.msra.mxu0 %v1626
    %1727 = vmatprep.subr.bf16.mxu0 %v1631
    %1728 = vmatpush1.bf16.msra.mxu0 %v1630
    %1729 = vmatprep.subr.bf16.mxu0 %v1635
    %1730 = vmatpush1.bf16.msra.mxu0 %v1634
    %1731 = vmatprep.subr.bf16.mxu0 %v1639
    %1732 = vmatpush1.bf16.msra.mxu0 %v1638
    %1733 = vmatprep.subr.bf16.mxu0 %v1643
    %1734 = vmatpush1.bf16.msra.mxu0 %v1642
    %1735 = vmatprep.subr.bf16.mxu0 %v1647
    %1736 = vmatpush1.bf16.msra.mxu0 %v1646
    %1737 = vmatprep.subr.bf16.mxu0 %v1651
    %1738 = vmatpush1.bf16.msra.mxu0 %v1650
    %1739 = vmatprep.subr.bf16.mxu0 %v1655
    %1740 = vmatpush1.bf16.msra.mxu0 %v1654
    %1741 = vmatprep.subr.bf16.mxu0 %v1659
    %1742 = vmatpush1.bf16.msra.mxu0 %v1658
    %1743 = vmatprep.subr.bf16.mxu0 %v1663
    %1744 = vmatpush1.bf16.msra.mxu0 %v1662
    %1745 = vmatprep.subr.bf16.mxu0 %v1667
    %1746 = vmatpush1.bf16.msra.mxu0 %v1666
    %1747 = vmatprep.subr.bf16.mxu0 %v1671
    %1748 = vmatpush1.bf16.msra.mxu0 %v1670
    %1749 = vmatprep.subr.bf16.mxu0 %v1675
    %1750 = vmatpush1.bf16.msra.mxu0 %v1674
    %1751 = vmatprep.subr.bf16.mxu0 %v1679
    %1752 = vmatpush1.bf16.msra.mxu0 %v1678
    %1753 = vmatprep.mubr.bf16.mxu0 %v1099
    %1754 = vmatmul.mubr.bf16.gmra.mrb[0].mxu0 %v1615
    %v1755 = vpop.f32.mrb[0].mxu0
    %v1756 = vadd.f32 %v203, %v1755
    %v1757 = vpop.f32.mrb[0].mxu0
    %v1758 = vadd.f32 %v207, %v1757
    %v1759 = vpop.f32.mrb[0].mxu0
    %v1760 = vpop.f32.mrb[0].mxu0
    %1761 = vdwg.mxu0
    %v1762 = vmul.f32 %v1715, 0.5
    %v1763 = vtanh.pop %v1762
    %v1764 = vmul.f32 %v1763, 0.5
    %v1765 = vadd.f32 %v1764, 0.5
    %v1766 = vmul.f32 %v1717, 0.5
    %v1767 = vtanh.pop %v1766
    %v1768 = vmul.f32 %v1767, 0.5
    %v1769 = vadd.f32 %v1768, 0.5
    %v1770 = vtanh.pop %v1756
    %v1771 = vmul.f32 %v1758, 0.5
    %v1772 = vtanh.pop %v1771
    %v1773 = vmul.f32 %v1772, 0.5
    %v1774 = vadd.f32 %v1773, 0.5
    %v1775 = vmul.f32 %v1769, %v1096
    %v1776 = vmul.f32 %v1765, %v1770
    %v1777 = vadd.f32 %v1775, %v1776
    %v1778 = vtanh.pop %v1777
    %v1779 = vmul.f32 %v1774, %v1778
    %v1780 = vpack.c.bf16 %v1779, %v1779
    %v1781 = vld [vmem:[#allocation4] sm:$0xff]
    %v1782 = vld [vmem:[#allocation4 + $0x8] sm:$0xff]
    %v1783 = vld [vmem:[#allocation4 + $0x10] sm:$0xff]
    %v1784 = vld [vmem:[#allocation4 + $0x18] sm:$0xff]
    %v1785 = vld [vmem:[#allocation4 + $0x20] sm:$0xff]
    %v1786 = vld [vmem:[#allocation4 + $0x28] sm:$0xff]
    %v1787 = vld [vmem:[#allocation4 + $0x30] sm:$0xff]
    %v1788 = vld [vmem:[#allocation4 + $0x38] sm:$0xff]
    %v1789 = vld [vmem:[#allocation4 + $0x40] sm:$0xff]
    %v1790 = vld [vmem:[#allocation4 + $0x48] sm:$0xff]
    %v1791 = vld [vmem:[#allocation4 + $0x50] sm:$0xff]
    %v1792 = vld [vmem:[#allocation4 + $0x58] sm:$0xff]
    %v1793 = vld [vmem:[#allocation4 + $0x60] sm:$0xff]
    %v1794 = vld [vmem:[#allocation4 + $0x68] sm:$0xff]
    %v1795 = vld [vmem:[#allocation4 + $0x70] sm:$0xff]
    %v1796 = vld [vmem:[#allocation4 + $0x78] sm:$0xff]
    %v1797 = vld [vmem:[#allocation4 + $0x80] sm:$0xff]
    %v1798 = vld [vmem:[#allocation4 + $0x88] sm:$0xff]
    %v1799 = vld [vmem:[#allocation4 + $0x90] sm:$0xff]
    %v1800 = vld [vmem:[#allocation4 + $0x98] sm:$0xff]
    %v1801 = vld [vmem:[#allocation4 + $0xa0] sm:$0xff]
    %v1802 = vld [vmem:[#allocation4 + $0xa8] sm:$0xff]
    %v1803 = vld [vmem:[#allocation4 + $0xb0] sm:$0xff]
    %v1804 = vld [vmem:[#allocation4 + $0xb8] sm:$0xff]
    %v1805 = vld [vmem:[#allocation4 + $0xc0] sm:$0xff]
    %v1806 = vld [vmem:[#allocation4 + $0xc8] sm:$0xff]
    %v1807 = vld [vmem:[#allocation4 + $0xd0] sm:$0xff]
    %v1808 = vld [vmem:[#allocation4 + $0xd8] sm:$0xff]
    %v1809 = vld [vmem:[#allocation4 + $0xe0] sm:$0xff]
    %v1810 = vld [vmem:[#allocation4 + $0xe8] sm:$0xff]
    %v1811 = vld [vmem:[#allocation4 + $0xf0] sm:$0xff]
    %v1812 = vld [vmem:[#allocation4 + $0xf8] sm:$0xff]
    %v1813 = vld [vmem:[#allocation4 + $0x100] sm:$0xff]
    %v1814 = vld [vmem:[#allocation4 + $0x108] sm:$0xff]
    %v1815 = vld [vmem:[#allocation4 + $0x110] sm:$0xff]
    %v1816 = vld [vmem:[#allocation4 + $0x118] sm:$0xff]
    %v1817 = vld [vmem:[#allocation4 + $0x120] sm:$0xff]
    %v1818 = vld [vmem:[#allocation4 + $0x128] sm:$0xff]
    %v1819 = vld [vmem:[#allocation4 + $0x130] sm:$0xff]
    %v1820 = vld [vmem:[#allocation4 + $0x138] sm:$0xff]
    %v1821 = vld [vmem:[#allocation4 + $0x140] sm:$0xff]
    %v1822 = vld [vmem:[#allocation4 + $0x148] sm:$0xff]
    %v1823 = vld [vmem:[#allocation4 + $0x150] sm:$0xff]
    %v1824 = vld [vmem:[#allocation4 + $0x158] sm:$0xff]
    %v1825 = vld [vmem:[#allocation4 + $0x160] sm:$0xff]
    %v1826 = vld [vmem:[#allocation4 + $0x168] sm:$0xff]
    %v1827 = vld [vmem:[#allocation4 + $0x170] sm:$0xff]
    %v1828 = vld [vmem:[#allocation4 + $0x178] sm:$0xff]
    %v1829 = vld [vmem:[#allocation4 + $0x180] sm:$0xff]
    %v1830 = vld [vmem:[#allocation4 + $0x188] sm:$0xff]
    %v1831 = vld [vmem:[#allocation4 + $0x190] sm:$0xff]
    %v1832 = vld [vmem:[#allocation4 + $0x198] sm:$0xff]
    %v1833 = vld [vmem:[#allocation4 + $0x1a0] sm:$0xff]
    %v1834 = vld [vmem:[#allocation4 + $0x1a8] sm:$0xff]
    %v1835 = vld [vmem:[#allocation4 + $0x1b0] sm:$0xff]
    %v1836 = vld [vmem:[#allocation4 + $0x1b8] sm:$0xff]
    %v1837 = vld [vmem:[#allocation4 + $0x1c0] sm:$0xff]
    %v1838 = vld [vmem:[#allocation4 + $0x1c8] sm:$0xff]
    %v1839 = vld [vmem:[#allocation4 + $0x1d0] sm:$0xff]
    %v1840 = vld [vmem:[#allocation4 + $0x1d8] sm:$0xff]
    %v1841 = vld [vmem:[#allocation4 + $0x1e0] sm:$0xff]
    %v1842 = vld [vmem:[#allocation4 + $0x1e8] sm:$0xff]
    %v1843 = vld [vmem:[#allocation4 + $0x1f0] sm:$0xff]
    %v1844 = vld [vmem:[#allocation4 + $0x1f8] sm:$0xff]
    %1845 = vmatprep.subr.bf16.mxu0 %v1782
    %1846 = vmatpush1.bf16.msra.mxu0 %v1781
    %1847 = vmatprep.subr.bf16.mxu0 %v1786
    %1848 = vmatpush1.bf16.msra.mxu0 %v1785
    %1849 = vmatprep.subr.bf16.mxu0 %v1790
    %1850 = vmatpush1.bf16.msra.mxu0 %v1789
    %1851 = vmatprep.subr.bf16.mxu0 %v1794
    %1852 = vmatpush1.bf16.msra.mxu0 %v1793
    %1853 = vmatprep.subr.bf16.mxu0 %v1798
    %1854 = vmatpush1.bf16.msra.mxu0 %v1797
    %1855 = vmatprep.subr.bf16.mxu0 %v1802
    %1856 = vmatpush1.bf16.msra.mxu0 %v1801
    %1857 = vmatprep.subr.bf16.mxu0 %v1806
    %1858 = vmatpush1.bf16.msra.mxu0 %v1805
    %1859 = vmatprep.subr.bf16.mxu0 %v1810
    %1860 = vmatpush1.bf16.msra.mxu0 %v1809
    %1861 = vmatprep.subr.bf16.mxu0 %v1814
    %1862 = vmatpush1.bf16.msra.mxu0 %v1813
    %1863 = vmatprep.subr.bf16.mxu0 %v1818
    %1864 = vmatpush1.bf16.msra.mxu0 %v1817
    %1865 = vmatprep.subr.bf16.mxu0 %v1822
    %1866 = vmatpush1.bf16.msra.mxu0 %v1821
    %1867 = vmatprep.subr.bf16.mxu0 %v1826
    %1868 = vmatpush1.bf16.msra.mxu0 %v1825
    %1869 = vmatprep.subr.bf16.mxu0 %v1830
    %1870 = vmatpush1.bf16.msra.mxu0 %v1829
    %1871 = vmatprep.subr.bf16.mxu0 %v1834
    %1872 = vmatpush1.bf16.msra.mxu0 %v1833
    %1873 = vmatprep.subr.bf16.mxu0 %v1838
    %1874 = vmatpush1.bf16.msra.mxu0 %v1837
    %1875 = vmatprep.subr.bf16.mxu0 %v1842
    %1876 = vmatpush1.bf16.msra.mxu0 %v1841
    %1877 = vmatprep.mubr.bf16.mxu0 %v1264
    %1878 = vmatmul.mubr.bf16.gmra.mrb[0].mxu0 %v1780
    %v1879 = vpop.f32.mrb[0].mxu0
    %v1880 = vadd.f32 %v217, %v1879
    %v1881 = vpop.f32.mrb[0].mxu0
    %v1882 = vadd.f32 %v221, %v1881
    %v1883 = vpop.f32.mrb[0].mxu0
    %v1884 = vpop.f32.mrb[0].mxu0
    %1885 = vdwg.mxu0
    %1886 = vmatprep.subr.bf16.mxu0 %v1784
    %1887 = vmatpush1.bf16.msra.mxu0 %v1783
    %1888 = vmatprep.subr.bf16.mxu0 %v1788
    %1889 = vmatpush1.bf16.msra.mxu0 %v1787
    %1890 = vmatprep.subr.bf16.mxu0 %v1792
    %1891 = vmatpush1.bf16.msra.mxu0 %v1791
    %1892 = vmatprep.subr.bf16.mxu0 %v1796
    %1893 = vmatpush1.bf16.msra.mxu0 %v1795
    %1894 = vmatprep.subr.bf16.mxu0 %v1800
    %1895 = vmatpush1.bf16.msra.mxu0 %v1799
    %1896 = vmatprep.subr.bf16.mxu0 %v1804
    %1897 = vmatpush1.bf16.msra.mxu0 %v1803
    %1898 = vmatprep.subr.bf16.mxu0 %v1808
    %1899 = vmatpush1.bf16.msra.mxu0 %v1807
    %1900 = vmatprep.subr.bf16.mxu0 %v1812
    %1901 = vmatpush1.bf16.msra.mxu0 %v1811
    %1902 = vmatprep.subr.bf16.mxu0 %v1816
    %1903 = vmatpush1.bf16.msra.mxu0 %v1815
    %1904 = vmatprep.subr.bf16.mxu0 %v1820
    %1905 = vmatpush1.bf16.msra.mxu0 %v1819
    %1906 = vmatprep.subr.bf16.mxu0 %v1824
    %1907 = vmatpush1.bf16.msra.mxu0 %v1823
    %1908 = vmatprep.subr.bf16.mxu0 %v1828
    %1909 = vmatpush1.bf16.msra.mxu0 %v1827
    %1910 = vmatprep.subr.bf16.mxu0 %v1832
    %1911 = vmatpush1.bf16.msra.mxu0 %v1831
    %1912 = vmatprep.subr.bf16.mxu0 %v1836
    %1913 = vmatpush1.bf16.msra.mxu0 %v1835
    %1914 = vmatprep.subr.bf16.mxu0 %v1840
    %1915 = vmatpush1.bf16.msra.mxu0 %v1839
    %1916 = vmatprep.subr.bf16.mxu0 %v1844
    %1917 = vmatpush1.bf16.msra.mxu0 %v1843
    %1918 = vmatprep.mubr.bf16.mxu0 %v1264
    %1919 = vmatmul.mubr.bf16.gmra.mrb[0].mxu0 %v1780
    %v1920 = vpop.f32.mrb[0].mxu0
    %v1921 = vadd.f32 %v225, %v1920
    %v1922 = vpop.f32.mrb[0].mxu0
    %v1923 = vadd.f32 %v229, %v1922
    %v1924 = vpop.f32.mrb[0].mxu0
    %v1925 = vpop.f32.mrb[0].mxu0
    %1926 = vdwg.mxu0
    %v1927 = vmul.f32 %v1880, 0.5
    %v1928 = vtanh.pop %v1927
    %v1929 = vmul.f32 %v1928, 0.5
    %v1930 = vadd.f32 %v1929, 0.5
    %v1931 = vmul.f32 %v1882, 0.5
    %v1932 = vtanh.pop %v1931
    %v1933 = vmul.f32 %v1932, 0.5
    %v1934 = vadd.f32 %v1933, 0.5
    %v1935 = vtanh.pop %v1921
    %v1936 = vmul.f32 %v1923, 0.5
    %v1937 = vtanh.pop %v1936
    %v1938 = vmul.f32 %v1937, 0.5
    %v1939 = vadd.f32 %v1938, 0.5
    %v1940 = vmul.f32 %v1934, %v1261
    %v1941 = vmul.f32 %v1930, %v1935
    %v1942 = vadd.f32 %v1940, %v1941
    %v1943 = vtanh.pop %v1942
    %v1944 = vmul.f32 %v1939, %v1943
    %v1945 = vpack.c.bf16 %v1944, %v1944
    %v1946 = vld [vmem:[#allocation5] sm:$0xff]
    %v1947 = vld [vmem:[#allocation5 + $0x8] sm:$0xff]
    %v1948 = vld [vmem:[#allocation5 + $0x10] sm:$0xff]
    %v1949 = vld [vmem:[#allocation5 + $0x18] sm:$0xff]
    %v1950 = vld [vmem:[#allocation5 + $0x20] sm:$0xff]
    %v1951 = vld [vmem:[#allocation5 + $0x28] sm:$0xff]
    %v1952 = vld [vmem:[#allocation5 + $0x30] sm:$0xff]
    %v1953 = vld [vmem:[#allocation5 + $0x38] sm:$0xff]
    %1954 = vmatprep.subr.bf16.mxu0 0
    %1955 = vmatpush1.bf16.msra.mxu0 %v1946
    %1956 = vmatprep.subr.bf16.mxu0 0
    %1957 = vmatpush1.bf16.msra.mxu0 %v1947
    %1958 = vmatprep.subr.bf16.mxu0 0
    %1959 = vmatpush1.bf16.msra.mxu0 %v1948
    %1960 = vmatprep.subr.bf16.mxu0 0
    %1961 = vmatpush1.bf16.msra.mxu0 %v1949
    %1962 = vmatprep.subr.bf16.mxu0 0
    %1963 = vmatpush1.bf16.msra.mxu0 %v1950
    %1964 = vmatprep.subr.bf16.mxu0 0
    %1965 = vmatpush1.bf16.msra.mxu0 %v1951
    %1966 = vmatprep.subr.bf16.mxu0 0
    %1967 = vmatpush1.bf16.msra.mxu0 %v1952
    %1968 = vmatprep.subr.bf16.mxu0 0
    %1969 = vmatpush1.bf16.msra.mxu0 %v1953
    %1970 = vmatprep.subr.bf16.mxu0 0
    %1971 = vmatpush1.bf16.msra.mxu0 0
    %1972 = vmatprep.subr.bf16.mxu0 0
    %1973 = vmatpush1.bf16.msra.mxu0 0
    %1974 = vmatprep.subr.bf16.mxu0 0
    %1975 = vmatpush1.bf16.msra.mxu0 0
    %1976 = vmatprep.subr.bf16.mxu0 0
    %1977 = vmatpush1.bf16.msra.mxu0 0
    %1978 = vmatprep.subr.bf16.mxu0 0
    %1979 = vmatpush1.bf16.msra.mxu0 0
    %1980 = vmatprep.subr.bf16.mxu0 0
    %1981 = vmatpush1.bf16.msra.mxu0 0
    %1982 = vmatprep.subr.bf16.mxu0 0
    %1983 = vmatpush1.bf16.msra.mxu0 0
    %1984 = vmatprep.subr.bf16.mxu0 0
    %1985 = vmatpush1.bf16.msra.mxu0 0
    %1986 = vmatprep.mubr.bf16.mxu0 0
    %1987 = vmatmul.mubr.bf16.gmra.mrb[0].mxu0 %v1945
    %v1988 = vpop.f32.mrb[0].mxu0
    %v1989 = vadd.f32 %v239, %v1988
    %v1990 = vpop.f32.mrb[0].mxu0
    %v1991 = vpop.f32.mrb[0].mxu0
    %v1992 = vpop.f32.mrb[0].mxu0
    %1993 = vdwg.mxu0
    %s1994 = scalar_lea.vmem %s9, 8
    %1995 = vst [vmem:[%s1994] sm:$0xff] %v1989
    %s1996 = scalar_lea.vmem [#allocation2], 64
    %v1997 = vld [vmem:[%s1996] sm:$0xff]
    %v1998 = vld [vmem:[%s1996 + $0x8] sm:$0xff]
    %v1999 = vld [vmem:[%s1996 + $0x10] sm:$0xff]
    %v2000 = vld [vmem:[%s1996 + $0x18] sm:$0xff]
    %v2001 = vld [vmem:[#allocation7 + $0x100] sm:$0xff]
    %v2002 = vld [vmem:[#allocation7 + $0x108] sm:$0xff]
    %v2003 = vld [vmem:[#allocation7 + $0x110] sm:$0xff]
    %v2004 = vld [vmem:[#allocation7 + $0x118] sm:$0xff]
    %v2005 = vld [vmem:[#allocation7 + $0x120] sm:$0xff]
    %v2006 = vld [vmem:[#allocation7 + $0x128] sm:$0xff]
    %v2007 = vld [vmem:[#allocation7 + $0x130] sm:$0xff]
    %v2008 = vld [vmem:[#allocation7 + $0x138] sm:$0xff]
    %v2009 = vld [vmem:[#allocation7 + $0x140] sm:$0xff]
    %v2010 = vld [vmem:[#allocation7 + $0x148] sm:$0xff]
    %v2011 = vld [vmem:[#allocation7 + $0x150] sm:$0xff]
    %v2012 = vld [vmem:[#allocation7 + $0x158] sm:$0xff]
    %v2013 = vld [vmem:[#allocation7 + $0x160] sm:$0xff]
    %v2014 = vld [vmem:[#allocation7 + $0x168] sm:$0xff]
    %v2015 = vld [vmem:[#allocation7 + $0x170] sm:$0xff]
    %v2016 = vld [vmem:[#allocation7 + $0x178] sm:$0xff]
    %v2017 = vld [vmem:[#allocation7 + $0x180] sm:$0xff]
    %v2018 = vld [vmem:[#allocation7 + $0x188] sm:$0xff]
    %v2019 = vld [vmem:[#allocation7 + $0x190] sm:$0xff]
    %v2020 = vld [vmem:[#allocation7 + $0x198] sm:$0xff]
    %v2021 = vld [vmem:[#allocation7 + $0x1a0] sm:$0xff]
    %v2022 = vld [vmem:[#allocation7 + $0x1a8] sm:$0xff]
    %v2023 = vld [vmem:[#allocation7 + $0x1b0] sm:$0xff]
    %v2024 = vld [vmem:[#allocation7 + $0x1b8] sm:$0xff]
    %v2025 = vld [vmem:[#allocation7 + $0x1c0] sm:$0xff]
    %v2026 = vld [vmem:[#allocation7 + $0x1c8] sm:$0xff]
    %v2027 = vld [vmem:[#allocation7 + $0x1d0] sm:$0xff]
    %v2028 = vld [vmem:[#allocation7 + $0x1d8] sm:$0xff]
    %v2029 = vld [vmem:[#allocation7 + $0x1e0] sm:$0xff]
    %v2030 = vld [vmem:[#allocation7 + $0x1e8] sm:$0xff]
    %v2031 = vld [vmem:[#allocation7 + $0x1f0] sm:$0xff]
    %v2032 = vld [vmem:[#allocation7 + $0x1f8] sm:$0xff]
    %v2065 = vunpack.c.l.b16 %v2001
    %v2066 = vunpack.c.h.b16 %v2001
    %v2067 = vunpack.c.l.b16 %v2002
    %v2068 = vunpack.c.h.b16 %v2002
    %v2069 = vunpack.c.l.b16 %v2003
    %v2070 = vunpack.c.h.b16 %v2003
    %v2071 = vunpack.c.l.b16 %v2004
    %v2072 = vunpack.c.h.b16 %v2004
    %v2073 = vunpack.c.l.b16 %v2005
    %v2074 = vunpack.c.h.b16 %v2005
    %v2075 = vunpack.c.l.b16 %v2006
    %v2076 = vunpack.c.h.b16 %v2006
    %v2077 = vunpack.c.l.b16 %v2007
    %v2078 = vunpack.c.h.b16 %v2007
    %v2079 = vunpack.c.l.b16 %v2008
    %v2080 = vunpack.c.h.b16 %v2008
    %v2081 = vunpack.c.l.b16 %v2009
    %v2082 = vunpack.c.h.b16 %v2009
    %v2083 = vunpack.c.l.b16 %v2010
    %v2084 = vunpack.c.h.b16 %v2010
    %v2085 = vunpack.c.l.b16 %v2011
    %v2086 = vunpack.c.h.b16 %v2011
    %v2087 = vunpack.c.l.b16 %v2012
    %v2088 = vunpack.c.h.b16 %v2012
    %v2089 = vunpack.c.l.b16 %v2013
    %v2090 = vunpack.c.h.b16 %v2013
    %v2091 = vunpack.c.l.b16 %v2014
    %v2092 = vunpack.c.h.b16 %v2014
    %v2093 = vunpack.c.l.b16 %v2015
    %v2094 = vunpack.c.h.b16 %v2015
    %v2095 = vunpack.c.l.b16 %v2016
    %v2096 = vunpack.c.h.b16 %v2016
    %v2097 = vunpack.c.l.b16 %v2017
    %v2098 = vunpack.c.h.b16 %v2017
    %v2099 = vunpack.c.l.b16 %v2018
    %v2100 = vunpack.c.h.b16 %v2018
    %v2101 = vunpack.c.l.b16 %v2019
    %v2102 = vunpack.c.h.b16 %v2019
    %v2103 = vunpack.c.l.b16 %v2020
    %v2104 = vunpack.c.h.b16 %v2020
    %v2105 = vunpack.c.l.b16 %v2021
    %v2106 = vunpack.c.h.b16 %v2021
    %v2107 = vunpack.c.l.b16 %v2022
    %v2108 = vunpack.c.h.b16 %v2022
    %v2109 = vunpack.c.l.b16 %v2023
    %v2110 = vunpack.c.h.b16 %v2023
    %v2111 = vunpack.c.l.b16 %v2024
    %v2112 = vunpack.c.h.b16 %v2024
    %v2113 = vunpack.c.l.b16 %v2025
    %v2114 = vunpack.c.h.b16 %v2025
    %v2115 = vunpack.c.l.b16 %v2026
    %v2116 = vunpack.c.h.b16 %v2026
    %v2117 = vunpack.c.l.b16 %v2027
    %v2118 = vunpack.c.h.b16 %v2027
    %v2119 = vunpack.c.l.b16 %v2028
    %v2120 = vunpack.c.h.b16 %v2028
    %v2121 = vunpack.c.l.b16 %v2029
    %v2122 = vunpack.c.h.b16 %v2029
    %v2123 = vunpack.c.l.b16 %v2030
    %v2124 = vunpack.c.h.b16 %v2030
    %v2125 = vunpack.c.l.b16 %v2031
    %v2126 = vunpack.c.h.b16 %v2031
    %v2127 = vunpack.c.l.b16 %v2032
    %v2128 = vunpack.c.h.b16 %v2032
    %v2129 = vpack.c.b16 %v2069, %v2065
    %v2130 = vpack.c.b16 %v2070, %v2066
    %v2131 = vpack.c.b16 %v2071, %v2067
    %v2132 = vpack.c.b16 %v2072, %v2068
    %v2133 = vpack.c.b16 %v2077, %v2073
    %v2134 = vpack.c.b16 %v2078, %v2074
    %v2135 = vpack.c.b16 %v2079, %v2075
    %v2136 = vpack.c.b16 %v2080, %v2076
    %v2137 = vpack.c.b16 %v2085, %v2081
    %v2138 = vpack.c.b16 %v2086, %v2082
    %v2139 = vpack.c.b16 %v2087, %v2083
    %v2140 = vpack.c.b16 %v2088, %v2084
    %v2141 = vpack.c.b16 %v2093, %v2089
    %v2142 = vpack.c.b16 %v2094, %v2090
    %v2143 = vpack.c.b16 %v2095, %v2091
    %v2144 = vpack.c.b16 %v2096, %v2092
    %v2145 = vpack.c.b16 %v2101, %v2097
    %v2146 = vpack.c.b16 %v2102, %v2098
    %v2147 = vpack.c.b16 %v2103, %v2099
    %v2148 = vpack.c.b16 %v2104, %v2100
    %v2149 = vpack.c.b16 %v2109, %v2105
    %v2150 = vpack.c.b16 %v2110, %v2106
    %v2151 = vpack.c.b16 %v2111, %v2107
    %v2152 = vpack.c.b16 %v2112, %v2108
    %v2153 = vpack.c.b16 %v2117, %v2113
    %v2154 = vpack.c.b16 %v2118, %v2114
    %v2155 = vpack.c.b16 %v2119, %v2115
    %v2156 = vpack.c.b16 %v2120, %v2116
    %v2157 = vpack.c.b16 %v2125, %v2121
    %v2158 = vpack.c.b16 %v2126, %v2122
    %v2159 = vpack.c.b16 %v2127, %v2123
    %v2160 = vpack.c.b16 %v2128, %v2124
    %2193 = vmatprep.subr.bf16.mxu0 %v2130
    %2194 = vmatpush1.bf16.msra.mxu0 %v2129
    %2195 = vmatprep.subr.bf16.mxu0 %v2134
    %2196 = vmatpush1.bf16.msra.mxu0 %v2133
    %2197 = vmatprep.subr.bf16.mxu0 %v2138
    %2198 = vmatpush1.bf16.msra.mxu0 %v2137
    %2199 = vmatprep.subr.bf16.mxu0 %v2142
    %2200 = vmatpush1.bf16.msra.mxu0 %v2141
    %2201 = vmatprep.subr.bf16.mxu0 %v2146
    %2202 = vmatpush1.bf16.msra.mxu0 %v2145
    %2203 = vmatprep.subr.bf16.mxu0 %v2150
    %2204 = vmatpush1.bf16.msra.mxu0 %v2149
    %2205 = vmatprep.subr.bf16.mxu0 %v2154
    %2206 = vmatpush1.bf16.msra.mxu0 %v2153
    %2207 = vmatprep.subr.bf16.mxu0 %v2158
    %2208 = vmatpush1.bf16.msra.mxu0 %v2157
    %2209 = vmatprep.subr.bf16.mxu0 0
    %2210 = vmatpush1.bf16.msra.mxu0 0
    %2211 = vmatprep.subr.bf16.mxu0 0
    %2212 = vmatpush1.bf16.msra.mxu0 0
    %2213 = vmatprep.subr.bf16.mxu0 0
    %2214 = vmatpush1.bf16.msra.mxu0 0
    %2215 = vmatprep.subr.bf16.mxu0 0
    %2216 = vmatpush1.bf16.msra.mxu0 0
    %2217 = vmatprep.subr.bf16.mxu0 0
    %2218 = vmatpush1.bf16.msra.mxu0 0
    %2219 = vmatprep.subr.bf16.mxu0 0
    %2220 = vmatpush1.bf16.msra.mxu0 0
    %2221 = vmatprep.subr.bf16.mxu0 0
    %2222 = vmatpush1.bf16.msra.mxu0 0
    %2223 = vmatprep.subr.bf16.mxu0 0
    %2224 = vmatpush1.bf16.msra.mxu0 0
    %2225 = vmatprep.mubr.bf16.mxu0 0
    %2226 = vmatmul.mubr.bf16.gmra.mrb[0].mxu0 %v1615
    %v2227 = vpop.f32.mrb[0].mxu0
    %v2228 = vadd.f32 0.0, %v2227
    %v2229 = vpop.f32.mrb[0].mxu0
    %v2230 = vadd.f32 0.0, %v2229
    %v2231 = vpop.f32.mrb[0].mxu0
    %v2232 = vpop.f32.mrb[0].mxu0
    %2233 = vdwg.mxu0
    %2234 = vmatprep.subr.bf16.mxu0 %v2132
    %2235 = vmatpush1.bf16.msra.mxu0 %v2131
    %2236 = vmatprep.subr.bf16.mxu0 %v2136
    %2237 = vmatpush1.bf16.msra.mxu0 %v2135
    %2238 = vmatprep.subr.bf16.mxu0 %v2140
    %2239 = vmatpush1.bf16.msra.mxu0 %v2139
    %2240 = vmatprep.subr.bf16.mxu0 %v2144
    %2241 = vmatpush1.bf16.msra.mxu0 %v2143
    %2242 = vmatprep.subr.bf16.mxu0 %v2148
    %2243 = vmatpush1.bf16.msra.mxu0 %v2147
    %2244 = vmatprep.subr.bf16.mxu0 %v2152
    %2245 = vmatpush1.bf16.msra.mxu0 %v2151
    %2246 = vmatprep.subr.bf16.mxu0 %v2156
    %2247 = vmatpush1.bf16.msra.mxu0 %v2155
    %2248 = vmatprep.subr.bf16.mxu0 %v2160
    %2249 = vmatpush1.bf16.msra.mxu0 %v2159
    %2250 = vmatprep.subr.bf16.mxu0 0
    %2251 = vmatpush1.bf16.msra.mxu0 0
    %2252 = vmatprep.subr.bf16.mxu0 0
    %2253 = vmatpush1.bf16.msra.mxu0 0
    %2254 = vmatprep.subr.bf16.mxu0 0
    %2255 = vmatpush1.bf16.msra.mxu0 0
    %2256 = vmatprep.subr.bf16.mxu0 0
    %2257 = vmatpush1.bf16.msra.mxu0 0
    %2258 = vmatprep.subr.bf16.mxu0 0
    %2259 = vmatpush1.bf16.msra.mxu0 0
    %2260 = vmatprep.subr.bf16.mxu0 0
    %2261 = vmatpush1.bf16.msra.mxu0 0
    %2262 = vmatprep.subr.bf16.mxu0 0
    %2263 = vmatpush1.bf16.msra.mxu0 0
    %2264 = vmatprep.subr.bf16.mxu0 0
    %2265 = vmatpush1.bf16.msra.mxu0 0
    %2266 = vmatprep.mubr.bf16.mxu0 0
    %2267 = vmatmul.mubr.bf16.gmra.mrb[0].mxu0 %v1615
    %v2268 = vpop.f32.mrb[0].mxu0
    %v2269 = vadd.f32 0.0, %v2268
    %v2270 = vpop.f32.mrb[0].mxu0
    %v2271 = vadd.f32 0.0, %v2270
    %v2272 = vpop.f32.mrb[0].mxu0
    %v2273 = vpop.f32.mrb[0].mxu0
    %2274 = vdwg.mxu0
    %v2275 = vadd.f32 %v1997, %v2228
    %v2276 = vadd.f32 %v1998, %v2230
    %v2277 = vadd.f32 %v1999, %v2269
    %v2278 = vadd.f32 %v2000, %v2271
    %v2279 = vmul.f32 %v2275, 0.5
    %v2280 = vtanh.pop %v2279
    %v2281 = vmul.f32 %v2280, 0.5
    %v2282 = vadd.f32 %v2281, 0.5
    %v2283 = vmul.f32 %v2276, 0.5
    %v2284 = vtanh.pop %v2283
    %v2285 = vmul.f32 %v2284, 0.5
    %v2286 = vadd.f32 %v2285, 0.5
    %v2287 = vtanh.pop %v2277
    %v2288 = vmul.f32 %v2278, 0.5
    %v2289 = vtanh.pop %v2288
    %v2290 = vmul.f32 %v2289, 0.5
    %v2291 = vadd.f32 %v2290, 0.5
    %v2292 = vmul.f32 %v2286, %v1612
    %v2293 = vmul.f32 %v2282, %v2287
    %v2294 = vadd.f32 %v2292, %v2293
    %v2295 = vtanh.pop %v2294
    %v2296 = vmul.f32 %v2291, %v2295
    %v2297 = vpack.c.bf16 %v2296, %v2296
    %v2298 = vld [vmem:[#allocation3] sm:$0xff]
    %v2299 = vld [vmem:[#allocation3 + $0x8] sm:$0xff]
    %v2300 = vld [vmem:[#allocation3 + $0x10] sm:$0xff]
    %v2301 = vld [vmem:[#allocation3 + $0x18] sm:$0xff]
    %v2302 = vld [vmem:[#allocation3 + $0x20] sm:$0xff]
    %v2303 = vld [vmem:[#allocation3 + $0x28] sm:$0xff]
    %v2304 = vld [vmem:[#allocation3 + $0x30] sm:$0xff]
    %v2305 = vld [vmem:[#allocation3 + $0x38] sm:$0xff]
    %v2306 = vld [vmem:[#allocation3 + $0x40] sm:$0xff]
    %v2307 = vld [vmem:[#allocation3 + $0x48] sm:$0xff]
    %v2308 = vld [vmem:[#allocation3 + $0x50] sm:$0xff]
    %v2309 = vld [vmem:[#allocation3 + $0x58] sm:$0xff]
    %v2310 = vld [vmem:[#allocation3 + $0x60] sm:$0xff]
    %v2311 = vld [vmem:[#allocation3 + $0x68] sm:$0xff]
    %v2312 = vld [vmem:[#allocation3 + $0x70] sm:$0xff]
    %v2313 = vld [vmem:[#allocation3 + $0x78] sm:$0xff]
    %v2314 = vld [vmem:[#allocation3 + $0x80] sm:$0xff]
    %v2315 = vld [vmem:[#allocation3 + $0x88] sm:$0xff]
    %v2316 = vld [vmem:[#allocation3 + $0x90] sm:$0xff]
    %v2317 = vld [vmem:[#allocation3 + $0x98] sm:$0xff]
    %v2318 = vld [vmem:[#allocation3 + $0xa0] sm:$0xff]
    %v2319 = vld [vmem:[#allocation3 + $0xa8] sm:$0xff]
    %v2320 = vld [vmem:[#allocation3 + $0xb0] sm:$0xff]
    %v2321 = vld [vmem:[#allocation3 + $0xb8] sm:$0xff]
    %v2322 = vld [vmem:[#allocation3 + $0xc0] sm:$0xff]
    %v2323 = vld [vmem:[#allocation3 + $0xc8] sm:$0xff]
    %v2324 = vld [vmem:[#allocation3 + $0xd0] sm:$0xff]
    %v2325 = vld [vmem:[#allocation3 + $0xd8] sm:$0xff]
    %v2326 = vld [vmem:[#allocation3 + $0xe0] sm:$0xff]
    %v2327 = vld [vmem:[#allocation3 + $0xe8] sm:$0xff]
    %v2328 = vld [vmem:[#allocation3 + $0xf0] sm:$0xff]
    %v2329 = vld [vmem:[#allocation3 + $0xf8] sm:$0xff]
    %v2330 = vld [vmem:[#allocation3 + $0x100] sm:$0xff]
    %v2331 = vld [vmem:[#allocation3 + $0x108] sm:$0xff]
    %v2332 = vld [vmem:[#allocation3 + $0x110] sm:$0xff]
    %v2333 = vld [vmem:[#allocation3 + $0x118] sm:$0xff]
    %v2334 = vld [vmem:[#allocation3 + $0x120] sm:$0xff]
    %v2335 = vld [vmem:[#allocation3 + $0x128] sm:$0xff]
    %v2336 = vld [vmem:[#allocation3 + $0x130] sm:$0xff]
    %v2337 = vld [vmem:[#allocation3 + $0x138] sm:$0xff]
    %v2338 = vld [vmem:[#allocation3 + $0x140] sm:$0xff]
    %v2339 = vld [vmem:[#allocation3 + $0x148] sm:$0xff]
    %v2340 = vld [vmem:[#allocation3 + $0x150] sm:$0xff]
    %v2341 = vld [vmem:[#allocation3 + $0x158] sm:$0xff]
    %v2342 = vld [vmem:[#allocation3 + $0x160] sm:$0xff]
    %v2343 = vld [vmem:[#allocation3 + $0x168] sm:$0xff]
    %v2344 = vld [vmem:[#allocation3 + $0x170] sm:$0xff]
    %v2345 = vld [vmem:[#allocation3 + $0x178] sm:$0xff]
    %v2346 = vld [vmem:[#allocation3 + $0x180] sm:$0xff]
    %v2347 = vld [vmem:[#allocation3 + $0x188] sm:$0xff]
    %v2348 = vld [vmem:[#allocation3 + $0x190] sm:$0xff]
    %v2349 = vld [vmem:[#allocation3 + $0x198] sm:$0xff]
    %v2350 = vld [vmem:[#allocation3 + $0x1a0] sm:$0xff]
    %v2351 = vld [vmem:[#allocation3 + $0x1a8] sm:$0xff]
    %v2352 = vld [vmem:[#allocation3 + $0x1b0] sm:$0xff]
    %v2353 = vld [vmem:[#allocation3 + $0x1b8] sm:$0xff]
    %v2354 = vld [vmem:[#allocation3 + $0x1c0] sm:$0xff]
    %v2355 = vld [vmem:[#allocation3 + $0x1c8] sm:$0xff]
    %v2356 = vld [vmem:[#allocation3 + $0x1d0] sm:$0xff]
    %v2357 = vld [vmem:[#allocation3 + $0x1d8] sm:$0xff]
    %v2358 = vld [vmem:[#allocation3 + $0x1e0] sm:$0xff]
    %v2359 = vld [vmem:[#allocation3 + $0x1e8] sm:$0xff]
    %v2360 = vld [vmem:[#allocation3 + $0x1f0] sm:$0xff]
    %v2361 = vld [vmem:[#allocation3 + $0x1f8] sm:$0xff]
    %2362 = vmatprep.subr.bf16.mxu0 %v2299
    %2363 = vmatpush1.bf16.msra.mxu0 %v2298
    %2364 = vmatprep.subr.bf16.mxu0 %v2303
    %2365 = vmatpush1.bf16.msra.mxu0 %v2302
    %2366 = vmatprep.subr.bf16.mxu0 %v2307
    %2367 = vmatpush1.bf16.msra.mxu0 %v2306
    %2368 = vmatprep.subr.bf16.mxu0 %v2311
    %2369 = vmatpush1.bf16.msra.mxu0 %v2310
    %2370 = vmatprep.subr.bf16.mxu0 %v2315
    %2371 = vmatpush1.bf16.msra.mxu0 %v2314
    %2372 = vmatprep.subr.bf16.mxu0 %v2319
    %2373 = vmatpush1.bf16.msra.mxu0 %v2318
    %2374 = vmatprep.subr.bf16.mxu0 %v2323
    %2375 = vmatpush1.bf16.msra.mxu0 %v2322
    %2376 = vmatprep.subr.bf16.mxu0 %v2327
    %2377 = vmatpush1.bf16.msra.mxu0 %v2326
    %2378 = vmatprep.subr.bf16.mxu0 %v2331
    %2379 = vmatpush1.bf16.msra.mxu0 %v2330
    %2380 = vmatprep.subr.bf16.mxu0 %v2335
    %2381 = vmatpush1.bf16.msra.mxu0 %v2334
    %2382 = vmatprep.subr.bf16.mxu0 %v2339
    %2383 = vmatpush1.bf16.msra.mxu0 %v2338
    %2384 = vmatprep.subr.bf16.mxu0 %v2343
    %2385 = vmatpush1.bf16.msra.mxu0 %v2342
    %2386 = vmatprep.subr.bf16.mxu0 %v2347
    %2387 = vmatpush1.bf16.msra.mxu0 %v2346
    %2388 = vmatprep.subr.bf16.mxu0 %v2351
    %2389 = vmatpush1.bf16.msra.mxu0 %v2350
    %2390 = vmatprep.subr.bf16.mxu0 %v2355
    %2391 = vmatpush1.bf16.msra.mxu0 %v2354
    %2392 = vmatprep.subr.bf16.mxu0 %v2359
    %2393 = vmatpush1.bf16.msra.mxu0 %v2358
    %2394 = vmatprep.mubr.bf16.mxu0 %v1780
    %2395 = vmatmul.mubr.bf16.gmra.mrb[0].mxu0 %v2297
    %v2396 = vpop.f32.mrb[0].mxu0
    %v2397 = vadd.f32 %v195, %v2396
    %v2398 = vpop.f32.mrb[0].mxu0
    %v2399 = vadd.f32 %v199, %v2398
    %v2400 = vpop.f32.mrb[0].mxu0
    %v2401 = vpop.f32.mrb[0].mxu0
    %2402 = vdwg.mxu0
    %2403 = vmatprep.subr.bf16.mxu0 %v2301
    %2404 = vmatpush1.bf16.msra.mxu0 %v2300
    %2405 = vmatprep.subr.bf16.mxu0 %v2305
    %2406 = vmatpush1.bf16.msra.mxu0 %v2304
    %2407 = vmatprep.subr.bf16.mxu0 %v2309
    %2408 = vmatpush1.bf16.msra.mxu0 %v2308
    %2409 = vmatprep.subr.bf16.mxu0 %v2313
    %2410 = vmatpush1.bf16.msra.mxu0 %v2312
    %2411 = vmatprep.subr.bf16.mxu0 %v2317
    %2412 = vmatpush1.bf16.msra.mxu0 %v2316
    %2413 = vmatprep.subr.bf16.mxu0 %v2321
    %2414 = vmatpush1.bf16.msra.mxu0 %v2320
    %2415 = vmatprep.subr.bf16.mxu0 %v2325
    %2416 = vmatpush1.bf16.msra.mxu0 %v2324
    %2417 = vmatprep.subr.bf16.mxu0 %v2329
    %2418 = vmatpush1.bf16.msra.mxu0 %v2328
    %2419 = vmatprep.subr.bf16.mxu0 %v2333
    %2420 = vmatpush1.bf16.msra.mxu0 %v2332
    %2421 = vmatprep.subr.bf16.mxu0 %v2337
    %2422 = vmatpush1.bf16.msra.mxu0 %v2336
    %2423 = vmatprep.subr.bf16.mxu0 %v2341
    %2424 = vmatpush1.bf16.msra.mxu0 %v2340
    %2425 = vmatprep.subr.bf16.mxu0 %v2345
    %2426 = vmatpush1.bf16.msra.mxu0 %v2344
    %2427 = vmatprep.subr.bf16.mxu0 %v2349
    %2428 = vmatpush1.bf16.msra.mxu0 %v2348
    %2429 = vmatprep.subr.bf16.mxu0 %v2353
    %2430 = vmatpush1.bf16.msra.mxu0 %v2352
    %2431 = vmatprep.subr.bf16.mxu0 %v2357
    %2432 = vmatpush1.bf16.msra.mxu0 %v2356
    %2433 = vmatprep.subr.bf16.mxu0 %v2361
    %2434 = vmatpush1.bf16.msra.mxu0 %v2360
    %2435 = vmatprep.mubr.bf16.mxu0 %v1780
    %2436 = vmatmul.mubr.bf16.gmra.mrb[0].mxu0 %v2297
    %v2437 = vpop.f32.mrb[0].mxu0
    %v2438 = vadd.f32 %v203, %v2437
    %v2439 = vpop.f32.mrb[0].mxu0
    %v2440 = vadd.f32 %v207, %v2439
    %v2441 = vpop.f32.mrb[0].mxu0
    %v2442 = vpop.f32.mrb[0].mxu0
    %2443 = vdwg.mxu0
    %v2444 = vmul.f32 %v2397, 0.5
    %v2445 = vtanh.pop %v2444
    %v2446 = vmul.f32 %v2445, 0.5
    %v2447 = vadd.f32 %v2446, 0.5
    %v2448 = vmul.f32 %v2399, 0.5
    %v2449 = vtanh.pop %v2448
    %v2450 = vmul.f32 %v2449, 0.5
    %v2451 = vadd.f32 %v2450, 0.5
    %v2452 = vtanh.pop %v2438
    %v2453 = vmul.f32 %v2440, 0.5
    %v2454 = vtanh.pop %v2453
    %v2455 = vmul.f32 %v2454, 0.5
    %v2456 = vadd.f32 %v2455, 0.5
    %v2457 = vmul.f32 %v2451, %v1777
    %v2458 = vmul.f32 %v2447, %v2452
    %v2459 = vadd.f32 %v2457, %v2458
    %v2460 = vtanh.pop %v2459
    %v2461 = vmul.f32 %v2456, %v2460
    %v2462 = vpack.c.bf16 %v2461, %v2461
    %v2463 = vld [vmem:[#allocation4] sm:$0xff]
    %v2464 = vld [vmem:[#allocation4 + $0x8] sm:$0xff]
    %v2465 = vld [vmem:[#allocation4 + $0x10] sm:$0xff]
    %v2466 = vld [vmem:[#allocation4 + $0x18] sm:$0xff]
    %v2467 = vld [vmem:[#allocation4 + $0x20] sm:$0xff]
    %v2468 = vld [vmem:[#allocation4 + $0x28] sm:$0xff]
    %v2469 = vld [vmem:[#allocation4 + $0x30] sm:$0xff]
    %v2470 = vld [vmem:[#allocation4 + $0x38] sm:$0xff]
    %v2471 = vld [vmem:[#allocation4 + $0x40] sm:$0xff]
    %v2472 = vld [vmem:[#allocation4 + $0x48] sm:$0xff]
    %v2473 = vld [vmem:[#allocation4 + $0x50] sm:$0xff]
    %v2474 = vld [vmem:[#allocation4 + $0x58] sm:$0xff]
    %v2475 = vld [vmem:[#allocation4 + $0x60] sm:$0xff]
    %v2476 = vld [vmem:[#allocation4 + $0x68] sm:$0xff]
    %v2477 = vld [vmem:[#allocation4 + $0x70] sm:$0xff]
    %v2478 = vld [vmem:[#allocation4 + $0x78] sm:$0xff]
    %v2479 = vld [vmem:[#allocation4 + $0x80] sm:$0xff]
    %v2480 = vld [vmem:[#allocation4 + $0x88] sm:$0xff]
    %v2481 = vld [vmem:[#allocation4 + $0x90] sm:$0xff]
    %v2482 = vld [vmem:[#allocation4 + $0x98] sm:$0xff]
    %v2483 = vld [vmem:[#allocation4 + $0xa0] sm:$0xff]
    %v2484 = vld [vmem:[#allocation4 + $0xa8] sm:$0xff]
    %v2485 = vld [vmem:[#allocation4 + $0xb0] sm:$0xff]
    %v2486 = vld [vmem:[#allocation4 + $0xb8] sm:$0xff]
    %v2487 = vld [vmem:[#allocation4 + $0xc0] sm:$0xff]
    %v2488 = vld [vmem:[#allocation4 + $0xc8] sm:$0xff]
    %v2489 = vld [vmem:[#allocation4 + $0xd0] sm:$0xff]
    %v2490 = vld [vmem:[#allocation4 + $0xd8] sm:$0xff]
    %v2491 = vld [vmem:[#allocation4 + $0xe0] sm:$0xff]
    %v2492 = vld [vmem:[#allocation4 + $0xe8] sm:$0xff]
    %v2493 = vld [vmem:[#allocation4 + $0xf0] sm:$0xff]
    %v2494 = vld [vmem:[#allocation4 + $0xf8] sm:$0xff]
    %v2495 = vld [vmem:[#allocation4 + $0x100] sm:$0xff]
    %v2496 = vld [vmem:[#allocation4 + $0x108] sm:$0xff]
    %v2497 = vld [vmem:[#allocation4 + $0x110] sm:$0xff]
    %v2498 = vld [vmem:[#allocation4 + $0x118] sm:$0xff]
    %v2499 = vld [vmem:[#allocation4 + $0x120] sm:$0xff]
    %v2500 = vld [vmem:[#allocation4 + $0x128] sm:$0xff]
    %v2501 = vld [vmem:[#allocation4 + $0x130] sm:$0xff]
    %v2502 = vld [vmem:[#allocation4 + $0x138] sm:$0xff]
    %v2503 = vld [vmem:[#allocation4 + $0x140] sm:$0xff]
    %v2504 = vld [vmem:[#allocation4 + $0x148] sm:$0xff]
    %v2505 = vld [vmem:[#allocation4 + $0x150] sm:$0xff]
    %v2506 = vld [vmem:[#allocation4 + $0x158] sm:$0xff]
    %v2507 = vld [vmem:[#allocation4 + $0x160] sm:$0xff]
    %v2508 = vld [vmem:[#allocation4 + $0x168] sm:$0xff]
    %v2509 = vld [vmem:[#allocation4 + $0x170] sm:$0xff]
    %v2510 = vld [vmem:[#allocation4 + $0x178] sm:$0xff]
    %v2511 = vld [vmem:[#allocation4 + $0x180] sm:$0xff]
    %v2512 = vld [vmem:[#allocation4 + $0x188] sm:$0xff]
    %v2513 = vld [vmem:[#allocation4 + $0x190] sm:$0xff]
    %v2514 = vld [vmem:[#allocation4 + $0x198] sm:$0xff]
    %v2515 = vld [vmem:[#allocation4 + $0x1a0] sm:$0xff]
    %v2516 = vld [vmem:[#allocation4 + $0x1a8] sm:$0xff]
    %v2517 = vld [vmem:[#allocation4 + $0x1b0] sm:$0xff]
    %v2518 = vld [vmem:[#allocation4 + $0x1b8] sm:$0xff]
    %v2519 = vld [vmem:[#allocation4 + $0x1c0] sm:$0xff]
    %v2520 = vld [vmem:[#allocation4 + $0x1c8] sm:$0xff]
    %v2521 = vld [vmem:[#allocation4 + $0x1d0] sm:$0xff]
    %v2522 = vld [vmem:[#allocation4 + $0x1d8] sm:$0xff]
    %v2523 = vld [vmem:[#allocation4 + $0x1e0] sm:$0xff]
    %v2524 = vld [vmem:[#allocation4 + $0x1e8] sm:$0xff]
    %v2525 = vld [vmem:[#allocation4 + $0x1f0] sm:$0xff]
    %v2526 = vld [vmem:[#allocation4 + $0x1f8] sm:$0xff]
    %2527 = vmatprep.subr.bf16.mxu0 %v2464
    %2528 = vmatpush1.bf16.msra.mxu0 %v2463
    %2529 = vmatprep.subr.bf16.mxu0 %v2468
    %2530 = vmatpush1.bf16.msra.mxu0 %v2467
    %2531 = vmatprep.subr.bf16.mxu0 %v2472
    %2532 = vmatpush1.bf16.msra.mxu0 %v2471
    %2533 = vmatprep.subr.bf16.mxu0 %v2476
    %2534 = vmatpush1.bf16.msra.mxu0 %v2475
    %2535 = vmatprep.subr.bf16.mxu0 %v2480
    %2536 = vmatpush1.bf16.msra.mxu0 %v2479
    %2537 = vmatprep.subr.bf16.mxu0 %v2484
    %2538 = vmatpush1.bf16.msra.mxu0 %v2483
    %2539 = vmatprep.subr.bf16.mxu0 %v2488
    %2540 = vmatpush1.bf16.msra.mxu0 %v2487
    %2541 = vmatprep.subr.bf16.mxu0 %v2492
    %2542 = vmatpush1.bf16.msra.mxu0 %v2491
    %2543 = vmatprep.subr.bf16.mxu0 %v2496
    %2544 = vmatpush1.bf16.msra.mxu0 %v2495
    %2545 = vmatprep.subr.bf16.mxu0 %v2500
    %2546 = vmatpush1.bf16.msra.mxu0 %v2499
    %2547 = vmatprep.subr.bf16.mxu0 %v2504
    %2548 = vmatpush1.bf16.msra.mxu0 %v2503
    %2549 = vmatprep.subr.bf16.mxu0 %v2508
    %2550 = vmatpush1.bf16.msra.mxu0 %v2507
    %2551 = vmatprep.subr.bf16.mxu0 %v2512
    %2552 = vmatpush1.bf16.msra.mxu0 %v2511
    %2553 = vmatprep.subr.bf16.mxu0 %v2516
    %2554 = vmatpush1.bf16.msra.mxu0 %v2515
    %2555 = vmatprep.subr.bf16.mxu0 %v2520
    %2556 = vmatpush1.bf16.msra.mxu0 %v2519
    %2557 = vmatprep.subr.bf16.mxu0 %v2524
    %2558 = vmatpush1.bf16.msra.mxu0 %v2523
    %2559 = vmatprep.mubr.bf16.mxu0 %v1945
    %2560 = vmatmul.mubr.bf16.gmra.mrb[0].mxu0 %v2462
    %v2561 = vpop.f32.mrb[0].mxu0
    %v2562 = vadd.f32 %v217, %v2561
    %v2563 = vpop.f32.mrb[0].mxu0
    %v2564 = vadd.f32 %v221, %v2563
    %v2565 = vpop.f32.mrb[0].mxu0
    %v2566 = vpop.f32.mrb[0].mxu0
    %2567 = vdwg.mxu0
    %2568 = vmatprep.subr.bf16.mxu0 %v2466
    %2569 = vmatpush1.bf16.msra.mxu0 %v2465
    %2570 = vmatprep.subr.bf16.mxu0 %v2470
    %2571 = vmatpush1.bf16.msra.mxu0 %v2469
    %2572 = vmatprep.subr.bf16.mxu0 %v2474
    %2573 = vmatpush1.bf16.msra.mxu0 %v2473
    %2574 = vmatprep.subr.bf16.mxu0 %v2478
    %2575 = vmatpush1.bf16.msra.mxu0 %v2477
    %2576 = vmatprep.subr.bf16.mxu0 %v2482
    %2577 = vmatpush1.bf16.msra.mxu0 %v2481
    %2578 = vmatprep.subr.bf16.mxu0 %v2486
    %2579 = vmatpush1.bf16.msra.mxu0 %v2485
    %2580 = vmatprep.subr.bf16.mxu0 %v2490
    %2581 = vmatpush1.bf16.msra.mxu0 %v2489
    %2582 = vmatprep.subr.bf16.mxu0 %v2494
    %2583 = vmatpush1.bf16.msra.mxu0 %v2493
    %2584 = vmatprep.subr.bf16.mxu0 %v2498
    %2585 = vmatpush1.bf16.msra.mxu0 %v2497
    %2586 = vmatprep.subr.bf16.mxu0 %v2502
    %2587 = vmatpush1.bf16.msra.mxu0 %v2501
    %2588 = vmatprep.subr.bf16.mxu0 %v2506
    %2589 = vmatpush1.bf16.msra.mxu0 %v2505
    %2590 = vmatprep.subr.bf16.mxu0 %v2510
    %2591 = vmatpush1.bf16.msra.mxu0 %v2509
    %2592 = vmatprep.subr.bf16.mxu0 %v2514
    %2593 = vmatpush1.bf16.msra.mxu0 %v2513
    %2594 = vmatprep.subr.bf16.mxu0 %v2518
    %2595 = vmatpush1.bf16.msra.mxu0 %v2517
    %2596 = vmatprep.subr.bf16.mxu0 %v2522
    %2597 = vmatpush1.bf16.msra.mxu0 %v2521
    %2598 = vmatprep.subr.bf16.mxu0 %v2526
    %2599 = vmatpush1.bf16.msra.mxu0 %v2525
    %2600 = vmatprep.mubr.bf16.mxu0 %v1945
    %2601 = vmatmul.mubr.bf16.gmra.mrb[0].mxu0 %v2462
    %v2602 = vpop.f32.mrb[0].mxu0
    %v2603 = vadd.f32 %v225, %v2602
    %v2604 = vpop.f32.mrb[0].mxu0
    %v2605 = vadd.f32 %v229, %v2604
    %v2606 = vpop.f32.mrb[0].mxu0
    %v2607 = vpop.f32.mrb[0].mxu0
    %2608 = vdwg.mxu0
    %v2609 = vmul.f32 %v2562, 0.5
    %v2610 = vtanh.pop %v2609
    %v2611 = vmul.f32 %v2610, 0.5
    %v2612 = vadd.f32 %v2611, 0.5
    %v2613 = vmul.f32 %v2564, 0.5
    %v2614 = vtanh.pop %v2613
    %v2615 = vmul.f32 %v2614, 0.5
    %v2616 = vadd.f32 %v2615, 0.5
    %v2617 = vtanh.pop %v2603
    %v2618 = vmul.f32 %v2605, 0.5
    %v2619 = vtanh.pop %v2618
    %v2620 = vmul.f32 %v2619, 0.5
    %v2621 = vadd.f32 %v2620, 0.5
    %v2622 = vmul.f32 %v2616, %v1942
    %v2623 = vmul.f32 %v2612, %v2617
    %v2624 = vadd.f32 %v2622, %v2623
    %v2625 = vtanh.pop %v2624
    %v2626 = vmul.f32 %v2621, %v2625
    %v2627 = vpack.c.bf16 %v2626, %v2626
    %v2628 = vld [vmem:[#allocation5] sm:$0xff]
    %v2629 = vld [vmem:[#allocation5 + $0x8] sm:$0xff]
    %v2630 = vld [vmem:[#allocation5 + $0x10] sm:$0xff]
    %v2631 = vld [vmem:[#allocation5 + $0x18] sm:$0xff]
    %v2632 = vld [vmem:[#allocation5 + $0x20] sm:$0xff]
    %v2633 = vld [vmem:[#allocation5 + $0x28] sm:$0xff]
    %v2634 = vld [vmem:[#allocation5 + $0x30] sm:$0xff]
    %v2635 = vld [vmem:[#allocation5 + $0x38] sm:$0xff]
    %2636 = vmatprep.subr.bf16.mxu0 0
    %2637 = vmatpush1.bf16.msra.mxu0 %v2628
    %2638 = vmatprep.subr.bf16.mxu0 0
    %2639 = vmatpush1.bf16.msra.mxu0 %v2629
    %2640 = vmatprep.subr.bf16.mxu0 0
    %2641 = vmatpush1.bf16.msra.mxu0 %v2630
    %2642 = vmatprep.subr.bf16.mxu0 0
    %2643 = vmatpush1.bf16.msra.mxu0 %v2631
    %2644 = vmatprep.subr.bf16.mxu0 0
    %2645 = vmatpush1.bf16.msra.mxu0 %v2632
    %2646 = vmatprep.subr.bf16.mxu0 0
    %2647 = vmatpush1.bf16.msra.mxu0 %v2633
    %2648 = vmatprep.subr.bf16.mxu0 0
    %2649 = vmatpush1.bf16.msra.mxu0 %v2634
    %2650 = vmatprep.subr.bf16.mxu0 0
    %2651 = vmatpush1.bf16.msra.mxu0 %v2635
    %2652 = vmatprep.subr.bf16.mxu0 0
    %2653 = vmatpush1.bf16.msra.mxu0 0
    %2654 = vmatprep.subr.bf16.mxu0 0
    %2655 = vmatpush1.bf16.msra.mxu0 0
    %2656 = vmatprep.subr.bf16.mxu0 0
    %2657 = vmatpush1.bf16.msra.mxu0 0
    %2658 = vmatprep.subr.bf16.mxu0 0
    %2659 = vmatpush1.bf16.msra.mxu0 0
    %2660 = vmatprep.subr.bf16.mxu0 0
    %2661 = vmatpush1.bf16.msra.mxu0 0
    %2662 = vmatprep.subr.bf16.mxu0 0
    %2663 = vmatpush1.bf16.msra.mxu0 0
    %2664 = vmatprep.subr.bf16.mxu0 0
    %2665 = vmatpush1.bf16.msra.mxu0 0
    %2666 = vmatprep.subr.bf16.mxu0 0
    %2667 = vmatpush1.bf16.msra.mxu0 0
    %2668 = vmatprep.mubr.bf16.mxu0 0
    %2669 = vmatmul.mubr.bf16.gmra.mrb[0].mxu0 %v2627
    %v2670 = vpop.f32.mrb[0].mxu0
    %v2671 = vadd.f32 %v239, %v2670
    %v2672 = vpop.f32.mrb[0].mxu0
    %v2673 = vpop.f32.mrb[0].mxu0
    %v2674 = vpop.f32.mrb[0].mxu0
    %2675 = vdwg.mxu0
    %s2676 = scalar_lea.vmem %s9, 16
    %2677 = vst [vmem:[%s2676] sm:$0xff] %v2671
    %s2678 = scalar_lea.vmem [#allocation2], 96
    %v2679 = vld [vmem:[%s2678] sm:$0xff]
    %v2680 = vld [vmem:[%s2678 + $0x8] sm:$0xff]
    %v2681 = vld [vmem:[%s2678 + $0x10] sm:$0xff]
    %v2682 = vld [vmem:[%s2678 + $0x18] sm:$0xff]
    %v2683 = vld [vmem:[#allocation7 + $0x100] sm:$0xff]
    %v2684 = vld [vmem:[#allocation7 + $0x108] sm:$0xff]
    %v2685 = vld [vmem:[#allocation7 + $0x110] sm:$0xff]
    %v2686 = vld [vmem:[#allocation7 + $0x118] sm:$0xff]
    %v2687 = vld [vmem:[#allocation7 + $0x120] sm:$0xff]
    %v2688 = vld [vmem:[#allocation7 + $0x128] sm:$0xff]
    %v2689 = vld [vmem:[#allocation7 + $0x130] sm:$0xff]
    %v2690 = vld [vmem:[#allocation7 + $0x138] sm:$0xff]
    %v2691 = vld [vmem:[#allocation7 + $0x140] sm:$0xff]
    %v2692 = vld [vmem:[#allocation7 + $0x148] sm:$0xff]
    %v2693 = vld [vmem:[#allocation7 + $0x150] sm:$0xff]
    %v2694 = vld [vmem:[#allocation7 + $0x158] sm:$0xff]
    %v2695 = vld [vmem:[#allocation7 + $0x160] sm:$0xff]
    %v2696 = vld [vmem:[#allocation7 + $0x168] sm:$0xff]
    %v2697 = vld [vmem:[#allocation7 + $0x170] sm:$0xff]
    %v2698 = vld [vmem:[#allocation7 + $0x178] sm:$0xff]
    %v2699 = vld [vmem:[#allocation7 + $0x180] sm:$0xff]
    %v2700 = vld [vmem:[#allocation7 + $0x188] sm:$0xff]
    %v2701 = vld [vmem:[#allocation7 + $0x190] sm:$0xff]
    %v2702 = vld [vmem:[#allocation7 + $0x198] sm:$0xff]
    %v2703 = vld [vmem:[#allocation7 + $0x1a0] sm:$0xff]
    %v2704 = vld [vmem:[#allocation7 + $0x1a8] sm:$0xff]
    %v2705 = vld [vmem:[#allocation7 + $0x1b0] sm:$0xff]
    %v2706 = vld [vmem:[#allocation7 + $0x1b8] sm:$0xff]
    %v2707 = vld [vmem:[#allocation7 + $0x1c0] sm:$0xff]
    %v2708 = vld [vmem:[#allocation7 + $0x1c8] sm:$0xff]
    %v2709 = vld [vmem:[#allocation7 + $0x1d0] sm:$0xff]
    %v2710 = vld [vmem:[#allocation7 + $0x1d8] sm:$0xff]
    %v2711 = vld [vmem:[#allocation7 + $0x1e0] sm:$0xff]
    %v2712 = vld [vmem:[#allocation7 + $0x1e8] sm:$0xff]
    %v2713 = vld [vmem:[#allocation7 + $0x1f0] sm:$0xff]
    %v2714 = vld [vmem:[#allocation7 + $0x1f8] sm:$0xff]
    %v2747 = vunpack.c.l.b16 %v2683
    %v2748 = vunpack.c.h.b16 %v2683
    %v2749 = vunpack.c.l.b16 %v2684
    %v2750 = vunpack.c.h.b16 %v2684
    %v2751 = vunpack.c.l.b16 %v2685
    %v2752 = vunpack.c.h.b16 %v2685
    %v2753 = vunpack.c.l.b16 %v2686
    %v2754 = vunpack.c.h.b16 %v2686
    %v2755 = vunpack.c.l.b16 %v2687
    %v2756 = vunpack.c.h.b16 %v2687
    %v2757 = vunpack.c.l.b16 %v2688
    %v2758 = vunpack.c.h.b16 %v2688
    %v2759 = vunpack.c.l.b16 %v2689
    %v2760 = vunpack.c.h.b16 %v2689
    %v2761 = vunpack.c.l.b16 %v2690
    %v2762 = vunpack.c.h.b16 %v2690
    %v2763 = vunpack.c.l.b16 %v2691
    %v2764 = vunpack.c.h.b16 %v2691
    %v2765 = vunpack.c.l.b16 %v2692
    %v2766 = vunpack.c.h.b16 %v2692
    %v2767 = vunpack.c.l.b16 %v2693
    %v2768 = vunpack.c.h.b16 %v2693
    %v2769 = vunpack.c.l.b16 %v2694
    %v2770 = vunpack.c.h.b16 %v2694
    %v2771 = vunpack.c.l.b16 %v2695
    %v2772 = vunpack.c.h.b16 %v2695
    %v2773 = vunpack.c.l.b16 %v2696
    %v2774 = vunpack.c.h.b16 %v2696
    %v2775 = vunpack.c.l.b16 %v2697
    %v2776 = vunpack.c.h.b16 %v2697
    %v2777 = vunpack.c.l.b16 %v2698
    %v2778 = vunpack.c.h.b16 %v2698
    %v2779 = vunpack.c.l.b16 %v2699
    %v2780 = vunpack.c.h.b16 %v2699
    %v2781 = vunpack.c.l.b16 %v2700
    %v2782 = vunpack.c.h.b16 %v2700
    %v2783 = vunpack.c.l.b16 %v2701
    %v2784 = vunpack.c.h.b16 %v2701
    %v2785 = vunpack.c.l.b16 %v2702
    %v2786 = vunpack.c.h.b16 %v2702
    %v2787 = vunpack.c.l.b16 %v2703
    %v2788 = vunpack.c.h.b16 %v2703
    %v2789 = vunpack.c.l.b16 %v2704
    %v2790 = vunpack.c.h.b16 %v2704
    %v2791 = vunpack.c.l.b16 %v2705
    %v2792 = vunpack.c.h.b16 %v2705
    %v2793 = vunpack.c.l.b16 %v2706
    %v2794 = vunpack.c.h.b16 %v2706
    %v2795 = vunpack.c.l.b16 %v2707
    %v2796 = vunpack.c.h.b16 %v2707
    %v2797 = vunpack.c.l.b16 %v2708
    %v2798 = vunpack.c.h.b16 %v2708
    %v2799 = vunpack.c.l.b16 %v2709
    %v2800 = vunpack.c.h.b16 %v2709
    %v2801 = vunpack.c.l.b16 %v2710
    %v2802 = vunpack.c.h.b16 %v2710
    %v2803 = vunpack.c.l.b16 %v2711
    %v2804 = vunpack.c.h.b16 %v2711
    %v2805 = vunpack.c.l.b16 %v2712
    %v2806 = vunpack.c.h.b16 %v2712
    %v2807 = vunpack.c.l.b16 %v2713
    %v2808 = vunpack.c.h.b16 %v2713
    %v2809 = vunpack.c.l.b16 %v2714
    %v2810 = vunpack.c.h.b16 %v2714
    %v2811 = vpack.c.b16 %v2751, %v2747
    %v2812 = vpack.c.b16 %v2752, %v2748
    %v2813 = vpack.c.b16 %v2753, %v2749
    %v2814 = vpack.c.b16 %v2754, %v2750
    %v2815 = vpack.c.b16 %v2759, %v2755
    %v2816 = vpack.c.b16 %v2760, %v2756
    %v2817 = vpack.c.b16 %v2761, %v2757
    %v2818 = vpack.c.b16 %v2762, %v2758
    %v2819 = vpack.c.b16 %v2767, %v2763
    %v2820 = vpack.c.b16 %v2768, %v2764
    %v2821 = vpack.c.b16 %v2769, %v2765
    %v2822 = vpack.c.b16 %v2770, %v2766
    %v2823 = vpack.c.b16 %v2775, %v2771
    %v2824 = vpack.c.b16 %v2776, %v2772
    %v2825 = vpack.c.b16 %v2777, %v2773
    %v2826 = vpack.c.b16 %v2778, %v2774
    %v2827 = vpack.c.b16 %v2783, %v2779
    %v2828 = vpack.c.b16 %v2784, %v2780
    %v2829 = vpack.c.b16 %v2785, %v2781
    %v2830 = vpack.c.b16 %v2786, %v2782
    %v2831 = vpack.c.b16 %v2791, %v2787
    %v2832 = vpack.c.b16 %v2792, %v2788
    %v2833 = vpack.c.b16 %v2793, %v2789
    %v2834 = vpack.c.b16 %v2794, %v2790
    %v2835 = vpack.c.b16 %v2799, %v2795
    %v2836 = vpack.c.b16 %v2800, %v2796
    %v2837 = vpack.c.b16 %v2801, %v2797
    %v2838 = vpack.c.b16 %v2802, %v2798
    %v2839 = vpack.c.b16 %v2807, %v2803
    %v2840 = vpack.c.b16 %v2808, %v2804
    %v2841 = vpack.c.b16 %v2809, %v2805
    %v2842 = vpack.c.b16 %v2810, %v2806
    %2875 = vmatprep.subr.bf16.mxu0 %v2812
    %2876 = vmatpush1.bf16.msra.mxu0 %v2811
    %2877 = vmatprep.subr.bf16.mxu0 %v2816
    %2878 = vmatpush1.bf16.msra.mxu0 %v2815
    %2879 = vmatprep.subr.bf16.mxu0 %v2820
    %2880 = vmatpush1.bf16.msra.mxu0 %v2819
    %2881 = vmatprep.subr.bf16.mxu0 %v2824
    %2882 = vmatpush1.bf16.msra.mxu0 %v2823
    %2883 = vmatprep.subr.bf16.mxu0 %v2828
    %2884 = vmatpush1.bf16.msra.mxu0 %v2827
    %2885 = vmatprep.subr.bf16.mxu0 %v2832
    %2886 = vmatpush1.bf16.msra.mxu0 %v2831
    %2887 = vmatprep.subr.bf16.mxu0 %v2836
    %2888 = vmatpush1.bf16.msra.mxu0 %v2835
    %2889 = vmatprep.subr.bf16.mxu0 %v2840
    %2890 = vmatpush1.bf16.msra.mxu0 %v2839
    %2891 = vmatprep.subr.bf16.mxu0 0
    %2892 = vmatpush1.bf16.msra.mxu0 0
    %2893 = vmatprep.subr.bf16.mxu0 0
    %2894 = vmatpush1.bf16.msra.mxu0 0
    %2895 = vmatprep.subr.bf16.mxu0 0
    %2896 = vmatpush1.bf16.msra.mxu0 0
    %2897 = vmatprep.subr.bf16.mxu0 0
    %2898 = vmatpush1.bf16.msra.mxu0 0
    %2899 = vmatprep.subr.bf16.mxu0 0
    %2900 = vmatpush1.bf16.msra.mxu0 0
    %2901 = vmatprep.subr.bf16.mxu0 0
    %2902 = vmatpush1.bf16.msra.mxu0 0
    %2903 = vmatprep.subr.bf16.mxu0 0
    %2904 = vmatpush1.bf16.msra.mxu0 0
    %2905 = vmatprep.subr.bf16.mxu0 0
    %2906 = vmatpush1.bf16.msra.mxu0 0
    %2907 = vmatprep.mubr.bf16.mxu0 0
    %2908 = vmatmul.mubr.bf16.gmra.mrb[0].mxu0 %v2297
    %v2909 = vpop.f32.mrb[0].mxu0
    %v2910 = vadd.f32 0.0, %v2909
    %v2911 = vpop.f32.mrb[0].mxu0
    %v2912 = vadd.f32 0.0, %v2911
    %v2913 = vpop.f32.mrb[0].mxu0
    %v2914 = vpop.f32.mrb[0].mxu0
    %2915 = vdwg.mxu0
    %2916 = vmatprep.subr.bf16.mxu0 %v2814
    %2917 = vmatpush1.bf16.msra.mxu0 %v2813
    %2918 = vmatprep.subr.bf16.mxu0 %v2818
    %2919 = vmatpush1.bf16.msra.mxu0 %v2817
    %2920 = vmatprep.subr.bf16.mxu0 %v2822
    %2921 = vmatpush1.bf16.msra.mxu0 %v2821
    %2922 = vmatprep.subr.bf16.mxu0 %v2826
    %2923 = vmatpush1.bf16.msra.mxu0 %v2825
    %2924 = vmatprep.subr.bf16.mxu0 %v2830
    %2925 = vmatpush1.bf16.msra.mxu0 %v2829
    %2926 = vmatprep.subr.bf16.mxu0 %v2834
    %2927 = vmatpush1.bf16.msra.mxu0 %v2833
    %2928 = vmatprep.subr.bf16.mxu0 %v2838
    %2929 = vmatpush1.bf16.msra.mxu0 %v2837
    %2930 = vmatprep.subr.bf16.mxu0 %v2842
    %2931 = vmatpush1.bf16.msra.mxu0 %v2841
    %2932 = vmatprep.subr.bf16.mxu0 0
    %2933 = vmatpush1.bf16.msra.mxu0 0
    %2934 = vmatprep.subr.bf16.mxu0 0
    %2935 = vmatpush1.bf16.msra.mxu0 0
    %2936 = vmatprep.subr.bf16.mxu0 0
    %2937 = vmatpush1.bf16.msra.mxu0 0
    %2938 = vmatprep.subr.bf16.mxu0 0
    %2939 = vmatpush1.bf16.msra.mxu0 0
    %2940 = vmatprep.subr.bf16.mxu0 0
    %2941 = vmatpush1.bf16.msra.mxu0 0
    %2942 = vmatprep.subr.bf16.mxu0 0
    %2943 = vmatpush1.bf16.msra.mxu0 0
    %2944 = vmatprep.subr.bf16.mxu0 0
    %2945 = vmatpush1.bf16.msra.mxu0 0
    %2946 = vmatprep.subr.bf16.mxu0 0
    %2947 = vmatpush1.bf16.msra.mxu0 0
    %2948 = vmatprep.mubr.bf16.mxu0 0
    %2949 = vmatmul.mubr.bf16.gmra.mrb[0].mxu0 %v2297
    %v2950 = vpop.f32.mrb[0].mxu0
    %v2951 = vadd.f32 0.0, %v2950
    %v2952 = vpop.f32.mrb[0].mxu0
    %v2953 = vadd.f32 0.0, %v2952
    %v2954 = vpop.f32.mrb[0].mxu0
    %v2955 = vpop.f32.mrb[0].mxu0
    %2956 = vdwg.mxu0
    %v2957 = vadd.f32 %v2679, %v2910
    %v2958 = vadd.f32 %v2680, %v2912
    %v2959 = vadd.f32 %v2681, %v2951
    %v2960 = vadd.f32 %v2682, %v2953
    %v2961 = vmul.f32 %v2957, 0.5
    %v2962 = vtanh.pop %v2961
    %v2963 = vmul.f32 %v2962, 0.5
    %v2964 = vadd.f32 %v2963, 0.5
    %v2965 = vmul.f32 %v2958, 0.5
    %v2966 = vtanh.pop %v2965
    %v2967 = vmul.f32 %v2966, 0.5
    %v2968 = vadd.f32 %v2967, 0.5
    %v2969 = vtanh.pop %v2959
    %v2970 = vmul.f32 %v2960, 0.5
    %v2971 = vtanh.pop %v2970
    %v2972 = vmul.f32 %v2971, 0.5
    %v2973 = vadd.f32 %v2972, 0.5
    %v2974 = vmul.f32 %v2968, %v2294
    %v2975 = vmul.f32 %v2964, %v2969
    %v2976 = vadd.f32 %v2974, %v2975
    %v2977 = vtanh.pop %v2976
    %v2978 = vmul.f32 %v2973, %v2977
    %v2979 = vpack.c.bf16 %v2978, %v2978
    %v2980 = vld [vmem:[#allocation3] sm:$0xff]
    %v2981 = vld [vmem:[#allocation3 + $0x8] sm:$0xff]
    %v2982 = vld [vmem:[#allocation3 + $0x10] sm:$0xff]
    %v2983 = vld [vmem:[#allocation3 + $0x18] sm:$0xff]
    %v2984 = vld [vmem:[#allocation3 + $0x20] sm:$0xff]
    %v2985 = vld [vmem:[#allocation3 + $0x28] sm:$0xff]
    %v2986 = vld [vmem:[#allocation3 + $0x30] sm:$0xff]
    %v2987 = vld [vmem:[#allocation3 + $0x38] sm:$0xff]
    %v2988 = vld [vmem:[#allocation3 + $0x40] sm:$0xff]
    %v2989 = vld [vmem:[#allocation3 + $0x48] sm:$0xff]
    %v2990 = vld [vmem:[#allocation3 + $0x50] sm:$0xff]
    %v2991 = vld [vmem:[#allocation3 + $0x58] sm:$0xff]
    %v2992 = vld [vmem:[#allocation3 + $0x60] sm:$0xff]
    %v2993 = vld [vmem:[#allocation3 + $0x68] sm:$0xff]
    %v2994 = vld [vmem:[#allocation3 + $0x70] sm:$0xff]
    %v2995 = vld [vmem:[#allocation3 + $0x78] sm:$0xff]
    %v2996 = vld [vmem:[#allocation3 + $0x80] sm:$0xff]
    %v2997 = vld [vmem:[#allocation3 + $0x88] sm:$0xff]
    %v2998 = vld [vmem:[#allocation3 + $0x90] sm:$0xff]
    %v2999 = vld [vmem:[#allocation3 + $0x98] sm:$0xff]
    %v3000 = vld [vmem:[#allocation3 + $0xa0] sm:$0xff]
    %v3001 = vld [vmem:[#allocation3 + $0xa8] sm:$0xff]
    %v3002 = vld [vmem:[#allocation3 + $0xb0] sm:$0xff]
    %v3003 = vld [vmem:[#allocation3 + $0xb8] sm:$0xff]
    %v3004 = vld [vmem:[#allocation3 + $0xc0] sm:$0xff]
    %v3005 = vld [vmem:[#allocation3 + $0xc8] sm:$0xff]
    %v3006 = vld [vmem:[#allocation3 + $0xd0] sm:$0xff]
    %v3007 = vld [vmem:[#allocation3 + $0xd8] sm:$0xff]
    %v3008 = vld [vmem:[#allocation3 + $0xe0] sm:$0xff]
    %v3009 = vld [vmem:[#allocation3 + $0xe8] sm:$0xff]
    %v3010 = vld [vmem:[#allocation3 + $0xf0] sm:$0xff]
    %v3011 = vld [vmem:[#allocation3 + $0xf8] sm:$0xff]
    %v3012 = vld [vmem:[#allocation3 + $0x100] sm:$0xff]
    %v3013 = vld [vmem:[#allocation3 + $0x108] sm:$0xff]
    %v3014 = vld [vmem:[#allocation3 + $0x110] sm:$0xff]
    %v3015 = vld [vmem:[#allocation3 + $0x118] sm:$0xff]
    %v3016 = vld [vmem:[#allocation3 + $0x120] sm:$0xff]
    %v3017 = vld [vmem:[#allocation3 + $0x128] sm:$0xff]
    %v3018 = vld [vmem:[#allocation3 + $0x130] sm:$0xff]
    %v3019 = vld [vmem:[#allocation3 + $0x138] sm:$0xff]
    %v3020 = vld [vmem:[#allocation3 + $0x140] sm:$0xff]
    %v3021 = vld [vmem:[#allocation3 + $0x148] sm:$0xff]
    %v3022 = vld [vmem:[#allocation3 + $0x150] sm:$0xff]
    %v3023 = vld [vmem:[#allocation3 + $0x158] sm:$0xff]
    %v3024 = vld [vmem:[#allocation3 + $0x160] sm:$0xff]
    %v3025 = vld [vmem:[#allocation3 + $0x168] sm:$0xff]
    %v3026 = vld [vmem:[#allocation3 + $0x170] sm:$0xff]
    %v3027 = vld [vmem:[#allocation3 + $0x178] sm:$0xff]
    %v3028 = vld [vmem:[#allocation3 + $0x180] sm:$0xff]
    %v3029 = vld [vmem:[#allocation3 + $0x188] sm:$0xff]
    %v3030 = vld [vmem:[#allocation3 + $0x190] sm:$0xff]
    %v3031 = vld [vmem:[#allocation3 + $0x198] sm:$0xff]
    %v3032 = vld [vmem:[#allocation3 + $0x1a0] sm:$0xff]
    %v3033 = vld [vmem:[#allocation3 + $0x1a8] sm:$0xff]
    %v3034 = vld [vmem:[#allocation3 + $0x1b0] sm:$0xff]
    %v3035 = vld [vmem:[#allocation3 + $0x1b8] sm:$0xff]
    %v3036 = vld [vmem:[#allocation3 + $0x1c0] sm:$0xff]
    %v3037 = vld [vmem:[#allocation3 + $0x1c8] sm:$0xff]
    %v3038 = vld [vmem:[#allocation3 + $0x1d0] sm:$0xff]
    %v3039 = vld [vmem:[#allocation3 + $0x1d8] sm:$0xff]
    %v3040 = vld [vmem:[#allocation3 + $0x1e0] sm:$0xff]
    %v3041 = vld [vmem:[#allocation3 + $0x1e8] sm:$0xff]
    %v3042 = vld [vmem:[#allocation3 + $0x1f0] sm:$0xff]
    %v3043 = vld [vmem:[#allocation3 + $0x1f8] sm:$0xff]
    %3044 = vmatprep.subr.bf16.mxu0 %v2981
    %3045 = vmatpush1.bf16.msra.mxu0 %v2980
    %3046 = vmatprep.subr.bf16.mxu0 %v2985
    %3047 = vmatpush1.bf16.msra.mxu0 %v2984
    %3048 = vmatprep.subr.bf16.mxu0 %v2989
    %3049 = vmatpush1.bf16.msra.mxu0 %v2988
    %3050 = vmatprep.subr.bf16.mxu0 %v2993
    %3051 = vmatpush1.bf16.msra.mxu0 %v2992
    %3052 = vmatprep.subr.bf16.mxu0 %v2997
    %3053 = vmatpush1.bf16.msra.mxu0 %v2996
    %3054 = vmatprep.subr.bf16.mxu0 %v3001
    %3055 = vmatpush1.bf16.msra.mxu0 %v3000
    %3056 = vmatprep.subr.bf16.mxu0 %v3005
    %3057 = vmatpush1.bf16.msra.mxu0 %v3004
    %3058 = vmatprep.subr.bf16.mxu0 %v3009
    %3059 = vmatpush1.bf16.msra.mxu0 %v3008
    %3060 = vmatprep.subr.bf16.mxu0 %v3013
    %3061 = vmatpush1.bf16.msra.mxu0 %v3012
    %3062 = vmatprep.subr.bf16.mxu0 %v3017
    %3063 = vmatpush1.bf16.msra.mxu0 %v3016
    %3064 = vmatprep.subr.bf16.mxu0 %v3021
    %3065 = vmatpush1.bf16.msra.mxu0 %v3020
    %3066 = vmatprep.subr.bf16.mxu0 %v3025
    %3067 = vmatpush1.bf16.msra.mxu0 %v3024
    %3068 = vmatprep.subr.bf16.mxu0 %v3029
    %3069 = vmatpush1.bf16.msra.mxu0 %v3028
    %3070 = vmatprep.subr.bf16.mxu0 %v3033
    %3071 = vmatpush1.bf16.msra.mxu0 %v3032
    %3072 = vmatprep.subr.bf16.mxu0 %v3037
    %3073 = vmatpush1.bf16.msra.mxu0 %v3036
    %3074 = vmatprep.subr.bf16.mxu0 %v3041
    %3075 = vmatpush1.bf16.msra.mxu0 %v3040
    %3076 = vmatprep.mubr.bf16.mxu0 %v2462
    %3077 = vmatmul.mubr.bf16.gmra.mrb[0].mxu0 %v2979
    %v3078 = vpop.f32.mrb[0].mxu0
    %v3079 = vadd.f32 %v195, %v3078
    %v3080 = vpop.f32.mrb[0].mxu0
    %v3081 = vadd.f32 %v199, %v3080
    %v3082 = vpop.f32.mrb[0].mxu0
    %v3083 = vpop.f32.mrb[0].mxu0
    %3084 = vdwg.mxu0
    %3085 = vmatprep.subr.bf16.mxu0 %v2983
    %3086 = vmatpush1.bf16.msra.mxu0 %v2982
    %3087 = vmatprep.subr.bf16.mxu0 %v2987
    %3088 = vmatpush1.bf16.msra.mxu0 %v2986
    %3089 = vmatprep.subr.bf16.mxu0 %v2991
    %3090 = vmatpush1.bf16.msra.mxu0 %v2990
    %3091 = vmatprep.subr.bf16.mxu0 %v2995
    %3092 = vmatpush1.bf16.msra.mxu0 %v2994
    %3093 = vmatprep.subr.bf16.mxu0 %v2999
    %3094 = vmatpush1.bf16.msra.mxu0 %v2998
    %3095 = vmatprep.subr.bf16.mxu0 %v3003
    %3096 = vmatpush1.bf16.msra.mxu0 %v3002
    %3097 = vmatprep.subr.bf16.mxu0 %v3007
    %3098 = vmatpush1.bf16.msra.mxu0 %v3006
    %3099 = vmatprep.subr.bf16.mxu0 %v3011
    %3100 = vmatpush1.bf16.msra.mxu0 %v3010
    %3101 = vmatprep.subr.bf16.mxu0 %v3015
    %3102 = vmatpush1.bf16.msra.mxu0 %v3014
    %3103 = vmatprep.subr.bf16.mxu0 %v3019
    %3104 = vmatpush1.bf16.msra.mxu0 %v3018
    %3105 = vmatprep.subr.bf16.mxu0 %v3023
    %3106 = vmatpush1.bf16.msra.mxu0 %v3022
    %3107 = vmatprep.subr.bf16.mxu0 %v3027
    %3108 = vmatpush1.bf16.msra.mxu0 %v3026
    %3109 = vmatprep.subr.bf16.mxu0 %v3031
    %3110 = vmatpush1.bf16.msra.mxu0 %v3030
    %3111 = vmatprep.subr.bf16.mxu0 %v3035
    %3112 = vmatpush1.bf16.msra.mxu0 %v3034
    %3113 = vmatprep.subr.bf16.mxu0 %v3039
    %3114 = vmatpush1.bf16.msra.mxu0 %v3038
    %3115 = vmatprep.subr.bf16.mxu0 %v3043
    %3116 = vmatpush1.bf16.msra.mxu0 %v3042
    %3117 = vmatprep.mubr.bf16.mxu0 %v2462
    %3118 = vmatmul.mubr.bf16.gmra.mrb[0].mxu0 %v2979
    %v3119 = vpop.f32.mrb[0].mxu0
    %v3120 = vadd.f32 %v203, %v3119
    %v3121 = vpop.f32.mrb[0].mxu0
    %v3122 = vadd.f32 %v207, %v3121
    %v3123 = vpop.f32.mrb[0].mxu0
    %v3124 = vpop.f32.mrb[0].mxu0
    %3125 = vdwg.mxu0
    %v3126 = vmul.f32 %v3079, 0.5
    %v3127 = vtanh.pop %v3126
    %v3128 = vmul.f32 %v3127, 0.5
    %v3129 = vadd.f32 %v3128, 0.5
    %v3130 = vmul.f32 %v3081, 0.5
    %v3131 = vtanh.pop %v3130
    %v3132 = vmul.f32 %v3131, 0.5
    %v3133 = vadd.f32 %v3132, 0.5
    %v3134 = vtanh.pop %v3120
    %v3135 = vmul.f32 %v3122, 0.5
    %v3136 = vtanh.pop %v3135
    %v3137 = vmul.f32 %v3136, 0.5
    %v3138 = vadd.f32 %v3137, 0.5
    %v3139 = vmul.f32 %v3133, %v2459
    %v3140 = vmul.f32 %v3129, %v3134
    %v3141 = vadd.f32 %v3139, %v3140
    %v3142 = vtanh.pop %v3141
    %v3143 = vmul.f32 %v3138, %v3142
    %v3144 = vpack.c.bf16 %v3143, %v3143
    %v3145 = vld [vmem:[#allocation4] sm:$0xff]
    %v3146 = vld [vmem:[#allocation4 + $0x8] sm:$0xff]
    %v3147 = vld [vmem:[#allocation4 + $0x10] sm:$0xff]
    %v3148 = vld [vmem:[#allocation4 + $0x18] sm:$0xff]
    %v3149 = vld [vmem:[#allocation4 + $0x20] sm:$0xff]
    %v3150 = vld [vmem:[#allocation4 + $0x28] sm:$0xff]
    %v3151 = vld [vmem:[#allocation4 + $0x30] sm:$0xff]
    %v3152 = vld [vmem:[#allocation4 + $0x38] sm:$0xff]
    %v3153 = vld [vmem:[#allocation4 + $0x40] sm:$0xff]
    %v3154 = vld [vmem:[#allocation4 + $0x48] sm:$0xff]
    %v3155 = vld [vmem:[#allocation4 + $0x50] sm:$0xff]
    %v3156 = vld [vmem:[#allocation4 + $0x58] sm:$0xff]
    %v3157 = vld [vmem:[#allocation4 + $0x60] sm:$0xff]
    %v3158 = vld [vmem:[#allocation4 + $0x68] sm:$0xff]
    %v3159 = vld [vmem:[#allocation4 + $0x70] sm:$0xff]
    %v3160 = vld [vmem:[#allocation4 + $0x78] sm:$0xff]
    %v3161 = vld [vmem:[#allocation4 + $0x80] sm:$0xff]
    %v3162 = vld [vmem:[#allocation4 + $0x88] sm:$0xff]
    %v3163 = vld [vmem:[#allocation4 + $0x90] sm:$0xff]
    %v3164 = vld [vmem:[#allocation4 + $0x98] sm:$0xff]
    %v3165 = vld [vmem:[#allocation4 + $0xa0] sm:$0xff]
    %v3166 = vld [vmem:[#allocation4 + $0xa8] sm:$0xff]
    %v3167 = vld [vmem:[#allocation4 + $0xb0] sm:$0xff]
    %v3168 = vld [vmem:[#allocation4 + $0xb8] sm:$0xff]
    %v3169 = vld [vmem:[#allocation4 + $0xc0] sm:$0xff]
    %v3170 = vld [vmem:[#allocation4 + $0xc8] sm:$0xff]
    %v3171 = vld [vmem:[#allocation4 + $0xd0] sm:$0xff]
    %v3172 = vld [vmem:[#allocation4 + $0xd8] sm:$0xff]
    %v3173 = vld [vmem:[#allocation4 + $0xe0] sm:$0xff]
    %v3174 = vld [vmem:[#allocation4 + $0xe8] sm:$0xff]
    %v3175 = vld [vmem:[#allocation4 + $0xf0] sm:$0xff]
    %v3176 = vld [vmem:[#allocation4 + $0xf8] sm:$0xff]
    %v3177 = vld [vmem:[#allocation4 + $0x100] sm:$0xff]
    %v3178 = vld [vmem:[#allocation4 + $0x108] sm:$0xff]
    %v3179 = vld [vmem:[#allocation4 + $0x110] sm:$0xff]
    %v3180 = vld [vmem:[#allocation4 + $0x118] sm:$0xff]
    %v3181 = vld [vmem:[#allocation4 + $0x120] sm:$0xff]
    %v3182 = vld [vmem:[#allocation4 + $0x128] sm:$0xff]
    %v3183 = vld [vmem:[#allocation4 + $0x130] sm:$0xff]
    %v3184 = vld [vmem:[#allocation4 + $0x138] sm:$0xff]
    %v3185 = vld [vmem:[#allocation4 + $0x140] sm:$0xff]
    %v3186 = vld [vmem:[#allocation4 + $0x148] sm:$0xff]
    %v3187 = vld [vmem:[#allocation4 + $0x150] sm:$0xff]
    %v3188 = vld [vmem:[#allocation4 + $0x158] sm:$0xff]
    %v3189 = vld [vmem:[#allocation4 + $0x160] sm:$0xff]
    %v3190 = vld [vmem:[#allocation4 + $0x168] sm:$0xff]
    %v3191 = vld [vmem:[#allocation4 + $0x170] sm:$0xff]
    %v3192 = vld [vmem:[#allocation4 + $0x178] sm:$0xff]
    %v3193 = vld [vmem:[#allocation4 + $0x180] sm:$0xff]
    %v3194 = vld [vmem:[#allocation4 + $0x188] sm:$0xff]
    %v3195 = vld [vmem:[#allocation4 + $0x190] sm:$0xff]
    %v3196 = vld [vmem:[#allocation4 + $0x198] sm:$0xff]
    %v3197 = vld [vmem:[#allocation4 + $0x1a0] sm:$0xff]
    %v3198 = vld [vmem:[#allocation4 + $0x1a8] sm:$0xff]
    %v3199 = vld [vmem:[#allocation4 + $0x1b0] sm:$0xff]
    %v3200 = vld [vmem:[#allocation4 + $0x1b8] sm:$0xff]
    %v3201 = vld [vmem:[#allocation4 + $0x1c0] sm:$0xff]
    %v3202 = vld [vmem:[#allocation4 + $0x1c8] sm:$0xff]
    %v3203 = vld [vmem:[#allocation4 + $0x1d0] sm:$0xff]
    %v3204 = vld [vmem:[#allocation4 + $0x1d8] sm:$0xff]
    %v3205 = vld [vmem:[#allocation4 + $0x1e0] sm:$0xff]
    %v3206 = vld [vmem:[#allocation4 + $0x1e8] sm:$0xff]
    %v3207 = vld [vmem:[#allocation4 + $0x1f0] sm:$0xff]
    %v3208 = vld [vmem:[#allocation4 + $0x1f8] sm:$0xff]
    %3209 = vmatprep.subr.bf16.mxu0 %v3146
    %3210 = vmatpush1.bf16.msra.mxu0 %v3145
    %3211 = vmatprep.subr.bf16.mxu0 %v3150
    %3212 = vmatpush1.bf16.msra.mxu0 %v3149
    %3213 = vmatprep.subr.bf16.mxu0 %v3154
    %3214 = vmatpush1.bf16.msra.mxu0 %v3153
    %3215 = vmatprep.subr.bf16.mxu0 %v3158
    %3216 = vmatpush1.bf16.msra.mxu0 %v3157
    %3217 = vmatprep.subr.bf16.mxu0 %v3162
    %3218 = vmatpush1.bf16.msra.mxu0 %v3161
    %3219 = vmatprep.subr.bf16.mxu0 %v3166
    %3220 = vmatpush1.bf16.msra.mxu0 %v3165
    %3221 = vmatprep.subr.bf16.mxu0 %v3170
    %3222 = vmatpush1.bf16.msra.mxu0 %v3169
    %3223 = vmatprep.subr.bf16.mxu0 %v3174
    %3224 = vmatpush1.bf16.msra.mxu0 %v3173
    %3225 = vmatprep.subr.bf16.mxu0 %v3178
    %3226 = vmatpush1.bf16.msra.mxu0 %v3177
    %3227 = vmatprep.subr.bf16.mxu0 %v3182
    %3228 = vmatpush1.bf16.msra.mxu0 %v3181
    %3229 = vmatprep.subr.bf16.mxu0 %v3186
    %3230 = vmatpush1.bf16.msra.mxu0 %v3185
    %3231 = vmatprep.subr.bf16.mxu0 %v3190
    %3232 = vmatpush1.bf16.msra.mxu0 %v3189
    %3233 = vmatprep.subr.bf16.mxu0 %v3194
    %3234 = vmatpush1.bf16.msra.mxu0 %v3193
    %3235 = vmatprep.subr.bf16.mxu0 %v3198
    %3236 = vmatpush1.bf16.msra.mxu0 %v3197
    %3237 = vmatprep.subr.bf16.mxu0 %v3202
    %3238 = vmatpush1.bf16.msra.mxu0 %v3201
    %3239 = vmatprep.subr.bf16.mxu0 %v3206
    %3240 = vmatpush1.bf16.msra.mxu0 %v3205
    %3241 = vmatprep.mubr.bf16.mxu0 %v2627
    %3242 = vmatmul.mubr.bf16.gmra.mrb[0].mxu0 %v3144
    %v3243 = vpop.f32.mrb[0].mxu0
    %v3244 = vadd.f32 %v217, %v3243
    %v3245 = vpop.f32.mrb[0].mxu0
    %v3246 = vadd.f32 %v221, %v3245
    %v3247 = vpop.f32.mrb[0].mxu0
    %v3248 = vpop.f32.mrb[0].mxu0
    %3249 = vdwg.mxu0
    %3250 = vmatprep.subr.bf16.mxu0 %v3148
    %3251 = vmatpush1.bf16.msra.mxu0 %v3147
    %3252 = vmatprep.subr.bf16.mxu0 %v3152
    %3253 = vmatpush1.bf16.msra.mxu0 %v3151
    %3254 = vmatprep.subr.bf16.mxu0 %v3156
    %3255 = vmatpush1.bf16.msra.mxu0 %v3155
    %3256 = vmatprep.subr.bf16.mxu0 %v3160
    %3257 = vmatpush1.bf16.msra.mxu0 %v3159
    %3258 = vmatprep.subr.bf16.mxu0 %v3164
    %3259 = vmatpush1.bf16.msra.mxu0 %v3163
    %3260 = vmatprep.subr.bf16.mxu0 %v3168
    %3261 = vmatpush1.bf16.msra.mxu0 %v3167
    %3262 = vmatprep.subr.bf16.mxu0 %v3172
    %3263 = vmatpush1.bf16.msra.mxu0 %v3171
    %3264 = vmatprep.subr.bf16.mxu0 %v3176
    %3265 = vmatpush1.bf16.msra.mxu0 %v3175
    %3266 = vmatprep.subr.bf16.mxu0 %v3180
    %3267 = vmatpush1.bf16.msra.mxu0 %v3179
    %3268 = vmatprep.subr.bf16.mxu0 %v3184
    %3269 = vmatpush1.bf16.msra.mxu0 %v3183
    %3270 = vmatprep.subr.bf16.mxu0 %v3188
    %3271 = vmatpush1.bf16.msra.mxu0 %v3187
    %3272 = vmatprep.subr.bf16.mxu0 %v3192
    %3273 = vmatpush1.bf16.msra.mxu0 %v3191
    %3274 = vmatprep.subr.bf16.mxu0 %v3196
    %3275 = vmatpush1.bf16.msra.mxu0 %v3195
    %3276 = vmatprep.subr.bf16.mxu0 %v3200
    %3277 = vmatpush1.bf16.msra.mxu0 %v3199
    %3278 = vmatprep.subr.bf16.mxu0 %v3204
    %3279 = vmatpush1.bf16.msra.mxu0 %v3203
    %3280 = vmatprep.subr.bf16.mxu0 %v3208
    %3281 = vmatpush1.bf16.msra.mxu0 %v3207
    %3282 = vmatprep.mubr.bf16.mxu0 %v2627
    %3283 = vmatmul.mubr.bf16.gmra.mrb[0].mxu0 %v3144
    %v3284 = vpop.f32.mrb[0].mxu0
    %v3285 = vadd.f32 %v225, %v3284
    %v3286 = vpop.f32.mrb[0].mxu0
    %v3287 = vadd.f32 %v229, %v3286
    %v3288 = vpop.f32.mrb[0].mxu0
    %v3289 = vpop.f32.mrb[0].mxu0
    %3290 = vdwg.mxu0
    %v3291 = vmul.f32 %v3244, 0.5
    %v3292 = vtanh.pop %v3291
    %v3293 = vmul.f32 %v3292, 0.5
    %v3294 = vadd.f32 %v3293, 0.5
    %v3295 = vmul.f32 %v3246, 0.5
    %v3296 = vtanh.pop %v3295
    %v3297 = vmul.f32 %v3296, 0.5
    %v3298 = vadd.f32 %v3297, 0.5
    %v3299 = vtanh.pop %v3285
    %v3300 = vmul.f32 %v3287, 0.5
    %v3301 = vtanh.pop %v3300
    %v3302 = vmul.f32 %v3301, 0.5
    %v3303 = vadd.f32 %v3302, 0.5
    %v3304 = vmul.f32 %v3298, %v2624
    %v3305 = vmul.f32 %v3294, %v3299
    %v3306 = vadd.f32 %v3304, %v3305
    %v3307 = vtanh.pop %v3306
    %v3308 = vmul.f32 %v3303, %v3307
    %v3309 = vpack.c.bf16 %v3308, %v3308
    %v3310 = vld [vmem:[#allocation5] sm:$0xff]
    %v3311 = vld [vmem:[#allocation5 + $0x8] sm:$0xff]
    %v3312 = vld [vmem:[#allocation5 + $0x10] sm:$0xff]
    %v3313 = vld [vmem:[#allocation5 + $0x18] sm:$0xff]
    %v3314 = vld [vmem:[#allocation5 + $0x20] sm:$0xff]
    %v3315 = vld [vmem:[#allocation5 + $0x28] sm:$0xff]
    %v3316 = vld [vmem:[#allocation5 + $0x30] sm:$0xff]
    %v3317 = vld [vmem:[#allocation5 + $0x38] sm:$0xff]
    %3318 = vmatprep.subr.bf16.mxu0 0
    %3319 = vmatpush1.bf16.msra.mxu0 %v3310
    %3320 = vmatprep.subr.bf16.mxu0 0
    %3321 = vmatpush1.bf16.msra.mxu0 %v3311
    %3322 = vmatprep.subr.bf16.mxu0 0
    %3323 = vmatpush1.bf16.msra.mxu0 %v3312
    %3324 = vmatprep.subr.bf16.mxu0 0
    %3325 = vmatpush1.bf16.msra.mxu0 %v3313
    %3326 = vmatprep.subr.bf16.mxu0 0
    %3327 = vmatpush1.bf16.msra.mxu0 %v3314
    %3328 = vmatprep.subr.bf16.mxu0 0
    %3329 = vmatpush1.bf16.msra.mxu0 %v3315
    %3330 = vmatprep.subr.bf16.mxu0 0
    %3331 = vmatpush1.bf16.msra.mxu0 %v3316
    %3332 = vmatprep.subr.bf16.mxu0 0
    %3333 = vmatpush1.bf16.msra.mxu0 %v3317
    %3334 = vmatprep.subr.bf16.mxu0 0
    %3335 = vmatpush1.bf16.msra.mxu0 0
    %3336 = vmatprep.subr.bf16.mxu0 0
    %3337 = vmatpush1.bf16.msra.mxu0 0
    %3338 = vmatprep.subr.bf16.mxu0 0
    %3339 = vmatpush1.bf16.msra.mxu0 0
    %3340 = vmatprep.subr.bf16.mxu0 0
    %3341 = vmatpush1.bf16.msra.mxu0 0
    %3342 = vmatprep.subr.bf16.mxu0 0
    %3343 = vmatpush1.bf16.msra.mxu0 0
    %3344 = vmatprep.subr.bf16.mxu0 0
    %3345 = vmatpush1.bf16.msra.mxu0 0
    %3346 = vmatprep.subr.bf16.mxu0 0
    %3347 = vmatpush1.bf16.msra.mxu0 0
    %3348 = vmatprep.subr.bf16.mxu0 0
    %3349 = vmatpush1.bf16.msra.mxu0 0
    %3350 = vmatprep.mubr.bf16.mxu0 0
    %3351 = vmatmul.mubr.bf16.gmra.mrb[0].mxu0 %v3309
    %v3352 = vpop.f32.mrb[0].mxu0
    %v3353 = vadd.f32 %v239, %v3352
    %v3354 = vpop.f32.mrb[0].mxu0
    %v3355 = vpop.f32.mrb[0].mxu0
    %v3356 = vpop.f32.mrb[0].mxu0
    %3357 = vdwg.mxu0
    %s3358 = scalar_lea.vmem %s9, 24
    %3359 = vst [vmem:[%s3358] sm:$0xff] %v3353
    %s3360 = scalar_lea.vmem [#allocation2], 128
    %v3361 = vld [vmem:[%s3360] sm:$0xff]
    %v3362 = vld [vmem:[%s3360 + $0x8] sm:$0xff]
    %v3363 = vld [vmem:[%s3360 + $0x10] sm:$0xff]
    %v3364 = vld [vmem:[%s3360 + $0x18] sm:$0xff]
    %v3365 = vld [vmem:[#allocation7 + $0x100] sm:$0xff]
    %v3366 = vld [vmem:[#allocation7 + $0x108] sm:$0xff]
    %v3367 = vld [vmem:[#allocation7 + $0x110] sm:$0xff]
    %v3368 = vld [vmem:[#allocation7 + $0x118] sm:$0xff]
    %v3369 = vld [vmem:[#allocation7 + $0x120] sm:$0xff]
    %v3370 = vld [vmem:[#allocation7 + $0x128] sm:$0xff]
    %v3371 = vld [vmem:[#allocation7 + $0x130] sm:$0xff]
    %v3372 = vld [vmem:[#allocation7 + $0x138] sm:$0xff]
    %v3373 = vld [vmem:[#allocation7 + $0x140] sm:$0xff]
    %v3374 = vld [vmem:[#allocation7 + $0x148] sm:$0xff]
    %v3375 = vld [vmem:[#allocation7 + $0x150] sm:$0xff]
    %v3376 = vld [vmem:[#allocation7 + $0x158] sm:$0xff]
    %v3377 = vld [vmem:[#allocation7 + $0x160] sm:$0xff]
    %v3378 = vld [vmem:[#allocation7 + $0x168] sm:$0xff]
    %v3379 = vld [vmem:[#allocation7 + $0x170] sm:$0xff]
    %v3380 = vld [vmem:[#allocation7 + $0x178] sm:$0xff]
    %v3381 = vld [vmem:[#allocation7 + $0x180] sm:$0xff]
    %v3382 = vld [vmem:[#allocation7 + $0x188] sm:$0xff]
    %v3383 = vld [vmem:[#allocation7 + $0x190] sm:$0xff]
    %v3384 = vld [vmem:[#allocation7 + $0x198] sm:$0xff]
    %v3385 = vld [vmem:[#allocation7 + $0x1a0] sm:$0xff]
    %v3386 = vld [vmem:[#allocation7 + $0x1a8] sm:$0xff]
    %v3387 = vld [vmem:[#allocation7 + $0x1b0] sm:$0xff]
    %v3388 = vld [vmem:[#allocation7 + $0x1b8] sm:$0xff]
    %v3389 = vld [vmem:[#allocation7 + $0x1c0] sm:$0xff]
    %v3390 = vld [vmem:[#allocation7 + $0x1c8] sm:$0xff]
    %v3391 = vld [vmem:[#allocation7 + $0x1d0] sm:$0xff]
    %v3392 = vld [vmem:[#allocation7 + $0x1d8] sm:$0xff]
    %v3393 = vld [vmem:[#allocation7 + $0x1e0] sm:$0xff]
    %v3394 = vld [vmem:[#allocation7 + $0x1e8] sm:$0xff]
    %v3395 = vld [vmem:[#allocation7 + $0x1f0] sm:$0xff]
    %v3396 = vld [vmem:[#allocation7 + $0x1f8] sm:$0xff]
    %v3429 = vunpack.c.l.b16 %v3365
    %v3430 = vunpack.c.h.b16 %v3365
    %v3431 = vunpack.c.l.b16 %v3366
    %v3432 = vunpack.c.h.b16 %v3366
    %v3433 = vunpack.c.l.b16 %v3367
    %v3434 = vunpack.c.h.b16 %v3367
    %v3435 = vunpack.c.l.b16 %v3368
    %v3436 = vunpack.c.h.b16 %v3368
    %v3437 = vunpack.c.l.b16 %v3369
    %v3438 = vunpack.c.h.b16 %v3369
    %v3439 = vunpack.c.l.b16 %v3370
    %v3440 = vunpack.c.h.b16 %v3370
    %v3441 = vunpack.c.l.b16 %v3371
    %v3442 = vunpack.c.h.b16 %v3371
    %v3443 = vunpack.c.l.b16 %v3372
    %v3444 = vunpack.c.h.b16 %v3372
    %v3445 = vunpack.c.l.b16 %v3373
    %v3446 = vunpack.c.h.b16 %v3373
    %v3447 = vunpack.c.l.b16 %v3374
    %v3448 = vunpack.c.h.b16 %v3374
    %v3449 = vunpack.c.l.b16 %v3375
    %v3450 = vunpack.c.h.b16 %v3375
    %v3451 = vunpack.c.l.b16 %v3376
    %v3452 = vunpack.c.h.b16 %v3376
    %v3453 = vunpack.c.l.b16 %v3377
    %v3454 = vunpack.c.h.b16 %v3377
    %v3455 = vunpack.c.l.b16 %v3378
    %v3456 = vunpack.c.h.b16 %v3378
    %v3457 = vunpack.c.l.b16 %v3379
    %v3458 = vunpack.c.h.b16 %v3379
    %v3459 = vunpack.c.l.b16 %v3380
    %v3460 = vunpack.c.h.b16 %v3380
    %v3461 = vunpack.c.l.b16 %v3381
    %v3462 = vunpack.c.h.b16 %v3381
    %v3463 = vunpack.c.l.b16 %v3382
    %v3464 = vunpack.c.h.b16 %v3382
    %v3465 = vunpack.c.l.b16 %v3383
    %v3466 = vunpack.c.h.b16 %v3383
    %v3467 = vunpack.c.l.b16 %v3384
    %v3468 = vunpack.c.h.b16 %v3384
    %v3469 = vunpack.c.l.b16 %v3385
    %v3470 = vunpack.c.h.b16 %v3385
    %v3471 = vunpack.c.l.b16 %v3386
    %v3472 = vunpack.c.h.b16 %v3386
    %v3473 = vunpack.c.l.b16 %v3387
    %v3474 = vunpack.c.h.b16 %v3387
    %v3475 = vunpack.c.l.b16 %v3388
    %v3476 = vunpack.c.h.b16 %v3388
    %v3477 = vunpack.c.l.b16 %v3389
    %v3478 = vunpack.c.h.b16 %v3389
    %v3479 = vunpack.c.l.b16 %v3390
    %v3480 = vunpack.c.h.b16 %v3390
    %v3481 = vunpack.c.l.b16 %v3391
    %v3482 = vunpack.c.h.b16 %v3391
    %v3483 = vunpack.c.l.b16 %v3392
    %v3484 = vunpack.c.h.b16 %v3392
    %v3485 = vunpack.c.l.b16 %v3393
    %v3486 = vunpack.c.h.b16 %v3393
    %v3487 = vunpack.c.l.b16 %v3394
    %v3488 = vunpack.c.h.b16 %v3394
    %v3489 = vunpack.c.l.b16 %v3395
    %v3490 = vunpack.c.h.b16 %v3395
    %v3491 = vunpack.c.l.b16 %v3396
    %v3492 = vunpack.c.h.b16 %v3396
    %v3493 = vpack.c.b16 %v3433, %v3429
    %v3494 = vpack.c.b16 %v3434, %v3430
    %v3495 = vpack.c.b16 %v3435, %v3431
    %v3496 = vpack.c.b16 %v3436, %v3432
    %v3497 = vpack.c.b16 %v3441, %v3437
    %v3498 = vpack.c.b16 %v3442, %v3438
    %v3499 = vpack.c.b16 %v3443, %v3439
    %v3500 = vpack.c.b16 %v3444, %v3440
    %v3501 = vpack.c.b16 %v3449, %v3445
    %v3502 = vpack.c.b16 %v3450, %v3446
    %v3503 = vpack.c.b16 %v3451, %v3447
    %v3504 = vpack.c.b16 %v3452, %v3448
    %v3505 = vpack.c.b16 %v3457, %v3453
    %v3506 = vpack.c.b16 %v3458, %v3454
    %v3507 = vpack.c.b16 %v3459, %v3455
    %v3508 = vpack.c.b16 %v3460, %v3456
    %v3509 = vpack.c.b16 %v3465, %v3461
    %v3510 = vpack.c.b16 %v3466, %v3462
    %v3511 = vpack.c.b16 %v3467, %v3463
    %v3512 = vpack.c.b16 %v3468, %v3464
    %v3513 = vpack.c.b16 %v3473, %v3469
    %v3514 = vpack.c.b16 %v3474, %v3470
    %v3515 = vpack.c.b16 %v3475, %v3471
    %v3516 = vpack.c.b16 %v3476, %v3472
    %v3517 = vpack.c.b16 %v3481, %v3477
    %v3518 = vpack.c.b16 %v3482, %v3478
    %v3519 = vpack.c.b16 %v3483, %v3479
    %v3520 = vpack.c.b16 %v3484, %v3480
    %v3521 = vpack.c.b16 %v3489, %v3485
    %v3522 = vpack.c.b16 %v3490, %v3486
    %v3523 = vpack.c.b16 %v3491, %v3487
    %v3524 = vpack.c.b16 %v3492, %v3488
    %3557 = vmatprep.subr.bf16.mxu0 %v3494
    %3558 = vmatpush1.bf16.msra.mxu0 %v3493
    %3559 = vmatprep.subr.bf16.mxu0 %v3498
    %3560 = vmatpush1.bf16.msra.mxu0 %v3497
    %3561 = vmatprep.subr.bf16.mxu0 %v3502
    %3562 = vmatpush1.bf16.msra.mxu0 %v3501
    %3563 = vmatprep.subr.bf16.mxu0 %v3506
    %3564 = vmatpush1.bf16.msra.mxu0 %v3505
    %3565 = vmatprep.subr.bf16.mxu0 %v3510
    %3566 = vmatpush1.bf16.msra.mxu0 %v3509
    %3567 = vmatprep.subr.bf16.mxu0 %v3514
    %3568 = vmatpush1.bf16.msra.mxu0 %v3513
    %3569 = vmatprep.subr.bf16.mxu0 %v3518
    %3570 = vmatpush1.bf16.msra.mxu0 %v3517
    %3571 = vmatprep.subr.bf16.mxu0 %v3522
    %3572 = vmatpush1.bf16.msra.mxu0 %v3521
    %3573 = vmatprep.subr.bf16.mxu0 0
    %3574 = vmatpush1.bf16.msra.mxu0 0
    %3575 = vmatprep.subr.bf16.mxu0 0
    %3576 = vmatpush1.bf16.msra.mxu0 0
    %3577 = vmatprep.subr.bf16.mxu0 0
    %3578 = vmatpush1.bf16.msra.mxu0 0
    %3579 = vmatprep.subr.bf16.mxu0 0
    %3580 = vmatpush1.bf16.msra.mxu0 0
    %3581 = vmatprep.subr.bf16.mxu0 0
    %3582 = vmatpush1.bf16.msra.mxu0 0
    %3583 = vmatprep.subr.bf16.mxu0 0
    %3584 = vmatpush1.bf16.msra.mxu0 0
    %3585 = vmatprep.subr.bf16.mxu0 0
    %3586 = vmatpush1.bf16.msra.mxu0 0
    %3587 = vmatprep.subr.bf16.mxu0 0
    %3588 = vmatpush1.bf16.msra.mxu0 0
    %3589 = vmatprep.mubr.bf16.mxu0 0
    %3590 = vmatmul.mubr.bf16.gmra.mrb[0].mxu0 %v2979
    %v3591 = vpop.f32.mrb[0].mxu0
    %v3592 = vadd.f32 0.0, %v3591
    %v3593 = vpop.f32.mrb[0].mxu0
    %v3594 = vadd.f32 0.0, %v3593
    %v3595 = vpop.f32.mrb[0].mxu0
    %v3596 = vpop.f32.mrb[0].mxu0
    %3597 = vdwg.mxu0
    %3598 = vmatprep.subr.bf16.mxu0 %v3496
    %3599 = vmatpush1.bf16.msra.mxu0 %v3495
    %3600 = vmatprep.subr.bf16.mxu0 %v3500
    %3601 = vmatpush1.bf16.msra.mxu0 %v3499
    %3602 = vmatprep.subr.bf16.mxu0 %v3504
    %3603 = vmatpush1.bf16.msra.mxu0 %v3503
    %3604 = vmatprep.subr.bf16.mxu0 %v3508
    %3605 = vmatpush1.bf16.msra.mxu0 %v3507
    %3606 = vmatprep.subr.bf16.mxu0 %v3512
    %3607 = vmatpush1.bf16.msra.mxu0 %v3511
    %3608 = vmatprep.subr.bf16.mxu0 %v3516
    %3609 = vmatpush1.bf16.msra.mxu0 %v3515
    %3610 = vmatprep.subr.bf16.mxu0 %v3520
    %3611 = vmatpush1.bf16.msra.mxu0 %v3519
    %3612 = vmatprep.subr.bf16.mxu0 %v3524
    %3613 = vmatpush1.bf16.msra.mxu0 %v3523
    %3614 = vmatprep.subr.bf16.mxu0 0
    %3615 = vmatpush1.bf16.msra.mxu0 0
    %3616 = vmatprep.subr.bf16.mxu0 0
    %3617 = vmatpush1.bf16.msra.mxu0 0
    %3618 = vmatprep.subr.bf16.mxu0 0
    %3619 = vmatpush1.bf16.msra.mxu0 0
    %3620 = vmatprep.subr.bf16.mxu0 0
    %3621 = vmatpush1.bf16.msra.mxu0 0
    %3622 = vmatprep.subr.bf16.mxu0 0
    %3623 = vmatpush1.bf16.msra.mxu0 0
    %3624 = vmatprep.subr.bf16.mxu0 0
    %3625 = vmatpush1.bf16.msra.mxu0 0
    %3626 = vmatprep.subr.bf16.mxu0 0
    %3627 = vmatpush1.bf16.msra.mxu0 0
    %3628 = vmatprep.subr.bf16.mxu0 0
    %3629 = vmatpush1.bf16.msra.mxu0 0
    %3630 = vmatprep.mubr.bf16.mxu0 0
    %3631 = vmatmul.mubr.bf16.gmra.mrb[0].mxu0 %v2979
    %v3632 = vpop.f32.mrb[0].mxu0
    %v3633 = vadd.f32 0.0, %v3632
    %v3634 = vpop.f32.mrb[0].mxu0
    %v3635 = vadd.f32 0.0, %v3634
    %v3636 = vpop.f32.mrb[0].mxu0
    %v3637 = vpop.f32.mrb[0].mxu0
    %3638 = vdwg.mxu0
    %v3639 = vadd.f32 %v3361, %v3592
    %v3640 = vadd.f32 %v3362, %v3594
    %v3641 = vadd.f32 %v3363, %v3633
    %v3642 = vadd.f32 %v3364, %v3635
    %v3643 = vmul.f32 %v3639, 0.5
    %v3644 = vtanh.pop %v3643
    %v3645 = vmul.f32 %v3644, 0.5
    %v3646 = vadd.f32 %v3645, 0.5
    %v3647 = vmul.f32 %v3640, 0.5
    %v3648 = vtanh.pop %v3647
    %v3649 = vmul.f32 %v3648, 0.5
    %v3650 = vadd.f32 %v3649, 0.5
    %v3651 = vtanh.pop %v3641
    %v3652 = vmul.f32 %v3642, 0.5
    %v3653 = vtanh.pop %v3652
    %v3654 = vmul.f32 %v3653, 0.5
    %v3655 = vadd.f32 %v3654, 0.5
    %v3656 = vmul.f32 %v3650, %v2976
    %v3657 = vmul.f32 %v3646, %v3651
    %v3658 = vadd.f32 %v3656, %v3657
    %v3659 = vtanh.pop %v3658
    %v3660 = vmul.f32 %v3655, %v3659
    %v3661 = vpack.c.bf16 %v3660, %v3660
    %v3662 = vld [vmem:[#allocation3] sm:$0xff]
    %v3663 = vld [vmem:[#allocation3 + $0x8] sm:$0xff]
    %v3664 = vld [vmem:[#allocation3 + $0x10] sm:$0xff]
    %v3665 = vld [vmem:[#allocation3 + $0x18] sm:$0xff]
    %v3666 = vld [vmem:[#allocation3 + $0x20] sm:$0xff]
    %v3667 = vld [vmem:[#allocation3 + $0x28] sm:$0xff]
    %v3668 = vld [vmem:[#allocation3 + $0x30] sm:$0xff]
    %v3669 = vld [vmem:[#allocation3 + $0x38] sm:$0xff]
    %v3670 = vld [vmem:[#allocation3 + $0x40] sm:$0xff]
    %v3671 = vld [vmem:[#allocation3 + $0x48] sm:$0xff]
    %v3672 = vld [vmem:[#allocation3 + $0x50] sm:$0xff]
    %v3673 = vld [vmem:[#allocation3 + $0x58] sm:$0xff]
    %v3674 = vld [vmem:[#allocation3 + $0x60] sm:$0xff]
    %v3675 = vld [vmem:[#allocation3 + $0x68] sm:$0xff]
    %v3676 = vld [vmem:[#allocation3 + $0x70] sm:$0xff]
    %v3677 = vld [vmem:[#allocation3 + $0x78] sm:$0xff]
    %v3678 = vld [vmem:[#allocation3 + $0x80] sm:$0xff]
    %v3679 = vld [vmem:[#allocation3 + $0x88] sm:$0xff]
    %v3680 = vld [vmem:[#allocation3 + $0x90] sm:$0xff]
    %v3681 = vld [vmem:[#allocation3 + $0x98] sm:$0xff]
    %v3682 = vld [vmem:[#allocation3 + $0xa0] sm:$0xff]
    %v3683 = vld [vmem:[#allocation3 + $0xa8] sm:$0xff]
    %v3684 = vld [vmem:[#allocation3 + $0xb0] sm:$0xff]
    %v3685 = vld [vmem:[#allocation3 + $0xb8] sm:$0xff]
    %v3686 = vld [vmem:[#allocation3 + $0xc0] sm:$0xff]
    %v3687 = vld [vmem:[#allocation3 + $0xc8] sm:$0xff]
    %v3688 = vld [vmem:[#allocation3 + $0xd0] sm:$0xff]
    %v3689 = vld [vmem:[#allocation3 + $0xd8] sm:$0xff]
    %v3690 = vld [vmem:[#allocation3 + $0xe0] sm:$0xff]
    %v3691 = vld [vmem:[#allocation3 + $0xe8] sm:$0xff]
    %v3692 = vld [vmem:[#allocation3 + $0xf0] sm:$0xff]
    %v3693 = vld [vmem:[#allocation3 + $0xf8] sm:$0xff]
    %v3694 = vld [vmem:[#allocation3 + $0x100] sm:$0xff]
    %v3695 = vld [vmem:[#allocation3 + $0x108] sm:$0xff]
    %v3696 = vld [vmem:[#allocation3 + $0x110] sm:$0xff]
    %v3697 = vld [vmem:[#allocation3 + $0x118] sm:$0xff]
    %v3698 = vld [vmem:[#allocation3 + $0x120] sm:$0xff]
    %v3699 = vld [vmem:[#allocation3 + $0x128] sm:$0xff]
    %v3700 = vld [vmem:[#allocation3 + $0x130] sm:$0xff]
    %v3701 = vld [vmem:[#allocation3 + $0x138] sm:$0xff]
    %v3702 = vld [vmem:[#allocation3 + $0x140] sm:$0xff]
    %v3703 = vld [vmem:[#allocation3 + $0x148] sm:$0xff]
    %v3704 = vld [vmem:[#allocation3 + $0x150] sm:$0xff]
    %v3705 = vld [vmem:[#allocation3 + $0x158] sm:$0xff]
    %v3706 = vld [vmem:[#allocation3 + $0x160] sm:$0xff]
    %v3707 = vld [vmem:[#allocation3 + $0x168] sm:$0xff]
    %v3708 = vld [vmem:[#allocation3 + $0x170] sm:$0xff]
    %v3709 = vld [vmem:[#allocation3 + $0x178] sm:$0xff]
    %v3710 = vld [vmem:[#allocation3 + $0x180] sm:$0xff]
    %v3711 = vld [vmem:[#allocation3 + $0x188] sm:$0xff]
    %v3712 = vld [vmem:[#allocation3 + $0x190] sm:$0xff]
    %v3713 = vld [vmem:[#allocation3 + $0x198] sm:$0xff]
    %v3714 = vld [vmem:[#allocation3 + $0x1a0] sm:$0xff]
    %v3715 = vld [vmem:[#allocation3 + $0x1a8] sm:$0xff]
    %v3716 = vld [vmem:[#allocation3 + $0x1b0] sm:$0xff]
    %v3717 = vld [vmem:[#allocation3 + $0x1b8] sm:$0xff]
    %v3718 = vld [vmem:[#allocation3 + $0x1c0] sm:$0xff]
    %v3719 = vld [vmem:[#allocation3 + $0x1c8] sm:$0xff]
    %v3720 = vld [vmem:[#allocation3 + $0x1d0] sm:$0xff]
    %v3721 = vld [vmem:[#allocation3 + $0x1d8] sm:$0xff]
    %v3722 = vld [vmem:[#allocation3 + $0x1e0] sm:$0xff]
    %v3723 = vld [vmem:[#allocation3 + $0x1e8] sm:$0xff]
    %v3724 = vld [vmem:[#allocation3 + $0x1f0] sm:$0xff]
    %v3725 = vld [vmem:[#allocation3 + $0x1f8] sm:$0xff]
    %3726 = vmatprep.subr.bf16.mxu0 %v3663
    %3727 = vmatpush1.bf16.msra.mxu0 %v3662
    %3728 = vmatprep.subr.bf16.mxu0 %v3667
    %3729 = vmatpush1.bf16.msra.mxu0 %v3666
    %3730 = vmatprep.subr.bf16.mxu0 %v3671
    %3731 = vmatpush1.bf16.msra.mxu0 %v3670
    %3732 = vmatprep.subr.bf16.mxu0 %v3675
    %3733 = vmatpush1.bf16.msra.mxu0 %v3674
    %3734 = vmatprep.subr.bf16.mxu0 %v3679
    %3735 = vmatpush1.bf16.msra.mxu0 %v3678
    %3736 = vmatprep.subr.bf16.mxu0 %v3683
    %3737 = vmatpush1.bf16.msra.mxu0 %v3682
    %3738 = vmatprep.subr.bf16.mxu0 %v3687
    %3739 = vmatpush1.bf16.msra.mxu0 %v3686
    %3740 = vmatprep.subr.bf16.mxu0 %v3691
    %3741 = vmatpush1.bf16.msra.mxu0 %v3690
    %3742 = vmatprep.subr.bf16.mxu0 %v3695
    %3743 = vmatpush1.bf16.msra.mxu0 %v3694
    %3744 = vmatprep.subr.bf16.mxu0 %v3699
    %3745 = vmatpush1.bf16.msra.mxu0 %v3698
    %3746 = vmatprep.subr.bf16.mxu0 %v3703
    %3747 = vmatpush1.bf16.msra.mxu0 %v3702
    %3748 = vmatprep.subr.bf16.mxu0 %v3707
    %3749 = vmatpush1.bf16.msra.mxu0 %v3706
    %3750 = vmatprep.subr.bf16.mxu0 %v3711
    %3751 = vmatpush1.bf16.msra.mxu0 %v3710
    %3752 = vmatprep.subr.bf16.mxu0 %v3715
    %3753 = vmatpush1.bf16.msra.mxu0 %v3714
    %3754 = vmatprep.subr.bf16.mxu0 %v3719
    %3755 = vmatpush1.bf16.msra.mxu0 %v3718
    %3756 = vmatprep.subr.bf16.mxu0 %v3723
    %3757 = vmatpush1.bf16.msra.mxu0 %v3722
    %3758 = vmatprep.mubr.bf16.mxu0 %v3144
    %3759 = vmatmul.mubr.bf16.gmra.mrb[0].mxu0 %v3661
    %v3760 = vpop.f32.mrb[0].mxu0
    %v3761 = vadd.f32 %v195, %v3760
    %v3762 = vpop.f32.mrb[0].mxu0
    %v3763 = vadd.f32 %v199, %v3762
    %v3764 = vpop.f32.mrb[0].mxu0
    %v3765 = vpop.f32.mrb[0].mxu0
    %3766 = vdwg.mxu0
    %3767 = vmatprep.subr.bf16.mxu0 %v3665
    %3768 = vmatpush1.bf16.msra.mxu0 %v3664
    %3769 = vmatprep.subr.bf16.mxu0 %v3669
    %3770 = vmatpush1.bf16.msra.mxu0 %v3668
    %3771 = vmatprep.subr.bf16.mxu0 %v3673
    %3772 = vmatpush1.bf16.msra.mxu0 %v3672
    %3773 = vmatprep.subr.bf16.mxu0 %v3677
    %3774 = vmatpush1.bf16.msra.mxu0 %v3676
    %3775 = vmatprep.subr.bf16.mxu0 %v3681
    %3776 = vmatpush1.bf16.msra.mxu0 %v3680
    %3777 = vmatprep.subr.bf16.mxu0 %v3685
    %3778 = vmatpush1.bf16.msra.mxu0 %v3684
    %3779 = vmatprep.subr.bf16.mxu0 %v3689
    %3780 = vmatpush1.bf16.msra.mxu0 %v3688
    %3781 = vmatprep.subr.bf16.mxu0 %v3693
    %3782 = vmatpush1.bf16.msra.mxu0 %v3692
    %3783 = vmatprep.subr.bf16.mxu0 %v3697
    %3784 = vmatpush1.bf16.msra.mxu0 %v3696
    %3785 = vmatprep.subr.bf16.mxu0 %v3701
    %3786 = vmatpush1.bf16.msra.mxu0 %v3700
    %3787 = vmatprep.subr.bf16.mxu0 %v3705
    %3788 = vmatpush1.bf16.msra.mxu0 %v3704
    %3789 = vmatprep.subr.bf16.mxu0 %v3709
    %3790 = vmatpush1.bf16.msra.mxu0 %v3708
    %3791 = vmatprep.subr.bf16.mxu0 %v3713
    %3792 = vmatpush1.bf16.msra.mxu0 %v3712
    %3793 = vmatprep.subr.bf16.mxu0 %v3717
    %3794 = vmatpush1.bf16.msra.mxu0 %v3716
    %3795 = vmatprep.subr.bf16.mxu0 %v3721
    %3796 = vmatpush1.bf16.msra.mxu0 %v3720
    %3797 = vmatprep.subr.bf16.mxu0 %v3725
    %3798 = vmatpush1.bf16.msra.mxu0 %v3724
    %3799 = vmatprep.mubr.bf16.mxu0 %v3144
    %3800 = vmatmul.mubr.bf16.gmra.mrb[0].mxu0 %v3661
    %v3801 = vpop.f32.mrb[0].mxu0
    %v3802 = vadd.f32 %v203, %v3801
    %v3803 = vpop.f32.mrb[0].mxu0
    %v3804 = vadd.f32 %v207, %v3803
    %v3805 = vpop.f32.mrb[0].mxu0
    %v3806 = vpop.f32.mrb[0].mxu0
    %3807 = vdwg.mxu0
    %v3808 = vmul.f32 %v3761, 0.5
    %v3809 = vtanh.pop %v3808
    %v3810 = vmul.f32 %v3809, 0.5
    %v3811 = vadd.f32 %v3810, 0.5
    %v3812 = vmul.f32 %v3763, 0.5
    %v3813 = vtanh.pop %v3812
    %v3814 = vmul.f32 %v3813, 0.5
    %v3815 = vadd.f32 %v3814, 0.5
    %v3816 = vtanh.pop %v3802
    %v3817 = vmul.f32 %v3804, 0.5
    %v3818 = vtanh.pop %v3817
    %v3819 = vmul.f32 %v3818, 0.5
    %v3820 = vadd.f32 %v3819, 0.5
    %v3821 = vmul.f32 %v3815, %v3141
    %v3822 = vmul.f32 %v3811, %v3816
    %v3823 = vadd.f32 %v3821, %v3822
    %v3824 = vtanh.pop %v3823
    %v3825 = vmul.f32 %v3820, %v3824
    %v3826 = vpack.c.bf16 %v3825, %v3825
    %v3827 = vld [vmem:[#allocation4] sm:$0xff]
    %v3828 = vld [vmem:[#allocation4 + $0x8] sm:$0xff]
    %v3829 = vld [vmem:[#allocation4 + $0x10] sm:$0xff]
    %v3830 = vld [vmem:[#allocation4 + $0x18] sm:$0xff]
    %v3831 = vld [vmem:[#allocation4 + $0x20] sm:$0xff]
    %v3832 = vld [vmem:[#allocation4 + $0x28] sm:$0xff]
    %v3833 = vld [vmem:[#allocation4 + $0x30] sm:$0xff]
    %v3834 = vld [vmem:[#allocation4 + $0x38] sm:$0xff]
    %v3835 = vld [vmem:[#allocation4 + $0x40] sm:$0xff]
    %v3836 = vld [vmem:[#allocation4 + $0x48] sm:$0xff]
    %v3837 = vld [vmem:[#allocation4 + $0x50] sm:$0xff]
    %v3838 = vld [vmem:[#allocation4 + $0x58] sm:$0xff]
    %v3839 = vld [vmem:[#allocation4 + $0x60] sm:$0xff]
    %v3840 = vld [vmem:[#allocation4 + $0x68] sm:$0xff]
    %v3841 = vld [vmem:[#allocation4 + $0x70] sm:$0xff]
    %v3842 = vld [vmem:[#allocation4 + $0x78] sm:$0xff]
    %v3843 = vld [vmem:[#allocation4 + $0x80] sm:$0xff]
    %v3844 = vld [vmem:[#allocation4 + $0x88] sm:$0xff]
    %v3845 = vld [vmem:[#allocation4 + $0x90] sm:$0xff]
    %v3846 = vld [vmem:[#allocation4 + $0x98] sm:$0xff]
    %v3847 = vld [vmem:[#allocation4 + $0xa0] sm:$0xff]
    %v3848 = vld [vmem:[#allocation4 + $0xa8] sm:$0xff]
    %v3849 = vld [vmem:[#allocation4 + $0xb0] sm:$0xff]
    %v3850 = vld [vmem:[#allocation4 + $0xb8] sm:$0xff]
    %v3851 = vld [vmem:[#allocation4 + $0xc0] sm:$0xff]
    %v3852 = vld [vmem:[#allocation4 + $0xc8] sm:$0xff]
    %v3853 = vld [vmem:[#allocation4 + $0xd0] sm:$0xff]
    %v3854 = vld [vmem:[#allocation4 + $0xd8] sm:$0xff]
    %v3855 = vld [vmem:[#allocation4 + $0xe0] sm:$0xff]
    %v3856 = vld [vmem:[#allocation4 + $0xe8] sm:$0xff]
    %v3857 = vld [vmem:[#allocation4 + $0xf0] sm:$0xff]
    %v3858 = vld [vmem:[#allocation4 + $0xf8] sm:$0xff]
    %v3859 = vld [vmem:[#allocation4 + $0x100] sm:$0xff]
    %v3860 = vld [vmem:[#allocation4 + $0x108] sm:$0xff]
    %v3861 = vld [vmem:[#allocation4 + $0x110] sm:$0xff]
    %v3862 = vld [vmem:[#allocation4 + $0x118] sm:$0xff]
    %v3863 = vld [vmem:[#allocation4 + $0x120] sm:$0xff]
    %v3864 = vld [vmem:[#allocation4 + $0x128] sm:$0xff]
    %v3865 = vld [vmem:[#allocation4 + $0x130] sm:$0xff]
    %v3866 = vld [vmem:[#allocation4 + $0x138] sm:$0xff]
    %v3867 = vld [vmem:[#allocation4 + $0x140] sm:$0xff]
    %v3868 = vld [vmem:[#allocation4 + $0x148] sm:$0xff]
    %v3869 = vld [vmem:[#allocation4 + $0x150] sm:$0xff]
    %v3870 = vld [vmem:[#allocation4 + $0x158] sm:$0xff]
    %v3871 = vld [vmem:[#allocation4 + $0x160] sm:$0xff]
    %v3872 = vld [vmem:[#allocation4 + $0x168] sm:$0xff]
    %v3873 = vld [vmem:[#allocation4 + $0x170] sm:$0xff]
    %v3874 = vld [vmem:[#allocation4 + $0x178] sm:$0xff]
    %v3875 = vld [vmem:[#allocation4 + $0x180] sm:$0xff]
    %v3876 = vld [vmem:[#allocation4 + $0x188] sm:$0xff]
    %v3877 = vld [vmem:[#allocation4 + $0x190] sm:$0xff]
    %v3878 = vld [vmem:[#allocation4 + $0x198] sm:$0xff]
    %v3879 = vld [vmem:[#allocation4 + $0x1a0] sm:$0xff]
    %v3880 = vld [vmem:[#allocation4 + $0x1a8] sm:$0xff]
    %v3881 = vld [vmem:[#allocation4 + $0x1b0] sm:$0xff]
    %v3882 = vld [vmem:[#allocation4 + $0x1b8] sm:$0xff]
    %v3883 = vld [vmem:[#allocation4 + $0x1c0] sm:$0xff]
    %v3884 = vld [vmem:[#allocation4 + $0x1c8] sm:$0xff]
    %v3885 = vld [vmem:[#allocation4 + $0x1d0] sm:$0xff]
    %v3886 = vld [vmem:[#allocation4 + $0x1d8] sm:$0xff]
    %v3887 = vld [vmem:[#allocation4 + $0x1e0] sm:$0xff]
    %v3888 = vld [vmem:[#allocation4 + $0x1e8] sm:$0xff]
    %v3889 = vld [vmem:[#allocation4 + $0x1f0] sm:$0xff]
    %v3890 = vld [vmem:[#allocation4 + $0x1f8] sm:$0xff]
    %3891 = vmatprep.subr.bf16.mxu0 %v3828
    %3892 = vmatpush1.bf16.msra.mxu0 %v3827
    %3893 = vmatprep.subr.bf16.mxu0 %v3832
    %3894 = vmatpush1.bf16.msra.mxu0 %v3831
    %3895 = vmatprep.subr.bf16.mxu0 %v3836
    %3896 = vmatpush1.bf16.msra.mxu0 %v3835
    %3897 = vmatprep.subr.bf16.mxu0 %v3840
    %3898 = vmatpush1.bf16.msra.mxu0 %v3839
    %3899 = vmatprep.subr.bf16.mxu0 %v3844
    %3900 = vmatpush1.bf16.msra.mxu0 %v3843
    %3901 = vmatprep.subr.bf16.mxu0 %v3848
    %3902 = vmatpush1.bf16.msra.mxu0 %v3847
    %3903 = vmatprep.subr.bf16.mxu0 %v3852
    %3904 = vmatpush1.bf16.msra.mxu0 %v3851
    %3905 = vmatprep.subr.bf16.mxu0 %v3856
    %3906 = vmatpush1.bf16.msra.mxu0 %v3855
    %3907 = vmatprep.subr.bf16.mxu0 %v3860
    %3908 = vmatpush1.bf16.msra.mxu0 %v3859
    %3909 = vmatprep.subr.bf16.mxu0 %v3864
    %3910 = vmatpush1.bf16.msra.mxu0 %v3863
    %3911 = vmatprep.subr.bf16.mxu0 %v3868
    %3912 = vmatpush1.bf16.msra.mxu0 %v3867
    %3913 = vmatprep.subr.bf16.mxu0 %v3872
    %3914 = vmatpush1.bf16.msra.mxu0 %v3871
    %3915 = vmatprep.subr.bf16.mxu0 %v3876
    %3916 = vmatpush1.bf16.msra.mxu0 %v3875
    %3917 = vmatprep.subr.bf16.mxu0 %v3880
    %3918 = vmatpush1.bf16.msra.mxu0 %v3879
    %3919 = vmatprep.subr.bf16.mxu0 %v3884
    %3920 = vmatpush1.bf16.msra.mxu0 %v3883
    %3921 = vmatprep.subr.bf16.mxu0 %v3888
    %3922 = vmatpush1.bf16.msra.mxu0 %v3887
    %3923 = vmatprep.mubr.bf16.mxu0 %v3309
    %3924 = vmatmul.mubr.bf16.gmra.mrb[0].mxu0 %v3826
    %v3925 = vpop.f32.mrb[0].mxu0
    %v3926 = vadd.f32 %v217, %v3925
    %v3927 = vpop.f32.mrb[0].mxu0
    %v3928 = vadd.f32 %v221, %v3927
    %v3929 = vpop.f32.mrb[0].mxu0
    %v3930 = vpop.f32.mrb[0].mxu0
    %3931 = vdwg.mxu0
    %3932 = vmatprep.subr.bf16.mxu0 %v3830
    %3933 = vmatpush1.bf16.msra.mxu0 %v3829
    %3934 = vmatprep.subr.bf16.mxu0 %v3834
    %3935 = vmatpush1.bf16.msra.mxu0 %v3833
    %3936 = vmatprep.subr.bf16.mxu0 %v3838
    %3937 = vmatpush1.bf16.msra.mxu0 %v3837
    %3938 = vmatprep.subr.bf16.mxu0 %v3842
    %3939 = vmatpush1.bf16.msra.mxu0 %v3841
    %3940 = vmatprep.subr.bf16.mxu0 %v3846
    %3941 = vmatpush1.bf16.msra.mxu0 %v3845
    %3942 = vmatprep.subr.bf16.mxu0 %v3850
    %3943 = vmatpush1.bf16.msra.mxu0 %v3849
    %3944 = vmatprep.subr.bf16.mxu0 %v3854
    %3945 = vmatpush1.bf16.msra.mxu0 %v3853
    %3946 = vmatprep.subr.bf16.mxu0 %v3858
    %3947 = vmatpush1.bf16.msra.mxu0 %v3857
    %3948 = vmatprep.subr.bf16.mxu0 %v3862
    %3949 = vmatpush1.bf16.msra.mxu0 %v3861
    %3950 = vmatprep.subr.bf16.mxu0 %v3866
    %3951 = vmatpush1.bf16.msra.mxu0 %v3865
    %3952 = vmatprep.subr.bf16.mxu0 %v3870
    %3953 = vmatpush1.bf16.msra.mxu0 %v3869
    %3954 = vmatprep.subr.bf16.mxu0 %v3874
    %3955 = vmatpush1.bf16.msra.mxu0 %v3873
    %3956 = vmatprep.subr.bf16.mxu0 %v3878
    %3957 = vmatpush1.bf16.msra.mxu0 %v3877
    %3958 = vmatprep.subr.bf16.mxu0 %v3882
    %3959 = vmatpush1.bf16.msra.mxu0 %v3881
    %3960 = vmatprep.subr.bf16.mxu0 %v3886
    %3961 = vmatpush1.bf16.msra.mxu0 %v3885
    %3962 = vmatprep.subr.bf16.mxu0 %v3890
    %3963 = vmatpush1.bf16.msra.mxu0 %v3889
    %3964 = vmatprep.mubr.bf16.mxu0 %v3309
    %3965 = vmatmul.mubr.bf16.gmra.mrb[0].mxu0 %v3826
    %v3966 = vpop.f32.mrb[0].mxu0
    %v3967 = vadd.f32 %v225, %v3966
    %v3968 = vpop.f32.mrb[0].mxu0
    %v3969 = vadd.f32 %v229, %v3968
    %v3970 = vpop.f32.mrb[0].mxu0
    %v3971 = vpop.f32.mrb[0].mxu0
    %3972 = vdwg.mxu0
    %v3973 = vmul.f32 %v3926, 0.5
    %v3974 = vtanh.pop %v3973
    %v3975 = vmul.f32 %v3974, 0.5
    %v3976 = vadd.f32 %v3975, 0.5
    %v3977 = vmul.f32 %v3928, 0.5
    %v3978 = vtanh.pop %v3977
    %v3979 = vmul.f32 %v3978, 0.5
    %v3980 = vadd.f32 %v3979, 0.5
    %v3981 = vtanh.pop %v3967
    %v3982 = vmul.f32 %v3969, 0.5
    %v3983 = vtanh.pop %v3982
    %v3984 = vmul.f32 %v3983, 0.5
    %v3985 = vadd.f32 %v3984, 0.5
    %v3986 = vmul.f32 %v3980, %v3306
    %v3987 = vmul.f32 %v3976, %v3981
    %v3988 = vadd.f32 %v3986, %v3987
    %v3989 = vtanh.pop %v3988
    %v3990 = vmul.f32 %v3985, %v3989
    %v3991 = vpack.c.bf16 %v3990, %v3990
    %v3992 = vld [vmem:[#allocation5] sm:$0xff]
    %v3993 = vld [vmem:[#allocation5 + $0x8] sm:$0xff]
    %v3994 = vld [vmem:[#allocation5 + $0x10] sm:$0xff]
    %v3995 = vld [vmem:[#allocation5 + $0x18] sm:$0xff]
    %v3996 = vld [vmem:[#allocation5 + $0x20] sm:$0xff]
    %v3997 = vld [vmem:[#allocation5 + $0x28] sm:$0xff]
    %v3998 = vld [vmem:[#allocation5 + $0x30] sm:$0xff]
    %v3999 = vld [vmem:[#allocation5 + $0x38] sm:$0xff]
    %4000 = vmatprep.subr.bf16.mxu0 0
    %4001 = vmatpush1.bf16.msra.mxu0 %v3992
    %4002 = vmatprep.subr.bf16.mxu0 0
    %4003 = vmatpush1.bf16.msra.mxu0 %v3993
    %4004 = vmatprep.subr.bf16.mxu0 0
    %4005 = vmatpush1.bf16.msra.mxu0 %v3994
    %4006 = vmatprep.subr.bf16.mxu0 0
    %4007 = vmatpush1.bf16.msra.mxu0 %v3995
    %4008 = vmatprep.subr.bf16.mxu0 0
    %4009 = vmatpush1.bf16.msra.mxu0 %v3996
    %4010 = vmatprep.subr.bf16.mxu0 0
    %4011 = vmatpush1.bf16.msra.mxu0 %v3997
    %4012 = vmatprep.subr.bf16.mxu0 0
    %4013 = vmatpush1.bf16.msra.mxu0 %v3998
    %4014 = vmatprep.subr.bf16.mxu0 0
    %4015 = vmatpush1.bf16.msra.mxu0 %v3999
    %4016 = vmatprep.subr.bf16.mxu0 0
    %4017 = vmatpush1.bf16.msra.mxu0 0
    %4018 = vmatprep.subr.bf16.mxu0 0
    %4019 = vmatpush1.bf16.msra.mxu0 0
    %4020 = vmatprep.subr.bf16.mxu0 0
    %4021 = vmatpush1.bf16.msra.mxu0 0
    %4022 = vmatprep.subr.bf16.mxu0 0
    %4023 = vmatpush1.bf16.msra.mxu0 0
    %4024 = vmatprep.subr.bf16.mxu0 0
    %4025 = vmatpush1.bf16.msra.mxu0 0
    %4026 = vmatprep.subr.bf16.mxu0 0
    %4027 = vmatpush1.bf16.msra.mxu0 0
    %4028 = vmatprep.subr.bf16.mxu0 0
    %4029 = vmatpush1.bf16.msra.mxu0 0
    %4030 = vmatprep.subr.bf16.mxu0 0
    %4031 = vmatpush1.bf16.msra.mxu0 0
    %4032 = vmatprep.mubr.bf16.mxu0 0
    %4033 = vmatmul.mubr.bf16.gmra.mrb[0].mxu0 %v3991
    %v4034 = vpop.f32.mrb[0].mxu0
    %v4035 = vadd.f32 %v239, %v4034
    %v4036 = vpop.f32.mrb[0].mxu0
    %v4037 = vpop.f32.mrb[0].mxu0
    %v4038 = vpop.f32.mrb[0].mxu0
    %4039 = vdwg.mxu0
    %s4040 = scalar_lea.vmem %s9, 32
    %4041 = vst [vmem:[%s4040] sm:$0xff] %v4035
    %s4042 = scalar_lea.vmem [#allocation2], 160
    %v4043 = vld [vmem:[%s4042] sm:$0xff]
    %v4044 = vld [vmem:[%s4042 + $0x8] sm:$0xff]
    %v4045 = vld [vmem:[%s4042 + $0x10] sm:$0xff]
    %v4046 = vld [vmem:[%s4042 + $0x18] sm:$0xff]
    %v4047 = vld [vmem:[#allocation7 + $0x100] sm:$0xff]
    %v4048 = vld [vmem:[#allocation7 + $0x108] sm:$0xff]
    %v4049 = vld [vmem:[#allocation7 + $0x110] sm:$0xff]
    %v4050 = vld [vmem:[#allocation7 + $0x118] sm:$0xff]
    %v4051 = vld [vmem:[#allocation7 + $0x120] sm:$0xff]
    %v4052 = vld [vmem:[#allocation7 + $0x128] sm:$0xff]
    %v4053 = vld [vmem:[#allocation7 + $0x130] sm:$0xff]
    %v4054 = vld [vmem:[#allocation7 + $0x138] sm:$0xff]
    %v4055 = vld [vmem:[#allocation7 + $0x140] sm:$0xff]
    %v4056 = vld [vmem:[#allocation7 + $0x148] sm:$0xff]
    %v4057 = vld [vmem:[#allocation7 + $0x150] sm:$0xff]
    %v4058 = vld [vmem:[#allocation7 + $0x158] sm:$0xff]
    %v4059 = vld [vmem:[#allocation7 + $0x160] sm:$0xff]
    %v4060 = vld [vmem:[#allocation7 + $0x168] sm:$0xff]
    %v4061 = vld [vmem:[#allocation7 + $0x170] sm:$0xff]
    %v4062 = vld [vmem:[#allocation7 + $0x178] sm:$0xff]
    %v4063 = vld [vmem:[#allocation7 + $0x180] sm:$0xff]
    %v4064 = vld [vmem:[#allocation7 + $0x188] sm:$0xff]
    %v4065 = vld [vmem:[#allocation7 + $0x190] sm:$0xff]
    %v4066 = vld [vmem:[#allocation7 + $0x198] sm:$0xff]
    %v4067 = vld [vmem:[#allocation7 + $0x1a0] sm:$0xff]
    %v4068 = vld [vmem:[#allocation7 + $0x1a8] sm:$0xff]
    %v4069 = vld [vmem:[#allocation7 + $0x1b0] sm:$0xff]
    %v4070 = vld [vmem:[#allocation7 + $0x1b8] sm:$0xff]
    %v4071 = vld [vmem:[#allocation7 + $0x1c0] sm:$0xff]
    %v4072 = vld [vmem:[#allocation7 + $0x1c8] sm:$0xff]
    %v4073 = vld [vmem:[#allocation7 + $0x1d0] sm:$0xff]
    %v4074 = vld [vmem:[#allocation7 + $0x1d8] sm:$0xff]
    %v4075 = vld [vmem:[#allocation7 + $0x1e0] sm:$0xff]
    %v4076 = vld [vmem:[#allocation7 + $0x1e8] sm:$0xff]
    %v4077 = vld [vmem:[#allocation7 + $0x1f0] sm:$0xff]
    %v4078 = vld [vmem:[#allocation7 + $0x1f8] sm:$0xff]
    %v4111 = vunpack.c.l.b16 %v4047
    %v4112 = vunpack.c.h.b16 %v4047
    %v4113 = vunpack.c.l.b16 %v4048
    %v4114 = vunpack.c.h.b16 %v4048
    %v4115 = vunpack.c.l.b16 %v4049
    %v4116 = vunpack.c.h.b16 %v4049
    %v4117 = vunpack.c.l.b16 %v4050
    %v4118 = vunpack.c.h.b16 %v4050
    %v4119 = vunpack.c.l.b16 %v4051
    %v4120 = vunpack.c.h.b16 %v4051
    %v4121 = vunpack.c.l.b16 %v4052
    %v4122 = vunpack.c.h.b16 %v4052
    %v4123 = vunpack.c.l.b16 %v4053
    %v4124 = vunpack.c.h.b16 %v4053
    %v4125 = vunpack.c.l.b16 %v4054
    %v4126 = vunpack.c.h.b16 %v4054
    %v4127 = vunpack.c.l.b16 %v4055
    %v4128 = vunpack.c.h.b16 %v4055
    %v4129 = vunpack.c.l.b16 %v4056
    %v4130 = vunpack.c.h.b16 %v4056
    %v4131 = vunpack.c.l.b16 %v4057
    %v4132 = vunpack.c.h.b16 %v4057
    %v4133 = vunpack.c.l.b16 %v4058
    %v4134 = vunpack.c.h.b16 %v4058
    %v4135 = vunpack.c.l.b16 %v4059
    %v4136 = vunpack.c.h.b16 %v4059
    %v4137 = vunpack.c.l.b16 %v4060
    %v4138 = vunpack.c.h.b16 %v4060
    %v4139 = vunpack.c.l.b16 %v4061
    %v4140 = vunpack.c.h.b16 %v4061
    %v4141 = vunpack.c.l.b16 %v4062
    %v4142 = vunpack.c.h.b16 %v4062
    %v4143 = vunpack.c.l.b16 %v4063
    %v4144 = vunpack.c.h.b16 %v4063
    %v4145 = vunpack.c.l.b16 %v4064
    %v4146 = vunpack.c.h.b16 %v4064
    %v4147 = vunpack.c.l.b16 %v4065
    %v4148 = vunpack.c.h.b16 %v4065
    %v4149 = vunpack.c.l.b16 %v4066
    %v4150 = vunpack.c.h.b16 %v4066
    %v4151 = vunpack.c.l.b16 %v4067
    %v4152 = vunpack.c.h.b16 %v4067
    %v4153 = vunpack.c.l.b16 %v4068
    %v4154 = vunpack.c.h.b16 %v4068
    %v4155 = vunpack.c.l.b16 %v4069
    %v4156 = vunpack.c.h.b16 %v4069
    %v4157 = vunpack.c.l.b16 %v4070
    %v4158 = vunpack.c.h.b16 %v4070
    %v4159 = vunpack.c.l.b16 %v4071
    %v4160 = vunpack.c.h.b16 %v4071
    %v4161 = vunpack.c.l.b16 %v4072
    %v4162 = vunpack.c.h.b16 %v4072
    %v4163 = vunpack.c.l.b16 %v4073
    %v4164 = vunpack.c.h.b16 %v4073
    %v4165 = vunpack.c.l.b16 %v4074
    %v4166 = vunpack.c.h.b16 %v4074
    %v4167 = vunpack.c.l.b16 %v4075
    %v4168 = vunpack.c.h.b16 %v4075
    %v4169 = vunpack.c.l.b16 %v4076
    %v4170 = vunpack.c.h.b16 %v4076
    %v4171 = vunpack.c.l.b16 %v4077
    %v4172 = vunpack.c.h.b16 %v4077
    %v4173 = vunpack.c.l.b16 %v4078
    %v4174 = vunpack.c.h.b16 %v4078
    %v4175 = vpack.c.b16 %v4115, %v4111
    %v4176 = vpack.c.b16 %v4116, %v4112
    %v4177 = vpack.c.b16 %v4117, %v4113
    %v4178 = vpack.c.b16 %v4118, %v4114
    %v4179 = vpack.c.b16 %v4123, %v4119
    %v4180 = vpack.c.b16 %v4124, %v4120
    %v4181 = vpack.c.b16 %v4125, %v4121
    %v4182 = vpack.c.b16 %v4126, %v4122
    %v4183 = vpack.c.b16 %v4131, %v4127
    %v4184 = vpack.c.b16 %v4132, %v4128
    %v4185 = vpack.c.b16 %v4133, %v4129
    %v4186 = vpack.c.b16 %v4134, %v4130
    %v4187 = vpack.c.b16 %v4139, %v4135
    %v4188 = vpack.c.b16 %v4140, %v4136
    %v4189 = vpack.c.b16 %v4141, %v4137
    %v4190 = vpack.c.b16 %v4142, %v4138
    %v4191 = vpack.c.b16 %v4147, %v4143
    %v4192 = vpack.c.b16 %v4148, %v4144
    %v4193 = vpack.c.b16 %v4149, %v4145
    %v4194 = vpack.c.b16 %v4150, %v4146
    %v4195 = vpack.c.b16 %v4155, %v4151
    %v4196 = vpack.c.b16 %v4156, %v4152
    %v4197 = vpack.c.b16 %v4157, %v4153
    %v4198 = vpack.c.b16 %v4158, %v4154
    %v4199 = vpack.c.b16 %v4163, %v4159
    %v4200 = vpack.c.b16 %v4164, %v4160
    %v4201 = vpack.c.b16 %v4165, %v4161
    %v4202 = vpack.c.b16 %v4166, %v4162
    %v4203 = vpack.c.b16 %v4171, %v4167
    %v4204 = vpack.c.b16 %v4172, %v4168
    %v4205 = vpack.c.b16 %v4173, %v4169
    %v4206 = vpack.c.b16 %v4174, %v4170
    %4239 = vmatprep.subr.bf16.mxu0 %v4176
    %4240 = vmatpush1.bf16.msra.mxu0 %v4175
    %4241 = vmatprep.subr.bf16.mxu0 %v4180
    %4242 = vmatpush1.bf16.msra.mxu0 %v4179
    %4243 = vmatprep.subr.bf16.mxu0 %v4184
    %4244 = vmatpush1.bf16.msra.mxu0 %v4183
    %4245 = vmatprep.subr.bf16.mxu0 %v4188
    %4246 = vmatpush1.bf16.msra.mxu0 %v4187
    %4247 = vmatprep.subr.bf16.mxu0 %v4192
    %4248 = vmatpush1.bf16.msra.mxu0 %v4191
    %4249 = vmatprep.subr.bf16.mxu0 %v4196
    %4250 = vmatpush1.bf16.msra.mxu0 %v4195
    %4251 = vmatprep.subr.bf16.mxu0 %v4200
    %4252 = vmatpush1.bf16.msra.mxu0 %v4199
    %4253 = vmatprep.subr.bf16.mxu0 %v4204
    %4254 = vmatpush1.bf16.msra.mxu0 %v4203
    %4255 = vmatprep.subr.bf16.mxu0 0
    %4256 = vmatpush1.bf16.msra.mxu0 0
    %4257 = vmatprep.subr.bf16.mxu0 0
    %4258 = vmatpush1.bf16.msra.mxu0 0
    %4259 = vmatprep.subr.bf16.mxu0 0
    %4260 = vmatpush1.bf16.msra.mxu0 0
    %4261 = vmatprep.subr.bf16.mxu0 0
    %4262 = vmatpush1.bf16.msra.mxu0 0
    %4263 = vmatprep.subr.bf16.mxu0 0
    %4264 = vmatpush1.bf16.msra.mxu0 0
    %4265 = vmatprep.subr.bf16.mxu0 0
    %4266 = vmatpush1.bf16.msra.mxu0 0
    %4267 = vmatprep.subr.bf16.mxu0 0
    %4268 = vmatpush1.bf16.msra.mxu0 0
    %4269 = vmatprep.subr.bf16.mxu0 0
    %4270 = vmatpush1.bf16.msra.mxu0 0
    %4271 = vmatprep.mubr.bf16.mxu0 0
    %4272 = vmatmul.mubr.bf16.gmra.mrb[0].mxu0 %v3661
    %v4273 = vpop.f32.mrb[0].mxu0
    %v4274 = vadd.f32 0.0, %v4273
    %v4275 = vpop.f32.mrb[0].mxu0
    %v4276 = vadd.f32 0.0, %v4275
    %v4277 = vpop.f32.mrb[0].mxu0
    %v4278 = vpop.f32.mrb[0].mxu0
    %4279 = vdwg.mxu0
    %4280 = vmatprep.subr.bf16.mxu0 %v4178
    %4281 = vmatpush1.bf16.msra.mxu0 %v4177
    %4282 = vmatprep.subr.bf16.mxu0 %v4182
    %4283 = vmatpush1.bf16.msra.mxu0 %v4181
    %4284 = vmatprep.subr.bf16.mxu0 %v4186
    %4285 = vmatpush1.bf16.msra.mxu0 %v4185
    %4286 = vmatprep.subr.bf16.mxu0 %v4190
    %4287 = vmatpush1.bf16.msra.mxu0 %v4189
    %4288 = vmatprep.subr.bf16.mxu0 %v4194
    %4289 = vmatpush1.bf16.msra.mxu0 %v4193
    %4290 = vmatprep.subr.bf16.mxu0 %v4198
    %4291 = vmatpush1.bf16.msra.mxu0 %v4197
    %4292 = vmatprep.subr.bf16.mxu0 %v4202
    %4293 = vmatpush1.bf16.msra.mxu0 %v4201
    %4294 = vmatprep.subr.bf16.mxu0 %v4206
    %4295 = vmatpush1.bf16.msra.mxu0 %v4205
    %4296 = vmatprep.subr.bf16.mxu0 0
    %4297 = vmatpush1.bf16.msra.mxu0 0
    %4298 = vmatprep.subr.bf16.mxu0 0
    %4299 = vmatpush1.bf16.msra.mxu0 0
    %4300 = vmatprep.subr.bf16.mxu0 0
    %4301 = vmatpush1.bf16.msra.mxu0 0
    %4302 = vmatprep.subr.bf16.mxu0 0
    %4303 = vmatpush1.bf16.msra.mxu0 0
    %4304 = vmatprep.subr.bf16.mxu0 0
    %4305 = vmatpush1.bf16.msra.mxu0 0
    %4306 = vmatprep.subr.bf16.mxu0 0
    %4307 = vmatpush1.bf16.msra.mxu0 0
    %4308 = vmatprep.subr.bf16.mxu0 0
    %4309 = vmatpush1.bf16.msra.mxu0 0
    %4310 = vmatprep.subr.bf16.mxu0 0
    %4311 = vmatpush1.bf16.msra.mxu0 0
    %4312 = vmatprep.mubr.bf16.mxu0 0
    %4313 = vmatmul.mubr.bf16.gmra.mrb[0].mxu0 %v3661
    %v4314 = vpop.f32.mrb[0].mxu0
    %v4315 = vadd.f32 0.0, %v4314
    %v4316 = vpop.f32.mrb[0].mxu0
    %v4317 = vadd.f32 0.0, %v4316
    %v4318 = vpop.f32.mrb[0].mxu0
    %v4319 = vpop.f32.mrb[0].mxu0
    %4320 = vdwg.mxu0
    %v4321 = vadd.f32 %v4043, %v4274
    %v4322 = vadd.f32 %v4044, %v4276
    %v4323 = vadd.f32 %v4045, %v4315
    %v4324 = vadd.f32 %v4046, %v4317
    %v4325 = vmul.f32 %v4321, 0.5
    %v4326 = vtanh.pop %v4325
    %v4327 = vmul.f32 %v4326, 0.5
    %v4328 = vadd.f32 %v4327, 0.5
    %v4329 = vmul.f32 %v4322, 0.5
    %v4330 = vtanh.pop %v4329
    %v4331 = vmul.f32 %v4330, 0.5
    %v4332 = vadd.f32 %v4331, 0.5
    %v4333 = vtanh.pop %v4323
    %v4334 = vmul.f32 %v4324, 0.5
    %v4335 = vtanh.pop %v4334
    %v4336 = vmul.f32 %v4335, 0.5
    %v4337 = vadd.f32 %v4336, 0.5
    %v4338 = vmul.f32 %v4332, %v3658
    %v4339 = vmul.f32 %v4328, %v4333
    %v4340 = vadd.f32 %v4338, %v4339
    %v4341 = vtanh.pop %v4340
    %v4342 = vmul.f32 %v4337, %v4341
    %v4343 = vpack.c.bf16 %v4342, %v4342
    %v4344 = vld [vmem:[#allocation3] sm:$0xff]
    %v4345 = vld [vmem:[#allocation3 + $0x8] sm:$0xff]
    %v4346 = vld [vmem:[#allocation3 + $0x10] sm:$0xff]
    %v4347 = vld [vmem:[#allocation3 + $0x18] sm:$0xff]
    %v4348 = vld [vmem:[#allocation3 + $0x20] sm:$0xff]
    %v4349 = vld [vmem:[#allocation3 + $0x28] sm:$0xff]
    %v4350 = vld [vmem:[#allocation3 + $0x30] sm:$0xff]
    %v4351 = vld [vmem:[#allocation3 + $0x38] sm:$0xff]
    %v4352 = vld [vmem:[#allocation3 + $0x40] sm:$0xff]
    %v4353 = vld [vmem:[#allocation3 + $0x48] sm:$0xff]
    %v4354 = vld [vmem:[#allocation3 + $0x50] sm:$0xff]
    %v4355 = vld [vmem:[#allocation3 + $0x58] sm:$0xff]
    %v4356 = vld [vmem:[#allocation3 + $0x60] sm:$0xff]
    %v4357 = vld [vmem:[#allocation3 + $0x68] sm:$0xff]
    %v4358 = vld [vmem:[#allocation3 + $0x70] sm:$0xff]
    %v4359 = vld [vmem:[#allocation3 + $0x78] sm:$0xff]
    %v4360 = vld [vmem:[#allocation3 + $0x80] sm:$0xff]
    %v4361 = vld [vmem:[#allocation3 + $0x88] sm:$0xff]
    %v4362 = vld [vmem:[#allocation3 + $0x90] sm:$0xff]
    %v4363 = vld [vmem:[#allocation3 + $0x98] sm:$0xff]
    %v4364 = vld [vmem:[#allocation3 + $0xa0] sm:$0xff]
    %v4365 = vld [vmem:[#allocation3 + $0xa8] sm:$0xff]
    %v4366 = vld [vmem:[#allocation3 + $0xb0] sm:$0xff]
    %v4367 = vld [vmem:[#allocation3 + $0xb8] sm:$0xff]
    %v4368 = vld [vmem:[#allocation3 + $0xc0] sm:$0xff]
    %v4369 = vld [vmem:[#allocation3 + $0xc8] sm:$0xff]
    %v4370 = vld [vmem:[#allocation3 + $0xd0] sm:$0xff]
    %v4371 = vld [vmem:[#allocation3 + $0xd8] sm:$0xff]
    %v4372 = vld [vmem:[#allocation3 + $0xe0] sm:$0xff]
    %v4373 = vld [vmem:[#allocation3 + $0xe8] sm:$0xff]
    %v4374 = vld [vmem:[#allocation3 + $0xf0] sm:$0xff]
    %v4375 = vld [vmem:[#allocation3 + $0xf8] sm:$0xff]
    %v4376 = vld [vmem:[#allocation3 + $0x100] sm:$0xff]
    %v4377 = vld [vmem:[#allocation3 + $0x108] sm:$0xff]
    %v4378 = vld [vmem:[#allocation3 + $0x110] sm:$0xff]
    %v4379 = vld [vmem:[#allocation3 + $0x118] sm:$0xff]
    %v4380 = vld [vmem:[#allocation3 + $0x120] sm:$0xff]
    %v4381 = vld [vmem:[#allocation3 + $0x128] sm:$0xff]
    %v4382 = vld [vmem:[#allocation3 + $0x130] sm:$0xff]
    %v4383 = vld [vmem:[#allocation3 + $0x138] sm:$0xff]
    %v4384 = vld [vmem:[#allocation3 + $0x140] sm:$0xff]
    %v4385 = vld [vmem:[#allocation3 + $0x148] sm:$0xff]
    %v4386 = vld [vmem:[#allocation3 + $0x150] sm:$0xff]
    %v4387 = vld [vmem:[#allocation3 + $0x158] sm:$0xff]
    %v4388 = vld [vmem:[#allocation3 + $0x160] sm:$0xff]
    %v4389 = vld [vmem:[#allocation3 + $0x168] sm:$0xff]
    %v4390 = vld [vmem:[#allocation3 + $0x170] sm:$0xff]
    %v4391 = vld [vmem:[#allocation3 + $0x178] sm:$0xff]
    %v4392 = vld [vmem:[#allocation3 + $0x180] sm:$0xff]
    %v4393 = vld [vmem:[#allocation3 + $0x188] sm:$0xff]
    %v4394 = vld [vmem:[#allocation3 + $0x190] sm:$0xff]
    %v4395 = vld [vmem:[#allocation3 + $0x198] sm:$0xff]
    %v4396 = vld [vmem:[#allocation3 + $0x1a0] sm:$0xff]
    %v4397 = vld [vmem:[#allocation3 + $0x1a8] sm:$0xff]
    %v4398 = vld [vmem:[#allocation3 + $0x1b0] sm:$0xff]
    %v4399 = vld [vmem:[#allocation3 + $0x1b8] sm:$0xff]
    %v4400 = vld [vmem:[#allocation3 + $0x1c0] sm:$0xff]
    %v4401 = vld [vmem:[#allocation3 + $0x1c8] sm:$0xff]
    %v4402 = vld [vmem:[#allocation3 + $0x1d0] sm:$0xff]
    %v4403 = vld [vmem:[#allocation3 + $0x1d8] sm:$0xff]
    %v4404 = vld [vmem:[#allocation3 + $0x1e0] sm:$0xff]
    %v4405 = vld [vmem:[#allocation3 + $0x1e8] sm:$0xff]
    %v4406 = vld [vmem:[#allocation3 + $0x1f0] sm:$0xff]
    %v4407 = vld [vmem:[#allocation3 + $0x1f8] sm:$0xff]
    %4408 = vmatprep.subr.bf16.mxu0 %v4345
    %4409 = vmatpush1.bf16.msra.mxu0 %v4344
    %4410 = vmatprep.subr.bf16.mxu0 %v4349
    %4411 = vmatpush1.bf16.msra.mxu0 %v4348
    %4412 = vmatprep.subr.bf16.mxu0 %v4353
    %4413 = vmatpush1.bf16.msra.mxu0 %v4352
    %4414 = vmatprep.subr.bf16.mxu0 %v4357
    %4415 = vmatpush1.bf16.msra.mxu0 %v4356
    %4416 = vmatprep.subr.bf16.mxu0 %v4361
    %4417 = vmatpush1.bf16.msra.mxu0 %v4360
    %4418 = vmatprep.subr.bf16.mxu0 %v4365
    %4419 = vmatpush1.bf16.msra.mxu0 %v4364
    %4420 = vmatprep.subr.bf16.mxu0 %v4369
    %4421 = vmatpush1.bf16.msra.mxu0 %v4368
    %4422 = vmatprep.subr.bf16.mxu0 %v4373
    %4423 = vmatpush1.bf16.msra.mxu0 %v4372
    %4424 = vmatprep.subr.bf16.mxu0 %v4377
    %4425 = vmatpush1.bf16.msra.mxu0 %v4376
    %4426 = vmatprep.subr.bf16.mxu0 %v4381
    %4427 = vmatpush1.bf16.msra.mxu0 %v4380
    %4428 = vmatprep.subr.bf16.mxu0 %v4385
    %4429 = vmatpush1.bf16.msra.mxu0 %v4384
    %4430 = vmatprep.subr.bf16.mxu0 %v4389
    %4431 = vmatpush1.bf16.msra.mxu0 %v4388
    %4432 = vmatprep.subr.bf16.mxu0 %v4393
    %4433 = vmatpush1.bf16.msra.mxu0 %v4392
    %4434 = vmatprep.subr.bf16.mxu0 %v4397
    %4435 = vmatpush1.bf16.msra.mxu0 %v4396
    %4436 = vmatprep.subr.bf16.mxu0 %v4401
    %4437 = vmatpush1.bf16.msra.mxu0 %v4400
    %4438 = vmatprep.subr.bf16.mxu0 %v4405
    %4439 = vmatpush1.bf16.msra.mxu0 %v4404
    %4440 = vmatprep.mubr.bf16.mxu0 %v3826
    %4441 = vmatmul.mubr.bf16.gmra.mrb[0].mxu0 %v4343
    %v4442 = vpop.f32.mrb[0].mxu0
    %v4443 = vadd.f32 %v195, %v4442
    %v4444 = vpop.f32.mrb[0].mxu0
    %v4445 = vadd.f32 %v199, %v4444
    %v4446 = vpop.f32.mrb[0].mxu0
    %v4447 = vpop.f32.mrb[0].mxu0
    %4448 = vdwg.mxu0
    %4449 = vmatprep.subr.bf16.mxu0 %v4347
    %4450 = vmatpush1.bf16.msra.mxu0 %v4346
    %4451 = vmatprep.subr.bf16.mxu0 %v4351
    %4452 = vmatpush1.bf16.msra.mxu0 %v4350
    %4453 = vmatprep.subr.bf16.mxu0 %v4355
    %4454 = vmatpush1.bf16.msra.mxu0 %v4354
    %4455 = vmatprep.subr.bf16.mxu0 %v4359
    %4456 = vmatpush1.bf16.msra.mxu0 %v4358
    %4457 = vmatprep.subr.bf16.mxu0 %v4363
    %4458 = vmatpush1.bf16.msra.mxu0 %v4362
    %4459 = vmatprep.subr.bf16.mxu0 %v4367
    %4460 = vmatpush1.bf16.msra.mxu0 %v4366
    %4461 = vmatprep.subr.bf16.mxu0 %v4371
    %4462 = vmatpush1.bf16.msra.mxu0 %v4370
    %4463 = vmatprep.subr.bf16.mxu0 %v4375
    %4464 = vmatpush1.bf16.msra.mxu0 %v4374
    %4465 = vmatprep.subr.bf16.mxu0 %v4379
    %4466 = vmatpush1.bf16.msra.mxu0 %v4378
    %4467 = vmatprep.subr.bf16.mxu0 %v4383
    %4468 = vmatpush1.bf16.msra.mxu0 %v4382
    %4469 = vmatprep.subr.bf16.mxu0 %v4387
    %4470 = vmatpush1.bf16.msra.mxu0 %v4386
    %4471 = vmatprep.subr.bf16.mxu0 %v4391
    %4472 = vmatpush1.bf16.msra.mxu0 %v4390
    %4473 = vmatprep.subr.bf16.mxu0 %v4395
    %4474 = vmatpush1.bf16.msra.mxu0 %v4394
    %4475 = vmatprep.subr.bf16.mxu0 %v4399
    %4476 = vmatpush1.bf16.msra.mxu0 %v4398
    %4477 = vmatprep.subr.bf16.mxu0 %v4403
    %4478 = vmatpush1.bf16.msra.mxu0 %v4402
    %4479 = vmatprep.subr.bf16.mxu0 %v4407
    %4480 = vmatpush1.bf16.msra.mxu0 %v4406
    %4481 = vmatprep.mubr.bf16.mxu0 %v3826
    %4482 = vmatmul.mubr.bf16.gmra.mrb[0].mxu0 %v4343
    %v4483 = vpop.f32.mrb[0].mxu0
    %v4484 = vadd.f32 %v203, %v4483
    %v4485 = vpop.f32.mrb[0].mxu0
    %v4486 = vadd.f32 %v207, %v4485
    %v4487 = vpop.f32.mrb[0].mxu0
    %v4488 = vpop.f32.mrb[0].mxu0
    %4489 = vdwg.mxu0
    %v4490 = vmul.f32 %v4443, 0.5
    %v4491 = vtanh.pop %v4490
    %v4492 = vmul.f32 %v4491, 0.5
    %v4493 = vadd.f32 %v4492, 0.5
    %v4494 = vmul.f32 %v4445, 0.5
    %v4495 = vtanh.pop %v4494
    %v4496 = vmul.f32 %v4495, 0.5
    %v4497 = vadd.f32 %v4496, 0.5
    %v4498 = vtanh.pop %v4484
    %v4499 = vmul.f32 %v4486, 0.5
    %v4500 = vtanh.pop %v4499
    %v4501 = vmul.f32 %v4500, 0.5
    %v4502 = vadd.f32 %v4501, 0.5
    %v4503 = vmul.f32 %v4497, %v3823
    %v4504 = vmul.f32 %v4493, %v4498
    %v4505 = vadd.f32 %v4503, %v4504
    %v4506 = vtanh.pop %v4505
    %v4507 = vmul.f32 %v4502, %v4506
    %v4508 = vpack.c.bf16 %v4507, %v4507
    %v4509 = vld [vmem:[#allocation4] sm:$0xff]
    %v4510 = vld [vmem:[#allocation4 + $0x8] sm:$0xff]
    %v4511 = vld [vmem:[#allocation4 + $0x10] sm:$0xff]
    %v4512 = vld [vmem:[#allocation4 + $0x18] sm:$0xff]
    %v4513 = vld [vmem:[#allocation4 + $0x20] sm:$0xff]
    %v4514 = vld [vmem:[#allocation4 + $0x28] sm:$0xff]
    %v4515 = vld [vmem:[#allocation4 + $0x30] sm:$0xff]
    %v4516 = vld [vmem:[#allocation4 + $0x38] sm:$0xff]
    %v4517 = vld [vmem:[#allocation4 + $0x40] sm:$0xff]
    %v4518 = vld [vmem:[#allocation4 + $0x48] sm:$0xff]
    %v4519 = vld [vmem:[#allocation4 + $0x50] sm:$0xff]
    %v4520 = vld [vmem:[#allocation4 + $0x58] sm:$0xff]
    %v4521 = vld [vmem:[#allocation4 + $0x60] sm:$0xff]
    %v4522 = vld [vmem:[#allocation4 + $0x68] sm:$0xff]
    %v4523 = vld [vmem:[#allocation4 + $0x70] sm:$0xff]
    %v4524 = vld [vmem:[#allocation4 + $0x78] sm:$0xff]
    %v4525 = vld [vmem:[#allocation4 + $0x80] sm:$0xff]
    %v4526 = vld [vmem:[#allocation4 + $0x88] sm:$0xff]
    %v4527 = vld [vmem:[#allocation4 + $0x90] sm:$0xff]
    %v4528 = vld [vmem:[#allocation4 + $0x98] sm:$0xff]
    %v4529 = vld [vmem:[#allocation4 + $0xa0] sm:$0xff]
    %v4530 = vld [vmem:[#allocation4 + $0xa8] sm:$0xff]
    %v4531 = vld [vmem:[#allocation4 + $0xb0] sm:$0xff]
    %v4532 = vld [vmem:[#allocation4 + $0xb8] sm:$0xff]
    %v4533 = vld [vmem:[#allocation4 + $0xc0] sm:$0xff]
    %v4534 = vld [vmem:[#allocation4 + $0xc8] sm:$0xff]
    %v4535 = vld [vmem:[#allocation4 + $0xd0] sm:$0xff]
    %v4536 = vld [vmem:[#allocation4 + $0xd8] sm:$0xff]
    %v4537 = vld [vmem:[#allocation4 + $0xe0] sm:$0xff]
    %v4538 = vld [vmem:[#allocation4 + $0xe8] sm:$0xff]
    %v4539 = vld [vmem:[#allocation4 + $0xf0] sm:$0xff]
    %v4540 = vld [vmem:[#allocation4 + $0xf8] sm:$0xff]
    %v4541 = vld [vmem:[#allocation4 + $0x100] sm:$0xff]
    %v4542 = vld [vmem:[#allocation4 + $0x108] sm:$0xff]
    %v4543 = vld [vmem:[#allocation4 + $0x110] sm:$0xff]
    %v4544 = vld [vmem:[#allocation4 + $0x118] sm:$0xff]
    %v4545 = vld [vmem:[#allocation4 + $0x120] sm:$0xff]
    %v4546 = vld [vmem:[#allocation4 + $0x128] sm:$0xff]
    %v4547 = vld [vmem:[#allocation4 + $0x130] sm:$0xff]
    %v4548 = vld [vmem:[#allocation4 + $0x138] sm:$0xff]
    %v4549 = vld [vmem:[#allocation4 + $0x140] sm:$0xff]
    %v4550 = vld [vmem:[#allocation4 + $0x148] sm:$0xff]
    %v4551 = vld [vmem:[#allocation4 + $0x150] sm:$0xff]
    %v4552 = vld [vmem:[#allocation4 + $0x158] sm:$0xff]
    %v4553 = vld [vmem:[#allocation4 + $0x160] sm:$0xff]
    %v4554 = vld [vmem:[#allocation4 + $0x168] sm:$0xff]
    %v4555 = vld [vmem:[#allocation4 + $0x170] sm:$0xff]
    %v4556 = vld [vmem:[#allocation4 + $0x178] sm:$0xff]
    %v4557 = vld [vmem:[#allocation4 + $0x180] sm:$0xff]
    %v4558 = vld [vmem:[#allocation4 + $0x188] sm:$0xff]
    %v4559 = vld [vmem:[#allocation4 + $0x190] sm:$0xff]
    %v4560 = vld [vmem:[#allocation4 + $0x198] sm:$0xff]
    %v4561 = vld [vmem:[#allocation4 + $0x1a0] sm:$0xff]
    %v4562 = vld [vmem:[#allocation4 + $0x1a8] sm:$0xff]
    %v4563 = vld [vmem:[#allocation4 + $0x1b0] sm:$0xff]
    %v4564 = vld [vmem:[#allocation4 + $0x1b8] sm:$0xff]
    %v4565 = vld [vmem:[#allocation4 + $0x1c0] sm:$0xff]
    %v4566 = vld [vmem:[#allocation4 + $0x1c8] sm:$0xff]
    %v4567 = vld [vmem:[#allocation4 + $0x1d0] sm:$0xff]
    %v4568 = vld [vmem:[#allocation4 + $0x1d8] sm:$0xff]
    %v4569 = vld [vmem:[#allocation4 + $0x1e0] sm:$0xff]
    %v4570 = vld [vmem:[#allocation4 + $0x1e8] sm:$0xff]
    %v4571 = vld [vmem:[#allocation4 + $0x1f0] sm:$0xff]
    %v4572 = vld [vmem:[#allocation4 + $0x1f8] sm:$0xff]
    %4573 = vmatprep.subr.bf16.mxu0 %v4510
    %4574 = vmatpush1.bf16.msra.mxu0 %v4509
    %4575 = vmatprep.subr.bf16.mxu0 %v4514
    %4576 = vmatpush1.bf16.msra.mxu0 %v4513
    %4577 = vmatprep.subr.bf16.mxu0 %v4518
    %4578 = vmatpush1.bf16.msra.mxu0 %v4517
    %4579 = vmatprep.subr.bf16.mxu0 %v4522
    %4580 = vmatpush1.bf16.msra.mxu0 %v4521
    %4581 = vmatprep.subr.bf16.mxu0 %v4526
    %4582 = vmatpush1.bf16.msra.mxu0 %v4525
    %4583 = vmatprep.subr.bf16.mxu0 %v4530
    %4584 = vmatpush1.bf16.msra.mxu0 %v4529
    %4585 = vmatprep.subr.bf16.mxu0 %v4534
    %4586 = vmatpush1.bf16.msra.mxu0 %v4533
    %4587 = vmatprep.subr.bf16.mxu0 %v4538
    %4588 = vmatpush1.bf16.msra.mxu0 %v4537
    %4589 = vmatprep.subr.bf16.mxu0 %v4542
    %4590 = vmatpush1.bf16.msra.mxu0 %v4541
    %4591 = vmatprep.subr.bf16.mxu0 %v4546
    %4592 = vmatpush1.bf16.msra.mxu0 %v4545
    %4593 = vmatprep.subr.bf16.mxu0 %v4550
    %4594 = vmatpush1.bf16.msra.mxu0 %v4549
    %4595 = vmatprep.subr.bf16.mxu0 %v4554
    %4596 = vmatpush1.bf16.msra.mxu0 %v4553
    %4597 = vmatprep.subr.bf16.mxu0 %v4558
    %4598 = vmatpush1.bf16.msra.mxu0 %v4557
    %4599 = vmatprep.subr.bf16.mxu0 %v4562
    %4600 = vmatpush1.bf16.msra.mxu0 %v4561
    %4601 = vmatprep.subr.bf16.mxu0 %v4566
    %4602 = vmatpush1.bf16.msra.mxu0 %v4565
    %4603 = vmatprep.subr.bf16.mxu0 %v4570
    %4604 = vmatpush1.bf16.msra.mxu0 %v4569
    %4605 = vmatprep.mubr.bf16.mxu0 %v3991
    %4606 = vmatmul.mubr.bf16.gmra.mrb[0].mxu0 %v4508
    %v4607 = vpop.f32.mrb[0].mxu0
    %v4608 = vadd.f32 %v217, %v4607
    %v4609 = vpop.f32.mrb[0].mxu0
    %v4610 = vadd.f32 %v221, %v4609
    %v4611 = vpop.f32.mrb[0].mxu0
    %v4612 = vpop.f32.mrb[0].mxu0
    %4613 = vdwg.mxu0
    %4614 = vmatprep.subr.bf16.mxu0 %v4512
    %4615 = vmatpush1.bf16.msra.mxu0 %v4511
    %4616 = vmatprep.subr.bf16.mxu0 %v4516
    %4617 = vmatpush1.bf16.msra.mxu0 %v4515
    %4618 = vmatprep.subr.bf16.mxu0 %v4520
    %4619 = vmatpush1.bf16.msra.mxu0 %v4519
    %4620 = vmatprep.subr.bf16.mxu0 %v4524
    %4621 = vmatpush1.bf16.msra.mxu0 %v4523
    %4622 = vmatprep.subr.bf16.mxu0 %v4528
    %4623 = vmatpush1.bf16.msra.mxu0 %v4527
    %4624 = vmatprep.subr.bf16.mxu0 %v4532
    %4625 = vmatpush1.bf16.msra.mxu0 %v4531
    %4626 = vmatprep.subr.bf16.mxu0 %v4536
    %4627 = vmatpush1.bf16.msra.mxu0 %v4535
    %4628 = vmatprep.subr.bf16.mxu0 %v4540
    %4629 = vmatpush1.bf16.msra.mxu0 %v4539
    %4630 = vmatprep.subr.bf16.mxu0 %v4544
    %4631 = vmatpush1.bf16.msra.mxu0 %v4543
    %4632 = vmatprep.subr.bf16.mxu0 %v4548
    %4633 = vmatpush1.bf16.msra.mxu0 %v4547
    %4634 = vmatprep.subr.bf16.mxu0 %v4552
    %4635 = vmatpush1.bf16.msra.mxu0 %v4551
    %4636 = vmatprep.subr.bf16.mxu0 %v4556
    %4637 = vmatpush1.bf16.msra.mxu0 %v4555
    %4638 = vmatprep.subr.bf16.mxu0 %v4560
    %4639 = vmatpush1.bf16.msra.mxu0 %v4559
    %4640 = vmatprep.subr.bf16.mxu0 %v4564
    %4641 = vmatpush1.bf16.msra.mxu0 %v4563
    %4642 = vmatprep.subr.bf16.mxu0 %v4568
    %4643 = vmatpush1.bf16.msra.mxu0 %v4567
    %4644 = vmatprep.subr.bf16.mxu0 %v4572
    %4645 = vmatpush1.bf16.msra.mxu0 %v4571
    %4646 = vmatprep.mubr.bf16.mxu0 %v3991
    %4647 = vmatmul.mubr.bf16.gmra.mrb[0].mxu0 %v4508
    %v4648 = vpop.f32.mrb[0].mxu0
    %v4649 = vadd.f32 %v225, %v4648
    %v4650 = vpop.f32.mrb[0].mxu0
    %v4651 = vadd.f32 %v229, %v4650
    %v4652 = vpop.f32.mrb[0].mxu0
    %v4653 = vpop.f32.mrb[0].mxu0
    %4654 = vdwg.mxu0
    %v4655 = vmul.f32 %v4608, 0.5
    %v4656 = vtanh.pop %v4655
    %v4657 = vmul.f32 %v4656, 0.5
    %v4658 = vadd.f32 %v4657, 0.5
    %v4659 = vmul.f32 %v4610, 0.5
    %v4660 = vtanh.pop %v4659
    %v4661 = vmul.f32 %v4660, 0.5
    %v4662 = vadd.f32 %v4661, 0.5
    %v4663 = vtanh.pop %v4649
    %v4664 = vmul.f32 %v4651, 0.5
    %v4665 = vtanh.pop %v4664
    %v4666 = vmul.f32 %v4665, 0.5
    %v4667 = vadd.f32 %v4666, 0.5
    %v4668 = vmul.f32 %v4662, %v3988
    %v4669 = vmul.f32 %v4658, %v4663
    %v4670 = vadd.f32 %v4668, %v4669
    %v4671 = vtanh.pop %v4670
    %v4672 = vmul.f32 %v4667, %v4671
    %v4673 = vpack.c.bf16 %v4672, %v4672
    %v4674 = vld [vmem:[#allocation5] sm:$0xff]
    %v4675 = vld [vmem:[#allocation5 + $0x8] sm:$0xff]
    %v4676 = vld [vmem:[#allocation5 + $0x10] sm:$0xff]
    %v4677 = vld [vmem:[#allocation5 + $0x18] sm:$0xff]
    %v4678 = vld [vmem:[#allocation5 + $0x20] sm:$0xff]
    %v4679 = vld [vmem:[#allocation5 + $0x28] sm:$0xff]
    %v4680 = vld [vmem:[#allocation5 + $0x30] sm:$0xff]
    %v4681 = vld [vmem:[#allocation5 + $0x38] sm:$0xff]
    %4682 = vmatprep.subr.bf16.mxu0 0
    %4683 = vmatpush1.bf16.msra.mxu0 %v4674
    %4684 = vmatprep.subr.bf16.mxu0 0
    %4685 = vmatpush1.bf16.msra.mxu0 %v4675
    %4686 = vmatprep.subr.bf16.mxu0 0
    %4687 = vmatpush1.bf16.msra.mxu0 %v4676
    %4688 = vmatprep.subr.bf16.mxu0 0
    %4689 = vmatpush1.bf16.msra.mxu0 %v4677
    %4690 = vmatprep.subr.bf16.mxu0 0
    %4691 = vmatpush1.bf16.msra.mxu0 %v4678
    %4692 = vmatprep.subr.bf16.mxu0 0
    %4693 = vmatpush1.bf16.msra.mxu0 %v4679
    %4694 = vmatprep.subr.bf16.mxu0 0
    %4695 = vmatpush1.bf16.msra.mxu0 %v4680
    %4696 = vmatprep.subr.bf16.mxu0 0
    %4697 = vmatpush1.bf16.msra.mxu0 %v4681
    %4698 = vmatprep.subr.bf16.mxu0 0
    %4699 = vmatpush1.bf16.msra.mxu0 0
    %4700 = vmatprep.subr.bf16.mxu0 0
    %4701 = vmatpush1.bf16.msra.mxu0 0
    %4702 = vmatprep.subr.bf16.mxu0 0
    %4703 = vmatpush1.bf16.msra.mxu0 0
    %4704 = vmatprep.subr.bf16.mxu0 0
    %4705 = vmatpush1.bf16.msra.mxu0 0
    %4706 = vmatprep.subr.bf16.mxu0 0
    %4707 = vmatpush1.bf16.msra.mxu0 0
    %4708 = vmatprep.subr.bf16.mxu0 0
    %4709 = vmatpush1.bf16.msra.mxu0 0
    %4710 = vmatprep.subr.bf16.mxu0 0
    %4711 = vmatpush1.bf16.msra.mxu0 0
    %4712 = vmatprep.subr.bf16.mxu0 0
    %4713 = vmatpush1.bf16.msra.mxu0 0
    %4714 = vmatprep.mubr.bf16.mxu0 0
    %4715 = vmatmul.mubr.bf16.gmra.mrb[0].mxu0 %v4673
    %v4716 = vpop.f32.mrb[0].mxu0
    %v4717 = vadd.f32 %v239, %v4716
    %v4718 = vpop.f32.mrb[0].mxu0
    %v4719 = vpop.f32.mrb[0].mxu0
    %v4720 = vpop.f32.mrb[0].mxu0
    %4721 = vdwg.mxu0
    %s4722 = scalar_lea.vmem %s9, 40
    %4723 = vst [vmem:[%s4722] sm:$0xff] %v4717
    %s4724 = scalar_lea.vmem [#allocation2], 192
    %v4725 = vld [vmem:[%s4724] sm:$0xff]
    %v4726 = vld [vmem:[%s4724 + $0x8] sm:$0xff]
    %v4727 = vld [vmem:[%s4724 + $0x10] sm:$0xff]
    %v4728 = vld [vmem:[%s4724 + $0x18] sm:$0xff]
    %v4729 = vld [vmem:[#allocation7 + $0x100] sm:$0xff]
    %v4730 = vld [vmem:[#allocation7 + $0x108] sm:$0xff]
    %v4731 = vld [vmem:[#allocation7 + $0x110] sm:$0xff]
    %v4732 = vld [vmem:[#allocation7 + $0x118] sm:$0xff]
    %v4733 = vld [vmem:[#allocation7 + $0x120] sm:$0xff]
    %v4734 = vld [vmem:[#allocation7 + $0x128] sm:$0xff]
    %v4735 = vld [vmem:[#allocation7 + $0x130] sm:$0xff]
    %v4736 = vld [vmem:[#allocation7 + $0x138] sm:$0xff]
    %v4737 = vld [vmem:[#allocation7 + $0x140] sm:$0xff]
    %v4738 = vld [vmem:[#allocation7 + $0x148] sm:$0xff]
    %v4739 = vld [vmem:[#allocation7 + $0x150] sm:$0xff]
    %v4740 = vld [vmem:[#allocation7 + $0x158] sm:$0xff]
    %v4741 = vld [vmem:[#allocation7 + $0x160] sm:$0xff]
    %v4742 = vld [vmem:[#allocation7 + $0x168] sm:$0xff]
    %v4743 = vld [vmem:[#allocation7 + $0x170] sm:$0xff]
    %v4744 = vld [vmem:[#allocation7 + $0x178] sm:$0xff]
    %v4745 = vld [vmem:[#allocation7 + $0x180] sm:$0xff]
    %v4746 = vld [vmem:[#allocation7 + $0x188] sm:$0xff]
    %v4747 = vld [vmem:[#allocation7 + $0x190] sm:$0xff]
    %v4748 = vld [vmem:[#allocation7 + $0x198] sm:$0xff]
    %v4749 = vld [vmem:[#allocation7 + $0x1a0] sm:$0xff]
    %v4750 = vld [vmem:[#allocation7 + $0x1a8] sm:$0xff]
    %v4751 = vld [vmem:[#allocation7 + $0x1b0] sm:$0xff]
    %v4752 = vld [vmem:[#allocation7 + $0x1b8] sm:$0xff]
    %v4753 = vld [vmem:[#allocation7 + $0x1c0] sm:$0xff]
    %v4754 = vld [vmem:[#allocation7 + $0x1c8] sm:$0xff]
    %v4755 = vld [vmem:[#allocation7 + $0x1d0] sm:$0xff]
    %v4756 = vld [vmem:[#allocation7 + $0x1d8] sm:$0xff]
    %v4757 = vld [vmem:[#allocation7 + $0x1e0] sm:$0xff]
    %v4758 = vld [vmem:[#allocation7 + $0x1e8] sm:$0xff]
    %v4759 = vld [vmem:[#allocation7 + $0x1f0] sm:$0xff]
    %v4760 = vld [vmem:[#allocation7 + $0x1f8] sm:$0xff]
    %v4793 = vunpack.c.l.b16 %v4729
    %v4794 = vunpack.c.h.b16 %v4729
    %v4795 = vunpack.c.l.b16 %v4730
    %v4796 = vunpack.c.h.b16 %v4730
    %v4797 = vunpack.c.l.b16 %v4731
    %v4798 = vunpack.c.h.b16 %v4731
    %v4799 = vunpack.c.l.b16 %v4732
    %v4800 = vunpack.c.h.b16 %v4732
    %v4801 = vunpack.c.l.b16 %v4733
    %v4802 = vunpack.c.h.b16 %v4733
    %v4803 = vunpack.c.l.b16 %v4734
    %v4804 = vunpack.c.h.b16 %v4734
    %v4805 = vunpack.c.l.b16 %v4735
    %v4806 = vunpack.c.h.b16 %v4735
    %v4807 = vunpack.c.l.b16 %v4736
    %v4808 = vunpack.c.h.b16 %v4736
    %v4809 = vunpack.c.l.b16 %v4737
    %v4810 = vunpack.c.h.b16 %v4737
    %v4811 = vunpack.c.l.b16 %v4738
    %v4812 = vunpack.c.h.b16 %v4738
    %v4813 = vunpack.c.l.b16 %v4739
    %v4814 = vunpack.c.h.b16 %v4739
    %v4815 = vunpack.c.l.b16 %v4740
    %v4816 = vunpack.c.h.b16 %v4740
    %v4817 = vunpack.c.l.b16 %v4741
    %v4818 = vunpack.c.h.b16 %v4741
    %v4819 = vunpack.c.l.b16 %v4742
    %v4820 = vunpack.c.h.b16 %v4742
    %v4821 = vunpack.c.l.b16 %v4743
    %v4822 = vunpack.c.h.b16 %v4743
    %v4823 = vunpack.c.l.b16 %v4744
    %v4824 = vunpack.c.h.b16 %v4744
    %v4825 = vunpack.c.l.b16 %v4745
    %v4826 = vunpack.c.h.b16 %v4745
    %v4827 = vunpack.c.l.b16 %v4746
    %v4828 = vunpack.c.h.b16 %v4746
    %v4829 = vunpack.c.l.b16 %v4747
    %v4830 = vunpack.c.h.b16 %v4747
    %v4831 = vunpack.c.l.b16 %v4748
    %v4832 = vunpack.c.h.b16 %v4748
    %v4833 = vunpack.c.l.b16 %v4749
    %v4834 = vunpack.c.h.b16 %v4749
    %v4835 = vunpack.c.l.b16 %v4750
    %v4836 = vunpack.c.h.b16 %v4750
    %v4837 = vunpack.c.l.b16 %v4751
    %v4838 = vunpack.c.h.b16 %v4751
    %v4839 = vunpack.c.l.b16 %v4752
    %v4840 = vunpack.c.h.b16 %v4752
    %v4841 = vunpack.c.l.b16 %v4753
    %v4842 = vunpack.c.h.b16 %v4753
    %v4843 = vunpack.c.l.b16 %v4754
    %v4844 = vunpack.c.h.b16 %v4754
    %v4845 = vunpack.c.l.b16 %v4755
    %v4846 = vunpack.c.h.b16 %v4755
    %v4847 = vunpack.c.l.b16 %v4756
    %v4848 = vunpack.c.h.b16 %v4756
    %v4849 = vunpack.c.l.b16 %v4757
    %v4850 = vunpack.c.h.b16 %v4757
    %v4851 = vunpack.c.l.b16 %v4758
    %v4852 = vunpack.c.h.b16 %v4758
    %v4853 = vunpack.c.l.b16 %v4759
    %v4854 = vunpack.c.h.b16 %v4759
    %v4855 = vunpack.c.l.b16 %v4760
    %v4856 = vunpack.c.h.b16 %v4760
    %v4857 = vpack.c.b16 %v4797, %v4793
    %v4858 = vpack.c.b16 %v4798, %v4794
    %v4859 = vpack.c.b16 %v4799, %v4795
    %v4860 = vpack.c.b16 %v4800, %v4796
    %v4861 = vpack.c.b16 %v4805, %v4801
    %v4862 = vpack.c.b16 %v4806, %v4802
    %v4863 = vpack.c.b16 %v4807, %v4803
    %v4864 = vpack.c.b16 %v4808, %v4804
    %v4865 = vpack.c.b16 %v4813, %v4809
    %v4866 = vpack.c.b16 %v4814, %v4810
    %v4867 = vpack.c.b16 %v4815, %v4811
    %v4868 = vpack.c.b16 %v4816, %v4812
    %v4869 = vpack.c.b16 %v4821, %v4817
    %v4870 = vpack.c.b16 %v4822, %v4818
    %v4871 = vpack.c.b16 %v4823, %v4819
    %v4872 = vpack.c.b16 %v4824, %v4820
    %v4873 = vpack.c.b16 %v4829, %v4825
    %v4874 = vpack.c.b16 %v4830, %v4826
    %v4875 = vpack.c.b16 %v4831, %v4827
    %v4876 = vpack.c.b16 %v4832, %v4828
    %v4877 = vpack.c.b16 %v4837, %v4833
    %v4878 = vpack.c.b16 %v4838, %v4834
    %v4879 = vpack.c.b16 %v4839, %v4835
    %v4880 = vpack.c.b16 %v4840, %v4836
    %v4881 = vpack.c.b16 %v4845, %v4841
    %v4882 = vpack.c.b16 %v4846, %v4842
    %v4883 = vpack.c.b16 %v4847, %v4843
    %v4884 = vpack.c.b16 %v4848, %v4844
    %v4885 = vpack.c.b16 %v4853, %v4849
    %v4886 = vpack.c.b16 %v4854, %v4850
    %v4887 = vpack.c.b16 %v4855, %v4851
    %v4888 = vpack.c.b16 %v4856, %v4852
    %4921 = vmatprep.subr.bf16.mxu0 %v4858
    %4922 = vmatpush1.bf16.msra.mxu0 %v4857
    %4923 = vmatprep.subr.bf16.mxu0 %v4862
    %4924 = vmatpush1.bf16.msra.mxu0 %v4861
    %4925 = vmatprep.subr.bf16.mxu0 %v4866
    %4926 = vmatpush1.bf16.msra.mxu0 %v4865
    %4927 = vmatprep.subr.bf16.mxu0 %v4870
    %4928 = vmatpush1.bf16.msra.mxu0 %v4869
    %4929 = vmatprep.subr.bf16.mxu0 %v4874
    %4930 = vmatpush1.bf16.msra.mxu0 %v4873
    %4931 = vmatprep.subr.bf16.mxu0 %v4878
    %4932 = vmatpush1.bf16.msra.mxu0 %v4877
    %4933 = vmatprep.subr.bf16.mxu0 %v4882
    %4934 = vmatpush1.bf16.msra.mxu0 %v4881
    %4935 = vmatprep.subr.bf16.mxu0 %v4886
    %4936 = vmatpush1.bf16.msra.mxu0 %v4885
    %4937 = vmatprep.subr.bf16.mxu0 0
    %4938 = vmatpush1.bf16.msra.mxu0 0
    %4939 = vmatprep.subr.bf16.mxu0 0
    %4940 = vmatpush1.bf16.msra.mxu0 0
    %4941 = vmatprep.subr.bf16.mxu0 0
    %4942 = vmatpush1.bf16.msra.mxu0 0
    %4943 = vmatprep.subr.bf16.mxu0 0
    %4944 = vmatpush1.bf16.msra.mxu0 0
    %4945 = vmatprep.subr.bf16.mxu0 0
    %4946 = vmatpush1.bf16.msra.mxu0 0
    %4947 = vmatprep.subr.bf16.mxu0 0
    %4948 = vmatpush1.bf16.msra.mxu0 0
    %4949 = vmatprep.subr.bf16.mxu0 0
    %4950 = vmatpush1.bf16.msra.mxu0 0
    %4951 = vmatprep.subr.bf16.mxu0 0
    %4952 = vmatpush1.bf16.msra.mxu0 0
    %4953 = vmatprep.mubr.bf16.mxu0 0
    %4954 = vmatmul.mubr.bf16.gmra.mrb[0].mxu0 %v4343
    %v4955 = vpop.f32.mrb[0].mxu0
    %v4956 = vadd.f32 0.0, %v4955
    %v4957 = vpop.f32.mrb[0].mxu0
    %v4958 = vadd.f32 0.0, %v4957
    %v4959 = vpop.f32.mrb[0].mxu0
    %v4960 = vpop.f32.mrb[0].mxu0
    %4961 = vdwg.mxu0
    %4962 = vmatprep.subr.bf16.mxu0 %v4860
    %4963 = vmatpush1.bf16.msra.mxu0 %v4859
    %4964 = vmatprep.subr.bf16.mxu0 %v4864
    %4965 = vmatpush1.bf16.msra.mxu0 %v4863
    %4966 = vmatprep.subr.bf16.mxu0 %v4868
    %4967 = vmatpush1.bf16.msra.mxu0 %v4867
    %4968 = vmatprep.subr.bf16.mxu0 %v4872
    %4969 = vmatpush1.bf16.msra.mxu0 %v4871
    %4970 = vmatprep.subr.bf16.mxu0 %v4876
    %4971 = vmatpush1.bf16.msra.mxu0 %v4875
    %4972 = vmatprep.subr.bf16.mxu0 %v4880
    %4973 = vmatpush1.bf16.msra.mxu0 %v4879
    %4974 = vmatprep.subr.bf16.mxu0 %v4884
    %4975 = vmatpush1.bf16.msra.mxu0 %v4883
    %4976 = vmatprep.subr.bf16.mxu0 %v4888
    %4977 = vmatpush1.bf16.msra.mxu0 %v4887
    %4978 = vmatprep.subr.bf16.mxu0 0
    %4979 = vmatpush1.bf16.msra.mxu0 0
    %4980 = vmatprep.subr.bf16.mxu0 0
    %4981 = vmatpush1.bf16.msra.mxu0 0
    %4982 = vmatprep.subr.bf16.mxu0 0
    %4983 = vmatpush1.bf16.msra.mxu0 0
    %4984 = vmatprep.subr.bf16.mxu0 0
    %4985 = vmatpush1.bf16.msra.mxu0 0
    %4986 = vmatprep.subr.bf16.mxu0 0
    %4987 = vmatpush1.bf16.msra.mxu0 0
    %4988 = vmatprep.subr.bf16.mxu0 0
    %4989 = vmatpush1.bf16.msra.mxu0 0
    %4990 = vmatprep.subr.bf16.mxu0 0
    %4991 = vmatpush1.bf16.msra.mxu0 0
    %4992 = vmatprep.subr.bf16.mxu0 0
    %4993 = vmatpush1.bf16.msra.mxu0 0
    %4994 = vmatprep.mubr.bf16.mxu0 0
    %4995 = vmatmul.mubr.bf16.gmra.mrb[0].mxu0 %v4343
    %v4996 = vpop.f32.mrb[0].mxu0
    %v4997 = vadd.f32 0.0, %v4996
    %v4998 = vpop.f32.mrb[0].mxu0
    %v4999 = vadd.f32 0.0, %v4998
    %v5000 = vpop.f32.mrb[0].mxu0
    %v5001 = vpop.f32.mrb[0].mxu0
    %5002 = vdwg.mxu0
    %v5003 = vadd.f32 %v4725, %v4956
    %v5004 = vadd.f32 %v4726, %v4958
    %v5005 = vadd.f32 %v4727, %v4997
    %v5006 = vadd.f32 %v4728, %v4999
    %v5007 = vmul.f32 %v5003, 0.5
    %v5008 = vtanh.pop %v5007
    %v5009 = vmul.f32 %v5008, 0.5
    %v5010 = vadd.f32 %v5009, 0.5
    %v5011 = vmul.f32 %v5004, 0.5
    %v5012 = vtanh.pop %v5011
    %v5013 = vmul.f32 %v5012, 0.5
    %v5014 = vadd.f32 %v5013, 0.5
    %v5015 = vtanh.pop %v5005
    %v5016 = vmul.f32 %v5006, 0.5
    %v5017 = vtanh.pop %v5016
    %v5018 = vmul.f32 %v5017, 0.5
    %v5019 = vadd.f32 %v5018, 0.5
    %v5020 = vmul.f32 %v5014, %v4340
    %v5021 = vmul.f32 %v5010, %v5015
    %v5022 = vadd.f32 %v5020, %v5021
    %v5023 = vtanh.pop %v5022
    %v5024 = vmul.f32 %v5019, %v5023
    %v5025 = vpack.c.bf16 %v5024, %v5024
    %v5026 = vld [vmem:[#allocation3] sm:$0xff]
    %v5027 = vld [vmem:[#allocation3 + $0x8] sm:$0xff]
    %v5028 = vld [vmem:[#allocation3 + $0x10] sm:$0xff]
    %v5029 = vld [vmem:[#allocation3 + $0x18] sm:$0xff]
    %v5030 = vld [vmem:[#allocation3 + $0x20] sm:$0xff]
    %v5031 = vld [vmem:[#allocation3 + $0x28] sm:$0xff]
    %v5032 = vld [vmem:[#allocation3 + $0x30] sm:$0xff]
    %v5033 = vld [vmem:[#allocation3 + $0x38] sm:$0xff]
    %v5034 = vld [vmem:[#allocation3 + $0x40] sm:$0xff]
    %v5035 = vld [vmem:[#allocation3 + $0x48] sm:$0xff]
    %v5036 = vld [vmem:[#allocation3 + $0x50] sm:$0xff]
    %v5037 = vld [vmem:[#allocation3 + $0x58] sm:$0xff]
    %v5038 = vld [vmem:[#allocation3 + $0x60] sm:$0xff]
    %v5039 = vld [vmem:[#allocation3 + $0x68] sm:$0xff]
    %v5040 = vld [vmem:[#allocation3 + $0x70] sm:$0xff]
    %v5041 = vld [vmem:[#allocation3 + $0x78] sm:$0xff]
    %v5042 = vld [vmem:[#allocation3 + $0x80] sm:$0xff]
    %v5043 = vld [vmem:[#allocation3 + $0x88] sm:$0xff]
    %v5044 = vld [vmem:[#allocation3 + $0x90] sm:$0xff]
    %v5045 = vld [vmem:[#allocation3 + $0x98] sm:$0xff]
    %v5046 = vld [vmem:[#allocation3 + $0xa0] sm:$0xff]
    %v5047 = vld [vmem:[#allocation3 + $0xa8] sm:$0xff]
    %v5048 = vld [vmem:[#allocation3 + $0xb0] sm:$0xff]
    %v5049 = vld [vmem:[#allocation3 + $0xb8] sm:$0xff]
    %v5050 = vld [vmem:[#allocation3 + $0xc0] sm:$0xff]
    %v5051 = vld [vmem:[#allocation3 + $0xc8] sm:$0xff]
    %v5052 = vld [vmem:[#allocation3 + $0xd0] sm:$0xff]
    %v5053 = vld [vmem:[#allocation3 + $0xd8] sm:$0xff]
    %v5054 = vld [vmem:[#allocation3 + $0xe0] sm:$0xff]
    %v5055 = vld [vmem:[#allocation3 + $0xe8] sm:$0xff]
    %v5056 = vld [vmem:[#allocation3 + $0xf0] sm:$0xff]
    %v5057 = vld [vmem:[#allocation3 + $0xf8] sm:$0xff]
    %v5058 = vld [vmem:[#allocation3 + $0x100] sm:$0xff]
    %v5059 = vld [vmem:[#allocation3 + $0x108] sm:$0xff]
    %v5060 = vld [vmem:[#allocation3 + $0x110] sm:$0xff]
    %v5061 = vld [vmem:[#allocation3 + $0x118] sm:$0xff]
    %v5062 = vld [vmem:[#allocation3 + $0x120] sm:$0xff]
    %v5063 = vld [vmem:[#allocation3 + $0x128] sm:$0xff]
    %v5064 = vld [vmem:[#allocation3 + $0x130] sm:$0xff]
    %v5065 = vld [vmem:[#allocation3 + $0x138] sm:$0xff]
    %v5066 = vld [vmem:[#allocation3 + $0x140] sm:$0xff]
    %v5067 = vld [vmem:[#allocation3 + $0x148] sm:$0xff]
    %v5068 = vld [vmem:[#allocation3 + $0x150] sm:$0xff]
    %v5069 = vld [vmem:[#allocation3 + $0x158] sm:$0xff]
    %v5070 = vld [vmem:[#allocation3 + $0x160] sm:$0xff]
    %v5071 = vld [vmem:[#allocation3 + $0x168] sm:$0xff]
    %v5072 = vld [vmem:[#allocation3 + $0x170] sm:$0xff]
    %v5073 = vld [vmem:[#allocation3 + $0x178] sm:$0xff]
    %v5074 = vld [vmem:[#allocation3 + $0x180] sm:$0xff]
    %v5075 = vld [vmem:[#allocation3 + $0x188] sm:$0xff]
    %v5076 = vld [vmem:[#allocation3 + $0x190] sm:$0xff]
    %v5077 = vld [vmem:[#allocation3 + $0x198] sm:$0xff]
    %v5078 = vld [vmem:[#allocation3 + $0x1a0] sm:$0xff]
    %v5079 = vld [vmem:[#allocation3 + $0x1a8] sm:$0xff]
    %v5080 = vld [vmem:[#allocation3 + $0x1b0] sm:$0xff]
    %v5081 = vld [vmem:[#allocation3 + $0x1b8] sm:$0xff]
    %v5082 = vld [vmem:[#allocation3 + $0x1c0] sm:$0xff]
    %v5083 = vld [vmem:[#allocation3 + $0x1c8] sm:$0xff]
    %v5084 = vld [vmem:[#allocation3 + $0x1d0] sm:$0xff]
    %v5085 = vld [vmem:[#allocation3 + $0x1d8] sm:$0xff]
    %v5086 = vld [vmem:[#allocation3 + $0x1e0] sm:$0xff]
    %v5087 = vld [vmem:[#allocation3 + $0x1e8] sm:$0xff]
    %v5088 = vld [vmem:[#allocation3 + $0x1f0] sm:$0xff]
    %v5089 = vld [vmem:[#allocation3 + $0x1f8] sm:$0xff]
    %5090 = vmatprep.subr.bf16.mxu0 %v5027
    %5091 = vmatpush1.bf16.msra.mxu0 %v5026
    %5092 = vmatprep.subr.bf16.mxu0 %v5031
    %5093 = vmatpush1.bf16.msra.mxu0 %v5030
    %5094 = vmatprep.subr.bf16.mxu0 %v5035
    %5095 = vmatpush1.bf16.msra.mxu0 %v5034
    %5096 = vmatprep.subr.bf16.mxu0 %v5039
    %5097 = vmatpush1.bf16.msra.mxu0 %v5038
    %5098 = vmatprep.subr.bf16.mxu0 %v5043
    %5099 = vmatpush1.bf16.msra.mxu0 %v5042
    %5100 = vmatprep.subr.bf16.mxu0 %v5047
    %5101 = vmatpush1.bf16.msra.mxu0 %v5046
    %5102 = vmatprep.subr.bf16.mxu0 %v5051
    %5103 = vmatpush1.bf16.msra.mxu0 %v5050
    %5104 = vmatprep.subr.bf16.mxu0 %v5055
    %5105 = vmatpush1.bf16.msra.mxu0 %v5054
    %5106 = vmatprep.subr.bf16.mxu0 %v5059
    %5107 = vmatpush1.bf16.msra.mxu0 %v5058
    %5108 = vmatprep.subr.bf16.mxu0 %v5063
    %5109 = vmatpush1.bf16.msra.mxu0 %v5062
    %5110 = vmatprep.subr.bf16.mxu0 %v5067
    %5111 = vmatpush1.bf16.msra.mxu0 %v5066
    %5112 = vmatprep.subr.bf16.mxu0 %v5071
    %5113 = vmatpush1.bf16.msra.mxu0 %v5070
    %5114 = vmatprep.subr.bf16.mxu0 %v5075
    %5115 = vmatpush1.bf16.msra.mxu0 %v5074
    %5116 = vmatprep.subr.bf16.mxu0 %v5079
    %5117 = vmatpush1.bf16.msra.mxu0 %v5078
    %5118 = vmatprep.subr.bf16.mxu0 %v5083
    %5119 = vmatpush1.bf16.msra.mxu0 %v5082
    %5120 = vmatprep.subr.bf16.mxu0 %v5087
    %5121 = vmatpush1.bf16.msra.mxu0 %v5086
    %5122 = vmatprep.mubr.bf16.mxu0 %v4508
    %5123 = vmatmul.mubr.bf16.gmra.mrb[0].mxu0 %v5025
    %v5124 = vpop.f32.mrb[0].mxu0
    %v5125 = vadd.f32 %v195, %v5124
    %v5126 = vpop.f32.mrb[0].mxu0
    %v5127 = vadd.f32 %v199, %v5126
    %v5128 = vpop.f32.mrb[0].mxu0
    %v5129 = vpop.f32.mrb[0].mxu0
    %5130 = vdwg.mxu0
    %5131 = vmatprep.subr.bf16.mxu0 %v5029
    %5132 = vmatpush1.bf16.msra.mxu0 %v5028
    %5133 = vmatprep.subr.bf16.mxu0 %v5033
    %5134 = vmatpush1.bf16.msra.mxu0 %v5032
    %5135 = vmatprep.subr.bf16.mxu0 %v5037
    %5136 = vmatpush1.bf16.msra.mxu0 %v5036
    %5137 = vmatprep.subr.bf16.mxu0 %v5041
    %5138 = vmatpush1.bf16.msra.mxu0 %v5040
    %5139 = vmatprep.subr.bf16.mxu0 %v5045
    %5140 = vmatpush1.bf16.msra.mxu0 %v5044
    %5141 = vmatprep.subr.bf16.mxu0 %v5049
    %5142 = vmatpush1.bf16.msra.mxu0 %v5048
    %5143 = vmatprep.subr.bf16.mxu0 %v5053
    %5144 = vmatpush1.bf16.msra.mxu0 %v5052
    %5145 = vmatprep.subr.bf16.mxu0 %v5057
    %5146 = vmatpush1.bf16.msra.mxu0 %v5056
    %5147 = vmatprep.subr.bf16.mxu0 %v5061
    %5148 = vmatpush1.bf16.msra.mxu0 %v5060
    %5149 = vmatprep.subr.bf16.mxu0 %v5065
    %5150 = vmatpush1.bf16.msra.mxu0 %v5064
    %5151 = vmatprep.subr.bf16.mxu0 %v5069
    %5152 = vmatpush1.bf16.msra.mxu0 %v5068
    %5153 = vmatprep.subr.bf16.mxu0 %v5073
    %5154 = vmatpush1.bf16.msra.mxu0 %v5072
    %5155 = vmatprep.subr.bf16.mxu0 %v5077
    %5156 = vmatpush1.bf16.msra.mxu0 %v5076
    %5157 = vmatprep.subr.bf16.mxu0 %v5081
    %5158 = vmatpush1.bf16.msra.mxu0 %v5080
    %5159 = vmatprep.subr.bf16.mxu0 %v5085
    %5160 = vmatpush1.bf16.msra.mxu0 %v5084
    %5161 = vmatprep.subr.bf16.mxu0 %v5089
    %5162 = vmatpush1.bf16.msra.mxu0 %v5088
    %5163 = vmatprep.mubr.bf16.mxu0 %v4508
    %5164 = vmatmul.mubr.bf16.gmra.mrb[0].mxu0 %v5025
    %v5165 = vpop.f32.mrb[0].mxu0
    %v5166 = vadd.f32 %v203, %v5165
    %v5167 = vpop.f32.mrb[0].mxu0
    %v5168 = vadd.f32 %v207, %v5167
    %v5169 = vpop.f32.mrb[0].mxu0
    %v5170 = vpop.f32.mrb[0].mxu0
    %5171 = vdwg.mxu0
    %v5172 = vmul.f32 %v5125, 0.5
    %v5173 = vtanh.pop %v5172
    %v5174 = vmul.f32 %v5173, 0.5
    %v5175 = vadd.f32 %v5174, 0.5
    %v5176 = vmul.f32 %v5127, 0.5
    %v5177 = vtanh.pop %v5176
    %v5178 = vmul.f32 %v5177, 0.5
    %v5179 = vadd.f32 %v5178, 0.5
    %v5180 = vtanh.pop %v5166
    %v5181 = vmul.f32 %v5168, 0.5
    %v5182 = vtanh.pop %v5181
    %v5183 = vmul.f32 %v5182, 0.5
    %v5184 = vadd.f32 %v5183, 0.5
    %v5185 = vmul.f32 %v5179, %v4505
    %v5186 = vmul.f32 %v5175, %v5180
    %v5187 = vadd.f32 %v5185, %v5186
    %v5188 = vtanh.pop %v5187
    %v5189 = vmul.f32 %v5184, %v5188
    %v5190 = vpack.c.bf16 %v5189, %v5189
    %v5191 = vld [vmem:[#allocation4] sm:$0xff]
    %v5192 = vld [vmem:[#allocation4 + $0x8] sm:$0xff]
    %v5193 = vld [vmem:[#allocation4 + $0x10] sm:$0xff]
    %v5194 = vld [vmem:[#allocation4 + $0x18] sm:$0xff]
    %v5195 = vld [vmem:[#allocation4 + $0x20] sm:$0xff]
    %v5196 = vld [vmem:[#allocation4 + $0x28] sm:$0xff]
    %v5197 = vld [vmem:[#allocation4 + $0x30] sm:$0xff]
    %v5198 = vld [vmem:[#allocation4 + $0x38] sm:$0xff]
    %v5199 = vld [vmem:[#allocation4 + $0x40] sm:$0xff]
    %v5200 = vld [vmem:[#allocation4 + $0x48] sm:$0xff]
    %v5201 = vld [vmem:[#allocation4 + $0x50] sm:$0xff]
    %v5202 = vld [vmem:[#allocation4 + $0x58] sm:$0xff]
    %v5203 = vld [vmem:[#allocation4 + $0x60] sm:$0xff]
    %v5204 = vld [vmem:[#allocation4 + $0x68] sm:$0xff]
    %v5205 = vld [vmem:[#allocation4 + $0x70] sm:$0xff]
    %v5206 = vld [vmem:[#allocation4 + $0x78] sm:$0xff]
    %v5207 = vld [vmem:[#allocation4 + $0x80] sm:$0xff]
    %v5208 = vld [vmem:[#allocation4 + $0x88] sm:$0xff]
    %v5209 = vld [vmem:[#allocation4 + $0x90] sm:$0xff]
    %v5210 = vld [vmem:[#allocation4 + $0x98] sm:$0xff]
    %v5211 = vld [vmem:[#allocation4 + $0xa0] sm:$0xff]
    %v5212 = vld [vmem:[#allocation4 + $0xa8] sm:$0xff]
    %v5213 = vld [vmem:[#allocation4 + $0xb0] sm:$0xff]
    %v5214 = vld [vmem:[#allocation4 + $0xb8] sm:$0xff]
    %v5215 = vld [vmem:[#allocation4 + $0xc0] sm:$0xff]
    %v5216 = vld [vmem:[#allocation4 + $0xc8] sm:$0xff]
    %v5217 = vld [vmem:[#allocation4 + $0xd0] sm:$0xff]
    %v5218 = vld [vmem:[#allocation4 + $0xd8] sm:$0xff]
    %v5219 = vld [vmem:[#allocation4 + $0xe0] sm:$0xff]
    %v5220 = vld [vmem:[#allocation4 + $0xe8] sm:$0xff]
    %v5221 = vld [vmem:[#allocation4 + $0xf0] sm:$0xff]
    %v5222 = vld [vmem:[#allocation4 + $0xf8] sm:$0xff]
    %v5223 = vld [vmem:[#allocation4 + $0x100] sm:$0xff]
    %v5224 = vld [vmem:[#allocation4 + $0x108] sm:$0xff]
    %v5225 = vld [vmem:[#allocation4 + $0x110] sm:$0xff]
    %v5226 = vld [vmem:[#allocation4 + $0x118] sm:$0xff]
    %v5227 = vld [vmem:[#allocation4 + $0x120] sm:$0xff]
    %v5228 = vld [vmem:[#allocation4 + $0x128] sm:$0xff]
    %v5229 = vld [vmem:[#allocation4 + $0x130] sm:$0xff]
    %v5230 = vld [vmem:[#allocation4 + $0x138] sm:$0xff]
    %v5231 = vld [vmem:[#allocation4 + $0x140] sm:$0xff]
    %v5232 = vld [vmem:[#allocation4 + $0x148] sm:$0xff]
    %v5233 = vld [vmem:[#allocation4 + $0x150] sm:$0xff]
    %v5234 = vld [vmem:[#allocation4 + $0x158] sm:$0xff]
    %v5235 = vld [vmem:[#allocation4 + $0x160] sm:$0xff]
    %v5236 = vld [vmem:[#allocation4 + $0x168] sm:$0xff]
    %v5237 = vld [vmem:[#allocation4 + $0x170] sm:$0xff]
    %v5238 = vld [vmem:[#allocation4 + $0x178] sm:$0xff]
    %v5239 = vld [vmem:[#allocation4 + $0x180] sm:$0xff]
    %v5240 = vld [vmem:[#allocation4 + $0x188] sm:$0xff]
    %v5241 = vld [vmem:[#allocation4 + $0x190] sm:$0xff]
    %v5242 = vld [vmem:[#allocation4 + $0x198] sm:$0xff]
    %v5243 = vld [vmem:[#allocation4 + $0x1a0] sm:$0xff]
    %v5244 = vld [vmem:[#allocation4 + $0x1a8] sm:$0xff]
    %v5245 = vld [vmem:[#allocation4 + $0x1b0] sm:$0xff]
    %v5246 = vld [vmem:[#allocation4 + $0x1b8] sm:$0xff]
    %v5247 = vld [vmem:[#allocation4 + $0x1c0] sm:$0xff]
    %v5248 = vld [vmem:[#allocation4 + $0x1c8] sm:$0xff]
    %v5249 = vld [vmem:[#allocation4 + $0x1d0] sm:$0xff]
    %v5250 = vld [vmem:[#allocation4 + $0x1d8] sm:$0xff]
    %v5251 = vld [vmem:[#allocation4 + $0x1e0] sm:$0xff]
    %v5252 = vld [vmem:[#allocation4 + $0x1e8] sm:$0xff]
    %v5253 = vld [vmem:[#allocation4 + $0x1f0] sm:$0xff]
    %v5254 = vld [vmem:[#allocation4 + $0x1f8] sm:$0xff]
    %5255 = vmatprep.subr.bf16.mxu0 %v5192
    %5256 = vmatpush1.bf16.msra.mxu0 %v5191
    %5257 = vmatprep.subr.bf16.mxu0 %v5196
    %5258 = vmatpush1.bf16.msra.mxu0 %v5195
    %5259 = vmatprep.subr.bf16.mxu0 %v5200
    %5260 = vmatpush1.bf16.msra.mxu0 %v5199
    %5261 = vmatprep.subr.bf16.mxu0 %v5204
    %5262 = vmatpush1.bf16.msra.mxu0 %v5203
    %5263 = vmatprep.subr.bf16.mxu0 %v5208
    %5264 = vmatpush1.bf16.msra.mxu0 %v5207
    %5265 = vmatprep.subr.bf16.mxu0 %v5212
    %5266 = vmatpush1.bf16.msra.mxu0 %v5211
    %5267 = vmatprep.subr.bf16.mxu0 %v5216
    %5268 = vmatpush1.bf16.msra.mxu0 %v5215
    %5269 = vmatprep.subr.bf16.mxu0 %v5220
    %5270 = vmatpush1.bf16.msra.mxu0 %v5219
    %5271 = vmatprep.subr.bf16.mxu0 %v5224
    %5272 = vmatpush1.bf16.msra.mxu0 %v5223
    %5273 = vmatprep.subr.bf16.mxu0 %v5228
    %5274 = vmatpush1.bf16.msra.mxu0 %v5227
    %5275 = vmatprep.subr.bf16.mxu0 %v5232
    %5276 = vmatpush1.bf16.msra.mxu0 %v5231
    %5277 = vmatprep.subr.bf16.mxu0 %v5236
    %5278 = vmatpush1.bf16.msra.mxu0 %v5235
    %5279 = vmatprep.subr.bf16.mxu0 %v5240
    %5280 = vmatpush1.bf16.msra.mxu0 %v5239
    %5281 = vmatprep.subr.bf16.mxu0 %v5244
    %5282 = vmatpush1.bf16.msra.mxu0 %v5243
    %5283 = vmatprep.subr.bf16.mxu0 %v5248
    %5284 = vmatpush1.bf16.msra.mxu0 %v5247
    %5285 = vmatprep.subr.bf16.mxu0 %v5252
    %5286 = vmatpush1.bf16.msra.mxu0 %v5251
    %5287 = vmatprep.mubr.bf16.mxu0 %v4673
    %5288 = vmatmul.mubr.bf16.gmra.mrb[0].mxu0 %v5190
    %v5289 = vpop.f32.mrb[0].mxu0
    %v5290 = vadd.f32 %v217, %v5289
    %v5291 = vpop.f32.mrb[0].mxu0
    %v5292 = vadd.f32 %v221, %v5291
    %v5293 = vpop.f32.mrb[0].mxu0
    %v5294 = vpop.f32.mrb[0].mxu0
    %5295 = vdwg.mxu0
    %5296 = vmatprep.subr.bf16.mxu0 %v5194
    %5297 = vmatpush1.bf16.msra.mxu0 %v5193
    %5298 = vmatprep.subr.bf16.mxu0 %v5198
    %5299 = vmatpush1.bf16.msra.mxu0 %v5197
    %5300 = vmatprep.subr.bf16.mxu0 %v5202
    %5301 = vmatpush1.bf16.msra.mxu0 %v5201
    %5302 = vmatprep.subr.bf16.mxu0 %v5206
    %5303 = vmatpush1.bf16.msra.mxu0 %v5205
    %5304 = vmatprep.subr.bf16.mxu0 %v5210
    %5305 = vmatpush1.bf16.msra.mxu0 %v5209
    %5306 = vmatprep.subr.bf16.mxu0 %v5214
    %5307 = vmatpush1.bf16.msra.mxu0 %v5213
    %5308 = vmatprep.subr.bf16.mxu0 %v5218
    %5309 = vmatpush1.bf16.msra.mxu0 %v5217
    %5310 = vmatprep.subr.bf16.mxu0 %v5222
    %5311 = vmatpush1.bf16.msra.mxu0 %v5221
    %5312 = vmatprep.subr.bf16.mxu0 %v5226
    %5313 = vmatpush1.bf16.msra.mxu0 %v5225
    %5314 = vmatprep.subr.bf16.mxu0 %v5230
    %5315 = vmatpush1.bf16.msra.mxu0 %v5229
    %5316 = vmatprep.subr.bf16.mxu0 %v5234
    %5317 = vmatpush1.bf16.msra.mxu0 %v5233
    %5318 = vmatprep.subr.bf16.mxu0 %v5238
    %5319 = vmatpush1.bf16.msra.mxu0 %v5237
    %5320 = vmatprep.subr.bf16.mxu0 %v5242
    %5321 = vmatpush1.bf16.msra.mxu0 %v5241
    %5322 = vmatprep.subr.bf16.mxu0 %v5246
    %5323 = vmatpush1.bf16.msra.mxu0 %v5245
    %5324 = vmatprep.subr.bf16.mxu0 %v5250
    %5325 = vmatpush1.bf16.msra.mxu0 %v5249
    %5326 = vmatprep.subr.bf16.mxu0 %v5254
    %5327 = vmatpush1.bf16.msra.mxu0 %v5253
    %5328 = vmatprep.mubr.bf16.mxu0 %v4673
    %5329 = vmatmul.mubr.bf16.gmra.mrb[0].mxu0 %v5190
    %v5330 = vpop.f32.mrb[0].mxu0
    %v5331 = vadd.f32 %v225, %v5330
    %v5332 = vpop.f32.mrb[0].mxu0
    %v5333 = vadd.f32 %v229, %v5332
    %v5334 = vpop.f32.mrb[0].mxu0
    %v5335 = vpop.f32.mrb[0].mxu0
    %5336 = vdwg.mxu0
    %v5337 = vmul.f32 %v5290, 0.5
    %v5338 = vtanh.pop %v5337
    %v5339 = vmul.f32 %v5338, 0.5
    %v5340 = vadd.f32 %v5339, 0.5
    %v5341 = vmul.f32 %v5292, 0.5
    %v5342 = vtanh.pop %v5341
    %v5343 = vmul.f32 %v5342, 0.5
    %v5344 = vadd.f32 %v5343, 0.5
    %v5345 = vtanh.pop %v5331
    %v5346 = vmul.f32 %v5333, 0.5
    %v5347 = vtanh.pop %v5346
    %v5348 = vmul.f32 %v5347, 0.5
    %v5349 = vadd.f32 %v5348, 0.5
    %v5350 = vmul.f32 %v5344, %v4670
    %v5351 = vmul.f32 %v5340, %v5345
    %v5352 = vadd.f32 %v5350, %v5351
    %v5353 = vtanh.pop %v5352
    %v5354 = vmul.f32 %v5349, %v5353
    %v5355 = vpack.c.bf16 %v5354, %v5354
    %v5356 = vld [vmem:[#allocation5] sm:$0xff]
    %v5357 = vld [vmem:[#allocation5 + $0x8] sm:$0xff]
    %v5358 = vld [vmem:[#allocation5 + $0x10] sm:$0xff]
    %v5359 = vld [vmem:[#allocation5 + $0x18] sm:$0xff]
    %v5360 = vld [vmem:[#allocation5 + $0x20] sm:$0xff]
    %v5361 = vld [vmem:[#allocation5 + $0x28] sm:$0xff]
    %v5362 = vld [vmem:[#allocation5 + $0x30] sm:$0xff]
    %v5363 = vld [vmem:[#allocation5 + $0x38] sm:$0xff]
    %5364 = vmatprep.subr.bf16.mxu0 0
    %5365 = vmatpush1.bf16.msra.mxu0 %v5356
    %5366 = vmatprep.subr.bf16.mxu0 0
    %5367 = vmatpush1.bf16.msra.mxu0 %v5357
    %5368 = vmatprep.subr.bf16.mxu0 0
    %5369 = vmatpush1.bf16.msra.mxu0 %v5358
    %5370 = vmatprep.subr.bf16.mxu0 0
    %5371 = vmatpush1.bf16.msra.mxu0 %v5359
    %5372 = vmatprep.subr.bf16.mxu0 0
    %5373 = vmatpush1.bf16.msra.mxu0 %v5360
    %5374 = vmatprep.subr.bf16.mxu0 0
    %5375 = vmatpush1.bf16.msra.mxu0 %v5361
    %5376 = vmatprep.subr.bf16.mxu0 0
    %5377 = vmatpush1.bf16.msra.mxu0 %v5362
    %5378 = vmatprep.subr.bf16.mxu0 0
    %5379 = vmatpush1.bf16.msra.mxu0 %v5363
    %5380 = vmatprep.subr.bf16.mxu0 0
    %5381 = vmatpush1.bf16.msra.mxu0 0
    %5382 = vmatprep.subr.bf16.mxu0 0
    %5383 = vmatpush1.bf16.msra.mxu0 0
    %5384 = vmatprep.subr.bf16.mxu0 0
    %5385 = vmatpush1.bf16.msra.mxu0 0
    %5386 = vmatprep.subr.bf16.mxu0 0
    %5387 = vmatpush1.bf16.msra.mxu0 0
    %5388 = vmatprep.subr.bf16.mxu0 0
    %5389 = vmatpush1.bf16.msra.mxu0 0
    %5390 = vmatprep.subr.bf16.mxu0 0
    %5391 = vmatpush1.bf16.msra.mxu0 0
    %5392 = vmatprep.subr.bf16.mxu0 0
    %5393 = vmatpush1.bf16.msra.mxu0 0
    %5394 = vmatprep.subr.bf16.mxu0 0
    %5395 = vmatpush1.bf16.msra.mxu0 0
    %5396 = vmatprep.mubr.bf16.mxu0 0
    %5397 = vmatmul.mubr.bf16.gmra.mrb[0].mxu0 %v5355
    %v5398 = vpop.f32.mrb[0].mxu0
    %v5399 = vadd.f32 %v239, %v5398
    %v5400 = vpop.f32.mrb[0].mxu0
    %v5401 = vpop.f32.mrb[0].mxu0
    %v5402 = vpop.f32.mrb[0].mxu0
    %5403 = vdwg.mxu0
    %s5404 = scalar_lea.vmem %s9, 48
    %5405 = vst [vmem:[%s5404] sm:$0xff] %v5399
    %s5406 = scalar_lea.vmem [#allocation2], 224
    %v5407 = vld [vmem:[%s5406] sm:$0xff]
    %v5408 = vld [vmem:[%s5406 + $0x8] sm:$0xff]
    %v5409 = vld [vmem:[%s5406 + $0x10] sm:$0xff]
    %v5410 = vld [vmem:[%s5406 + $0x18] sm:$0xff]
    %v5411 = vld [vmem:[#allocation7 + $0x100] sm:$0xff]
    %v5412 = vld [vmem:[#allocation7 + $0x108] sm:$0xff]
    %v5413 = vld [vmem:[#allocation7 + $0x110] sm:$0xff]
    %v5414 = vld [vmem:[#allocation7 + $0x118] sm:$0xff]
    %v5415 = vld [vmem:[#allocation7 + $0x120] sm:$0xff]
    %v5416 = vld [vmem:[#allocation7 + $0x128] sm:$0xff]
    %v5417 = vld [vmem:[#allocation7 + $0x130] sm:$0xff]
    %v5418 = vld [vmem:[#allocation7 + $0x138] sm:$0xff]
    %v5419 = vld [vmem:[#allocation7 + $0x140] sm:$0xff]
    %v5420 = vld [vmem:[#allocation7 + $0x148] sm:$0xff]
    %v5421 = vld [vmem:[#allocation7 + $0x150] sm:$0xff]
    %v5422 = vld [vmem:[#allocation7 + $0x158] sm:$0xff]
    %v5423 = vld [vmem:[#allocation7 + $0x160] sm:$0xff]
    %v5424 = vld [vmem:[#allocation7 + $0x168] sm:$0xff]
    %v5425 = vld [vmem:[#allocation7 + $0x170] sm:$0xff]
    %v5426 = vld [vmem:[#allocation7 + $0x178] sm:$0xff]
    %v5427 = vld [vmem:[#allocation7 + $0x180] sm:$0xff]
    %v5428 = vld [vmem:[#allocation7 + $0x188] sm:$0xff]
    %v5429 = vld [vmem:[#allocation7 + $0x190] sm:$0xff]
    %v5430 = vld [vmem:[#allocation7 + $0x198] sm:$0xff]
    %v5431 = vld [vmem:[#allocation7 + $0x1a0] sm:$0xff]
    %v5432 = vld [vmem:[#allocation7 + $0x1a8] sm:$0xff]
    %v5433 = vld [vmem:[#allocation7 + $0x1b0] sm:$0xff]
    %v5434 = vld [vmem:[#allocation7 + $0x1b8] sm:$0xff]
    %v5435 = vld [vmem:[#allocation7 + $0x1c0] sm:$0xff]
    %v5436 = vld [vmem:[#allocation7 + $0x1c8] sm:$0xff]
    %v5437 = vld [vmem:[#allocation7 + $0x1d0] sm:$0xff]
    %v5438 = vld [vmem:[#allocation7 + $0x1d8] sm:$0xff]
    %v5439 = vld [vmem:[#allocation7 + $0x1e0] sm:$0xff]
    %v5440 = vld [vmem:[#allocation7 + $0x1e8] sm:$0xff]
    %v5441 = vld [vmem:[#allocation7 + $0x1f0] sm:$0xff]
    %v5442 = vld [vmem:[#allocation7 + $0x1f8] sm:$0xff]
    %v5475 = vunpack.c.l.b16 %v5411
    %v5476 = vunpack.c.h.b16 %v5411
    %v5477 = vunpack.c.l.b16 %v5412
    %v5478 = vunpack.c.h.b16 %v5412
    %v5479 = vunpack.c.l.b16 %v5413
    %v5480 = vunpack.c.h.b16 %v5413
    %v5481 = vunpack.c.l.b16 %v5414
    %v5482 = vunpack.c.h.b16 %v5414
    %v5483 = vunpack.c.l.b16 %v5415
    %v5484 = vunpack.c.h.b16 %v5415
    %v5485 = vunpack.c.l.b16 %v5416
    %v5486 = vunpack.c.h.b16 %v5416
    %v5487 = vunpack.c.l.b16 %v5417
    %v5488 = vunpack.c.h.b16 %v5417
    %v5489 = vunpack.c.l.b16 %v5418
    %v5490 = vunpack.c.h.b16 %v5418
    %v5491 = vunpack.c.l.b16 %v5419
    %v5492 = vunpack.c.h.b16 %v5419
    %v5493 = vunpack.c.l.b16 %v5420
    %v5494 = vunpack.c.h.b16 %v5420
    %v5495 = vunpack.c.l.b16 %v5421
    %v5496 = vunpack.c.h.b16 %v5421
    %v5497 = vunpack.c.l.b16 %v5422
    %v5498 = vunpack.c.h.b16 %v5422
    %v5499 = vunpack.c.l.b16 %v5423
    %v5500 = vunpack.c.h.b16 %v5423
    %v5501 = vunpack.c.l.b16 %v5424
    %v5502 = vunpack.c.h.b16 %v5424
    %v5503 = vunpack.c.l.b16 %v5425
    %v5504 = vunpack.c.h.b16 %v5425
    %v5505 = vunpack.c.l.b16 %v5426
    %v5506 = vunpack.c.h.b16 %v5426
    %v5507 = vunpack.c.l.b16 %v5427
    %v5508 = vunpack.c.h.b16 %v5427
    %v5509 = vunpack.c.l.b16 %v5428
    %v5510 = vunpack.c.h.b16 %v5428
    %v5511 = vunpack.c.l.b16 %v5429
    %v5512 = vunpack.c.h.b16 %v5429
    %v5513 = vunpack.c.l.b16 %v5430
    %v5514 = vunpack.c.h.b16 %v5430
    %v5515 = vunpack.c.l.b16 %v5431
    %v5516 = vunpack.c.h.b16 %v5431
    %v5517 = vunpack.c.l.b16 %v5432
    %v5518 = vunpack.c.h.b16 %v5432
    %v5519 = vunpack.c.l.b16 %v5433
    %v5520 = vunpack.c.h.b16 %v5433
    %v5521 = vunpack.c.l.b16 %v5434
    %v5522 = vunpack.c.h.b16 %v5434
    %v5523 = vunpack.c.l.b16 %v5435
    %v5524 = vunpack.c.h.b16 %v5435
    %v5525 = vunpack.c.l.b16 %v5436
    %v5526 = vunpack.c.h.b16 %v5436
    %v5527 = vunpack.c.l.b16 %v5437
    %v5528 = vunpack.c.h.b16 %v5437
    %v5529 = vunpack.c.l.b16 %v5438
    %v5530 = vunpack.c.h.b16 %v5438
    %v5531 = vunpack.c.l.b16 %v5439
    %v5532 = vunpack.c.h.b16 %v5439
    %v5533 = vunpack.c.l.b16 %v5440
    %v5534 = vunpack.c.h.b16 %v5440
    %v5535 = vunpack.c.l.b16 %v5441
    %v5536 = vunpack.c.h.b16 %v5441
    %v5537 = vunpack.c.l.b16 %v5442
    %v5538 = vunpack.c.h.b16 %v5442
    %v5539 = vpack.c.b16 %v5479, %v5475
    %v5540 = vpack.c.b16 %v5480, %v5476
    %v5541 = vpack.c.b16 %v5481, %v5477
    %v5542 = vpack.c.b16 %v5482, %v5478
    %v5543 = vpack.c.b16 %v5487, %v5483
    %v5544 = vpack.c.b16 %v5488, %v5484
    %v5545 = vpack.c.b16 %v5489, %v5485
    %v5546 = vpack.c.b16 %v5490, %v5486
    %v5547 = vpack.c.b16 %v5495, %v5491
    %v5548 = vpack.c.b16 %v5496, %v5492
    %v5549 = vpack.c.b16 %v5497, %v5493
    %v5550 = vpack.c.b16 %v5498, %v5494
    %v5551 = vpack.c.b16 %v5503, %v5499
    %v5552 = vpack.c.b16 %v5504, %v5500
    %v5553 = vpack.c.b16 %v5505, %v5501
    %v5554 = vpack.c.b16 %v5506, %v5502
    %v5555 = vpack.c.b16 %v5511, %v5507
    %v5556 = vpack.c.b16 %v5512, %v5508
    %v5557 = vpack.c.b16 %v5513, %v5509
    %v5558 = vpack.c.b16 %v5514, %v5510
    %v5559 = vpack.c.b16 %v5519, %v5515
    %v5560 = vpack.c.b16 %v5520, %v5516
    %v5561 = vpack.c.b16 %v5521, %v5517
    %v5562 = vpack.c.b16 %v5522, %v5518
    %v5563 = vpack.c.b16 %v5527, %v5523
    %v5564 = vpack.c.b16 %v5528, %v5524
    %v5565 = vpack.c.b16 %v5529, %v5525
    %v5566 = vpack.c.b16 %v5530, %v5526
    %v5567 = vpack.c.b16 %v5535, %v5531
    %v5568 = vpack.c.b16 %v5536, %v5532
    %v5569 = vpack.c.b16 %v5537, %v5533
    %v5570 = vpack.c.b16 %v5538, %v5534
    %5603 = vmatprep.subr.bf16.mxu0 %v5540
    %5604 = vmatpush1.bf16.msra.mxu0 %v5539
    %5605 = vmatprep.subr.bf16.mxu0 %v5544
    %5606 = vmatpush1.bf16.msra.mxu0 %v5543
    %5607 = vmatprep.subr.bf16.mxu0 %v5548
    %5608 = vmatpush1.bf16.msra.mxu0 %v5547
    %5609 = vmatprep.subr.bf16.mxu0 %v5552
    %5610 = vmatpush1.bf16.msra.mxu0 %v5551
    %5611 = vmatprep.subr.bf16.mxu0 %v5556
    %5612 = vmatpush1.bf16.msra.mxu0 %v5555
    %5613 = vmatprep.subr.bf16.mxu0 %v5560
    %5614 = vmatpush1.bf16.msra.mxu0 %v5559
    %5615 = vmatprep.subr.bf16.mxu0 %v5564
    %5616 = vmatpush1.bf16.msra.mxu0 %v5563
    %5617 = vmatprep.subr.bf16.mxu0 %v5568
    %5618 = vmatpush1.bf16.msra.mxu0 %v5567
    %5619 = vmatprep.subr.bf16.mxu0 0
    %5620 = vmatpush1.bf16.msra.mxu0 0
    %5621 = vmatprep.subr.bf16.mxu0 0
    %5622 = vmatpush1.bf16.msra.mxu0 0
    %5623 = vmatprep.subr.bf16.mxu0 0
    %5624 = vmatpush1.bf16.msra.mxu0 0
    %5625 = vmatprep.subr.bf16.mxu0 0
    %5626 = vmatpush1.bf16.msra.mxu0 0
    %5627 = vmatprep.subr.bf16.mxu0 0
    %5628 = vmatpush1.bf16.msra.mxu0 0
    %5629 = vmatprep.subr.bf16.mxu0 0
    %5630 = vmatpush1.bf16.msra.mxu0 0
    %5631 = vmatprep.subr.bf16.mxu0 0
    %5632 = vmatpush1.bf16.msra.mxu0 0
    %5633 = vmatprep.subr.bf16.mxu0 0
    %5634 = vmatpush1.bf16.msra.mxu0 0
    %5635 = vmatprep.mubr.bf16.mxu0 0
    %5636 = vmatmul.mubr.bf16.gmra.mrb[0].mxu0 %v5025
    %v5637 = vpop.f32.mrb[0].mxu0
    %v5638 = vadd.f32 0.0, %v5637
    %v5639 = vpop.f32.mrb[0].mxu0
    %v5640 = vadd.f32 0.0, %v5639
    %v5641 = vpop.f32.mrb[0].mxu0
    %v5642 = vpop.f32.mrb[0].mxu0
    %5643 = vdwg.mxu0
    %5644 = vmatprep.subr.bf16.mxu0 %v5542
    %5645 = vmatpush1.bf16.msra.mxu0 %v5541
    %5646 = vmatprep.subr.bf16.mxu0 %v5546
    %5647 = vmatpush1.bf16.msra.mxu0 %v5545
    %5648 = vmatprep.subr.bf16.mxu0 %v5550
    %5649 = vmatpush1.bf16.msra.mxu0 %v5549
    %5650 = vmatprep.subr.bf16.mxu0 %v5554
    %5651 = vmatpush1.bf16.msra.mxu0 %v5553
    %5652 = vmatprep.subr.bf16.mxu0 %v5558
    %5653 = vmatpush1.bf16.msra.mxu0 %v5557
    %5654 = vmatprep.subr.bf16.mxu0 %v5562
    %5655 = vmatpush1.bf16.msra.mxu0 %v5561
    %5656 = vmatprep.subr.bf16.mxu0 %v5566
    %5657 = vmatpush1.bf16.msra.mxu0 %v5565
    %5658 = vmatprep.subr.bf16.mxu0 %v5570
    %5659 = vmatpush1.bf16.msra.mxu0 %v5569
    %5660 = vmatprep.subr.bf16.mxu0 0
    %5661 = vmatpush1.bf16.msra.mxu0 0
    %5662 = vmatprep.subr.bf16.mxu0 0
    %5663 = vmatpush1.bf16.msra.mxu0 0
    %5664 = vmatprep.subr.bf16.mxu0 0
    %5665 = vmatpush1.bf16.msra.mxu0 0
    %5666 = vmatprep.subr.bf16.mxu0 0
    %5667 = vmatpush1.bf16.msra.mxu0 0
    %5668 = vmatprep.subr.bf16.mxu0 0
    %5669 = vmatpush1.bf16.msra.mxu0 0
    %5670 = vmatprep.subr.bf16.mxu0 0
    %5671 = vmatpush1.bf16.msra.mxu0 0
    %5672 = vmatprep.subr.bf16.mxu0 0
    %5673 = vmatpush1.bf16.msra.mxu0 0
    %5674 = vmatprep.subr.bf16.mxu0 0
    %5675 = vmatpush1.bf16.msra.mxu0 0
    %5676 = vmatprep.mubr.bf16.mxu0 0
    %5677 = vmatmul.mubr.bf16.gmra.mrb[0].mxu0 %v5025
    %v5678 = vpop.f32.mrb[0].mxu0
    %v5679 = vadd.f32 0.0, %v5678
    %v5680 = vpop.f32.mrb[0].mxu0
    %v5681 = vadd.f32 0.0, %v5680
    %v5682 = vpop.f32.mrb[0].mxu0
    %v5683 = vpop.f32.mrb[0].mxu0
    %5684 = vdwg.mxu0
    %v5685 = vadd.f32 %v5407, %v5638
    %v5686 = vadd.f32 %v5408, %v5640
    %v5687 = vadd.f32 %v5409, %v5679
    %v5688 = vadd.f32 %v5410, %v5681
    %v5689 = vmul.f32 %v5685, 0.5
    %v5690 = vtanh.pop %v5689
    %v5691 = vmul.f32 %v5690, 0.5
    %v5692 = vadd.f32 %v5691, 0.5
    %v5693 = vmul.f32 %v5686, 0.5
    %v5694 = vtanh.pop %v5693
    %v5695 = vmul.f32 %v5694, 0.5
    %v5696 = vadd.f32 %v5695, 0.5
    %v5697 = vtanh.pop %v5687
    %v5698 = vmul.f32 %v5688, 0.5
    %v5699 = vtanh.pop %v5698
    %v5700 = vmul.f32 %v5699, 0.5
    %v5701 = vadd.f32 %v5700, 0.5
    %v5702 = vmul.f32 %v5696, %v5022
    %v5703 = vmul.f32 %v5692, %v5697
    %v5704 = vadd.f32 %v5702, %v5703
    %v5705 = vtanh.pop %v5704
    %v5706 = vmul.f32 %v5701, %v5705
    %v5707 = vpack.c.bf16 %v5706, %v5706
    %v5708 = vld [vmem:[#allocation3] sm:$0xff]
    %v5709 = vld [vmem:[#allocation3 + $0x8] sm:$0xff]
    %v5710 = vld [vmem:[#allocation3 + $0x10] sm:$0xff]
    %v5711 = vld [vmem:[#allocation3 + $0x18] sm:$0xff]
    %v5712 = vld [vmem:[#allocation3 + $0x20] sm:$0xff]
    %v5713 = vld [vmem:[#allocation3 + $0x28] sm:$0xff]
    %v5714 = vld [vmem:[#allocation3 + $0x30] sm:$0xff]
    %v5715 = vld [vmem:[#allocation3 + $0x38] sm:$0xff]
    %v5716 = vld [vmem:[#allocation3 + $0x40] sm:$0xff]
    %v5717 = vld [vmem:[#allocation3 + $0x48] sm:$0xff]
    %v5718 = vld [vmem:[#allocation3 + $0x50] sm:$0xff]
    %v5719 = vld [vmem:[#allocation3 + $0x58] sm:$0xff]
    %v5720 = vld [vmem:[#allocation3 + $0x60] sm:$0xff]
    %v5721 = vld [vmem:[#allocation3 + $0x68] sm:$0xff]
    %v5722 = vld [vmem:[#allocation3 + $0x70] sm:$0xff]
    %v5723 = vld [vmem:[#allocation3 + $0x78] sm:$0xff]
    %v5724 = vld [vmem:[#allocation3 + $0x80] sm:$0xff]
    %v5725 = vld [vmem:[#allocation3 + $0x88] sm:$0xff]
    %v5726 = vld [vmem:[#allocation3 + $0x90] sm:$0xff]
    %v5727 = vld [vmem:[#allocation3 + $0x98] sm:$0xff]
    %v5728 = vld [vmem:[#allocation3 + $0xa0] sm:$0xff]
    %v5729 = vld [vmem:[#allocation3 + $0xa8] sm:$0xff]
    %v5730 = vld [vmem:[#allocation3 + $0xb0] sm:$0xff]
    %v5731 = vld [vmem:[#allocation3 + $0xb8] sm:$0xff]
    %v5732 = vld [vmem:[#allocation3 + $0xc0] sm:$0xff]
    %v5733 = vld [vmem:[#allocation3 + $0xc8] sm:$0xff]
    %v5734 = vld [vmem:[#allocation3 + $0xd0] sm:$0xff]
    %v5735 = vld [vmem:[#allocation3 + $0xd8] sm:$0xff]
    %v5736 = vld [vmem:[#allocation3 + $0xe0] sm:$0xff]
    %v5737 = vld [vmem:[#allocation3 + $0xe8] sm:$0xff]
    %v5738 = vld [vmem:[#allocation3 + $0xf0] sm:$0xff]
    %v5739 = vld [vmem:[#allocation3 + $0xf8] sm:$0xff]
    %v5740 = vld [vmem:[#allocation3 + $0x100] sm:$0xff]
    %v5741 = vld [vmem:[#allocation3 + $0x108] sm:$0xff]
    %v5742 = vld [vmem:[#allocation3 + $0x110] sm:$0xff]
    %v5743 = vld [vmem:[#allocation3 + $0x118] sm:$0xff]
    %v5744 = vld [vmem:[#allocation3 + $0x120] sm:$0xff]
    %v5745 = vld [vmem:[#allocation3 + $0x128] sm:$0xff]
    %v5746 = vld [vmem:[#allocation3 + $0x130] sm:$0xff]
    %v5747 = vld [vmem:[#allocation3 + $0x138] sm:$0xff]
    %v5748 = vld [vmem:[#allocation3 + $0x140] sm:$0xff]
    %v5749 = vld [vmem:[#allocation3 + $0x148] sm:$0xff]
    %v5750 = vld [vmem:[#allocation3 + $0x150] sm:$0xff]
    %v5751 = vld [vmem:[#allocation3 + $0x158] sm:$0xff]
    %v5752 = vld [vmem:[#allocation3 + $0x160] sm:$0xff]
    %v5753 = vld [vmem:[#allocation3 + $0x168] sm:$0xff]
    %v5754 = vld [vmem:[#allocation3 + $0x170] sm:$0xff]
    %v5755 = vld [vmem:[#allocation3 + $0x178] sm:$0xff]
    %v5756 = vld [vmem:[#allocation3 + $0x180] sm:$0xff]
    %v5757 = vld [vmem:[#allocation3 + $0x188] sm:$0xff]
    %v5758 = vld [vmem:[#allocation3 + $0x190] sm:$0xff]
    %v5759 = vld [vmem:[#allocation3 + $0x198] sm:$0xff]
    %v5760 = vld [vmem:[#allocation3 + $0x1a0] sm:$0xff]
    %v5761 = vld [vmem:[#allocation3 + $0x1a8] sm:$0xff]
    %v5762 = vld [vmem:[#allocation3 + $0x1b0] sm:$0xff]
    %v5763 = vld [vmem:[#allocation3 + $0x1b8] sm:$0xff]
    %v5764 = vld [vmem:[#allocation3 + $0x1c0] sm:$0xff]
    %v5765 = vld [vmem:[#allocation3 + $0x1c8] sm:$0xff]
    %v5766 = vld [vmem:[#allocation3 + $0x1d0] sm:$0xff]
    %v5767 = vld [vmem:[#allocation3 + $0x1d8] sm:$0xff]
    %v5768 = vld [vmem:[#allocation3 + $0x1e0] sm:$0xff]
    %v5769 = vld [vmem:[#allocation3 + $0x1e8] sm:$0xff]
    %v5770 = vld [vmem:[#allocation3 + $0x1f0] sm:$0xff]
    %v5771 = vld [vmem:[#allocation3 + $0x1f8] sm:$0xff]
    %5772 = vmatprep.subr.bf16.mxu0 %v5709
    %5773 = vmatpush1.bf16.msra.mxu0 %v5708
    %5774 = vmatprep.subr.bf16.mxu0 %v5713
    %5775 = vmatpush1.bf16.msra.mxu0 %v5712
    %5776 = vmatprep.subr.bf16.mxu0 %v5717
    %5777 = vmatpush1.bf16.msra.mxu0 %v5716
    %5778 = vmatprep.subr.bf16.mxu0 %v5721
    %5779 = vmatpush1.bf16.msra.mxu0 %v5720
    %5780 = vmatprep.subr.bf16.mxu0 %v5725
    %5781 = vmatpush1.bf16.msra.mxu0 %v5724
    %5782 = vmatprep.subr.bf16.mxu0 %v5729
    %5783 = vmatpush1.bf16.msra.mxu0 %v5728
    %5784 = vmatprep.subr.bf16.mxu0 %v5733
    %5785 = vmatpush1.bf16.msra.mxu0 %v5732
    %5786 = vmatprep.subr.bf16.mxu0 %v5737
    %5787 = vmatpush1.bf16.msra.mxu0 %v5736
    %5788 = vmatprep.subr.bf16.mxu0 %v5741
    %5789 = vmatpush1.bf16.msra.mxu0 %v5740
    %5790 = vmatprep.subr.bf16.mxu0 %v5745
    %5791 = vmatpush1.bf16.msra.mxu0 %v5744
    %5792 = vmatprep.subr.bf16.mxu0 %v5749
    %5793 = vmatpush1.bf16.msra.mxu0 %v5748
    %5794 = vmatprep.subr.bf16.mxu0 %v5753
    %5795 = vmatpush1.bf16.msra.mxu0 %v5752
    %5796 = vmatprep.subr.bf16.mxu0 %v5757
    %5797 = vmatpush1.bf16.msra.mxu0 %v5756
    %5798 = vmatprep.subr.bf16.mxu0 %v5761
    %5799 = vmatpush1.bf16.msra.mxu0 %v5760
    %5800 = vmatprep.subr.bf16.mxu0 %v5765
    %5801 = vmatpush1.bf16.msra.mxu0 %v5764
    %5802 = vmatprep.subr.bf16.mxu0 %v5769
    %5803 = vmatpush1.bf16.msra.mxu0 %v5768
    %5804 = vmatprep.mubr.bf16.mxu0 %v5190
    %5805 = vmatmul.mubr.bf16.gmra.mrb[0].mxu0 %v5707
    %v5806 = vpop.f32.mrb[0].mxu0
    %v5807 = vadd.f32 %v195, %v5806
    %v5808 = vpop.f32.mrb[0].mxu0
    %v5809 = vadd.f32 %v199, %v5808
    %v5810 = vpop.f32.mrb[0].mxu0
    %v5811 = vpop.f32.mrb[0].mxu0
    %5812 = vdwg.mxu0
    %5813 = vmatprep.subr.bf16.mxu0 %v5711
    %5814 = vmatpush1.bf16.msra.mxu0 %v5710
    %5815 = vmatprep.subr.bf16.mxu0 %v5715
    %5816 = vmatpush1.bf16.msra.mxu0 %v5714
    %5817 = vmatprep.subr.bf16.mxu0 %v5719
    %5818 = vmatpush1.bf16.msra.mxu0 %v5718
    %5819 = vmatprep.subr.bf16.mxu0 %v5723
    %5820 = vmatpush1.bf16.msra.mxu0 %v5722
    %5821 = vmatprep.subr.bf16.mxu0 %v5727
    %5822 = vmatpush1.bf16.msra.mxu0 %v5726
    %5823 = vmatprep.subr.bf16.mxu0 %v5731
    %5824 = vmatpush1.bf16.msra.mxu0 %v5730
    %5825 = vmatprep.subr.bf16.mxu0 %v5735
    %5826 = vmatpush1.bf16.msra.mxu0 %v5734
    %5827 = vmatprep.subr.bf16.mxu0 %v5739
    %5828 = vmatpush1.bf16.msra.mxu0 %v5738
    %5829 = vmatprep.subr.bf16.mxu0 %v5743
    %5830 = vmatpush1.bf16.msra.mxu0 %v5742
    %5831 = vmatprep.subr.bf16.mxu0 %v5747
    %5832 = vmatpush1.bf16.msra.mxu0 %v5746
    %5833 = vmatprep.subr.bf16.mxu0 %v5751
    %5834 = vmatpush1.bf16.msra.mxu0 %v5750
    %5835 = vmatprep.subr.bf16.mxu0 %v5755
    %5836 = vmatpush1.bf16.msra.mxu0 %v5754
    %5837 = vmatprep.subr.bf16.mxu0 %v5759
    %5838 = vmatpush1.bf16.msra.mxu0 %v5758
    %5839 = vmatprep.subr.bf16.mxu0 %v5763
    %5840 = vmatpush1.bf16.msra.mxu0 %v5762
    %5841 = vmatprep.subr.bf16.mxu0 %v5767
    %5842 = vmatpush1.bf16.msra.mxu0 %v5766
    %5843 = vmatprep.subr.bf16.mxu0 %v5771
    %5844 = vmatpush1.bf16.msra.mxu0 %v5770
    %5845 = vmatprep.mubr.bf16.mxu0 %v5190
    %5846 = vmatmul.mubr.bf16.gmra.mrb[0].mxu0 %v5707
    %v5847 = vpop.f32.mrb[0].mxu0
    %v5848 = vadd.f32 %v203, %v5847
    %v5849 = vpop.f32.mrb[0].mxu0
    %v5850 = vadd.f32 %v207, %v5849
    %v5851 = vpop.f32.mrb[0].mxu0
    %v5852 = vpop.f32.mrb[0].mxu0
    %5853 = vdwg.mxu0
    %v5854 = vmul.f32 %v5807, 0.5
    %v5855 = vtanh.pop %v5854
    %v5856 = vmul.f32 %v5855, 0.5
    %v5857 = vadd.f32 %v5856, 0.5
    %v5858 = vmul.f32 %v5809, 0.5
    %v5859 = vtanh.pop %v5858
    %v5860 = vmul.f32 %v5859, 0.5
    %v5861 = vadd.f32 %v5860, 0.5
    %v5862 = vtanh.pop %v5848
    %v5863 = vmul.f32 %v5850, 0.5
    %v5864 = vtanh.pop %v5863
    %v5865 = vmul.f32 %v5864, 0.5
    %v5866 = vadd.f32 %v5865, 0.5
    %v5867 = vmul.f32 %v5861, %v5187
    %v5868 = vmul.f32 %v5857, %v5862
    %v5869 = vadd.f32 %v5867, %v5868
    %v5870 = vtanh.pop %v5869
    %v5871 = vmul.f32 %v5866, %v5870
    %v5872 = vpack.c.bf16 %v5871, %v5871
    %v5873 = vld [vmem:[#allocation4] sm:$0xff]
    %v5874 = vld [vmem:[#allocation4 + $0x8] sm:$0xff]
    %v5875 = vld [vmem:[#allocation4 + $0x10] sm:$0xff]
    %v5876 = vld [vmem:[#allocation4 + $0x18] sm:$0xff]
    %v5877 = vld [vmem:[#allocation4 + $0x20] sm:$0xff]
    %v5878 = vld [vmem:[#allocation4 + $0x28] sm:$0xff]
    %v5879 = vld [vmem:[#allocation4 + $0x30] sm:$0xff]
    %v5880 = vld [vmem:[#allocation4 + $0x38] sm:$0xff]
    %v5881 = vld [vmem:[#allocation4 + $0x40] sm:$0xff]
    %v5882 = vld [vmem:[#allocation4 + $0x48] sm:$0xff]
    %v5883 = vld [vmem:[#allocation4 + $0x50] sm:$0xff]
    %v5884 = vld [vmem:[#allocation4 + $0x58] sm:$0xff]
    %v5885 = vld [vmem:[#allocation4 + $0x60] sm:$0xff]
    %v5886 = vld [vmem:[#allocation4 + $0x68] sm:$0xff]
    %v5887 = vld [vmem:[#allocation4 + $0x70] sm:$0xff]
    %v5888 = vld [vmem:[#allocation4 + $0x78] sm:$0xff]
    %v5889 = vld [vmem:[#allocation4 + $0x80] sm:$0xff]
    %v5890 = vld [vmem:[#allocation4 + $0x88] sm:$0xff]
    %v5891 = vld [vmem:[#allocation4 + $0x90] sm:$0xff]
    %v5892 = vld [vmem:[#allocation4 + $0x98] sm:$0xff]
    %v5893 = vld [vmem:[#allocation4 + $0xa0] sm:$0xff]
    %v5894 = vld [vmem:[#allocation4 + $0xa8] sm:$0xff]
    %v5895 = vld [vmem:[#allocation4 + $0xb0] sm:$0xff]
    %v5896 = vld [vmem:[#allocation4 + $0xb8] sm:$0xff]
    %v5897 = vld [vmem:[#allocation4 + $0xc0] sm:$0xff]
    %v5898 = vld [vmem:[#allocation4 + $0xc8] sm:$0xff]
    %v5899 = vld [vmem:[#allocation4 + $0xd0] sm:$0xff]
    %v5900 = vld [vmem:[#allocation4 + $0xd8] sm:$0xff]
    %v5901 = vld [vmem:[#allocation4 + $0xe0] sm:$0xff]
    %v5902 = vld [vmem:[#allocation4 + $0xe8] sm:$0xff]
    %v5903 = vld [vmem:[#allocation4 + $0xf0] sm:$0xff]
    %v5904 = vld [vmem:[#allocation4 + $0xf8] sm:$0xff]
    %v5905 = vld [vmem:[#allocation4 + $0x100] sm:$0xff]
    %v5906 = vld [vmem:[#allocation4 + $0x108] sm:$0xff]
    %v5907 = vld [vmem:[#allocation4 + $0x110] sm:$0xff]
    %v5908 = vld [vmem:[#allocation4 + $0x118] sm:$0xff]
    %v5909 = vld [vmem:[#allocation4 + $0x120] sm:$0xff]
    %v5910 = vld [vmem:[#allocation4 + $0x128] sm:$0xff]
    %v5911 = vld [vmem:[#allocation4 + $0x130] sm:$0xff]
    %v5912 = vld [vmem:[#allocation4 + $0x138] sm:$0xff]
    %v5913 = vld [vmem:[#allocation4 + $0x140] sm:$0xff]
    %v5914 = vld [vmem:[#allocation4 + $0x148] sm:$0xff]
    %v5915 = vld [vmem:[#allocation4 + $0x150] sm:$0xff]
    %v5916 = vld [vmem:[#allocation4 + $0x158] sm:$0xff]
    %v5917 = vld [vmem:[#allocation4 + $0x160] sm:$0xff]
    %v5918 = vld [vmem:[#allocation4 + $0x168] sm:$0xff]
    %v5919 = vld [vmem:[#allocation4 + $0x170] sm:$0xff]
    %v5920 = vld [vmem:[#allocation4 + $0x178] sm:$0xff]
    %v5921 = vld [vmem:[#allocation4 + $0x180] sm:$0xff]
    %v5922 = vld [vmem:[#allocation4 + $0x188] sm:$0xff]
    %v5923 = vld [vmem:[#allocation4 + $0x190] sm:$0xff]
    %v5924 = vld [vmem:[#allocation4 + $0x198] sm:$0xff]
    %v5925 = vld [vmem:[#allocation4 + $0x1a0] sm:$0xff]
    %v5926 = vld [vmem:[#allocation4 + $0x1a8] sm:$0xff]
    %v5927 = vld [vmem:[#allocation4 + $0x1b0] sm:$0xff]
    %v5928 = vld [vmem:[#allocation4 + $0x1b8] sm:$0xff]
    %v5929 = vld [vmem:[#allocation4 + $0x1c0] sm:$0xff]
    %v5930 = vld [vmem:[#allocation4 + $0x1c8] sm:$0xff]
    %v5931 = vld [vmem:[#allocation4 + $0x1d0] sm:$0xff]
    %v5932 = vld [vmem:[#allocation4 + $0x1d8] sm:$0xff]
    %v5933 = vld [vmem:[#allocation4 + $0x1e0] sm:$0xff]
    %v5934 = vld [vmem:[#allocation4 + $0x1e8] sm:$0xff]
    %v5935 = vld [vmem:[#allocation4 + $0x1f0] sm:$0xff]
    %v5936 = vld [vmem:[#allocation4 + $0x1f8] sm:$0xff]
    %5937 = vmatprep.subr.bf16.mxu0 %v5874
    %5938 = vmatpush1.bf16.msra.mxu0 %v5873
    %5939 = vmatprep.subr.bf16.mxu0 %v5878
    %5940 = vmatpush1.bf16.msra.mxu0 %v5877
    %5941 = vmatprep.subr.bf16.mxu0 %v5882
    %5942 = vmatpush1.bf16.msra.mxu0 %v5881
    %5943 = vmatprep.subr.bf16.mxu0 %v5886
    %5944 = vmatpush1.bf16.msra.mxu0 %v5885
    %5945 = vmatprep.subr.bf16.mxu0 %v5890
    %5946 = vmatpush1.bf16.msra.mxu0 %v5889
    %5947 = vmatprep.subr.bf16.mxu0 %v5894
    %5948 = vmatpush1.bf16.msra.mxu0 %v5893
    %5949 = vmatprep.subr.bf16.mxu0 %v5898
    %5950 = vmatpush1.bf16.msra.mxu0 %v5897
    %5951 = vmatprep.subr.bf16.mxu0 %v5902
    %5952 = vmatpush1.bf16.msra.mxu0 %v5901
    %5953 = vmatprep.subr.bf16.mxu0 %v5906
    %5954 = vmatpush1.bf16.msra.mxu0 %v5905
    %5955 = vmatprep.subr.bf16.mxu0 %v5910
    %5956 = vmatpush1.bf16.msra.mxu0 %v5909
    %5957 = vmatprep.subr.bf16.mxu0 %v5914
    %5958 = vmatpush1.bf16.msra.mxu0 %v5913
    %5959 = vmatprep.subr.bf16.mxu0 %v5918
    %5960 = vmatpush1.bf16.msra.mxu0 %v5917
    %5961 = vmatprep.subr.bf16.mxu0 %v5922
    %5962 = vmatpush1.bf16.msra.mxu0 %v5921
    %5963 = vmatprep.subr.bf16.mxu0 %v5926
    %5964 = vmatpush1.bf16.msra.mxu0 %v5925
    %5965 = vmatprep.subr.bf16.mxu0 %v5930
    %5966 = vmatpush1.bf16.msra.mxu0 %v5929
    %5967 = vmatprep.subr.bf16.mxu0 %v5934
    %5968 = vmatpush1.bf16.msra.mxu0 %v5933
    %5969 = vmatprep.mubr.bf16.mxu0 %v5355
    %5970 = vmatmul.mubr.bf16.gmra.mrb[0].mxu0 %v5872
    %v5971 = vpop.f32.mrb[0].mxu0
    %v5972 = vadd.f32 %v217, %v5971
    %v5973 = vpop.f32.mrb[0].mxu0
    %v5974 = vadd.f32 %v221, %v5973
    %v5975 = vpop.f32.mrb[0].mxu0
    %v5976 = vpop.f32.mrb[0].mxu0
    %5977 = vdwg.mxu0
    %5978 = vmatprep.subr.bf16.mxu0 %v5876
    %5979 = vmatpush1.bf16.msra.mxu0 %v5875
    %5980 = vmatprep.subr.bf16.mxu0 %v5880
    %5981 = vmatpush1.bf16.msra.mxu0 %v5879
    %5982 = vmatprep.subr.bf16.mxu0 %v5884
    %5983 = vmatpush1.bf16.msra.mxu0 %v5883
    %5984 = vmatprep.subr.bf16.mxu0 %v5888
    %5985 = vmatpush1.bf16.msra.mxu0 %v5887
    %5986 = vmatprep.subr.bf16.mxu0 %v5892
    %5987 = vmatpush1.bf16.msra.mxu0 %v5891
    %5988 = vmatprep.subr.bf16.mxu0 %v5896
    %5989 = vmatpush1.bf16.msra.mxu0 %v5895
    %5990 = vmatprep.subr.bf16.mxu0 %v5900
    %5991 = vmatpush1.bf16.msra.mxu0 %v5899
    %5992 = vmatprep.subr.bf16.mxu0 %v5904
    %5993 = vmatpush1.bf16.msra.mxu0 %v5903
    %5994 = vmatprep.subr.bf16.mxu0 %v5908
    %5995 = vmatpush1.bf16.msra.mxu0 %v5907
    %5996 = vmatprep.subr.bf16.mxu0 %v5912
    %5997 = vmatpush1.bf16.msra.mxu0 %v5911
    %5998 = vmatprep.subr.bf16.mxu0 %v5916
    %5999 = vmatpush1.bf16.msra.mxu0 %v5915
    %6000 = vmatprep.subr.bf16.mxu0 %v5920
    %6001 = vmatpush1.bf16.msra.mxu0 %v5919
    %6002 = vmatprep.subr.bf16.mxu0 %v5924
    %6003 = vmatpush1.bf16.msra.mxu0 %v5923
    %6004 = vmatprep.subr.bf16.mxu0 %v5928
    %6005 = vmatpush1.bf16.msra.mxu0 %v5927
    %6006 = vmatprep.subr.bf16.mxu0 %v5932
    %6007 = vmatpush1.bf16.msra.mxu0 %v5931
    %6008 = vmatprep.subr.bf16.mxu0 %v5936
    %6009 = vmatpush1.bf16.msra.mxu0 %v5935
    %6010 = vmatprep.mubr.bf16.mxu0 %v5355
    %6011 = vmatmul.mubr.bf16.gmra.mrb[0].mxu0 %v5872
    %v6012 = vpop.f32.mrb[0].mxu0
    %v6013 = vadd.f32 %v225, %v6012
    %v6014 = vpop.f32.mrb[0].mxu0
    %v6015 = vadd.f32 %v229, %v6014
    %v6016 = vpop.f32.mrb[0].mxu0
    %v6017 = vpop.f32.mrb[0].mxu0
    %6018 = vdwg.mxu0
    %v6019 = vmul.f32 %v5972, 0.5
    %v6020 = vtanh.pop %v6019
    %v6021 = vmul.f32 %v6020, 0.5
    %v6022 = vadd.f32 %v6021, 0.5
    %v6023 = vmul.f32 %v5974, 0.5
    %v6024 = vtanh.pop %v6023
    %v6025 = vmul.f32 %v6024, 0.5
    %v6026 = vadd.f32 %v6025, 0.5
    %v6027 = vtanh.pop %v6013
    %v6028 = vmul.f32 %v6015, 0.5
    %v6029 = vtanh.pop %v6028
    %v6030 = vmul.f32 %v6029, 0.5
    %v6031 = vadd.f32 %v6030, 0.5
    %v6032 = vmul.f32 %v6026, %v5352
    %v6033 = vmul.f32 %v6022, %v6027
    %v6034 = vadd.f32 %v6032, %v6033
    %v6035 = vtanh.pop %v6034
    %v6036 = vmul.f32 %v6031, %v6035
    %v6037 = vpack.c.bf16 %v6036, %v6036
    %v6038 = vld [vmem:[#allocation5] sm:$0xff]
    %v6039 = vld [vmem:[#allocation5 + $0x8] sm:$0xff]
    %v6040 = vld [vmem:[#allocation5 + $0x10] sm:$0xff]
    %v6041 = vld [vmem:[#allocation5 + $0x18] sm:$0xff]
    %v6042 = vld [vmem:[#allocation5 + $0x20] sm:$0xff]
    %v6043 = vld [vmem:[#allocation5 + $0x28] sm:$0xff]
    %v6044 = vld [vmem:[#allocation5 + $0x30] sm:$0xff]
    %v6045 = vld [vmem:[#allocation5 + $0x38] sm:$0xff]
    %6046 = vmatprep.subr.bf16.mxu0 0
    %6047 = vmatpush1.bf16.msra.mxu0 %v6038
    %6048 = vmatprep.subr.bf16.mxu0 0
    %6049 = vmatpush1.bf16.msra.mxu0 %v6039
    %6050 = vmatprep.subr.bf16.mxu0 0
    %6051 = vmatpush1.bf16.msra.mxu0 %v6040
    %6052 = vmatprep.subr.bf16.mxu0 0
    %6053 = vmatpush1.bf16.msra.mxu0 %v6041
    %6054 = vmatprep.subr.bf16.mxu0 0
    %6055 = vmatpush1.bf16.msra.mxu0 %v6042
    %6056 = vmatprep.subr.bf16.mxu0 0
    %6057 = vmatpush1.bf16.msra.mxu0 %v6043
    %6058 = vmatprep.subr.bf16.mxu0 0
    %6059 = vmatpush1.bf16.msra.mxu0 %v6044
    %6060 = vmatprep.subr.bf16.mxu0 0
    %6061 = vmatpush1.bf16.msra.mxu0 %v6045
    %6062 = vmatprep.subr.bf16.mxu0 0
    %6063 = vmatpush1.bf16.msra.mxu0 0
    %6064 = vmatprep.subr.bf16.mxu0 0
    %6065 = vmatpush1.bf16.msra.mxu0 0
    %6066 = vmatprep.subr.bf16.mxu0 0
    %6067 = vmatpush1.bf16.msra.mxu0 0
    %6068 = vmatprep.subr.bf16.mxu0 0
    %6069 = vmatpush1.bf16.msra.mxu0 0
    %6070 = vmatprep.subr.bf16.mxu0 0
    %6071 = vmatpush1.bf16.msra.mxu0 0
    %6072 = vmatprep.subr.bf16.mxu0 0
    %6073 = vmatpush1.bf16.msra.mxu0 0
    %6074 = vmatprep.subr.bf16.mxu0 0
    %6075 = vmatpush1.bf16.msra.mxu0 0
    %6076 = vmatprep.subr.bf16.mxu0 0
    %6077 = vmatpush1.bf16.msra.mxu0 0
    %6078 = vmatprep.mubr.bf16.mxu0 0
    %6079 = vmatmul.mubr.bf16.gmra.mrb[0].mxu0 %v6037
    %v6080 = vpop.f32.mrb[0].mxu0
    %v6081 = vadd.f32 %v239, %v6080
    %v6082 = vpop.f32.mrb[0].mxu0
    %v6083 = vpop.f32.mrb[0].mxu0
    %v6084 = vpop.f32.mrb[0].mxu0
    %6085 = vdwg.mxu0
    %s6086 = scalar_lea.vmem %s9, 56
    %6087 = vst [vmem:[%s6086] sm:$0xff] %v6081
    %v6088 = vpack.c.bf16 %v6081, %v6081
    %v6089 = vld [vmem:[#allocation7] sm:$0xff]
    %v6090 = vld [vmem:[#allocation7 + $0x8] sm:$0xff]
    %v6091 = vld [vmem:[#allocation7 + $0x10] sm:$0xff]
    %v6092 = vld [vmem:[#allocation7 + $0x18] sm:$0xff]
    %v6093 = vld [vmem:[#allocation7 + $0x20] sm:$0xff]
    %v6094 = vld [vmem:[#allocation7 + $0x28] sm:$0xff]
    %v6095 = vld [vmem:[#allocation7 + $0x30] sm:$0xff]
    %v6096 = vld [vmem:[#allocation7 + $0x38] sm:$0xff]
    %v6097 = vld [vmem:[#allocation7 + $0x40] sm:$0xff]
    %v6098 = vld [vmem:[#allocation7 + $0x48] sm:$0xff]
    %v6099 = vld [vmem:[#allocation7 + $0x50] sm:$0xff]
    %v6100 = vld [vmem:[#allocation7 + $0x58] sm:$0xff]
    %v6101 = vld [vmem:[#allocation7 + $0x60] sm:$0xff]
    %v6102 = vld [vmem:[#allocation7 + $0x68] sm:$0xff]
    %v6103 = vld [vmem:[#allocation7 + $0x70] sm:$0xff]
    %v6104 = vld [vmem:[#allocation7 + $0x78] sm:$0xff]
    %v6105 = vld [vmem:[#allocation7 + $0x80] sm:$0xff]
    %v6106 = vld [vmem:[#allocation7 + $0x88] sm:$0xff]
    %v6107 = vld [vmem:[#allocation7 + $0x90] sm:$0xff]
    %v6108 = vld [vmem:[#allocation7 + $0x98] sm:$0xff]
    %v6109 = vld [vmem:[#allocation7 + $0xa0] sm:$0xff]
    %v6110 = vld [vmem:[#allocation7 + $0xa8] sm:$0xff]
    %v6111 = vld [vmem:[#allocation7 + $0xb0] sm:$0xff]
    %v6112 = vld [vmem:[#allocation7 + $0xb8] sm:$0xff]
    %v6113 = vld [vmem:[#allocation7 + $0xc0] sm:$0xff]
    %v6114 = vld [vmem:[#allocation7 + $0xc8] sm:$0xff]
    %v6115 = vld [vmem:[#allocation7 + $0xd0] sm:$0xff]
    %v6116 = vld [vmem:[#allocation7 + $0xd8] sm:$0xff]
    %v6117 = vld [vmem:[#allocation7 + $0xe0] sm:$0xff]
    %v6118 = vld [vmem:[#allocation7 + $0xe8] sm:$0xff]
    %v6119 = vld [vmem:[#allocation7 + $0xf0] sm:$0xff]
    %v6120 = vld [vmem:[#allocation7 + $0xf8] sm:$0xff]
    %v6121 = vld [vmem:[#allocation7 + $0x100] sm:$0xff]
    %v6122 = vld [vmem:[#allocation7 + $0x108] sm:$0xff]
    %v6123 = vld [vmem:[#allocation7 + $0x110] sm:$0xff]
    %v6124 = vld [vmem:[#allocation7 + $0x118] sm:$0xff]
    %v6125 = vld [vmem:[#allocation7 + $0x120] sm:$0xff]
    %v6126 = vld [vmem:[#allocation7 + $0x128] sm:$0xff]
    %v6127 = vld [vmem:[#allocation7 + $0x130] sm:$0xff]
    %v6128 = vld [vmem:[#allocation7 + $0x138] sm:$0xff]
    %v6129 = vld [vmem:[#allocation7 + $0x140] sm:$0xff]
    %v6130 = vld [vmem:[#allocation7 + $0x148] sm:$0xff]
    %v6131 = vld [vmem:[#allocation7 + $0x150] sm:$0xff]
    %v6132 = vld [vmem:[#allocation7 + $0x158] sm:$0xff]
    %v6133 = vld [vmem:[#allocation7 + $0x160] sm:$0xff]
    %v6134 = vld [vmem:[#allocation7 + $0x168] sm:$0xff]
    %v6135 = vld [vmem:[#allocation7 + $0x170] sm:$0xff]
    %v6136 = vld [vmem:[#allocation7 + $0x178] sm:$0xff]
    %v6137 = vld [vmem:[#allocation7 + $0x180] sm:$0xff]
    %v6138 = vld [vmem:[#allocation7 + $0x188] sm:$0xff]
    %v6139 = vld [vmem:[#allocation7 + $0x190] sm:$0xff]
    %v6140 = vld [vmem:[#allocation7 + $0x198] sm:$0xff]
    %v6141 = vld [vmem:[#allocation7 + $0x1a0] sm:$0xff]
    %v6142 = vld [vmem:[#allocation7 + $0x1a8] sm:$0xff]
    %v6143 = vld [vmem:[#allocation7 + $0x1b0] sm:$0xff]
    %v6144 = vld [vmem:[#allocation7 + $0x1b8] sm:$0xff]
    %v6145 = vld [vmem:[#allocation7 + $0x1c0] sm:$0xff]
    %v6146 = vld [vmem:[#allocation7 + $0x1c8] sm:$0xff]
    %v6147 = vld [vmem:[#allocation7 + $0x1d0] sm:$0xff]
    %v6148 = vld [vmem:[#allocation7 + $0x1d8] sm:$0xff]
    %v6149 = vld [vmem:[#allocation7 + $0x1e0] sm:$0xff]
    %v6150 = vld [vmem:[#allocation7 + $0x1e8] sm:$0xff]
    %v6151 = vld [vmem:[#allocation7 + $0x1f0] sm:$0xff]
    %v6152 = vld [vmem:[#allocation7 + $0x1f8] sm:$0xff]
    %v6217 = vunpack.c.l.b16 %v6089
    %v6218 = vunpack.c.h.b16 %v6089
    %v6219 = vunpack.c.l.b16 %v6090
    %v6220 = vunpack.c.h.b16 %v6090
    %v6221 = vunpack.c.l.b16 %v6091
    %v6222 = vunpack.c.h.b16 %v6091
    %v6223 = vunpack.c.l.b16 %v6092
    %v6224 = vunpack.c.h.b16 %v6092
    %v6225 = vunpack.c.l.b16 %v6093
    %v6226 = vunpack.c.h.b16 %v6093
    %v6227 = vunpack.c.l.b16 %v6094
    %v6228 = vunpack.c.h.b16 %v6094
    %v6229 = vunpack.c.l.b16 %v6095
    %v6230 = vunpack.c.h.b16 %v6095
    %v6231 = vunpack.c.l.b16 %v6096
    %v6232 = vunpack.c.h.b16 %v6096
    %v6233 = vunpack.c.l.b16 %v6097
    %v6234 = vunpack.c.h.b16 %v6097
    %v6235 = vunpack.c.l.b16 %v6098
    %v6236 = vunpack.c.h.b16 %v6098
    %v6237 = vunpack.c.l.b16 %v6099
    %v6238 = vunpack.c.h.b16 %v6099
    %v6239 = vunpack.c.l.b16 %v6100
    %v6240 = vunpack.c.h.b16 %v6100
    %v6241 = vunpack.c.l.b16 %v6101
    %v6242 = vunpack.c.h.b16 %v6101
    %v6243 = vunpack.c.l.b16 %v6102
    %v6244 = vunpack.c.h.b16 %v6102
    %v6245 = vunpack.c.l.b16 %v6103
    %v6246 = vunpack.c.h.b16 %v6103
    %v6247 = vunpack.c.l.b16 %v6104
    %v6248 = vunpack.c.h.b16 %v6104
    %v6249 = vunpack.c.l.b16 %v6105
    %v6250 = vunpack.c.h.b16 %v6105
    %v6251 = vunpack.c.l.b16 %v6106
    %v6252 = vunpack.c.h.b16 %v6106
    %v6253 = vunpack.c.l.b16 %v6107
    %v6254 = vunpack.c.h.b16 %v6107
    %v6255 = vunpack.c.l.b16 %v6108
    %v6256 = vunpack.c.h.b16 %v6108
    %v6257 = vunpack.c.l.b16 %v6109
    %v6258 = vunpack.c.h.b16 %v6109
    %v6259 = vunpack.c.l.b16 %v6110
    %v6260 = vunpack.c.h.b16 %v6110
    %v6261 = vunpack.c.l.b16 %v6111
    %v6262 = vunpack.c.h.b16 %v6111
    %v6263 = vunpack.c.l.b16 %v6112
    %v6264 = vunpack.c.h.b16 %v6112
    %v6265 = vunpack.c.l.b16 %v6113
    %v6266 = vunpack.c.h.b16 %v6113
    %v6267 = vunpack.c.l.b16 %v6114
    %v6268 = vunpack.c.h.b16 %v6114
    %v6269 = vunpack.c.l.b16 %v6115
    %v6270 = vunpack.c.h.b16 %v6115
    %v6271 = vunpack.c.l.b16 %v6116
    %v6272 = vunpack.c.h.b16 %v6116
    %v6273 = vunpack.c.l.b16 %v6117
    %v6274 = vunpack.c.h.b16 %v6117
    %v6275 = vunpack.c.l.b16 %v6118
    %v6276 = vunpack.c.h.b16 %v6118
    %v6277 = vunpack.c.l.b16 %v6119
    %v6278 = vunpack.c.h.b16 %v6119
    %v6279 = vunpack.c.l.b16 %v6120
    %v6280 = vunpack.c.h.b16 %v6120
    %v6281 = vunpack.c.l.b16 %v6121
    %v6282 = vunpack.c.h.b16 %v6121
    %v6283 = vunpack.c.l.b16 %v6122
    %v6284 = vunpack.c.h.b16 %v6122
    %v6285 = vunpack.c.l.b16 %v6123
    %v6286 = vunpack.c.h.b16 %v6123
    %v6287 = vunpack.c.l.b16 %v6124
    %v6288 = vunpack.c.h.b16 %v6124
    %v6289 = vunpack.c.l.b16 %v6125
    %v6290 = vunpack.c.h.b16 %v6125
    %v6291 = vunpack.c.l.b16 %v6126
    %v6292 = vunpack.c.h.b16 %v6126
    %v6293 = vunpack.c.l.b16 %v6127
    %v6294 = vunpack.c.h.b16 %v6127
    %v6295 = vunpack.c.l.b16 %v6128
    %v6296 = vunpack.c.h.b16 %v6128
    %v6297 = vunpack.c.l.b16 %v6129
    %v6298 = vunpack.c.h.b16 %v6129
    %v6299 = vunpack.c.l.b16 %v6130
    %v6300 = vunpack.c.h.b16 %v6130
    %v6301 = vunpack.c.l.b16 %v6131
    %v6302 = vunpack.c.h.b16 %v6131
    %v6303 = vunpack.c.l.b16 %v6132
    %v6304 = vunpack.c.h.b16 %v6132
    %v6305 = vunpack.c.l.b16 %v6133
    %v6306 = vunpack.c.h.b16 %v6133
    %v6307 = vunpack.c.l.b16 %v6134
    %v6308 = vunpack.c.h.b16 %v6134
    %v6309 = vunpack.c.l.b16 %v6135
    %v6310 = vunpack.c.h.b16 %v6135
    %v6311 = vunpack.c.l.b16 %v6136
    %v6312 = vunpack.c.h.b16 %v6136
    %v6313 = vunpack.c.l.b16 %v6137
    %v6314 = vunpack.c.h.b16 %v6137
    %v6315 = vunpack.c.l.b16 %v6138
    %v6316 = vunpack.c.h.b16 %v6138
    %v6317 = vunpack.c.l.b16 %v6139
    %v6318 = vunpack.c.h.b16 %v6139
    %v6319 = vunpack.c.l.b16 %v6140
    %v6320 = vunpack.c.h.b16 %v6140
    %v6321 = vunpack.c.l.b16 %v6141
    %v6322 = vunpack.c.h.b16 %v6141
    %v6323 = vunpack.c.l.b16 %v6142
    %v6324 = vunpack.c.h.b16 %v6142
    %v6325 = vunpack.c.l.b16 %v6143
    %v6326 = vunpack.c.h.b16 %v6143
    %v6327 = vunpack.c.l.b16 %v6144
    %v6328 = vunpack.c.h.b16 %v6144
    %v6329 = vunpack.c.l.b16 %v6145
    %v6330 = vunpack.c.h.b16 %v6145
    %v6331 = vunpack.c.l.b16 %v6146
    %v6332 = vunpack.c.h.b16 %v6146
    %v6333 = vunpack.c.l.b16 %v6147
    %v6334 = vunpack.c.h.b16 %v6147
    %v6335 = vunpack.c.l.b16 %v6148
    %v6336 = vunpack.c.h.b16 %v6148
    %v6337 = vunpack.c.l.b16 %v6149
    %v6338 = vunpack.c.h.b16 %v6149
    %v6339 = vunpack.c.l.b16 %v6150
    %v6340 = vunpack.c.h.b16 %v6150
    %v6341 = vunpack.c.l.b16 %v6151
    %v6342 = vunpack.c.h.b16 %v6151
    %v6343 = vunpack.c.l.b16 %v6152
    %v6344 = vunpack.c.h.b16 %v6152
    %v6345 = vpack.c.b16 %v6221, %v6217
    %v6346 = vpack.c.b16 %v6222, %v6218
    %v6347 = vpack.c.b16 %v6223, %v6219
    %v6348 = vpack.c.b16 %v6224, %v6220
    %v6349 = vpack.c.b16 %v6229, %v6225
    %v6350 = vpack.c.b16 %v6230, %v6226
    %v6351 = vpack.c.b16 %v6231, %v6227
    %v6352 = vpack.c.b16 %v6232, %v6228
    %v6353 = vpack.c.b16 %v6237, %v6233
    %v6354 = vpack.c.b16 %v6238, %v6234
    %v6355 = vpack.c.b16 %v6239, %v6235
    %v6356 = vpack.c.b16 %v6240, %v6236
    %v6357 = vpack.c.b16 %v6245, %v6241
    %v6358 = vpack.c.b16 %v6246, %v6242
    %v6359 = vpack.c.b16 %v6247, %v6243
    %v6360 = vpack.c.b16 %v6248, %v6244
    %v6361 = vpack.c.b16 %v6253, %v6249
    %v6362 = vpack.c.b16 %v6254, %v6250
    %v6363 = vpack.c.b16 %v6255, %v6251
    %v6364 = vpack.c.b16 %v6256, %v6252
    %v6365 = vpack.c.b16 %v6261, %v6257
    %v6366 = vpack.c.b16 %v6262, %v6258
    %v6367 = vpack.c.b16 %v6263, %v6259
    %v6368 = vpack.c.b16 %v6264, %v6260
    %v6369 = vpack.c.b16 %v6269, %v6265
    %v6370 = vpack.c.b16 %v6270, %v6266
    %v6371 = vpack.c.b16 %v6271, %v6267
    %v6372 = vpack.c.b16 %v6272, %v6268
    %v6373 = vpack.c.b16 %v6277, %v6273
    %v6374 = vpack.c.b16 %v6278, %v6274
    %v6375 = vpack.c.b16 %v6279, %v6275
    %v6376 = vpack.c.b16 %v6280, %v6276
    %v6377 = vpack.c.b16 %v6285, %v6281
    %v6378 = vpack.c.b16 %v6286, %v6282
    %v6379 = vpack.c.b16 %v6287, %v6283
    %v6380 = vpack.c.b16 %v6288, %v6284
    %v6381 = vpack.c.b16 %v6293, %v6289
    %v6382 = vpack.c.b16 %v6294, %v6290
    %v6383 = vpack.c.b16 %v6295, %v6291
    %v6384 = vpack.c.b16 %v6296, %v6292
    %v6385 = vpack.c.b16 %v6301, %v6297
    %v6386 = vpack.c.b16 %v6302, %v6298
    %v6387 = vpack.c.b16 %v6303, %v6299
    %v6388 = vpack.c.b16 %v6304, %v6300
    %v6389 = vpack.c.b16 %v6309, %v6305
    %v6390 = vpack.c.b16 %v6310, %v6306
    %v6391 = vpack.c.b16 %v6311, %v6307
    %v6392 = vpack.c.b16 %v6312, %v6308
    %v6393 = vpack.c.b16 %v6317, %v6313
    %v6394 = vpack.c.b16 %v6318, %v6314
    %v6395 = vpack.c.b16 %v6319, %v6315
    %v6396 = vpack.c.b16 %v6320, %v6316
    %v6397 = vpack.c.b16 %v6325, %v6321
    %v6398 = vpack.c.b16 %v6326, %v6322
    %v6399 = vpack.c.b16 %v6327, %v6323
    %v6400 = vpack.c.b16 %v6328, %v6324
    %v6401 = vpack.c.b16 %v6333, %v6329
    %v6402 = vpack.c.b16 %v6334, %v6330
    %v6403 = vpack.c.b16 %v6335, %v6331
    %v6404 = vpack.c.b16 %v6336, %v6332
    %v6405 = vpack.c.b16 %v6341, %v6337
    %v6406 = vpack.c.b16 %v6342, %v6338
    %v6407 = vpack.c.b16 %v6343, %v6339
    %v6408 = vpack.c.b16 %v6344, %v6340
    %6473 = vmatprep.subr.bf16.mxu0 %v6346
    %6474 = vmatpush1.bf16.msra.mxu0 %v6345
    %6475 = vmatprep.subr.bf16.mxu0 %v6350
    %6476 = vmatpush1.bf16.msra.mxu0 %v6349
    %6477 = vmatprep.subr.bf16.mxu0 %v6354
    %6478 = vmatpush1.bf16.msra.mxu0 %v6353
    %6479 = vmatprep.subr.bf16.mxu0 %v6358
    %6480 = vmatpush1.bf16.msra.mxu0 %v6357
    %6481 = vmatprep.subr.bf16.mxu0 %v6362
    %6482 = vmatpush1.bf16.msra.mxu0 %v6361
    %6483 = vmatprep.subr.bf16.mxu0 %v6366
    %6484 = vmatpush1.bf16.msra.mxu0 %v6365
    %6485 = vmatprep.subr.bf16.mxu0 %v6370
    %6486 = vmatpush1.bf16.msra.mxu0 %v6369
    %6487 = vmatprep.subr.bf16.mxu0 %v6374
    %6488 = vmatpush1.bf16.msra.mxu0 %v6373
    %6489 = vmatprep.subr.bf16.mxu0 %v6378
    %6490 = vmatpush1.bf16.msra.mxu0 %v6377
    %6491 = vmatprep.subr.bf16.mxu0 %v6382
    %6492 = vmatpush1.bf16.msra.mxu0 %v6381
    %6493 = vmatprep.subr.bf16.mxu0 %v6386
    %6494 = vmatpush1.bf16.msra.mxu0 %v6385
    %6495 = vmatprep.subr.bf16.mxu0 %v6390
    %6496 = vmatpush1.bf16.msra.mxu0 %v6389
    %6497 = vmatprep.subr.bf16.mxu0 %v6394
    %6498 = vmatpush1.bf16.msra.mxu0 %v6393
    %6499 = vmatprep.subr.bf16.mxu0 %v6398
    %6500 = vmatpush1.bf16.msra.mxu0 %v6397
    %6501 = vmatprep.subr.bf16.mxu0 %v6402
    %6502 = vmatpush1.bf16.msra.mxu0 %v6401
    %6503 = vmatprep.subr.bf16.mxu0 %v6406
    %6504 = vmatpush1.bf16.msra.mxu0 %v6405
    %6505 = vmatprep.mubr.bf16.mxu0 %v5707
    %6506 = vmatmul.mubr.bf16.gmra.mrb[0].mxu0 %v6088
    %v6507 = vpop.f32.mrb[0].mxu0
    %v6508 = vadd.f32 %v173, %v6507
    %v6509 = vpop.f32.mrb[0].mxu0
    %v6510 = vadd.f32 %v177, %v6509
    %v6511 = vpop.f32.mrb[0].mxu0
    %v6512 = vpop.f32.mrb[0].mxu0
    %6513 = vdwg.mxu0
    %6514 = vmatprep.subr.bf16.mxu0 %v6348
    %6515 = vmatpush1.bf16.msra.mxu0 %v6347
    %6516 = vmatprep.subr.bf16.mxu0 %v6352
    %6517 = vmatpush1.bf16.msra.mxu0 %v6351
    %6518 = vmatprep.subr.bf16.mxu0 %v6356
    %6519 = vmatpush1.bf16.msra.mxu0 %v6355
    %6520 = vmatprep.subr.bf16.mxu0 %v6360
    %6521 = vmatpush1.bf16.msra.mxu0 %v6359
    %6522 = vmatprep.subr.bf16.mxu0 %v6364
    %6523 = vmatpush1.bf16.msra.mxu0 %v6363
    %6524 = vmatprep.subr.bf16.mxu0 %v6368
    %6525 = vmatpush1.bf16.msra.mxu0 %v6367
    %6526 = vmatprep.subr.bf16.mxu0 %v6372
    %6527 = vmatpush1.bf16.msra.mxu0 %v6371
    %6528 = vmatprep.subr.bf16.mxu0 %v6376
    %6529 = vmatpush1.bf16.msra.mxu0 %v6375
    %6530 = vmatprep.subr.bf16.mxu0 %v6380
    %6531 = vmatpush1.bf16.msra.mxu0 %v6379
    %6532 = vmatprep.subr.bf16.mxu0 %v6384
    %6533 = vmatpush1.bf16.msra.mxu0 %v6383
    %6534 = vmatprep.subr.bf16.mxu0 %v6388
    %6535 = vmatpush1.bf16.msra.mxu0 %v6387
    %6536 = vmatprep.subr.bf16.mxu0 %v6392
    %6537 = vmatpush1.bf16.msra.mxu0 %v6391
    %6538 = vmatprep.subr.bf16.mxu0 %v6396
    %6539 = vmatpush1.bf16.msra.mxu0 %v6395
    %6540 = vmatprep.subr.bf16.mxu0 %v6400
    %6541 = vmatpush1.bf16.msra.mxu0 %v6399
    %6542 = vmatprep.subr.bf16.mxu0 %v6404
    %6543 = vmatpush1.bf16.msra.mxu0 %v6403
    %6544 = vmatprep.subr.bf16.mxu0 %v6408
    %6545 = vmatpush1.bf16.msra.mxu0 %v6407
    %6546 = vmatprep.mubr.bf16.mxu0 %v5707
    %6547 = vmatmul.mubr.bf16.gmra.mrb[0].mxu0 %v6088
    %v6548 = vpop.f32.mrb[0].mxu0
    %v6549 = vadd.f32 %v181, %v6548
    %v6550 = vpop.f32.mrb[0].mxu0
    %v6551 = vadd.f32 %v185, %v6550
    %v6552 = vpop.f32.mrb[0].mxu0
    %v6553 = vpop.f32.mrb[0].mxu0
    %6554 = vdwg.mxu0
    %v6555 = vmul.f32 %v6508, 0.5
    %v6556 = vtanh.pop %v6555
    %v6557 = vmul.f32 %v6556, 0.5
    %v6558 = vadd.f32 %v6557, 0.5
    %v6559 = vmul.f32 %v6510, 0.5
    %v6560 = vtanh.pop %v6559
    %v6561 = vmul.f32 %v6560, 0.5
    %v6562 = vadd.f32 %v6561, 0.5
    %v6563 = vtanh.pop %v6549
    %v6564 = vmul.f32 %v6551, 0.5
    %v6565 = vtanh.pop %v6564
    %v6566 = vmul.f32 %v6565, 0.5
    %v6567 = vadd.f32 %v6566, 0.5
    %v6568 = vmul.f32 %v6562, %v5704
    %v6569 = vmul.f32 %v6558, %v6563
    %v6570 = vadd.f32 %v6568, %v6569
    %v6571 = vtanh.pop %v6570
    %v6572 = vmul.f32 %v6567, %v6571
    %v6573 = vpack.c.bf16 %v6572, %v6572
    %v6574 = vld [vmem:[#allocation3] sm:$0xff]
    %v6575 = vld [vmem:[#allocation3 + $0x8] sm:$0xff]
    %v6576 = vld [vmem:[#allocation3 + $0x10] sm:$0xff]
    %v6577 = vld [vmem:[#allocation3 + $0x18] sm:$0xff]
    %v6578 = vld [vmem:[#allocation3 + $0x20] sm:$0xff]
    %v6579 = vld [vmem:[#allocation3 + $0x28] sm:$0xff]
    %v6580 = vld [vmem:[#allocation3 + $0x30] sm:$0xff]
    %v6581 = vld [vmem:[#allocation3 + $0x38] sm:$0xff]
    %v6582 = vld [vmem:[#allocation3 + $0x40] sm:$0xff]
    %v6583 = vld [vmem:[#allocation3 + $0x48] sm:$0xff]
    %v6584 = vld [vmem:[#allocation3 + $0x50] sm:$0xff]
    %v6585 = vld [vmem:[#allocation3 + $0x58] sm:$0xff]
    %v6586 = vld [vmem:[#allocation3 + $0x60] sm:$0xff]
    %v6587 = vld [vmem:[#allocation3 + $0x68] sm:$0xff]
    %v6588 = vld [vmem:[#allocation3 + $0x70] sm:$0xff]
    %v6589 = vld [vmem:[#allocation3 + $0x78] sm:$0xff]
    %v6590 = vld [vmem:[#allocation3 + $0x80] sm:$0xff]
    %v6591 = vld [vmem:[#allocation3 + $0x88] sm:$0xff]
    %v6592 = vld [vmem:[#allocation3 + $0x90] sm:$0xff]
    %v6593 = vld [vmem:[#allocation3 + $0x98] sm:$0xff]
    %v6594 = vld [vmem:[#allocation3 + $0xa0] sm:$0xff]
    %v6595 = vld [vmem:[#allocation3 + $0xa8] sm:$0xff]
    %v6596 = vld [vmem:[#allocation3 + $0xb0] sm:$0xff]
    %v6597 = vld [vmem:[#allocation3 + $0xb8] sm:$0xff]
    %v6598 = vld [vmem:[#allocation3 + $0xc0] sm:$0xff]
    %v6599 = vld [vmem:[#allocation3 + $0xc8] sm:$0xff]
    %v6600 = vld [vmem:[#allocation3 + $0xd0] sm:$0xff]
    %v6601 = vld [vmem:[#allocation3 + $0xd8] sm:$0xff]
    %v6602 = vld [vmem:[#allocation3 + $0xe0] sm:$0xff]
    %v6603 = vld [vmem:[#allocation3 + $0xe8] sm:$0xff]
    %v6604 = vld [vmem:[#allocation3 + $0xf0] sm:$0xff]
    %v6605 = vld [vmem:[#allocation3 + $0xf8] sm:$0xff]
    %v6606 = vld [vmem:[#allocation3 + $0x100] sm:$0xff]
    %v6607 = vld [vmem:[#allocation3 + $0x108] sm:$0xff]
    %v6608 = vld [vmem:[#allocation3 + $0x110] sm:$0xff]
    %v6609 = vld [vmem:[#allocation3 + $0x118] sm:$0xff]
    %v6610 = vld [vmem:[#allocation3 + $0x120] sm:$0xff]
    %v6611 = vld [vmem:[#allocation3 + $0x128] sm:$0xff]
    %v6612 = vld [vmem:[#allocation3 + $0x130] sm:$0xff]
    %v6613 = vld [vmem:[#allocation3 + $0x138] sm:$0xff]
    %v6614 = vld [vmem:[#allocation3 + $0x140] sm:$0xff]
    %v6615 = vld [vmem:[#allocation3 + $0x148] sm:$0xff]
    %v6616 = vld [vmem:[#allocation3 + $0x150] sm:$0xff]
    %v6617 = vld [vmem:[#allocation3 + $0x158] sm:$0xff]
    %v6618 = vld [vmem:[#allocation3 + $0x160] sm:$0xff]
    %v6619 = vld [vmem:[#allocation3 + $0x168] sm:$0xff]
    %v6620 = vld [vmem:[#allocation3 + $0x170] sm:$0xff]
    %v6621 = vld [vmem:[#allocation3 + $0x178] sm:$0xff]
    %v6622 = vld [vmem:[#allocation3 + $0x180] sm:$0xff]
    %v6623 = vld [vmem:[#allocation3 + $0x188] sm:$0xff]
    %v6624 = vld [vmem:[#allocation3 + $0x190] sm:$0xff]
    %v6625 = vld [vmem:[#allocation3 + $0x198] sm:$0xff]
    %v6626 = vld [vmem:[#allocation3 + $0x1a0] sm:$0xff]
    %v6627 = vld [vmem:[#allocation3 + $0x1a8] sm:$0xff]
    %v6628 = vld [vmem:[#allocation3 + $0x1b0] sm:$0xff]
    %v6629 = vld [vmem:[#allocation3 + $0x1b8] sm:$0xff]
    %v6630 = vld [vmem:[#allocation3 + $0x1c0] sm:$0xff]
    %v6631 = vld [vmem:[#allocation3 + $0x1c8] sm:$0xff]
    %v6632 = vld [vmem:[#allocation3 + $0x1d0] sm:$0xff]
    %v6633 = vld [vmem:[#allocation3 + $0x1d8] sm:$0xff]
    %v6634 = vld [vmem:[#allocation3 + $0x1e0] sm:$0xff]
    %v6635 = vld [vmem:[#allocation3 + $0x1e8] sm:$0xff]
    %v6636 = vld [vmem:[#allocation3 + $0x1f0] sm:$0xff]
    %v6637 = vld [vmem:[#allocation3 + $0x1f8] sm:$0xff]
    %6638 = vmatprep.subr.bf16.mxu0 %v6575
    %6639 = vmatpush1.bf16.msra.mxu0 %v6574
    %6640 = vmatprep.subr.bf16.mxu0 %v6579
    %6641 = vmatpush1.bf16.msra.mxu0 %v6578
    %6642 = vmatprep.subr.bf16.mxu0 %v6583
    %6643 = vmatpush1.bf16.msra.mxu0 %v6582
    %6644 = vmatprep.subr.bf16.mxu0 %v6587
    %6645 = vmatpush1.bf16.msra.mxu0 %v6586
    %6646 = vmatprep.subr.bf16.mxu0 %v6591
    %6647 = vmatpush1.bf16.msra.mxu0 %v6590
    %6648 = vmatprep.subr.bf16.mxu0 %v6595
    %6649 = vmatpush1.bf16.msra.mxu0 %v6594
    %6650 = vmatprep.subr.bf16.mxu0 %v6599
    %6651 = vmatpush1.bf16.msra.mxu0 %v6598
    %6652 = vmatprep.subr.bf16.mxu0 %v6603
    %6653 = vmatpush1.bf16.msra.mxu0 %v6602
    %6654 = vmatprep.subr.bf16.mxu0 %v6607
    %6655 = vmatpush1.bf16.msra.mxu0 %v6606
    %6656 = vmatprep.subr.bf16.mxu0 %v6611
    %6657 = vmatpush1.bf16.msra.mxu0 %v6610
    %6658 = vmatprep.subr.bf16.mxu0 %v6615
    %6659 = vmatpush1.bf16.msra.mxu0 %v6614
    %6660 = vmatprep.subr.bf16.mxu0 %v6619
    %6661 = vmatpush1.bf16.msra.mxu0 %v6618
    %6662 = vmatprep.subr.bf16.mxu0 %v6623
    %6663 = vmatpush1.bf16.msra.mxu0 %v6622
    %6664 = vmatprep.subr.bf16.mxu0 %v6627
    %6665 = vmatpush1.bf16.msra.mxu0 %v6626
    %6666 = vmatprep.subr.bf16.mxu0 %v6631
    %6667 = vmatpush1.bf16.msra.mxu0 %v6630
    %6668 = vmatprep.subr.bf16.mxu0 %v6635
    %6669 = vmatpush1.bf16.msra.mxu0 %v6634
    %6670 = vmatprep.mubr.bf16.mxu0 %v5872
    %6671 = vmatmul.mubr.bf16.gmra.mrb[0].mxu0 %v6573
    %v6672 = vpop.f32.mrb[0].mxu0
    %v6673 = vadd.f32 %v195, %v6672
    %v6674 = vpop.f32.mrb[0].mxu0
    %v6675 = vadd.f32 %v199, %v6674
    %v6676 = vpop.f32.mrb[0].mxu0
    %v6677 = vpop.f32.mrb[0].mxu0
    %6678 = vdwg.mxu0
    %6679 = vmatprep.subr.bf16.mxu0 %v6577
    %6680 = vmatpush1.bf16.msra.mxu0 %v6576
    %6681 = vmatprep.subr.bf16.mxu0 %v6581
    %6682 = vmatpush1.bf16.msra.mxu0 %v6580
    %6683 = vmatprep.subr.bf16.mxu0 %v6585
    %6684 = vmatpush1.bf16.msra.mxu0 %v6584
    %6685 = vmatprep.subr.bf16.mxu0 %v6589
    %6686 = vmatpush1.bf16.msra.mxu0 %v6588
    %6687 = vmatprep.subr.bf16.mxu0 %v6593
    %6688 = vmatpush1.bf16.msra.mxu0 %v6592
    %6689 = vmatprep.subr.bf16.mxu0 %v6597
    %6690 = vmatpush1.bf16.msra.mxu0 %v6596
    %6691 = vmatprep.subr.bf16.mxu0 %v6601
    %6692 = vmatpush1.bf16.msra.mxu0 %v6600
    %6693 = vmatprep.subr.bf16.mxu0 %v6605
    %6694 = vmatpush1.bf16.msra.mxu0 %v6604
    %6695 = vmatprep.subr.bf16.mxu0 %v6609
    %6696 = vmatpush1.bf16.msra.mxu0 %v6608
    %6697 = vmatprep.subr.bf16.mxu0 %v6613
    %6698 = vmatpush1.bf16.msra.mxu0 %v6612
    %6699 = vmatprep.subr.bf16.mxu0 %v6617
    %6700 = vmatpush1.bf16.msra.mxu0 %v6616
    %6701 = vmatprep.subr.bf16.mxu0 %v6621
    %6702 = vmatpush1.bf16.msra.mxu0 %v6620
    %6703 = vmatprep.subr.bf16.mxu0 %v6625
    %6704 = vmatpush1.bf16.msra.mxu0 %v6624
    %6705 = vmatprep.subr.bf16.mxu0 %v6629
    %6706 = vmatpush1.bf16.msra.mxu0 %v6628
    %6707 = vmatprep.subr.bf16.mxu0 %v6633
    %6708 = vmatpush1.bf16.msra.mxu0 %v6632
    %6709 = vmatprep.subr.bf16.mxu0 %v6637
    %6710 = vmatpush1.bf16.msra.mxu0 %v6636
    %6711 = vmatprep.mubr.bf16.mxu0 %v5872
    %6712 = vmatmul.mubr.bf16.gmra.mrb[0].mxu0 %v6573
    %v6713 = vpop.f32.mrb[0].mxu0
    %v6714 = vadd.f32 %v203, %v6713
    %v6715 = vpop.f32.mrb[0].mxu0
    %v6716 = vadd.f32 %v207, %v6715
    %v6717 = vpop.f32.mrb[0].mxu0
    %v6718 = vpop.f32.mrb[0].mxu0
    %6719 = vdwg.mxu0
    %v6720 = vmul.f32 %v6673, 0.5
    %v6721 = vtanh.pop %v6720
    %v6722 = vmul.f32 %v6721, 0.5
    %v6723 = vadd.f32 %v6722, 0.5
    %v6724 = vmul.f32 %v6675, 0.5
    %v6725 = vtanh.pop %v6724
    %v6726 = vmul.f32 %v6725, 0.5
    %v6727 = vadd.f32 %v6726, 0.5
    %v6728 = vtanh.pop %v6714
    %v6729 = vmul.f32 %v6716, 0.5
    %v6730 = vtanh.pop %v6729
    %v6731 = vmul.f32 %v6730, 0.5
    %v6732 = vadd.f32 %v6731, 0.5
    %v6733 = vmul.f32 %v6727, %v5869
    %v6734 = vmul.f32 %v6723, %v6728
    %v6735 = vadd.f32 %v6733, %v6734
    %v6736 = vtanh.pop %v6735
    %v6737 = vmul.f32 %v6732, %v6736
    %v6738 = vpack.c.bf16 %v6737, %v6737
    %v6739 = vld [vmem:[#allocation4] sm:$0xff]
    %v6740 = vld [vmem:[#allocation4 + $0x8] sm:$0xff]
    %v6741 = vld [vmem:[#allocation4 + $0x10] sm:$0xff]
    %v6742 = vld [vmem:[#allocation4 + $0x18] sm:$0xff]
    %v6743 = vld [vmem:[#allocation4 + $0x20] sm:$0xff]
    %v6744 = vld [vmem:[#allocation4 + $0x28] sm:$0xff]
    %v6745 = vld [vmem:[#allocation4 + $0x30] sm:$0xff]
    %v6746 = vld [vmem:[#allocation4 + $0x38] sm:$0xff]
    %v6747 = vld [vmem:[#allocation4 + $0x40] sm:$0xff]
    %v6748 = vld [vmem:[#allocation4 + $0x48] sm:$0xff]
    %v6749 = vld [vmem:[#allocation4 + $0x50] sm:$0xff]
    %v6750 = vld [vmem:[#allocation4 + $0x58] sm:$0xff]
    %v6751 = vld [vmem:[#allocation4 + $0x60] sm:$0xff]
    %v6752 = vld [vmem:[#allocation4 + $0x68] sm:$0xff]
    %v6753 = vld [vmem:[#allocation4 + $0x70] sm:$0xff]
    %v6754 = vld [vmem:[#allocation4 + $0x78] sm:$0xff]
    %v6755 = vld [vmem:[#allocation4 + $0x80] sm:$0xff]
    %v6756 = vld [vmem:[#allocation4 + $0x88] sm:$0xff]
    %v6757 = vld [vmem:[#allocation4 + $0x90] sm:$0xff]
    %v6758 = vld [vmem:[#allocation4 + $0x98] sm:$0xff]
    %v6759 = vld [vmem:[#allocation4 + $0xa0] sm:$0xff]
    %v6760 = vld [vmem:[#allocation4 + $0xa8] sm:$0xff]
    %v6761 = vld [vmem:[#allocation4 + $0xb0] sm:$0xff]
    %v6762 = vld [vmem:[#allocation4 + $0xb8] sm:$0xff]
    %v6763 = vld [vmem:[#allocation4 + $0xc0] sm:$0xff]
    %v6764 = vld [vmem:[#allocation4 + $0xc8] sm:$0xff]
    %v6765 = vld [vmem:[#allocation4 + $0xd0] sm:$0xff]
    %v6766 = vld [vmem:[#allocation4 + $0xd8] sm:$0xff]
    %v6767 = vld [vmem:[#allocation4 + $0xe0] sm:$0xff]
    %v6768 = vld [vmem:[#allocation4 + $0xe8] sm:$0xff]
    %v6769 = vld [vmem:[#allocation4 + $0xf0] sm:$0xff]
    %v6770 = vld [vmem:[#allocation4 + $0xf8] sm:$0xff]
    %v6771 = vld [vmem:[#allocation4 + $0x100] sm:$0xff]
    %v6772 = vld [vmem:[#allocation4 + $0x108] sm:$0xff]
    %v6773 = vld [vmem:[#allocation4 + $0x110] sm:$0xff]
    %v6774 = vld [vmem:[#allocation4 + $0x118] sm:$0xff]
    %v6775 = vld [vmem:[#allocation4 + $0x120] sm:$0xff]
    %v6776 = vld [vmem:[#allocation4 + $0x128] sm:$0xff]
    %v6777 = vld [vmem:[#allocation4 + $0x130] sm:$0xff]
    %v6778 = vld [vmem:[#allocation4 + $0x138] sm:$0xff]
    %v6779 = vld [vmem:[#allocation4 + $0x140] sm:$0xff]
    %v6780 = vld [vmem:[#allocation4 + $0x148] sm:$0xff]
    %v6781 = vld [vmem:[#allocation4 + $0x150] sm:$0xff]
    %v6782 = vld [vmem:[#allocation4 + $0x158] sm:$0xff]
    %v6783 = vld [vmem:[#allocation4 + $0x160] sm:$0xff]
    %v6784 = vld [vmem:[#allocation4 + $0x168] sm:$0xff]
    %v6785 = vld [vmem:[#allocation4 + $0x170] sm:$0xff]
    %v6786 = vld [vmem:[#allocation4 + $0x178] sm:$0xff]
    %v6787 = vld [vmem:[#allocation4 + $0x180] sm:$0xff]
    %v6788 = vld [vmem:[#allocation4 + $0x188] sm:$0xff]
    %v6789 = vld [vmem:[#allocation4 + $0x190] sm:$0xff]
    %v6790 = vld [vmem:[#allocation4 + $0x198] sm:$0xff]
    %v6791 = vld [vmem:[#allocation4 + $0x1a0] sm:$0xff]
    %v6792 = vld [vmem:[#allocation4 + $0x1a8] sm:$0xff]
    %v6793 = vld [vmem:[#allocation4 + $0x1b0] sm:$0xff]
    %v6794 = vld [vmem:[#allocation4 + $0x1b8] sm:$0xff]
    %v6795 = vld [vmem:[#allocation4 + $0x1c0] sm:$0xff]
    %v6796 = vld [vmem:[#allocation4 + $0x1c8] sm:$0xff]
    %v6797 = vld [vmem:[#allocation4 + $0x1d0] sm:$0xff]
    %v6798 = vld [vmem:[#allocation4 + $0x1d8] sm:$0xff]
    %v6799 = vld [vmem:[#allocation4 + $0x1e0] sm:$0xff]
    %v6800 = vld [vmem:[#allocation4 + $0x1e8] sm:$0xff]
    %v6801 = vld [vmem:[#allocation4 + $0x1f0] sm:$0xff]
    %v6802 = vld [vmem:[#allocation4 + $0x1f8] sm:$0xff]
    %6803 = vmatprep.subr.bf16.mxu0 %v6740
    %6804 = vmatpush1.bf16.msra.mxu0 %v6739
    %6805 = vmatprep.subr.bf16.mxu0 %v6744
    %6806 = vmatpush1.bf16.msra.mxu0 %v6743
    %6807 = vmatprep.subr.bf16.mxu0 %v6748
    %6808 = vmatpush1.bf16.msra.mxu0 %v6747
    %6809 = vmatprep.subr.bf16.mxu0 %v6752
    %6810 = vmatpush1.bf16.msra.mxu0 %v6751
    %6811 = vmatprep.subr.bf16.mxu0 %v6756
    %6812 = vmatpush1.bf16.msra.mxu0 %v6755
    %6813 = vmatprep.subr.bf16.mxu0 %v6760
    %6814 = vmatpush1.bf16.msra.mxu0 %v6759
    %6815 = vmatprep.subr.bf16.mxu0 %v6764
    %6816 = vmatpush1.bf16.msra.mxu0 %v6763
    %6817 = vmatprep.subr.bf16.mxu0 %v6768
    %6818 = vmatpush1.bf16.msra.mxu0 %v6767
    %6819 = vmatprep.subr.bf16.mxu0 %v6772
    %6820 = vmatpush1.bf16.msra.mxu0 %v6771
    %6821 = vmatprep.subr.bf16.mxu0 %v6776
    %6822 = vmatpush1.bf16.msra.mxu0 %v6775
    %6823 = vmatprep.subr.bf16.mxu0 %v6780
    %6824 = vmatpush1.bf16.msra.mxu0 %v6779
    %6825 = vmatprep.subr.bf16.mxu0 %v6784
    %6826 = vmatpush1.bf16.msra.mxu0 %v6783
    %6827 = vmatprep.subr.bf16.mxu0 %v6788
    %6828 = vmatpush1.bf16.msra.mxu0 %v6787
    %6829 = vmatprep.subr.bf16.mxu0 %v6792
    %6830 = vmatpush1.bf16.msra.mxu0 %v6791
    %6831 = vmatprep.subr.bf16.mxu0 %v6796
    %6832 = vmatpush1.bf16.msra.mxu0 %v6795
    %6833 = vmatprep.subr.bf16.mxu0 %v6800
    %6834 = vmatpush1.bf16.msra.mxu0 %v6799
    %6835 = vmatprep.mubr.bf16.mxu0 %v6037
    %6836 = vmatmul.mubr.bf16.gmra.mrb[0].mxu0 %v6738
    %v6837 = vpop.f32.mrb[0].mxu0
    %v6838 = vadd.f32 %v217, %v6837
    %v6839 = vpop.f32.mrb[0].mxu0
    %v6840 = vadd.f32 %v221, %v6839
    %v6841 = vpop.f32.mrb[0].mxu0
    %v6842 = vpop.f32.mrb[0].mxu0
    %6843 = vdwg.mxu0
    %6844 = vmatprep.subr.bf16.mxu0 %v6742
    %6845 = vmatpush1.bf16.msra.mxu0 %v6741
    %6846 = vmatprep.subr.bf16.mxu0 %v6746
    %6847 = vmatpush1.bf16.msra.mxu0 %v6745
    %6848 = vmatprep.subr.bf16.mxu0 %v6750
    %6849 = vmatpush1.bf16.msra.mxu0 %v6749
    %6850 = vmatprep.subr.bf16.mxu0 %v6754
    %6851 = vmatpush1.bf16.msra.mxu0 %v6753
    %6852 = vmatprep.subr.bf16.mxu0 %v6758
    %6853 = vmatpush1.bf16.msra.mxu0 %v6757
    %6854 = vmatprep.subr.bf16.mxu0 %v6762
    %6855 = vmatpush1.bf16.msra.mxu0 %v6761
    %6856 = vmatprep.subr.bf16.mxu0 %v6766
    %6857 = vmatpush1.bf16.msra.mxu0 %v6765
    %6858 = vmatprep.subr.bf16.mxu0 %v6770
    %6859 = vmatpush1.bf16.msra.mxu0 %v6769
    %6860 = vmatprep.subr.bf16.mxu0 %v6774
    %6861 = vmatpush1.bf16.msra.mxu0 %v6773
    %6862 = vmatprep.subr.bf16.mxu0 %v6778
    %6863 = vmatpush1.bf16.msra.mxu0 %v6777
    %6864 = vmatprep.subr.bf16.mxu0 %v6782
    %6865 = vmatpush1.bf16.msra.mxu0 %v6781
    %6866 = vmatprep.subr.bf16.mxu0 %v6786
    %6867 = vmatpush1.bf16.msra.mxu0 %v6785
    %6868 = vmatprep.subr.bf16.mxu0 %v6790
    %6869 = vmatpush1.bf16.msra.mxu0 %v6789
    %6870 = vmatprep.subr.bf16.mxu0 %v6794
    %6871 = vmatpush1.bf16.msra.mxu0 %v6793
    %6872 = vmatprep.subr.bf16.mxu0 %v6798
    %6873 = vmatpush1.bf16.msra.mxu0 %v6797
    %6874 = vmatprep.subr.bf16.mxu0 %v6802
    %6875 = vmatpush1.bf16.msra.mxu0 %v6801
    %6876 = vmatprep.mubr.bf16.mxu0 %v6037
    %6877 = vmatmul.mubr.bf16.gmra.mrb[0].mxu0 %v6738
    %v6878 = vpop.f32.mrb[0].mxu0
    %v6879 = vadd.f32 %v225, %v6878
    %v6880 = vpop.f32.mrb[0].mxu0
    %v6881 = vadd.f32 %v229, %v6880
    %v6882 = vpop.f32.mrb[0].mxu0
    %v6883 = vpop.f32.mrb[0].mxu0
    %6884 = vdwg.mxu0
    %v6885 = vmul.f32 %v6838, 0.5
    %v6886 = vtanh.pop %v6885
    %v6887 = vmul.f32 %v6886, 0.5
    %v6888 = vadd.f32 %v6887, 0.5
    %v6889 = vmul.f32 %v6840, 0.5
    %v6890 = vtanh.pop %v6889
    %v6891 = vmul.f32 %v6890, 0.5
    %v6892 = vadd.f32 %v6891, 0.5
    %v6893 = vtanh.pop %v6879
    %v6894 = vmul.f32 %v6881, 0.5
    %v6895 = vtanh.pop %v6894
    %v6896 = vmul.f32 %v6895, 0.5
    %v6897 = vadd.f32 %v6896, 0.5
    %v6898 = vmul.f32 %v6892, %v6034
    %v6899 = vmul.f32 %v6888, %v6893
    %v6900 = vadd.f32 %v6898, %v6899
    %v6901 = vtanh.pop %v6900
    %v6902 = vmul.f32 %v6897, %v6901
    %v6903 = vpack.c.bf16 %v6902, %v6902
    %v6904 = vld [vmem:[#allocation5] sm:$0xff]
    %v6905 = vld [vmem:[#allocation5 + $0x8] sm:$0xff]
    %v6906 = vld [vmem:[#allocation5 + $0x10] sm:$0xff]
    %v6907 = vld [vmem:[#allocation5 + $0x18] sm:$0xff]
    %v6908 = vld [vmem:[#allocation5 + $0x20] sm:$0xff]
    %v6909 = vld [vmem:[#allocation5 + $0x28] sm:$0xff]
    %v6910 = vld [vmem:[#allocation5 + $0x30] sm:$0xff]
    %v6911 = vld [vmem:[#allocation5 + $0x38] sm:$0xff]
    %6912 = vmatprep.subr.bf16.mxu0 0
    %6913 = vmatpush1.bf16.msra.mxu0 %v6904
    %6914 = vmatprep.subr.bf16.mxu0 0
    %6915 = vmatpush1.bf16.msra.mxu0 %v6905
    %6916 = vmatprep.subr.bf16.mxu0 0
    %6917 = vmatpush1.bf16.msra.mxu0 %v6906
    %6918 = vmatprep.subr.bf16.mxu0 0
    %6919 = vmatpush1.bf16.msra.mxu0 %v6907
    %6920 = vmatprep.subr.bf16.mxu0 0
    %6921 = vmatpush1.bf16.msra.mxu0 %v6908
    %6922 = vmatprep.subr.bf16.mxu0 0
    %6923 = vmatpush1.bf16.msra.mxu0 %v6909
    %6924 = vmatprep.subr.bf16.mxu0 0
    %6925 = vmatpush1.bf16.msra.mxu0 %v6910
    %6926 = vmatprep.subr.bf16.mxu0 0
    %6927 = vmatpush1.bf16.msra.mxu0 %v6911
    %6928 = vmatprep.subr.bf16.mxu0 0
    %6929 = vmatpush1.bf16.msra.mxu0 0
    %6930 = vmatprep.subr.bf16.mxu0 0
    %6931 = vmatpush1.bf16.msra.mxu0 0
    %6932 = vmatprep.subr.bf16.mxu0 0
    %6933 = vmatpush1.bf16.msra.mxu0 0
    %6934 = vmatprep.subr.bf16.mxu0 0
    %6935 = vmatpush1.bf16.msra.mxu0 0
    %6936 = vmatprep.subr.bf16.mxu0 0
    %6937 = vmatpush1.bf16.msra.mxu0 0
    %6938 = vmatprep.subr.bf16.mxu0 0
    %6939 = vmatpush1.bf16.msra.mxu0 0
    %6940 = vmatprep.subr.bf16.mxu0 0
    %6941 = vmatpush1.bf16.msra.mxu0 0
    %6942 = vmatprep.subr.bf16.mxu0 0
    %6943 = vmatpush1.bf16.msra.mxu0 0
    %6944 = vmatprep.mubr.bf16.mxu0 0
    %6945 = vmatmul.mubr.bf16.gmra.mrb[0].mxu0 %v6903
    %v6946 = vpop.f32.mrb[0].mxu0
    %v6947 = vadd.f32 %v239, %v6946
    %v6948 = vpop.f32.mrb[0].mxu0
    %v6949 = vpop.f32.mrb[0].mxu0
    %v6950 = vpop.f32.mrb[0].mxu0
    %6951 = vdwg.mxu0
    %s6952 = scalar_lea.vmem %s9, 64
    %6953 = vst [vmem:[%s6952] sm:$0xff] %v6947
    %v6954 = vpack.c.bf16 %v6947, %v6947
    %v6955 = vld [vmem:[#allocation7] sm:$0xff]
    %v6956 = vld [vmem:[#allocation7 + $0x8] sm:$0xff]
    %v6957 = vld [vmem:[#allocation7 + $0x10] sm:$0xff]
    %v6958 = vld [vmem:[#allocation7 + $0x18] sm:$0xff]
    %v6959 = vld [vmem:[#allocation7 + $0x20] sm:$0xff]
    %v6960 = vld [vmem:[#allocation7 + $0x28] sm:$0xff]
    %v6961 = vld [vmem:[#allocation7 + $0x30] sm:$0xff]
    %v6962 = vld [vmem:[#allocation7 + $0x38] sm:$0xff]
    %v6963 = vld [vmem:[#allocation7 + $0x40] sm:$0xff]
    %v6964 = vld [vmem:[#allocation7 + $0x48] sm:$0xff]
    %v6965 = vld [vmem:[#allocation7 + $0x50] sm:$0xff]
    %v6966 = vld [vmem:[#allocation7 + $0x58] sm:$0xff]
    %v6967 = vld [vmem:[#allocation7 + $0x60] sm:$0xff]
    %v6968 = vld [vmem:[#allocation7 + $0x68] sm:$0xff]
    %v6969 = vld [vmem:[#allocation7 + $0x70] sm:$0xff]
    %v6970 = vld [vmem:[#allocation7 + $0x78] sm:$0xff]
    %v6971 = vld [vmem:[#allocation7 + $0x80] sm:$0xff]
    %v6972 = vld [vmem:[#allocation7 + $0x88] sm:$0xff]
    %v6973 = vld [vmem:[#allocation7 + $0x90] sm:$0xff]
    %v6974 = vld [vmem:[#allocation7 + $0x98] sm:$0xff]
    %v6975 = vld [vmem:[#allocation7 + $0xa0] sm:$0xff]
    %v6976 = vld [vmem:[#allocation7 + $0xa8] sm:$0xff]
    %v6977 = vld [vmem:[#allocation7 + $0xb0] sm:$0xff]
    %v6978 = vld [vmem:[#allocation7 + $0xb8] sm:$0xff]
    %v6979 = vld [vmem:[#allocation7 + $0xc0] sm:$0xff]
    %v6980 = vld [vmem:[#allocation7 + $0xc8] sm:$0xff]
    %v6981 = vld [vmem:[#allocation7 + $0xd0] sm:$0xff]
    %v6982 = vld [vmem:[#allocation7 + $0xd8] sm:$0xff]
    %v6983 = vld [vmem:[#allocation7 + $0xe0] sm:$0xff]
    %v6984 = vld [vmem:[#allocation7 + $0xe8] sm:$0xff]
    %v6985 = vld [vmem:[#allocation7 + $0xf0] sm:$0xff]
    %v6986 = vld [vmem:[#allocation7 + $0xf8] sm:$0xff]
    %v6987 = vld [vmem:[#allocation7 + $0x100] sm:$0xff]
    %v6988 = vld [vmem:[#allocation7 + $0x108] sm:$0xff]
    %v6989 = vld [vmem:[#allocation7 + $0x110] sm:$0xff]
    %v6990 = vld [vmem:[#allocation7 + $0x118] sm:$0xff]
    %v6991 = vld [vmem:[#allocation7 + $0x120] sm:$0xff]
    %v6992 = vld [vmem:[#allocation7 + $0x128] sm:$0xff]
    %v6993 = vld [vmem:[#allocation7 + $0x130] sm:$0xff]
    %v6994 = vld [vmem:[#allocation7 + $0x138] sm:$0xff]
    %v6995 = vld [vmem:[#allocation7 + $0x140] sm:$0xff]
    %v6996 = vld [vmem:[#allocation7 + $0x148] sm:$0xff]
    %v6997 = vld [vmem:[#allocation7 + $0x150] sm:$0xff]
    %v6998 = vld [vmem:[#allocation7 + $0x158] sm:$0xff]
    %v6999 = vld [vmem:[#allocation7 + $0x160] sm:$0xff]
    %v7000 = vld [vmem:[#allocation7 + $0x168] sm:$0xff]
    %v7001 = vld [vmem:[#allocation7 + $0x170] sm:$0xff]
    %v7002 = vld [vmem:[#allocation7 + $0x178] sm:$0xff]
    %v7003 = vld [vmem:[#allocation7 + $0x180] sm:$0xff]
    %v7004 = vld [vmem:[#allocation7 + $0x188] sm:$0xff]
    %v7005 = vld [vmem:[#allocation7 + $0x190] sm:$0xff]
    %v7006 = vld [vmem:[#allocation7 + $0x198] sm:$0xff]
    %v7007 = vld [vmem:[#allocation7 + $0x1a0] sm:$0xff]
    %v7008 = vld [vmem:[#allocation7 + $0x1a8] sm:$0xff]
    %v7009 = vld [vmem:[#allocation7 + $0x1b0] sm:$0xff]
    %v7010 = vld [vmem:[#allocation7 + $0x1b8] sm:$0xff]
    %v7011 = vld [vmem:[#allocation7 + $0x1c0] sm:$0xff]
    %v7012 = vld [vmem:[#allocation7 + $0x1c8] sm:$0xff]
    %v7013 = vld [vmem:[#allocation7 + $0x1d0] sm:$0xff]
    %v7014 = vld [vmem:[#allocation7 + $0x1d8] sm:$0xff]
    %v7015 = vld [vmem:[#allocation7 + $0x1e0] sm:$0xff]
    %v7016 = vld [vmem:[#allocation7 + $0x1e8] sm:$0xff]
    %v7017 = vld [vmem:[#allocation7 + $0x1f0] sm:$0xff]
    %v7018 = vld [vmem:[#allocation7 + $0x1f8] sm:$0xff]
    %v7083 = vunpack.c.l.b16 %v6955
    %v7084 = vunpack.c.h.b16 %v6955
    %v7085 = vunpack.c.l.b16 %v6956
    %v7086 = vunpack.c.h.b16 %v6956
    %v7087 = vunpack.c.l.b16 %v6957
    %v7088 = vunpack.c.h.b16 %v6957
    %v7089 = vunpack.c.l.b16 %v6958
    %v7090 = vunpack.c.h.b16 %v6958
    %v7091 = vunpack.c.l.b16 %v6959
    %v7092 = vunpack.c.h.b16 %v6959
    %v7093 = vunpack.c.l.b16 %v6960
    %v7094 = vunpack.c.h.b16 %v6960
    %v7095 = vunpack.c.l.b16 %v6961
    %v7096 = vunpack.c.h.b16 %v6961
    %v7097 = vunpack.c.l.b16 %v6962
    %v7098 = vunpack.c.h.b16 %v6962
    %v7099 = vunpack.c.l.b16 %v6963
    %v7100 = vunpack.c.h.b16 %v6963
    %v7101 = vunpack.c.l.b16 %v6964
    %v7102 = vunpack.c.h.b16 %v6964
    %v7103 = vunpack.c.l.b16 %v6965
    %v7104 = vunpack.c.h.b16 %v6965
    %v7105 = vunpack.c.l.b16 %v6966
    %v7106 = vunpack.c.h.b16 %v6966
    %v7107 = vunpack.c.l.b16 %v6967
    %v7108 = vunpack.c.h.b16 %v6967
    %v7109 = vunpack.c.l.b16 %v6968
    %v7110 = vunpack.c.h.b16 %v6968
    %v7111 = vunpack.c.l.b16 %v6969
    %v7112 = vunpack.c.h.b16 %v6969
    %v7113 = vunpack.c.l.b16 %v6970
    %v7114 = vunpack.c.h.b16 %v6970
    %v7115 = vunpack.c.l.b16 %v6971
    %v7116 = vunpack.c.h.b16 %v6971
    %v7117 = vunpack.c.l.b16 %v6972
    %v7118 = vunpack.c.h.b16 %v6972
    %v7119 = vunpack.c.l.b16 %v6973
    %v7120 = vunpack.c.h.b16 %v6973
    %v7121 = vunpack.c.l.b16 %v6974
    %v7122 = vunpack.c.h.b16 %v6974
    %v7123 = vunpack.c.l.b16 %v6975
    %v7124 = vunpack.c.h.b16 %v6975
    %v7125 = vunpack.c.l.b16 %v6976
    %v7126 = vunpack.c.h.b16 %v6976
    %v7127 = vunpack.c.l.b16 %v6977
    %v7128 = vunpack.c.h.b16 %v6977
    %v7129 = vunpack.c.l.b16 %v6978
    %v7130 = vunpack.c.h.b16 %v6978
    %v7131 = vunpack.c.l.b16 %v6979
    %v7132 = vunpack.c.h.b16 %v6979
    %v7133 = vunpack.c.l.b16 %v6980
    %v7134 = vunpack.c.h.b16 %v6980
    %v7135 = vunpack.c.l.b16 %v6981
    %v7136 = vunpack.c.h.b16 %v6981
    %v7137 = vunpack.c.l.b16 %v6982
    %v7138 = vunpack.c.h.b16 %v6982
    %v7139 = vunpack.c.l.b16 %v6983
    %v7140 = vunpack.c.h.b16 %v6983
    %v7141 = vunpack.c.l.b16 %v6984
    %v7142 = vunpack.c.h.b16 %v6984
    %v7143 = vunpack.c.l.b16 %v6985
    %v7144 = vunpack.c.h.b16 %v6985
    %v7145 = vunpack.c.l.b16 %v6986
    %v7146 = vunpack.c.h.b16 %v6986
    %v7147 = vunpack.c.l.b16 %v6987
    %v7148 = vunpack.c.h.b16 %v6987
    %v7149 = vunpack.c.l.b16 %v6988
    %v7150 = vunpack.c.h.b16 %v6988
    %v7151 = vunpack.c.l.b16 %v6989
    %v7152 = vunpack.c.h.b16 %v6989
    %v7153 = vunpack.c.l.b16 %v6990
    %v7154 = vunpack.c.h.b16 %v6990
    %v7155 = vunpack.c.l.b16 %v6991
    %v7156 = vunpack.c.h.b16 %v6991
    %v7157 = vunpack.c.l.b16 %v6992
    %v7158 = vunpack.c.h.b16 %v6992
    %v7159 = vunpack.c.l.b16 %v6993
    %v7160 = vunpack.c.h.b16 %v6993
    %v7161 = vunpack.c.l.b16 %v6994
    %v7162 = vunpack.c.h.b16 %v6994
    %v7163 = vunpack.c.l.b16 %v6995
    %v7164 = vunpack.c.h.b16 %v6995
    %v7165 = vunpack.c.l.b16 %v6996
    %v7166 = vunpack.c.h.b16 %v6996
    %v7167 = vunpack.c.l.b16 %v6997
    %v7168 = vunpack.c.h.b16 %v6997
    %v7169 = vunpack.c.l.b16 %v6998
    %v7170 = vunpack.c.h.b16 %v6998
    %v7171 = vunpack.c.l.b16 %v6999
    %v7172 = vunpack.c.h.b16 %v6999
    %v7173 = vunpack.c.l.b16 %v7000
    %v7174 = vunpack.c.h.b16 %v7000
    %v7175 = vunpack.c.l.b16 %v7001
    %v7176 = vunpack.c.h.b16 %v7001
    %v7177 = vunpack.c.l.b16 %v7002
    %v7178 = vunpack.c.h.b16 %v7002
    %v7179 = vunpack.c.l.b16 %v7003
    %v7180 = vunpack.c.h.b16 %v7003
    %v7181 = vunpack.c.l.b16 %v7004
    %v7182 = vunpack.c.h.b16 %v7004
    %v7183 = vunpack.c.l.b16 %v7005
    %v7184 = vunpack.c.h.b16 %v7005
    %v7185 = vunpack.c.l.b16 %v7006
    %v7186 = vunpack.c.h.b16 %v7006
    %v7187 = vunpack.c.l.b16 %v7007
    %v7188 = vunpack.c.h.b16 %v7007
    %v7189 = vunpack.c.l.b16 %v7008
    %v7190 = vunpack.c.h.b16 %v7008
    %v7191 = vunpack.c.l.b16 %v7009
    %v7192 = vunpack.c.h.b16 %v7009
    %v7193 = vunpack.c.l.b16 %v7010
    %v7194 = vunpack.c.h.b16 %v7010
    %v7195 = vunpack.c.l.b16 %v7011
    %v7196 = vunpack.c.h.b16 %v7011
    %v7197 = vunpack.c.l.b16 %v7012
    %v7198 = vunpack.c.h.b16 %v7012
    %v7199 = vunpack.c.l.b16 %v7013
    %v7200 = vunpack.c.h.b16 %v7013
    %v7201 = vunpack.c.l.b16 %v7014
    %v7202 = vunpack.c.h.b16 %v7014
    %v7203 = vunpack.c.l.b16 %v7015
    %v7204 = vunpack.c.h.b16 %v7015
    %v7205 = vunpack.c.l.b16 %v7016
    %v7206 = vunpack.c.h.b16 %v7016
    %v7207 = vunpack.c.l.b16 %v7017
    %v7208 = vunpack.c.h.b16 %v7017
    %v7209 = vunpack.c.l.b16 %v7018
    %v7210 = vunpack.c.h.b16 %v7018
    %v7211 = vpack.c.b16 %v7087, %v7083
    %v7212 = vpack.c.b16 %v7088, %v7084
    %v7213 = vpack.c.b16 %v7089, %v7085
    %v7214 = vpack.c.b16 %v7090, %v7086
    %v7215 = vpack.c.b16 %v7095, %v7091
    %v7216 = vpack.c.b16 %v7096, %v7092
    %v7217 = vpack.c.b16 %v7097, %v7093
    %v7218 = vpack.c.b16 %v7098, %v7094
    %v7219 = vpack.c.b16 %v7103, %v7099
    %v7220 = vpack.c.b16 %v7104, %v7100
    %v7221 = vpack.c.b16 %v7105, %v7101
    %v7222 = vpack.c.b16 %v7106, %v7102
    %v7223 = vpack.c.b16 %v7111, %v7107
    %v7224 = vpack.c.b16 %v7112, %v7108
    %v7225 = vpack.c.b16 %v7113, %v7109
    %v7226 = vpack.c.b16 %v7114, %v7110
    %v7227 = vpack.c.b16 %v7119, %v7115
    %v7228 = vpack.c.b16 %v7120, %v7116
    %v7229 = vpack.c.b16 %v7121, %v7117
    %v7230 = vpack.c.b16 %v7122, %v7118
    %v7231 = vpack.c.b16 %v7127, %v7123
    %v7232 = vpack.c.b16 %v7128, %v7124
    %v7233 = vpack.c.b16 %v7129, %v7125
    %v7234 = vpack.c.b16 %v7130, %v7126
    %v7235 = vpack.c.b16 %v7135, %v7131
    %v7236 = vpack.c.b16 %v7136, %v7132
    %v7237 = vpack.c.b16 %v7137, %v7133
    %v7238 = vpack.c.b16 %v7138, %v7134
    %v7239 = vpack.c.b16 %v7143, %v7139
    %v7240 = vpack.c.b16 %v7144, %v7140
    %v7241 = vpack.c.b16 %v7145, %v7141
    %v7242 = vpack.c.b16 %v7146, %v7142
    %v7243 = vpack.c.b16 %v7151, %v7147
    %v7244 = vpack.c.b16 %v7152, %v7148
    %v7245 = vpack.c.b16 %v7153, %v7149
    %v7246 = vpack.c.b16 %v7154, %v7150
    %v7247 = vpack.c.b16 %v7159, %v7155
    %v7248 = vpack.c.b16 %v7160, %v7156
    %v7249 = vpack.c.b16 %v7161, %v7157
    %v7250 = vpack.c.b16 %v7162, %v7158
    %v7251 = vpack.c.b16 %v7167, %v7163
    %v7252 = vpack.c.b16 %v7168, %v7164
    %v7253 = vpack.c.b16 %v7169, %v7165
    %v7254 = vpack.c.b16 %v7170, %v7166
    %v7255 = vpack.c.b16 %v7175, %v7171
    %v7256 = vpack.c.b16 %v7176, %v7172
    %v7257 = vpack.c.b16 %v7177, %v7173
    %v7258 = vpack.c.b16 %v7178, %v7174
    %v7259 = vpack.c.b16 %v7183, %v7179
    %v7260 = vpack.c.b16 %v7184, %v7180
    %v7261 = vpack.c.b16 %v7185, %v7181
    %v7262 = vpack.c.b16 %v7186, %v7182
    %v7263 = vpack.c.b16 %v7191, %v7187
    %v7264 = vpack.c.b16 %v7192, %v7188
    %v7265 = vpack.c.b16 %v7193, %v7189
    %v7266 = vpack.c.b16 %v7194, %v7190
    %v7267 = vpack.c.b16 %v7199, %v7195
    %v7268 = vpack.c.b16 %v7200, %v7196
    %v7269 = vpack.c.b16 %v7201, %v7197
    %v7270 = vpack.c.b16 %v7202, %v7198
    %v7271 = vpack.c.b16 %v7207, %v7203
    %v7272 = vpack.c.b16 %v7208, %v7204
    %v7273 = vpack.c.b16 %v7209, %v7205
    %v7274 = vpack.c.b16 %v7210, %v7206
    %7339 = vmatprep.subr.bf16.mxu0 %v7212
    %7340 = vmatpush1.bf16.msra.mxu0 %v7211
    %7341 = vmatprep.subr.bf16.mxu0 %v7216
    %7342 = vmatpush1.bf16.msra.mxu0 %v7215
    %7343 = vmatprep.subr.bf16.mxu0 %v7220
    %7344 = vmatpush1.bf16.msra.mxu0 %v7219
    %7345 = vmatprep.subr.bf16.mxu0 %v7224
    %7346 = vmatpush1.bf16.msra.mxu0 %v7223
    %7347 = vmatprep.subr.bf16.mxu0 %v7228
    %7348 = vmatpush1.bf16.msra.mxu0 %v7227
    %7349 = vmatprep.subr.bf16.mxu0 %v7232
    %7350 = vmatpush1.bf16.msra.mxu0 %v7231
    %7351 = vmatprep.subr.bf16.mxu0 %v7236
    %7352 = vmatpush1.bf16.msra.mxu0 %v7235
    %7353 = vmatprep.subr.bf16.mxu0 %v7240
    %7354 = vmatpush1.bf16.msra.mxu0 %v7239
    %7355 = vmatprep.subr.bf16.mxu0 %v7244
    %7356 = vmatpush1.bf16.msra.mxu0 %v7243
    %7357 = vmatprep.subr.bf16.mxu0 %v7248
    %7358 = vmatpush1.bf16.msra.mxu0 %v7247
    %7359 = vmatprep.subr.bf16.mxu0 %v7252
    %7360 = vmatpush1.bf16.msra.mxu0 %v7251
    %7361 = vmatprep.subr.bf16.mxu0 %v7256
    %7362 = vmatpush1.bf16.msra.mxu0 %v7255
    %7363 = vmatprep.subr.bf16.mxu0 %v7260
    %7364 = vmatpush1.bf16.msra.mxu0 %v7259
    %7365 = vmatprep.subr.bf16.mxu0 %v7264
    %7366 = vmatpush1.bf16.msra.mxu0 %v7263
    %7367 = vmatprep.subr.bf16.mxu0 %v7268
    %7368 = vmatpush1.bf16.msra.mxu0 %v7267
    %7369 = vmatprep.subr.bf16.mxu0 %v7272
    %7370 = vmatpush1.bf16.msra.mxu0 %v7271
    %7371 = vmatprep.mubr.bf16.mxu0 %v6573
    %7372 = vmatmul.mubr.bf16.gmra.mrb[0].mxu0 %v6954
    %v7373 = vpop.f32.mrb[0].mxu0
    %v7374 = vadd.f32 %v173, %v7373
    %v7375 = vpop.f32.mrb[0].mxu0
    %v7376 = vadd.f32 %v177, %v7375
    %v7377 = vpop.f32.mrb[0].mxu0
    %v7378 = vpop.f32.mrb[0].mxu0
    %7379 = vdwg.mxu0
    %7380 = vmatprep.subr.bf16.mxu0 %v7214
    %7381 = vmatpush1.bf16.msra.mxu0 %v7213
    %7382 = vmatprep.subr.bf16.mxu0 %v7218
    %7383 = vmatpush1.bf16.msra.mxu0 %v7217
    %7384 = vmatprep.subr.bf16.mxu0 %v7222
    %7385 = vmatpush1.bf16.msra.mxu0 %v7221
    %7386 = vmatprep.subr.bf16.mxu0 %v7226
    %7387 = vmatpush1.bf16.msra.mxu0 %v7225
    %7388 = vmatprep.subr.bf16.mxu0 %v7230
    %7389 = vmatpush1.bf16.msra.mxu0 %v7229
    %7390 = vmatprep.subr.bf16.mxu0 %v7234
    %7391 = vmatpush1.bf16.msra.mxu0 %v7233
    %7392 = vmatprep.subr.bf16.mxu0 %v7238
    %7393 = vmatpush1.bf16.msra.mxu0 %v7237
    %7394 = vmatprep.subr.bf16.mxu0 %v7242
    %7395 = vmatpush1.bf16.msra.mxu0 %v7241
    %7396 = vmatprep.subr.bf16.mxu0 %v7246
    %7397 = vmatpush1.bf16.msra.mxu0 %v7245
    %7398 = vmatprep.subr.bf16.mxu0 %v7250
    %7399 = vmatpush1.bf16.msra.mxu0 %v7249
    %7400 = vmatprep.subr.bf16.mxu0 %v7254
    %7401 = vmatpush1.bf16.msra.mxu0 %v7253
    %7402 = vmatprep.subr.bf16.mxu0 %v7258
    %7403 = vmatpush1.bf16.msra.mxu0 %v7257
    %7404 = vmatprep.subr.bf16.mxu0 %v7262
    %7405 = vmatpush1.bf16.msra.mxu0 %v7261
    %7406 = vmatprep.subr.bf16.mxu0 %v7266
    %7407 = vmatpush1.bf16.msra.mxu0 %v7265
    %7408 = vmatprep.subr.bf16.mxu0 %v7270
    %7409 = vmatpush1.bf16.msra.mxu0 %v7269
    %7410 = vmatprep.subr.bf16.mxu0 %v7274
    %7411 = vmatpush1.bf16.msra.mxu0 %v7273
    %7412 = vmatprep.mubr.bf16.mxu0 %v6573
    %7413 = vmatmul.mubr.bf16.gmra.mrb[0].mxu0 %v6954
    %v7414 = vpop.f32.mrb[0].mxu0
    %v7415 = vadd.f32 %v181, %v7414
    %v7416 = vpop.f32.mrb[0].mxu0
    %v7417 = vadd.f32 %v185, %v7416
    %v7418 = vpop.f32.mrb[0].mxu0
    %v7419 = vpop.f32.mrb[0].mxu0
    %7420 = vdwg.mxu0
    %v7421 = vmul.f32 %v7374, 0.5
    %v7422 = vtanh.pop %v7421
    %v7423 = vmul.f32 %v7422, 0.5
    %v7424 = vadd.f32 %v7423, 0.5
    %v7425 = vmul.f32 %v7376, 0.5
    %v7426 = vtanh.pop %v7425
    %v7427 = vmul.f32 %v7426, 0.5
    %v7428 = vadd.f32 %v7427, 0.5
    %v7429 = vtanh.pop %v7415
    %v7430 = vmul.f32 %v7417, 0.5
    %v7431 = vtanh.pop %v7430
    %v7432 = vmul.f32 %v7431, 0.5
    %v7433 = vadd.f32 %v7432, 0.5
    %v7434 = vmul.f32 %v7428, %v6570
    %v7435 = vmul.f32 %v7424, %v7429
    %v7436 = vadd.f32 %v7434, %v7435
    %v7437 = vtanh.pop %v7436
    %v7438 = vmul.f32 %v7433, %v7437
    %v7439 = vpack.c.bf16 %v7438, %v7438
    %v7440 = vld [vmem:[#allocation3] sm:$0xff]
    %v7441 = vld [vmem:[#allocation3 + $0x8] sm:$0xff]
    %v7442 = vld [vmem:[#allocation3 + $0x10] sm:$0xff]
    %v7443 = vld [vmem:[#allocation3 + $0x18] sm:$0xff]
    %v7444 = vld [vmem:[#allocation3 + $0x20] sm:$0xff]
    %v7445 = vld [vmem:[#allocation3 + $0x28] sm:$0xff]
    %v7446 = vld [vmem:[#allocation3 + $0x30] sm:$0xff]
    %v7447 = vld [vmem:[#allocation3 + $0x38] sm:$0xff]
    %v7448 = vld [vmem:[#allocation3 + $0x40] sm:$0xff]
    %v7449 = vld [vmem:[#allocation3 + $0x48] sm:$0xff]
    %v7450 = vld [vmem:[#allocation3 + $0x50] sm:$0xff]
    %v7451 = vld [vmem:[#allocation3 + $0x58] sm:$0xff]
    %v7452 = vld [vmem:[#allocation3 + $0x60] sm:$0xff]
    %v7453 = vld [vmem:[#allocation3 + $0x68] sm:$0xff]
    %v7454 = vld [vmem:[#allocation3 + $0x70] sm:$0xff]
    %v7455 = vld [vmem:[#allocation3 + $0x78] sm:$0xff]
    %v7456 = vld [vmem:[#allocation3 + $0x80] sm:$0xff]
    %v7457 = vld [vmem:[#allocation3 + $0x88] sm:$0xff]
    %v7458 = vld [vmem:[#allocation3 + $0x90] sm:$0xff]
    %v7459 = vld [vmem:[#allocation3 + $0x98] sm:$0xff]
    %v7460 = vld [vmem:[#allocation3 + $0xa0] sm:$0xff]
    %v7461 = vld [vmem:[#allocation3 + $0xa8] sm:$0xff]
    %v7462 = vld [vmem:[#allocation3 + $0xb0] sm:$0xff]
    %v7463 = vld [vmem:[#allocation3 + $0xb8] sm:$0xff]
    %v7464 = vld [vmem:[#allocation3 + $0xc0] sm:$0xff]
    %v7465 = vld [vmem:[#allocation3 + $0xc8] sm:$0xff]
    %v7466 = vld [vmem:[#allocation3 + $0xd0] sm:$0xff]
    %v7467 = vld [vmem:[#allocation3 + $0xd8] sm:$0xff]
    %v7468 = vld [vmem:[#allocation3 + $0xe0] sm:$0xff]
    %v7469 = vld [vmem:[#allocation3 + $0xe8] sm:$0xff]
    %v7470 = vld [vmem:[#allocation3 + $0xf0] sm:$0xff]
    %v7471 = vld [vmem:[#allocation3 + $0xf8] sm:$0xff]
    %v7472 = vld [vmem:[#allocation3 + $0x100] sm:$0xff]
    %v7473 = vld [vmem:[#allocation3 + $0x108] sm:$0xff]
    %v7474 = vld [vmem:[#allocation3 + $0x110] sm:$0xff]
    %v7475 = vld [vmem:[#allocation3 + $0x118] sm:$0xff]
    %v7476 = vld [vmem:[#allocation3 + $0x120] sm:$0xff]
    %v7477 = vld [vmem:[#allocation3 + $0x128] sm:$0xff]
    %v7478 = vld [vmem:[#allocation3 + $0x130] sm:$0xff]
    %v7479 = vld [vmem:[#allocation3 + $0x138] sm:$0xff]
    %v7480 = vld [vmem:[#allocation3 + $0x140] sm:$0xff]
    %v7481 = vld [vmem:[#allocation3 + $0x148] sm:$0xff]
    %v7482 = vld [vmem:[#allocation3 + $0x150] sm:$0xff]
    %v7483 = vld [vmem:[#allocation3 + $0x158] sm:$0xff]
    %v7484 = vld [vmem:[#allocation3 + $0x160] sm:$0xff]
    %v7485 = vld [vmem:[#allocation3 + $0x168] sm:$0xff]
    %v7486 = vld [vmem:[#allocation3 + $0x170] sm:$0xff]
    %v7487 = vld [vmem:[#allocation3 + $0x178] sm:$0xff]
    %v7488 = vld [vmem:[#allocation3 + $0x180] sm:$0xff]
    %v7489 = vld [vmem:[#allocation3 + $0x188] sm:$0xff]
    %v7490 = vld [vmem:[#allocation3 + $0x190] sm:$0xff]
    %v7491 = vld [vmem:[#allocation3 + $0x198] sm:$0xff]
    %v7492 = vld [vmem:[#allocation3 + $0x1a0] sm:$0xff]
    %v7493 = vld [vmem:[#allocation3 + $0x1a8] sm:$0xff]
    %v7494 = vld [vmem:[#allocation3 + $0x1b0] sm:$0xff]
    %v7495 = vld [vmem:[#allocation3 + $0x1b8] sm:$0xff]
    %v7496 = vld [vmem:[#allocation3 + $0x1c0] sm:$0xff]
    %v7497 = vld [vmem:[#allocation3 + $0x1c8] sm:$0xff]
    %v7498 = vld [vmem:[#allocation3 + $0x1d0] sm:$0xff]
    %v7499 = vld [vmem:[#allocation3 + $0x1d8] sm:$0xff]
    %v7500 = vld [vmem:[#allocation3 + $0x1e0] sm:$0xff]
    %v7501 = vld [vmem:[#allocation3 + $0x1e8] sm:$0xff]
    %v7502 = vld [vmem:[#allocation3 + $0x1f0] sm:$0xff]
    %v7503 = vld [vmem:[#allocation3 + $0x1f8] sm:$0xff]
    %7504 = vmatprep.subr.bf16.mxu0 %v7441
    %7505 = vmatpush1.bf16.msra.mxu0 %v7440
    %7506 = vmatprep.subr.bf16.mxu0 %v7445
    %7507 = vmatpush1.bf16.msra.mxu0 %v7444
    %7508 = vmatprep.subr.bf16.mxu0 %v7449
    %7509 = vmatpush1.bf16.msra.mxu0 %v7448
    %7510 = vmatprep.subr.bf16.mxu0 %v7453
    %7511 = vmatpush1.bf16.msra.mxu0 %v7452
    %7512 = vmatprep.subr.bf16.mxu0 %v7457
    %7513 = vmatpush1.bf16.msra.mxu0 %v7456
    %7514 = vmatprep.subr.bf16.mxu0 %v7461
    %7515 = vmatpush1.bf16.msra.mxu0 %v7460
    %7516 = vmatprep.subr.bf16.mxu0 %v7465
    %7517 = vmatpush1.bf16.msra.mxu0 %v7464
    %7518 = vmatprep.subr.bf16.mxu0 %v7469
    %7519 = vmatpush1.bf16.msra.mxu0 %v7468
    %7520 = vmatprep.subr.bf16.mxu0 %v7473
    %7521 = vmatpush1.bf16.msra.mxu0 %v7472
    %7522 = vmatprep.subr.bf16.mxu0 %v7477
    %7523 = vmatpush1.bf16.msra.mxu0 %v7476
    %7524 = vmatprep.subr.bf16.mxu0 %v7481
    %7525 = vmatpush1.bf16.msra.mxu0 %v7480
    %7526 = vmatprep.subr.bf16.mxu0 %v7485
    %7527 = vmatpush1.bf16.msra.mxu0 %v7484
    %7528 = vmatprep.subr.bf16.mxu0 %v7489
    %7529 = vmatpush1.bf16.msra.mxu0 %v7488
    %7530 = vmatprep.subr.bf16.mxu0 %v7493
    %7531 = vmatpush1.bf16.msra.mxu0 %v7492
    %7532 = vmatprep.subr.bf16.mxu0 %v7497
    %7533 = vmatpush1.bf16.msra.mxu0 %v7496
    %7534 = vmatprep.subr.bf16.mxu0 %v7501
    %7535 = vmatpush1.bf16.msra.mxu0 %v7500
    %7536 = vmatprep.mubr.bf16.mxu0 %v6738
    %7537 = vmatmul.mubr.bf16.gmra.mrb[0].mxu0 %v7439
    %v7538 = vpop.f32.mrb[0].mxu0
    %v7539 = vadd.f32 %v195, %v7538
    %v7540 = vpop.f32.mrb[0].mxu0
    %v7541 = vadd.f32 %v199, %v7540
    %v7542 = vpop.f32.mrb[0].mxu0
    %v7543 = vpop.f32.mrb[0].mxu0
    %7544 = vdwg.mxu0
    %7545 = vmatprep.subr.bf16.mxu0 %v7443
    %7546 = vmatpush1.bf16.msra.mxu0 %v7442
    %7547 = vmatprep.subr.bf16.mxu0 %v7447
    %7548 = vmatpush1.bf16.msra.mxu0 %v7446
    %7549 = vmatprep.subr.bf16.mxu0 %v7451
    %7550 = vmatpush1.bf16.msra.mxu0 %v7450
    %7551 = vmatprep.subr.bf16.mxu0 %v7455
    %7552 = vmatpush1.bf16.msra.mxu0 %v7454
    %7553 = vmatprep.subr.bf16.mxu0 %v7459
    %7554 = vmatpush1.bf16.msra.mxu0 %v7458
    %7555 = vmatprep.subr.bf16.mxu0 %v7463
    %7556 = vmatpush1.bf16.msra.mxu0 %v7462
    %7557 = vmatprep.subr.bf16.mxu0 %v7467
    %7558 = vmatpush1.bf16.msra.mxu0 %v7466
    %7559 = vmatprep.subr.bf16.mxu0 %v7471
    %7560 = vmatpush1.bf16.msra.mxu0 %v7470
    %7561 = vmatprep.subr.bf16.mxu0 %v7475
    %7562 = vmatpush1.bf16.msra.mxu0 %v7474
    %7563 = vmatprep.subr.bf16.mxu0 %v7479
    %7564 = vmatpush1.bf16.msra.mxu0 %v7478
    %7565 = vmatprep.subr.bf16.mxu0 %v7483
    %7566 = vmatpush1.bf16.msra.mxu0 %v7482
    %7567 = vmatprep.subr.bf16.mxu0 %v7487
    %7568 = vmatpush1.bf16.msra.mxu0 %v7486
    %7569 = vmatprep.subr.bf16.mxu0 %v7491
    %7570 = vmatpush1.bf16.msra.mxu0 %v7490
    %7571 = vmatprep.subr.bf16.mxu0 %v7495
    %7572 = vmatpush1.bf16.msra.mxu0 %v7494
    %7573 = vmatprep.subr.bf16.mxu0 %v7499
    %7574 = vmatpush1.bf16.msra.mxu0 %v7498
    %7575 = vmatprep.subr.bf16.mxu0 %v7503
    %7576 = vmatpush1.bf16.msra.mxu0 %v7502
    %7577 = vmatprep.mubr.bf16.mxu0 %v6738
    %7578 = vmatmul.mubr.bf16.gmra.mrb[0].mxu0 %v7439
    %v7579 = vpop.f32.mrb[0].mxu0
    %v7580 = vadd.f32 %v203, %v7579
    %v7581 = vpop.f32.mrb[0].mxu0
    %v7582 = vadd.f32 %v207, %v7581
    %v7583 = vpop.f32.mrb[0].mxu0
    %v7584 = vpop.f32.mrb[0].mxu0
    %7585 = vdwg.mxu0
    %v7586 = vmul.f32 %v7539, 0.5
    %v7587 = vtanh.pop %v7586
    %v7588 = vmul.f32 %v7587, 0.5
    %v7589 = vadd.f32 %v7588, 0.5
    %v7590 = vmul.f32 %v7541, 0.5
    %v7591 = vtanh.pop %v7590
    %v7592 = vmul.f32 %v7591, 0.5
    %v7593 = vadd.f32 %v7592, 0.5
    %v7594 = vtanh.pop %v7580
    %v7595 = vmul.f32 %v7582, 0.5
    %v7596 = vtanh.pop %v7595
    %v7597 = vmul.f32 %v7596, 0.5
    %v7598 = vadd.f32 %v7597, 0.5
    %v7599 = vmul.f32 %v7593, %v6735
    %v7600 = vmul.f32 %v7589, %v7594
    %v7601 = vadd.f32 %v7599, %v7600
    %v7602 = vtanh.pop %v7601
    %v7603 = vmul.f32 %v7598, %v7602
    %v7604 = vpack.c.bf16 %v7603, %v7603
    %v7605 = vld [vmem:[#allocation4] sm:$0xff]
    %v7606 = vld [vmem:[#allocation4 + $0x8] sm:$0xff]
    %v7607 = vld [vmem:[#allocation4 + $0x10] sm:$0xff]
    %v7608 = vld [vmem:[#allocation4 + $0x18] sm:$0xff]
    %v7609 = vld [vmem:[#allocation4 + $0x20] sm:$0xff]
    %v7610 = vld [vmem:[#allocation4 + $0x28] sm:$0xff]
    %v7611 = vld [vmem:[#allocation4 + $0x30] sm:$0xff]
    %v7612 = vld [vmem:[#allocation4 + $0x38] sm:$0xff]
    %v7613 = vld [vmem:[#allocation4 + $0x40] sm:$0xff]
    %v7614 = vld [vmem:[#allocation4 + $0x48] sm:$0xff]
    %v7615 = vld [vmem:[#allocation4 + $0x50] sm:$0xff]
    %v7616 = vld [vmem:[#allocation4 + $0x58] sm:$0xff]
    %v7617 = vld [vmem:[#allocation4 + $0x60] sm:$0xff]
    %v7618 = vld [vmem:[#allocation4 + $0x68] sm:$0xff]
    %v7619 = vld [vmem:[#allocation4 + $0x70] sm:$0xff]
    %v7620 = vld [vmem:[#allocation4 + $0x78] sm:$0xff]
    %v7621 = vld [vmem:[#allocation4 + $0x80] sm:$0xff]
    %v7622 = vld [vmem:[#allocation4 + $0x88] sm:$0xff]
    %v7623 = vld [vmem:[#allocation4 + $0x90] sm:$0xff]
    %v7624 = vld [vmem:[#allocation4 + $0x98] sm:$0xff]
    %v7625 = vld [vmem:[#allocation4 + $0xa0] sm:$0xff]
    %v7626 = vld [vmem:[#allocation4 + $0xa8] sm:$0xff]
    %v7627 = vld [vmem:[#allocation4 + $0xb0] sm:$0xff]
    %v7628 = vld [vmem:[#allocation4 + $0xb8] sm:$0xff]
    %v7629 = vld [vmem:[#allocation4 + $0xc0] sm:$0xff]
    %v7630 = vld [vmem:[#allocation4 + $0xc8] sm:$0xff]
    %v7631 = vld [vmem:[#allocation4 + $0xd0] sm:$0xff]
    %v7632 = vld [vmem:[#allocation4 + $0xd8] sm:$0xff]
    %v7633 = vld [vmem:[#allocation4 + $0xe0] sm:$0xff]
    %v7634 = vld [vmem:[#allocation4 + $0xe8] sm:$0xff]
    %v7635 = vld [vmem:[#allocation4 + $0xf0] sm:$0xff]
    %v7636 = vld [vmem:[#allocation4 + $0xf8] sm:$0xff]
    %v7637 = vld [vmem:[#allocation4 + $0x100] sm:$0xff]
    %v7638 = vld [vmem:[#allocation4 + $0x108] sm:$0xff]
    %v7639 = vld [vmem:[#allocation4 + $0x110] sm:$0xff]
    %v7640 = vld [vmem:[#allocation4 + $0x118] sm:$0xff]
    %v7641 = vld [vmem:[#allocation4 + $0x120] sm:$0xff]
    %v7642 = vld [vmem:[#allocation4 + $0x128] sm:$0xff]
    %v7643 = vld [vmem:[#allocation4 + $0x130] sm:$0xff]
    %v7644 = vld [vmem:[#allocation4 + $0x138] sm:$0xff]
    %v7645 = vld [vmem:[#allocation4 + $0x140] sm:$0xff]
    %v7646 = vld [vmem:[#allocation4 + $0x148] sm:$0xff]
    %v7647 = vld [vmem:[#allocation4 + $0x150] sm:$0xff]
    %v7648 = vld [vmem:[#allocation4 + $0x158] sm:$0xff]
    %v7649 = vld [vmem:[#allocation4 + $0x160] sm:$0xff]
    %v7650 = vld [vmem:[#allocation4 + $0x168] sm:$0xff]
    %v7651 = vld [vmem:[#allocation4 + $0x170] sm:$0xff]
    %v7652 = vld [vmem:[#allocation4 + $0x178] sm:$0xff]
    %v7653 = vld [vmem:[#allocation4 + $0x180] sm:$0xff]
    %v7654 = vld [vmem:[#allocation4 + $0x188] sm:$0xff]
    %v7655 = vld [vmem:[#allocation4 + $0x190] sm:$0xff]
    %v7656 = vld [vmem:[#allocation4 + $0x198] sm:$0xff]
    %v7657 = vld [vmem:[#allocation4 + $0x1a0] sm:$0xff]
    %v7658 = vld [vmem:[#allocation4 + $0x1a8] sm:$0xff]
    %v7659 = vld [vmem:[#allocation4 + $0x1b0] sm:$0xff]
    %v7660 = vld [vmem:[#allocation4 + $0x1b8] sm:$0xff]
    %v7661 = vld [vmem:[#allocation4 + $0x1c0] sm:$0xff]
    %v7662 = vld [vmem:[#allocation4 + $0x1c8] sm:$0xff]
    %v7663 = vld [vmem:[#allocation4 + $0x1d0] sm:$0xff]
    %v7664 = vld [vmem:[#allocation4 + $0x1d8] sm:$0xff]
    %v7665 = vld [vmem:[#allocation4 + $0x1e0] sm:$0xff]
    %v7666 = vld [vmem:[#allocation4 + $0x1e8] sm:$0xff]
    %v7667 = vld [vmem:[#allocation4 + $0x1f0] sm:$0xff]
    %v7668 = vld [vmem:[#allocation4 + $0x1f8] sm:$0xff]
    %7669 = vmatprep.subr.bf16.mxu0 %v7606
    %7670 = vmatpush1.bf16.msra.mxu0 %v7605
    %7671 = vmatprep.subr.bf16.mxu0 %v7610
    %7672 = vmatpush1.bf16.msra.mxu0 %v7609
    %7673 = vmatprep.subr.bf16.mxu0 %v7614
    %7674 = vmatpush1.bf16.msra.mxu0 %v7613
    %7675 = vmatprep.subr.bf16.mxu0 %v7618
    %7676 = vmatpush1.bf16.msra.mxu0 %v7617
    %7677 = vmatprep.subr.bf16.mxu0 %v7622
    %7678 = vmatpush1.bf16.msra.mxu0 %v7621
    %7679 = vmatprep.subr.bf16.mxu0 %v7626
    %7680 = vmatpush1.bf16.msra.mxu0 %v7625
    %7681 = vmatprep.subr.bf16.mxu0 %v7630
    %7682 = vmatpush1.bf16.msra.mxu0 %v7629
    %7683 = vmatprep.subr.bf16.mxu0 %v7634
    %7684 = vmatpush1.bf16.msra.mxu0 %v7633
    %7685 = vmatprep.subr.bf16.mxu0 %v7638
    %7686 = vmatpush1.bf16.msra.mxu0 %v7637
    %7687 = vmatprep.subr.bf16.mxu0 %v7642
    %7688 = vmatpush1.bf16.msra.mxu0 %v7641
    %7689 = vmatprep.subr.bf16.mxu0 %v7646
    %7690 = vmatpush1.bf16.msra.mxu0 %v7645
    %7691 = vmatprep.subr.bf16.mxu0 %v7650
    %7692 = vmatpush1.bf16.msra.mxu0 %v7649
    %7693 = vmatprep.subr.bf16.mxu0 %v7654
    %7694 = vmatpush1.bf16.msra.mxu0 %v7653
    %7695 = vmatprep.subr.bf16.mxu0 %v7658
    %7696 = vmatpush1.bf16.msra.mxu0 %v7657
    %7697 = vmatprep.subr.bf16.mxu0 %v7662
    %7698 = vmatpush1.bf16.msra.mxu0 %v7661
    %7699 = vmatprep.subr.bf16.mxu0 %v7666
    %7700 = vmatpush1.bf16.msra.mxu0 %v7665
    %7701 = vmatprep.mubr.bf16.mxu0 %v6903
    %7702 = vmatmul.mubr.bf16.gmra.mrb[0].mxu0 %v7604
    %v7703 = vpop.f32.mrb[0].mxu0
    %v7704 = vadd.f32 %v217, %v7703
    %v7705 = vpop.f32.mrb[0].mxu0
    %v7706 = vadd.f32 %v221, %v7705
    %v7707 = vpop.f32.mrb[0].mxu0
    %v7708 = vpop.f32.mrb[0].mxu0
    %7709 = vdwg.mxu0
    %7710 = vmatprep.subr.bf16.mxu0 %v7608
    %7711 = vmatpush1.bf16.msra.mxu0 %v7607
    %7712 = vmatprep.subr.bf16.mxu0 %v7612
    %7713 = vmatpush1.bf16.msra.mxu0 %v7611
    %7714 = vmatprep.subr.bf16.mxu0 %v7616
    %7715 = vmatpush1.bf16.msra.mxu0 %v7615
    %7716 = vmatprep.subr.bf16.mxu0 %v7620
    %7717 = vmatpush1.bf16.msra.mxu0 %v7619
    %7718 = vmatprep.subr.bf16.mxu0 %v7624
    %7719 = vmatpush1.bf16.msra.mxu0 %v7623
    %7720 = vmatprep.subr.bf16.mxu0 %v7628
    %7721 = vmatpush1.bf16.msra.mxu0 %v7627
    %7722 = vmatprep.subr.bf16.mxu0 %v7632
    %7723 = vmatpush1.bf16.msra.mxu0 %v7631
    %7724 = vmatprep.subr.bf16.mxu0 %v7636
    %7725 = vmatpush1.bf16.msra.mxu0 %v7635
    %7726 = vmatprep.subr.bf16.mxu0 %v7640
    %7727 = vmatpush1.bf16.msra.mxu0 %v7639
    %7728 = vmatprep.subr.bf16.mxu0 %v7644
    %7729 = vmatpush1.bf16.msra.mxu0 %v7643
    %7730 = vmatprep.subr.bf16.mxu0 %v7648
    %7731 = vmatpush1.bf16.msra.mxu0 %v7647
    %7732 = vmatprep.subr.bf16.mxu0 %v7652
    %7733 = vmatpush1.bf16.msra.mxu0 %v7651
    %7734 = vmatprep.subr.bf16.mxu0 %v7656
    %7735 = vmatpush1.bf16.msra.mxu0 %v7655
    %7736 = vmatprep.subr.bf16.mxu0 %v7660
    %7737 = vmatpush1.bf16.msra.mxu0 %v7659
    %7738 = vmatprep.subr.bf16.mxu0 %v7664
    %7739 = vmatpush1.bf16.msra.mxu0 %v7663
    %7740 = vmatprep.subr.bf16.mxu0 %v7668
    %7741 = vmatpush1.bf16.msra.mxu0 %v7667
    %7742 = vmatprep.mubr.bf16.mxu0 %v6903
    %7743 = vmatmul.mubr.bf16.gmra.mrb[0].mxu0 %v7604
    %v7744 = vpop.f32.mrb[0].mxu0
    %v7745 = vadd.f32 %v225, %v7744
    %v7746 = vpop.f32.mrb[0].mxu0
    %v7747 = vadd.f32 %v229, %v7746
    %v7748 = vpop.f32.mrb[0].mxu0
    %v7749 = vpop.f32.mrb[0].mxu0
    %7750 = vdwg.mxu0
    %v7751 = vmul.f32 %v7704, 0.5
    %v7752 = vtanh.pop %v7751
    %v7753 = vmul.f32 %v7752, 0.5
    %v7754 = vadd.f32 %v7753, 0.5
    %v7755 = vmul.f32 %v7706, 0.5
    %v7756 = vtanh.pop %v7755
    %v7757 = vmul.f32 %v7756, 0.5
    %v7758 = vadd.f32 %v7757, 0.5
    %v7759 = vtanh.pop %v7745
    %v7760 = vmul.f32 %v7747, 0.5
    %v7761 = vtanh.pop %v7760
    %v7762 = vmul.f32 %v7761, 0.5
    %v7763 = vadd.f32 %v7762, 0.5
    %v7764 = vmul.f32 %v7758, %v6900
    %v7765 = vmul.f32 %v7754, %v7759
    %v7766 = vadd.f32 %v7764, %v7765
    %v7767 = vtanh.pop %v7766
    %v7768 = vmul.f32 %v7763, %v7767
    %v7769 = vpack.c.bf16 %v7768, %v7768
    %v7770 = vld [vmem:[#allocation5] sm:$0xff]
    %v7771 = vld [vmem:[#allocation5 + $0x8] sm:$0xff]
    %v7772 = vld [vmem:[#allocation5 + $0x10] sm:$0xff]
    %v7773 = vld [vmem:[#allocation5 + $0x18] sm:$0xff]
    %v7774 = vld [vmem:[#allocation5 + $0x20] sm:$0xff]
    %v7775 = vld [vmem:[#allocation5 + $0x28] sm:$0xff]
    %v7776 = vld [vmem:[#allocation5 + $0x30] sm:$0xff]
    %v7777 = vld [vmem:[#allocation5 + $0x38] sm:$0xff]
    %7778 = vmatprep.subr.bf16.mxu0 0
    %7779 = vmatpush1.bf16.msra.mxu0 %v7770
    %7780 = vmatprep.subr.bf16.mxu0 0
    %7781 = vmatpush1.bf16.msra.mxu0 %v7771
    %7782 = vmatprep.subr.bf16.mxu0 0
    %7783 = vmatpush1.bf16.msra.mxu0 %v7772
    %7784 = vmatprep.subr.bf16.mxu0 0
    %7785 = vmatpush1.bf16.msra.mxu0 %v7773
    %7786 = vmatprep.subr.bf16.mxu0 0
    %7787 = vmatpush1.bf16.msra.mxu0 %v7774
    %7788 = vmatprep.subr.bf16.mxu0 0
    %7789 = vmatpush1.bf16.msra.mxu0 %v7775
    %7790 = vmatprep.subr.bf16.mxu0 0
    %7791 = vmatpush1.bf16.msra.mxu0 %v7776
    %7792 = vmatprep.subr.bf16.mxu0 0
    %7793 = vmatpush1.bf16.msra.mxu0 %v7777
    %7794 = vmatprep.subr.bf16.mxu0 0
    %7795 = vmatpush1.bf16.msra.mxu0 0
    %7796 = vmatprep.subr.bf16.mxu0 0
    %7797 = vmatpush1.bf16.msra.mxu0 0
    %7798 = vmatprep.subr.bf16.mxu0 0
    %7799 = vmatpush1.bf16.msra.mxu0 0
    %7800 = vmatprep.subr.bf16.mxu0 0
    %7801 = vmatpush1.bf16.msra.mxu0 0
    %7802 = vmatprep.subr.bf16.mxu0 0
    %7803 = vmatpush1.bf16.msra.mxu0 0
    %7804 = vmatprep.subr.bf16.mxu0 0
    %7805 = vmatpush1.bf16.msra.mxu0 0
    %7806 = vmatprep.subr.bf16.mxu0 0
    %7807 = vmatpush1.bf16.msra.mxu0 0
    %7808 = vmatprep.subr.bf16.mxu0 0
    %7809 = vmatpush1.bf16.msra.mxu0 0
    %7810 = vmatprep.mubr.bf16.mxu0 0
    %7811 = vmatmul.mubr.bf16.gmra.mrb[0].mxu0 %v7769
    %v7812 = vpop.f32.mrb[0].mxu0
    %v7813 = vadd.f32 %v239, %v7812
    %v7814 = vpop.f32.mrb[0].mxu0
    %v7815 = vpop.f32.mrb[0].mxu0
    %v7816 = vpop.f32.mrb[0].mxu0
    %7817 = vdwg.mxu0
    %s7818 = scalar_lea.vmem %s9, 72
    %7819 = vst [vmem:[%s7818] sm:$0xff] %v7813
    // Predicated region
    $region64: #{lstm_latent_2_forward.1} parent=1 // pred_check
      _
    $region65: #{lstm_latent_2_forward.1} parent=1 // pred_check_branch
      %7821 = sbr.rel (0) target = $region67
    $region66: #{lstm_latent_2_forward.1} parent=1 // pred_region
      _
    $region67: #{lstm_latent_2_forward.1} parent=1 // pred_fallthru
      _
    // Predicated region
    $region68: #{lstm_latent_2_forward.1} parent=1 // pred_check
      _
    $region69: #{lstm_latent_2_forward.1} parent=1 // pred_check_branch
      %7823 = sbr.rel (0) target = $region71
    $region70: #{lstm_latent_2_forward.1} parent=1 // pred_region
      _
    $region71: #{lstm_latent_2_forward.1} parent=1 // pred_fallthru
      _
    %7824 = vsyncpa [#allocation8], 1
  %7825 = vsyncmov [#allocation6]
  %s7826 = vpop.sfrf %7825
  %p7827 = scmp.eq.s32.totalorder %s7826, 0
  %p7828 = pneg %p7827
  %7830 = shalt.err (%p7828)
  %s7831 = scalar_lea.sflag [#allocation6], 1
  %7832 = vsyncmov %s7831
  %s7833 = vpop.sfrf %7832
  %p7834 = scmp.eq.s32.totalorder %s7833, 0
  %p7835 = pneg %p7834
  %7837 = shalt.err (%p7835)
  %s7838 = scalar_lea.sflag [#allocation6], 2
  %7839 = vsyncmov %s7838
  %s7840 = vpop.sfrf %7839
  %p7841 = scmp.eq.s32.totalorder %s7840, 0
  %p7842 = pneg %p7841
  %7844 = shalt.err (%p7842)

</llo_original>
